<compile_context>
chip_gen: v6e
topology: v6e:2x2x1
jax: 0.10.0
libtpu: 0.0.40
codegen_flags: <defaults>
</compile_context>

<pallas_src>
import math

import jax
import jax.numpy as jnp
from jax.experimental import pallas as pl
from jax.experimental.pallas import tpu as pltpu

# ----------------------------- model dims ------------------------------------
B = 2              # batch
T = 16             # input sequence length (= feature size of the spectral layers)
D = 32             # d_model              (= attention length after the permute)
H = 2              # heads per spectral encoder layer (split over T)
DK = T // H        # per-head dim
F_HID = 64         # FFN hidden dim
N_LEVELS = 2       # N in DoubleSPEncoder
L = 2 * N_LEVELS   # total EncoderLayer instances (layer_i and layer_t_i per level)
EPS = 1e-6         # LayerNorm eps (matches the PyTorch module)
INV_SQRT_DK = 1.0 / math.sqrt(DK)

# ---- packed-weight lane offsets inside w_slab (all 128-aligned -> no lane shifts)
W1_OFF = 0                      # W1  block-diag : (2T, 2*F_HID) = (32, 128)
WQKV_OFF = 128                  # QKV block-diag : (2T, 6T)      = (32,  96)
WO_OFF = 256                    # Wo  block-diag : (2T, 2T)      = (32,  32)
W_LANES = 384                   # padded to a multiple of 128 lanes

# ---- rows of the small-vector slab (biases / LayerNorm params), one vector per row
VROWS_PER_LEVEL = 12
R_FA = N_LEVELS * VROWS_PER_LEVEL       # final-norm scale row
R_FB = R_FA + 1                         # final-norm shift row
VEC_ROWS = 32                           # padded to a multiple of 8 sublanes


# ------------------------------- kernel ---------------------------------------
def double_sp_encoder_kernel(x_ref, bias_ref, w_ref, w2_ref, vec_ref, o_ref):
    xf = x_ref[...]                     # (B*D, T)  spectral-view activations (f32)
    bias = bias_ref[...]                # (B, D, D) additive mask bias (0 / -1e9)

    def vrow(r, n):                     # one packed parameter vector, broadcastable
        return vec_ref[r:r + 1, 0:n]    # (1, n)

    def recip(d):
        # EUP approximate reciprocal + 2 Newton steps (cheap VPU ops) -> f32-exact
        # on every generation while keeping the long divide off the VPU path.
        r = pl.reciprocal(d, approx=True)
        r = r * (2.0 - d * r)
        r = r * (2.0 - d * r)
        return r

    def norm_stats(v):
        # Two independent lane reductions (overlap in the XLU), then the unbiased
        # variance with the torch-LayerNorm (std + eps) denominator.
        n = v.shape[-1]
        s1 = jnp.sum(v, axis=-1, keepdims=True)
        s2 = jnp.sum(v * v, axis=-1, keepdims=True)
        mean = s1 * (1.0 / n)
        var = jnp.maximum(s2 - s1 * mean, 0.0) * (1.0 / (n - 1))
        inv = recip(jnp.sqrt(var) + EPS)
        return mean, inv

    def layer_norm(v, a, b):
        mean, inv = norm_stats(v)
        return a * ((v - mean) * inv) + b

    def softmax(s):
        m = jnp.max(s, axis=-1, keepdims=True)
        e = jnp.exp(s - m)
        return e * recip(jnp.sum(e, axis=-1, keepdims=True))

    # TODO(synk): dropout inside the injected encoder sublayers is identity (eval mode).
    for lvl in range(N_LEVELS):                 # static, fully unrolled
        r = lvl * VROWS_PER_LEVEL
        wl = w_ref[lvl]                         # (2T, W_LANES) packed weight slab

        # ---- sublayer 0: x + self_attn(norm(x)), both branches fused ------------
        # Both branches see the SAME input, so the norm statistics are shared and
        # only the per-branch affine differs.
        mean, inv = norm_stats(xf)
        cn = (xf - mean) * inv                                              # (B*D, T)
        n_cat = jnp.concatenate(
            [vrow(r + 4, T) * cn + vrow(r + 5, T),                          # branch a
             vrow(r + 6, T) * cn + vrow(r + 7, T)], axis=-1)                # branch b
        qkv = jnp.dot(n_cat, wl[:, WQKV_OFF:WQKV_OFF + 6 * T],
                      preferred_element_type=jnp.float32) + vrow(r + 0, 6 * T)
        heads = []
        for br in range(2):                     # branch: layer_i / layer_t_i
            off = br * 3 * T
            q = qkv[:, off + 0 * T:off + 1 * T].reshape(B, D, T)
            k = qkv[:, off + 1 * T:off + 2 * T].reshape(B, D, T)
            v = qkv[:, off + 2 * T:off + 3 * T].reshape(B, D, T)
            for h in range(H):                  # heads stay in vregs (no scratch)
                sl = slice(h * DK, (h + 1) * DK)
                s = jnp.einsum('bqd,bkd->bqk', q[..., sl], k[..., sl],
                               preferred_element_type=jnp.float32) * INV_SQRT_DK
                p = softmax(s + bias)           # precomputed additive mask bias
                heads.append(jnp.einsum('bqk,bkd->bqd', p, v[..., sl],
                                        preferred_element_type=jnp.float32))
        ctx = jnp.concatenate(heads, axis=-1).reshape(B * D, 2 * T)   # [ctx_a | ctx_b]
        attn = jnp.dot(ctx, wl[:, WO_OFF:WO_OFF + 2 * T],
                       preferred_element_type=jnp.float32) + vrow(r + 1, 2 * T)
        xa = xf + attn[:, 0:T]
        xb = xf + attn[:, T:2 * T]

        # ---- sublayer 1: x + ffn(norm(x)); residual streams now differ ---------
        n_cat = jnp.concatenate(
            [layer_norm(xa, vrow(r + 8, T), vrow(r + 9, T)),
             layer_norm(xb, vrow(r + 10, T), vrow(r + 11, T))], axis=-1)    # (B*D, 2T)
        h1 = jnp.maximum(
            jnp.dot(n_cat, wl[:, W1_OFF:W1_OFF + 2 * F_HID],
                    preferred_element_type=jnp.float32) + vrow(r + 2, 2 * F_HID),
            0.0)                                                            # (B*D, 2F)
        ff = jnp.dot(h1, w2_ref[lvl],
                     preferred_element_type=jnp.float32) + vrow(r + 3, 2 * T)
        xa = xa + ff[:, 0:T]
        xb = xb + ff[:, T:2 * T]

        xf = xa + xb                            # level output = layer(x) + layer_t(x)

    # The only in-kernel relayout: leave the spectral view and apply LayerNorm_D.
    xs = xf.reshape(B, D, T)
    xo = jnp.concatenate([xs[b].T for b in range(B)], axis=0)               # (B*T, D)
    out = layer_norm(xo, vrow(R_FA, D), vrow(R_FB, D))
    o_ref[...] = out.reshape(B, T, D).astype(o_ref.dtype)


# --------------------------- one-time param packing ----------------------------
def pack_params(params):
    """Block-diagonal fused weights + a single small-vector slab (run once)."""
    (wq, bq, wk, bk, wv, bv, wo, bo,
     w1, b1, w2, b2, ln_a, ln_b, fa, fb) = params

    w_slab = jnp.zeros((N_LEVELS, 2 * T, W_LANES), jnp.float32)
    w2_slab = jnp.zeros((N_LEVELS, 2 * F_HID, 2 * T), jnp.float32)
    vec = jnp.zeros((VEC_ROWS, 128), jnp.float32)

    for lvl in range(N_LEVELS):
        la, lb = 2 * lvl, 2 * lvl + 1
        wqkv_a = jnp.concatenate([wq[la], wk[la], wv[la]], axis=-1)   # (T, 3T)
        wqkv_b = jnp.concatenate([wq[lb], wk[lb], wv[lb]], axis=-1)
        # block-diagonal weights: rows 0:T -> branch a input, rows T:2T -> branch b
        w_slab = w_slab.at[lvl, 0:T, W1_OFF:W1_OFF + F_HID].set(w1[la])
        w_slab = w_slab.at[lvl, T:2 * T, W1_OFF + F_HID:W1_OFF + 2 * F_HID].set(w1[lb])
        w_slab = w_slab.at[lvl, 0:T, WQKV_OFF:WQKV_OFF + 3 * T].set(wqkv_a)
        w_slab = w_slab.at[lvl, T:2 * T, WQKV_OFF + 3 * T:WQKV_OFF + 6 * T].set(wqkv_b)
        w_slab = w_slab.at[lvl, 0:T, WO_OFF:WO_OFF + T].set(wo[la])
        w_slab = w_slab.at[lvl, T:2 * T, WO_OFF + T:WO_OFF + 2 * T].set(wo[lb])
        w2_slab = w2_slab.at[lvl, 0:F_HID, 0:T].set(w2[la])
        w2_slab = w2_slab.at[lvl, F_HID:2 * F_HID, T:2 * T].set(w2[lb])
        # small vectors: one logical vector per 128-lane row (offset 0 -> no shifts)
        r = lvl * VROWS_PER_LEVEL
        vec = vec.at[r + 0, 0:6 * T].set(
            jnp.concatenate([bq[la], bk[la], bv[la], bq[lb], bk[lb], bv[lb]]))
        vec = vec.at[r + 1, 0:2 * T].set(jnp.concatenate([bo[la], bo[lb]]))
        vec = vec.at[r + 2, 0:2 * F_HID].set(jnp.concatenate([b1[la], b1[lb]]))
        vec = vec.at[r + 3, 0:2 * T].set(jnp.concatenate([b2[la], b2[lb]]))
        vec = vec.at[r + 4, 0:T].set(ln_a[la, 0])
        vec = vec.at[r + 5, 0:T].set(ln_b[la, 0])
        vec = vec.at[r + 6, 0:T].set(ln_a[lb, 0])
        vec = vec.at[r + 7, 0:T].set(ln_b[lb, 0])
        vec = vec.at[r + 8, 0:T].set(ln_a[la, 1])
        vec = vec.at[r + 9, 0:T].set(ln_b[la, 1])
        vec = vec.at[r + 10, 0:T].set(ln_a[lb, 1])
        vec = vec.at[r + 11, 0:T].set(ln_b[lb, 1])
    vec = vec.at[R_FA, 0:D].set(fa)
    vec = vec.at[R_FB, 0:D].set(fb)
    return w_slab, w2_slab, vec


def pack_mask(mask):
    """keep-mask (1=keep, 0=mask) -> additive bias, computed once.
    Not bit-identical to masked_fill(-1e9) for masked positions, but the softmax
    difference is ~0 and exactly 0 for the all-ones test mask."""
    return (mask.astype(jnp.float32) - 1.0) * 1e9                   # (B, D, D)


# ------------------------------- wrapper ---------------------------------------
@jax.jit
def double_sp_encoder(x, bias, w_slab, w2_slab, vec_slab):
    """x: (B, T, D); bias: (B, D, D) additive mask; packed params from pack_params."""
    # Enter the spectral view on the XLA side (free on a 4 KB HBM tensor); the
    # kernel keeps it for all levels and only transposes once at the exit.
    xf = jnp.transpose(x, (0, 2, 1)).reshape(B * D, T)
    return pl.pallas_call(
        double_sp_encoder_kernel,
        out_shape=jax.ShapeDtypeStruct((B, T, D), jnp.float32),
        # whole-array VMEM residency for every operand (total < 150 KB)
        in_specs=[pl.BlockSpec(memory_space=pltpu.MemorySpace.VMEM)] * 5,
        out_specs=pl.BlockSpec(memory_space=pltpu.MemorySpace.VMEM),
    )(xf, bias, w_slab, w2_slab, vec_slab)


# --------------------------- pure-JAX reference --------------------------------
def reference(x, mask, params):
    (wq, bq, wk, bk, wv, bv, wo, bo,
     w1, b1, w2, b2, ln_a, ln_b, fa, fb) = params

    def layer_norm(v, a, b):
        mean = jnp.mean(v, axis=-1, keepdims=True)
        var = jnp.sum((v - mean) ** 2, axis=-1, keepdims=True) / (v.shape[-1] - 1)
        return a * (v - mean) / (jnp.sqrt(var) + EPS) + b

    def mha(xn, l):
        q = xn @ wq[l] + bq[l]
        k = xn @ wk[l] + bk[l]
        v = xn @ wv[l] + bv[l]
        outs = []
        for h in range(H):
            qh, kh, vh = (t[..., h * DK:(h + 1) * DK] for t in (q, k, v))
            s = jnp.einsum('bqd,bkd->bqk', qh, kh) / math.sqrt(DK)
            s = jnp.where(mask == 0.0, -1e9, s)
            p = jax.nn.softmax(s, axis=-1)
            outs.append(jnp.einsum('bqk,bkd->bqd', p, vh))
        return jnp.concatenate(outs, axis=-1) @ wo[l] + bo[l]

    def enc_layer(xp, l):
        xn = layer_norm(xp, ln_a[l, 0], ln_b[l, 0])
        xp = xp + mha(xn, l)
        xn = layer_norm(xp, ln_a[l, 1], ln_b[l, 1])
        return xp + (jnp.maximum(xn @ w1[l] + b1[l], 0.0) @ w2[l] + b2[l])

    for lvl in range(N_LEVELS):
        xp = jnp.transpose(x, (0, 2, 1))
        x = jnp.transpose(enc_layer(xp, 2 * lvl) + enc_layer(xp, 2 * lvl + 1),
                          (0, 2, 1))
    return layer_norm(x, fa, fb)


# --------------------------------- main -----------------------------------------
if __name__ == "__main__":
    key = jax.random.PRNGKey(0)
    ks = jax.random.split(key, 20)

    x = jax.random.normal(ks[0], (B, T, D), jnp.float32)
    mask = jnp.ones((B, D, D), jnp.float32)      # all-visible spectral mask

    sc = 0.1
    wq = sc * jax.random.normal(ks[1], (L, T, T), jnp.float32)
    wk = sc * jax.random.normal(ks[2], (L, T, T), jnp.float32)
    wv = sc * jax.random.normal(ks[3], (L, T, T), jnp.float32)
    wo = sc * jax.random.normal(ks[4], (L, T, T), jnp.float32)
    bq = sc * jax.random.normal(ks[5], (L, T), jnp.float32)
    bk = sc * jax.random.normal(ks[6], (L, T), jnp.float32)
    bv = sc * jax.random.normal(ks[7], (L, T), jnp.float32)
    bo = sc * jax.random.normal(ks[8], (L, T), jnp.float32)
    w1 = sc * jax.random.normal(ks[9], (L, T, F_HID), jnp.float32)
    b1 = sc * jax.random.normal(ks[10], (L, F_HID), jnp.float32)
    w2 = sc * jax.random.normal(ks[11], (L, F_HID, T), jnp.float32)
    b2 = sc * jax.random.normal(ks[12], (L, T), jnp.float32)
    ln_a = 1.0 + sc * jax.random.normal(ks[13], (L, 2, T), jnp.float32)
    ln_b = sc * jax.random.normal(ks[14], (L, 2, T), jnp.float32)
    fa = 1.0 + sc * jax.random.normal(ks[15], (D,), jnp.float32)
    fb = sc * jax.random.normal(ks[16], (D,), jnp.float32)

    params = (wq, bq, wk, bk, wv, bv, wo, bo,
              w1, b1, w2, b2, ln_a, ln_b, fa, fb)

    # One-time packing (hoisted out of the per-call path).
    bias = pack_mask(mask)
    w_slab, w2_slab, vec_slab = pack_params(params)

    out = jax.block_until_ready(double_sp_encoder(x, bias, w_slab, w2_slab, vec_slab))
    ref = jax.block_until_ready(reference(x, mask, params))

    assert out.shape == (B, T, D)
    max_err = float(jnp.max(jnp.abs(out - ref)))
    assert jnp.allclose(out, ref, rtol=1e-4, atol=1e-4), max_err
    print("KERNEL_OK")
</pallas_src>

<mosaic_0001>
module attributes {stable_mosaic.version = 11 : i64} {
  func.func @double_sp_encoder_kernel(%arg0: memref<64x16xf32, #tpu.memory_space<vmem>>, %arg1: memref<2x32x32xf32, #tpu.memory_space<vmem>>, %arg2: memref<2x32x384xf32, #tpu.memory_space<vmem>>, %arg3: memref<2x128x32xf32, #tpu.memory_space<vmem>>, %arg4: memref<32x128xf32, #tpu.memory_space<vmem>>, %arg5: memref<2x16x32xf32, #tpu.memory_space<vmem>>) attributes {dimension_semantics = [], scalar_prefetch = 0 : i64, scratch_operands = 0 : i64, tpu.core_type = #tpu.core_type<tc>} {
    %c0 = arith.constant 0 : index
    %c0_0 = arith.constant 0 : index
    %0 = vector.load %arg0[%c0, %c0_0] : memref<64x16xf32, #tpu.memory_space<vmem>>, vector<64x16xf32>
    %c0_1 = arith.constant 0 : index
    %c0_2 = arith.constant 0 : index
    %c0_3 = arith.constant 0 : index
    %1 = vector.load %arg1[%c0_1, %c0_2, %c0_3] : memref<2x32x32xf32, #tpu.memory_space<vmem>>, vector<2x32x32xf32>
    %c0_4 = arith.constant 0 : index
    %c0_5 = arith.constant 0 : index
    %c0_6 = arith.constant 0 : index
    %2 = vector.load %arg2[%c0_4, %c0_5, %c0_6] : memref<2x32x384xf32, #tpu.memory_space<vmem>>, vector<1x32x384xf32>
    %3 = vector.shape_cast %2 : vector<1x32x384xf32> to vector<32x384xf32>
    %cst = arith.constant dense<0.000000e+00> : vector<64xf32>
    %4 = vector.multi_reduction <add>, %0, %cst [1] : vector<64x16xf32> to vector<64xf32>
    %5 = vector.shape_cast %4 : vector<64xf32> to vector<64x1xf32>
    %6 = arith.mulf %0, %0 : vector<64x16xf32>
    %cst_7 = arith.constant dense<0.000000e+00> : vector<64xf32>
    %7 = vector.multi_reduction <add>, %6, %cst_7 [1] : vector<64x16xf32> to vector<64xf32>
    %8 = vector.shape_cast %7 : vector<64xf32> to vector<64x1xf32>
    %cst_8 = arith.constant 6.250000e-02 : f32
    %9 = vector.broadcast %cst_8 : f32 to vector<64x1xf32>
    %10 = arith.mulf %5, %9 : vector<64x1xf32>
    %11 = arith.mulf %5, %10 : vector<64x1xf32>
    %12 = arith.subf %8, %11 : vector<64x1xf32>
    %cst_9 = arith.constant 0.000000e+00 : f32
    %13 = vector.broadcast %cst_9 : f32 to vector<64x1xf32>
    %14 = arith.maximumf %12, %13 : vector<64x1xf32>
    %cst_10 = arith.constant 0.0666666701 : f32
    %15 = vector.broadcast %cst_10 : f32 to vector<64x1xf32>
    %16 = arith.mulf %14, %15 : vector<64x1xf32>
    %17 = math.sqrt %16 : vector<64x1xf32>
    %cst_11 = arith.constant 9.99999997E-7 : f32
    %18 = vector.broadcast %cst_11 : f32 to vector<64x1xf32>
    %19 = arith.addf %17, %18 : vector<64x1xf32>
    %20 = tpu.reciprocal %19 {approx = true} : vector<64x1xf32> -> vector<64x1xf32>
    %21 = arith.mulf %19, %20 : vector<64x1xf32>
    %cst_12 = arith.constant 2.000000e+00 : f32
    %22 = vector.broadcast %cst_12 : f32 to vector<64x1xf32>
    %23 = arith.subf %22, %21 : vector<64x1xf32>
    %24 = arith.mulf %20, %23 : vector<64x1xf32>
    %25 = arith.mulf %19, %24 : vector<64x1xf32>
    %cst_13 = arith.constant 2.000000e+00 : f32
    %26 = vector.broadcast %cst_13 : f32 to vector<64x1xf32>
    %27 = arith.subf %26, %25 : vector<64x1xf32>
    %28 = arith.mulf %24, %27 : vector<64x1xf32>
    %29 = vector.broadcast %10 : vector<64x1xf32> to vector<64x16xf32>
    %30 = arith.subf %0, %29 : vector<64x16xf32>
    %31 = vector.broadcast %28 : vector<64x1xf32> to vector<64x16xf32>
    %32 = arith.mulf %30, %31 : vector<64x16xf32>
    %c4 = arith.constant 4 : index
    %c0_14 = arith.constant 0 : index
    %33 = vector.load %arg4[%c4, %c0_14] : memref<32x128xf32, #tpu.memory_space<vmem>>, vector<1x16xf32>
    %34 = vector.broadcast %33 : vector<1x16xf32> to vector<64x16xf32>
    %35 = arith.mulf %34, %32 : vector<64x16xf32>
    %c5 = arith.constant 5 : index
    %c0_15 = arith.constant 0 : index
    %36 = vector.load %arg4[%c5, %c0_15] : memref<32x128xf32, #tpu.memory_space<vmem>>, vector<1x16xf32>
    %37 = vector.broadcast %36 : vector<1x16xf32> to vector<64x16xf32>
    %38 = arith.addf %35, %37 : vector<64x16xf32>
    %c6 = arith.constant 6 : index
    %c0_16 = arith.constant 0 : index
    %39 = vector.load %arg4[%c6, %c0_16] : memref<32x128xf32, #tpu.memory_space<vmem>>, vector<1x16xf32>
    %40 = vector.broadcast %39 : vector<1x16xf32> to vector<64x16xf32>
    %41 = arith.mulf %40, %32 : vector<64x16xf32>
    %c7 = arith.constant 7 : index
    %c0_17 = arith.constant 0 : index
    %42 = vector.load %arg4[%c7, %c0_17] : memref<32x128xf32, #tpu.memory_space<vmem>>, vector<1x16xf32>
    %43 = vector.broadcast %42 : vector<1x16xf32> to vector<64x16xf32>
    %44 = arith.addf %41, %43 : vector<64x16xf32>
    %45 = tpu.concatenate %38, %44 in 1 : vector<64x16xf32>, vector<64x16xf32> -> vector<64x32xf32>
    %46 = vector.extract_strided_slice %3 {offsets = [0, 128], sizes = [32, 96], strides = [1, 1]} : vector<32x384xf32> to vector<32x96xf32>
    %cst_18 = arith.constant dense<0.000000e+00> : vector<64x96xf32>
    %47 = tpu.matmul %45, %46, %cst_18 {dimension_numbers = #tpu.dot_dimension_numbers<[1], [0], [0], [1], [0, 0, 1, 1], [], []>} : vector<64x32xf32>, vector<32x96xf32>, vector<64x96xf32> -> vector<64x96xf32>
    %c0_19 = arith.constant 0 : index
    %c0_20 = arith.constant 0 : index
    %48 = vector.load %arg4[%c0_19, %c0_20] : memref<32x128xf32, #tpu.memory_space<vmem>>, vector<1x96xf32>
    %49 = vector.broadcast %48 : vector<1x96xf32> to vector<64x96xf32>
    %50 = arith.addf %47, %49 : vector<64x96xf32>
    %51 = vector.extract_strided_slice %50 {offsets = [0, 0], sizes = [64, 16], strides = [1, 1]} : vector<64x96xf32> to vector<64x16xf32>
    %52 = vector.shape_cast %51 : vector<64x16xf32> to vector<2x32x16xf32>
    %53 = vector.extract_strided_slice %50 {offsets = [0, 16], sizes = [64, 16], strides = [1, 1]} : vector<64x96xf32> to vector<64x16xf32>
    %54 = vector.shape_cast %53 : vector<64x16xf32> to vector<2x32x16xf32>
    %55 = vector.extract_strided_slice %50 {offsets = [0, 32], sizes = [64, 16], strides = [1, 1]} : vector<64x96xf32> to vector<64x16xf32>
    %56 = vector.shape_cast %55 : vector<64x16xf32> to vector<2x32x16xf32>
    %57 = vector.extract_strided_slice %52 {offsets = [0, 0, 0], sizes = [2, 32, 8], strides = [1, 1, 1]} : vector<2x32x16xf32> to vector<2x32x8xf32>
    %58 = vector.extract_strided_slice %54 {offsets = [0, 0, 0], sizes = [2, 32, 8], strides = [1, 1, 1]} : vector<2x32x16xf32> to vector<2x32x8xf32>
    "tpu.trace_start"() <{level = 10 : i32, message = "bqd,bkd->bqk"}> : () -> ()
    %cst_21 = arith.constant dense<0.000000e+00> : vector<2x32x32xf32>
    %59 = tpu.matmul %57, %58, %cst_21 {dimension_numbers = #tpu.dot_dimension_numbers<[2], [2], [1], [1], [0, 0, 0, 1, 1, 1], [0], [0]>} : vector<2x32x8xf32>, vector<2x32x8xf32>, vector<2x32x32xf32> -> vector<2x32x32xf32>
    "tpu.trace_stop"() : () -> ()
    %cst_22 = arith.constant 0.353553385 : f32
    %60 = vector.broadcast %cst_22 : f32 to vector<2x32x32xf32>
    %61 = arith.mulf %59, %60 : vector<2x32x32xf32>
    %62 = arith.addf %61, %1 : vector<2x32x32xf32>
    %cst_23 = arith.constant dense<0xFF800000> : vector<2x32xf32>
    %63 = vector.multi_reduction <maximumf>, %62, %cst_23 [2] : vector<2x32x32xf32> to vector<2x32xf32>
    %64 = vector.shape_cast %63 : vector<2x32xf32> to vector<2x32x1xf32>
    %65 = vector.broadcast %64 : vector<2x32x1xf32> to vector<2x32x32xf32>
    %66 = arith.subf %62, %65 : vector<2x32x32xf32>
    %67 = math.exp %66 : vector<2x32x32xf32>
    %cst_24 = arith.constant dense<0.000000e+00> : vector<2x32xf32>
    %68 = vector.multi_reduction <add>, %67, %cst_24 [2] : vector<2x32x32xf32> to vector<2x32xf32>
    %69 = vector.shape_cast %68 : vector<2x32xf32> to vector<2x32x1xf32>
    %70 = tpu.reciprocal %69 {approx = true} : vector<2x32x1xf32> -> vector<2x32x1xf32>
    %71 = arith.mulf %69, %70 : vector<2x32x1xf32>
    %cst_25 = arith.constant 2.000000e+00 : f32
    %72 = vector.broadcast %cst_25 : f32 to vector<2x32x1xf32>
    %73 = arith.subf %72, %71 : vector<2x32x1xf32>
    %74 = arith.mulf %70, %73 : vector<2x32x1xf32>
    %75 = arith.mulf %69, %74 : vector<2x32x1xf32>
    %cst_26 = arith.constant 2.000000e+00 : f32
    %76 = vector.broadcast %cst_26 : f32 to vector<2x32x1xf32>
    %77 = arith.subf %76, %75 : vector<2x32x1xf32>
    %78 = arith.mulf %74, %77 : vector<2x32x1xf32>
    %79 = vector.broadcast %78 : vector<2x32x1xf32> to vector<2x32x32xf32>
    %80 = arith.mulf %67, %79 : vector<2x32x32xf32>
    %81 = vector.extract_strided_slice %56 {offsets = [0, 0, 0], sizes = [2, 32, 8], strides = [1, 1, 1]} : vector<2x32x16xf32> to vector<2x32x8xf32>
    "tpu.trace_start"() <{level = 10 : i32, message = "bqk,bkd->bqd"}> : () -> ()
    %cst_27 = arith.constant dense<0.000000e+00> : vector<2x32x8xf32>
    %82 = tpu.matmul %80, %81, %cst_27 {dimension_numbers = #tpu.dot_dimension_numbers<[2], [1], [1], [2], [0, 0, 0, 1, 1, 2], [0], [0]>} : vector<2x32x32xf32>, vector<2x32x8xf32>, vector<2x32x8xf32> -> vector<2x32x8xf32>
    "tpu.trace_stop"() : () -> ()
    %83 = vector.extract_strided_slice %52 {offsets = [0, 0, 8], sizes = [2, 32, 8], strides = [1, 1, 1]} : vector<2x32x16xf32> to vector<2x32x8xf32>
    %84 = vector.extract_strided_slice %54 {offsets = [0, 0, 8], sizes = [2, 32, 8], strides = [1, 1, 1]} : vector<2x32x16xf32> to vector<2x32x8xf32>
    "tpu.trace_start"() <{level = 10 : i32, message = "bqd,bkd->bqk"}> : () -> ()
    %cst_28 = arith.constant dense<0.000000e+00> : vector<2x32x32xf32>
    %85 = tpu.matmul %83, %84, %cst_28 {dimension_numbers = #tpu.dot_dimension_numbers<[2], [2], [1], [1], [0, 0, 0, 1, 1, 1], [0], [0]>} : vector<2x32x8xf32>, vector<2x32x8xf32>, vector<2x32x32xf32> -> vector<2x32x32xf32>
    "tpu.trace_stop"() : () -> ()
    %cst_29 = arith.constant 0.353553385 : f32
    %86 = vector.broadcast %cst_29 : f32 to vector<2x32x32xf32>
    %87 = arith.mulf %85, %86 : vector<2x32x32xf32>
    %88 = arith.addf %87, %1 : vector<2x32x32xf32>
    %cst_30 = arith.constant dense<0xFF800000> : vector<2x32xf32>
    %89 = vector.multi_reduction <maximumf>, %88, %cst_30 [2] : vector<2x32x32xf32> to vector<2x32xf32>
    %90 = vector.shape_cast %89 : vector<2x32xf32> to vector<2x32x1xf32>
    %91 = vector.broadcast %90 : vector<2x32x1xf32> to vector<2x32x32xf32>
    %92 = arith.subf %88, %91 : vector<2x32x32xf32>
    %93 = math.exp %92 : vector<2x32x32xf32>
    %cst_31 = arith.constant dense<0.000000e+00> : vector<2x32xf32>
    %94 = vector.multi_reduction <add>, %93, %cst_31 [2] : vector<2x32x32xf32> to vector<2x32xf32>
    %95 = vector.shape_cast %94 : vector<2x32xf32> to vector<2x32x1xf32>
    %96 = tpu.reciprocal %95 {approx = true} : vector<2x32x1xf32> -> vector<2x32x1xf32>
    %97 = arith.mulf %95, %96 : vector<2x32x1xf32>
    %cst_32 = arith.constant 2.000000e+00 : f32
    %98 = vector.broadcast %cst_32 : f32 to vector<2x32x1xf32>
    %99 = arith.subf %98, %97 : vector<2x32x1xf32>
    %100 = arith.mulf %96, %99 : vector<2x32x1xf32>
    %101 = arith.mulf %95, %100 : vector<2x32x1xf32>
    %cst_33 = arith.constant 2.000000e+00 : f32
    %102 = vector.broadcast %cst_33 : f32 to vector<2x32x1xf32>
    %103 = arith.subf %102, %101 : vector<2x32x1xf32>
    %104 = arith.mulf %100, %103 : vector<2x32x1xf32>
    %105 = vector.broadcast %104 : vector<2x32x1xf32> to vector<2x32x32xf32>
    %106 = arith.mulf %93, %105 : vector<2x32x32xf32>
    %107 = vector.extract_strided_slice %56 {offsets = [0, 0, 8], sizes = [2, 32, 8], strides = [1, 1, 1]} : vector<2x32x16xf32> to vector<2x32x8xf32>
    "tpu.trace_start"() <{level = 10 : i32, message = "bqk,bkd->bqd"}> : () -> ()
    %cst_34 = arith.constant dense<0.000000e+00> : vector<2x32x8xf32>
    %108 = tpu.matmul %106, %107, %cst_34 {dimension_numbers = #tpu.dot_dimension_numbers<[2], [1], [1], [2], [0, 0, 0, 1, 1, 2], [0], [0]>} : vector<2x32x32xf32>, vector<2x32x8xf32>, vector<2x32x8xf32> -> vector<2x32x8xf32>
    "tpu.trace_stop"() : () -> ()
    %109 = vector.extract_strided_slice %50 {offsets = [0, 48], sizes = [64, 16], strides = [1, 1]} : vector<64x96xf32> to vector<64x16xf32>
    %110 = vector.shape_cast %109 : vector<64x16xf32> to vector<2x32x16xf32>
    %111 = vector.extract_strided_slice %50 {offsets = [0, 64], sizes = [64, 16], strides = [1, 1]} : vector<64x96xf32> to vector<64x16xf32>
    %112 = vector.shape_cast %111 : vector<64x16xf32> to vector<2x32x16xf32>
    %113 = vector.extract_strided_slice %50 {offsets = [0, 80], sizes = [64, 16], strides = [1, 1]} : vector<64x96xf32> to vector<64x16xf32>
    %114 = vector.shape_cast %113 : vector<64x16xf32> to vector<2x32x16xf32>
    %115 = vector.extract_strided_slice %110 {offsets = [0, 0, 0], sizes = [2, 32, 8], strides = [1, 1, 1]} : vector<2x32x16xf32> to vector<2x32x8xf32>
    %116 = vector.extract_strided_slice %112 {offsets = [0, 0, 0], sizes = [2, 32, 8], strides = [1, 1, 1]} : vector<2x32x16xf32> to vector<2x32x8xf32>
    "tpu.trace_start"() <{level = 10 : i32, message = "bqd,bkd->bqk"}> : () -> ()
    %cst_35 = arith.constant dense<0.000000e+00> : vector<2x32x32xf32>
    %117 = tpu.matmul %115, %116, %cst_35 {dimension_numbers = #tpu.dot_dimension_numbers<[2], [2], [1], [1], [0, 0, 0, 1, 1, 1], [0], [0]>} : vector<2x32x8xf32>, vector<2x32x8xf32>, vector<2x32x32xf32> -> vector<2x32x32xf32>
    "tpu.trace_stop"() : () -> ()
    %cst_36 = arith.constant 0.353553385 : f32
    %118 = vector.broadcast %cst_36 : f32 to vector<2x32x32xf32>
    %119 = arith.mulf %117, %118 : vector<2x32x32xf32>
    %120 = arith.addf %119, %1 : vector<2x32x32xf32>
    %cst_37 = arith.constant dense<0xFF800000> : vector<2x32xf32>
    %121 = vector.multi_reduction <maximumf>, %120, %cst_37 [2] : vector<2x32x32xf32> to vector<2x32xf32>
    %122 = vector.shape_cast %121 : vector<2x32xf32> to vector<2x32x1xf32>
    %123 = vector.broadcast %122 : vector<2x32x1xf32> to vector<2x32x32xf32>
    %124 = arith.subf %120, %123 : vector<2x32x32xf32>
    %125 = math.exp %124 : vector<2x32x32xf32>
    %cst_38 = arith.constant dense<0.000000e+00> : vector<2x32xf32>
    %126 = vector.multi_reduction <add>, %125, %cst_38 [2] : vector<2x32x32xf32> to vector<2x32xf32>
    %127 = vector.shape_cast %126 : vector<2x32xf32> to vector<2x32x1xf32>
    %128 = tpu.reciprocal %127 {approx = true} : vector<2x32x1xf32> -> vector<2x32x1xf32>
    %129 = arith.mulf %127, %128 : vector<2x32x1xf32>
    %cst_39 = arith.constant 2.000000e+00 : f32
    %130 = vector.broadcast %cst_39 : f32 to vector<2x32x1xf32>
    %131 = arith.subf %130, %129 : vector<2x32x1xf32>
    %132 = arith.mulf %128, %131 : vector<2x32x1xf32>
    %133 = arith.mulf %127, %132 : vector<2x32x1xf32>
    %cst_40 = arith.constant 2.000000e+00 : f32
    %134 = vector.broadcast %cst_40 : f32 to vector<2x32x1xf32>
    %135 = arith.subf %134, %133 : vector<2x32x1xf32>
    %136 = arith.mulf %132, %135 : vector<2x32x1xf32>
    %137 = vector.broadcast %136 : vector<2x32x1xf32> to vector<2x32x32xf32>
    %138 = arith.mulf %125, %137 : vector<2x32x32xf32>
    %139 = vector.extract_strided_slice %114 {offsets = [0, 0, 0], sizes = [2, 32, 8], strides = [1, 1, 1]} : vector<2x32x16xf32> to vector<2x32x8xf32>
    "tpu.trace_start"() <{level = 10 : i32, message = "bqk,bkd->bqd"}> : () -> ()
    %cst_41 = arith.constant dense<0.000000e+00> : vector<2x32x8xf32>
    %140 = tpu.matmul %138, %139, %cst_41 {dimension_numbers = #tpu.dot_dimension_numbers<[2], [1], [1], [2], [0, 0, 0, 1, 1, 2], [0], [0]>} : vector<2x32x32xf32>, vector<2x32x8xf32>, vector<2x32x8xf32> -> vector<2x32x8xf32>
    "tpu.trace_stop"() : () -> ()
    %141 = vector.extract_strided_slice %110 {offsets = [0, 0, 8], sizes = [2, 32, 8], strides = [1, 1, 1]} : vector<2x32x16xf32> to vector<2x32x8xf32>
    %142 = vector.extract_strided_slice %112 {offsets = [0, 0, 8], sizes = [2, 32, 8], strides = [1, 1, 1]} : vector<2x32x16xf32> to vector<2x32x8xf32>
    "tpu.trace_start"() <{level = 10 : i32, message = "bqd,bkd->bqk"}> : () -> ()
    %cst_42 = arith.constant dense<0.000000e+00> : vector<2x32x32xf32>
    %143 = tpu.matmul %141, %142, %cst_42 {dimension_numbers = #tpu.dot_dimension_numbers<[2], [2], [1], [1], [0, 0, 0, 1, 1, 1], [0], [0]>} : vector<2x32x8xf32>, vector<2x32x8xf32>, vector<2x32x32xf32> -> vector<2x32x32xf32>
    "tpu.trace_stop"() : () -> ()
    %cst_43 = arith.constant 0.353553385 : f32
    %144 = vector.broadcast %cst_43 : f32 to vector<2x32x32xf32>
    %145 = arith.mulf %143, %144 : vector<2x32x32xf32>
    %146 = arith.addf %145, %1 : vector<2x32x32xf32>
    %cst_44 = arith.constant dense<0xFF800000> : vector<2x32xf32>
    %147 = vector.multi_reduction <maximumf>, %146, %cst_44 [2] : vector<2x32x32xf32> to vector<2x32xf32>
    %148 = vector.shape_cast %147 : vector<2x32xf32> to vector<2x32x1xf32>
    %149 = vector.broadcast %148 : vector<2x32x1xf32> to vector<2x32x32xf32>
    %150 = arith.subf %146, %149 : vector<2x32x32xf32>
    %151 = math.exp %150 : vector<2x32x32xf32>
    %cst_45 = arith.constant dense<0.000000e+00> : vector<2x32xf32>
    %152 = vector.multi_reduction <add>, %151, %cst_45 [2] : vector<2x32x32xf32> to vector<2x32xf32>
    %153 = vector.shape_cast %152 : vector<2x32xf32> to vector<2x32x1xf32>
    %154 = tpu.reciprocal %153 {approx = true} : vector<2x32x1xf32> -> vector<2x32x1xf32>
    %155 = arith.mulf %153, %154 : vector<2x32x1xf32>
    %cst_46 = arith.constant 2.000000e+00 : f32
    %156 = vector.broadcast %cst_46 : f32 to vector<2x32x1xf32>
    %157 = arith.subf %156, %155 : vector<2x32x1xf32>
    %158 = arith.mulf %154, %157 : vector<2x32x1xf32>
    %159 = arith.mulf %153, %158 : vector<2x32x1xf32>
    %cst_47 = arith.constant 2.000000e+00 : f32
    %160 = vector.broadcast %cst_47 : f32 to vector<2x32x1xf32>
    %161 = arith.subf %160, %159 : vector<2x32x1xf32>
    %162 = arith.mulf %158, %161 : vector<2x32x1xf32>
    %163 = vector.broadcast %162 : vector<2x32x1xf32> to vector<2x32x32xf32>
    %164 = arith.mulf %151, %163 : vector<2x32x32xf32>
    %165 = vector.extract_strided_slice %114 {offsets = [0, 0, 8], sizes = [2, 32, 8], strides = [1, 1, 1]} : vector<2x32x16xf32> to vector<2x32x8xf32>
    "tpu.trace_start"() <{level = 10 : i32, message = "bqk,bkd->bqd"}> : () -> ()
    %cst_48 = arith.constant dense<0.000000e+00> : vector<2x32x8xf32>
    %166 = tpu.matmul %164, %165, %cst_48 {dimension_numbers = #tpu.dot_dimension_numbers<[2], [1], [1], [2], [0, 0, 0, 1, 1, 2], [0], [0]>} : vector<2x32x32xf32>, vector<2x32x8xf32>, vector<2x32x8xf32> -> vector<2x32x8xf32>
    "tpu.trace_stop"() : () -> ()
    %167 = tpu.concatenate %82, %108, %140, %166 in 2 : vector<2x32x8xf32>, vector<2x32x8xf32>, vector<2x32x8xf32>, vector<2x32x8xf32> -> vector<2x32x32xf32>
    %168 = vector.shape_cast %167 : vector<2x32x32xf32> to vector<64x32xf32>
    %169 = vector.extract_strided_slice %3 {offsets = [0, 256], sizes = [32, 32], strides = [1, 1]} : vector<32x384xf32> to vector<32x32xf32>
    %cst_49 = arith.constant dense<0.000000e+00> : vector<64x32xf32>
    %170 = tpu.matmul %168, %169, %cst_49 {dimension_numbers = #tpu.dot_dimension_numbers<[1], [0], [0], [1], [0, 0, 1, 1], [], []>} : vector<64x32xf32>, vector<32x32xf32>, vector<64x32xf32> -> vector<64x32xf32>
    %c1 = arith.constant 1 : index
    %c0_50 = arith.constant 0 : index
    %171 = vector.load %arg4[%c1, %c0_50] : memref<32x128xf32, #tpu.memory_space<vmem>>, vector<1x32xf32>
    %172 = vector.broadcast %171 : vector<1x32xf32> to vector<64x32xf32>
    %173 = arith.addf %170, %172 : vector<64x32xf32>
    %174 = vector.extract_strided_slice %173 {offsets = [0, 0], sizes = [64, 16], strides = [1, 1]} : vector<64x32xf32> to vector<64x16xf32>
    %175 = arith.addf %0, %174 : vector<64x16xf32>
    %176 = vector.extract_strided_slice %173 {offsets = [0, 16], sizes = [64, 16], strides = [1, 1]} : vector<64x32xf32> to vector<64x16xf32>
    %177 = arith.addf %0, %176 : vector<64x16xf32>
    %c8 = arith.constant 8 : index
    %c0_51 = arith.constant 0 : index
    %178 = vector.load %arg4[%c8, %c0_51] : memref<32x128xf32, #tpu.memory_space<vmem>>, vector<1x16xf32>
    %c9 = arith.constant 9 : index
    %c0_52 = arith.constant 0 : index
    %179 = vector.load %arg4[%c9, %c0_52] : memref<32x128xf32, #tpu.memory_space<vmem>>, vector<1x16xf32>
    %cst_53 = arith.constant dense<0.000000e+00> : vector<64xf32>
    %180 = vector.multi_reduction <add>, %175, %cst_53 [1] : vector<64x16xf32> to vector<64xf32>
    %181 = vector.shape_cast %180 : vector<64xf32> to vector<64x1xf32>
    %182 = arith.mulf %175, %175 : vector<64x16xf32>
    %cst_54 = arith.constant dense<0.000000e+00> : vector<64xf32>
    %183 = vector.multi_reduction <add>, %182, %cst_54 [1] : vector<64x16xf32> to vector<64xf32>
    %184 = vector.shape_cast %183 : vector<64xf32> to vector<64x1xf32>
    %cst_55 = arith.constant 6.250000e-02 : f32
    %185 = vector.broadcast %cst_55 : f32 to vector<64x1xf32>
    %186 = arith.mulf %181, %185 : vector<64x1xf32>
    %187 = arith.mulf %181, %186 : vector<64x1xf32>
    %188 = arith.subf %184, %187 : vector<64x1xf32>
    %cst_56 = arith.constant 0.000000e+00 : f32
    %189 = vector.broadcast %cst_56 : f32 to vector<64x1xf32>
    %190 = arith.maximumf %188, %189 : vector<64x1xf32>
    %cst_57 = arith.constant 0.0666666701 : f32
    %191 = vector.broadcast %cst_57 : f32 to vector<64x1xf32>
    %192 = arith.mulf %190, %191 : vector<64x1xf32>
    %193 = math.sqrt %192 : vector<64x1xf32>
    %cst_58 = arith.constant 9.99999997E-7 : f32
    %194 = vector.broadcast %cst_58 : f32 to vector<64x1xf32>
    %195 = arith.addf %193, %194 : vector<64x1xf32>
    %196 = tpu.reciprocal %195 {approx = true} : vector<64x1xf32> -> vector<64x1xf32>
    %197 = arith.mulf %195, %196 : vector<64x1xf32>
    %cst_59 = arith.constant 2.000000e+00 : f32
    %198 = vector.broadcast %cst_59 : f32 to vector<64x1xf32>
    %199 = arith.subf %198, %197 : vector<64x1xf32>
    %200 = arith.mulf %196, %199 : vector<64x1xf32>
    %201 = arith.mulf %195, %200 : vector<64x1xf32>
    %cst_60 = arith.constant 2.000000e+00 : f32
    %202 = vector.broadcast %cst_60 : f32 to vector<64x1xf32>
    %203 = arith.subf %202, %201 : vector<64x1xf32>
    %204 = arith.mulf %200, %203 : vector<64x1xf32>
    %205 = vector.broadcast %186 : vector<64x1xf32> to vector<64x16xf32>
    %206 = arith.subf %175, %205 : vector<64x16xf32>
    %207 = vector.broadcast %204 : vector<64x1xf32> to vector<64x16xf32>
    %208 = arith.mulf %206, %207 : vector<64x16xf32>
    %209 = vector.broadcast %178 : vector<1x16xf32> to vector<64x16xf32>
    %210 = arith.mulf %209, %208 : vector<64x16xf32>
    %211 = vector.broadcast %179 : vector<1x16xf32> to vector<64x16xf32>
    %212 = arith.addf %210, %211 : vector<64x16xf32>
    %c10 = arith.constant 10 : index
    %c0_61 = arith.constant 0 : index
    %213 = vector.load %arg4[%c10, %c0_61] : memref<32x128xf32, #tpu.memory_space<vmem>>, vector<1x16xf32>
    %c11 = arith.constant 11 : index
    %c0_62 = arith.constant 0 : index
    %214 = vector.load %arg4[%c11, %c0_62] : memref<32x128xf32, #tpu.memory_space<vmem>>, vector<1x16xf32>
    %cst_63 = arith.constant dense<0.000000e+00> : vector<64xf32>
    %215 = vector.multi_reduction <add>, %177, %cst_63 [1] : vector<64x16xf32> to vector<64xf32>
    %216 = vector.shape_cast %215 : vector<64xf32> to vector<64x1xf32>
    %217 = arith.mulf %177, %177 : vector<64x16xf32>
    %cst_64 = arith.constant dense<0.000000e+00> : vector<64xf32>
    %218 = vector.multi_reduction <add>, %217, %cst_64 [1] : vector<64x16xf32> to vector<64xf32>
    %219 = vector.shape_cast %218 : vector<64xf32> to vector<64x1xf32>
    %cst_65 = arith.constant 6.250000e-02 : f32
    %220 = vector.broadcast %cst_65 : f32 to vector<64x1xf32>
    %221 = arith.mulf %216, %220 : vector<64x1xf32>
    %222 = arith.mulf %216, %221 : vector<64x1xf32>
    %223 = arith.subf %219, %222 : vector<64x1xf32>
    %cst_66 = arith.constant 0.000000e+00 : f32
    %224 = vector.broadcast %cst_66 : f32 to vector<64x1xf32>
    %225 = arith.maximumf %223, %224 : vector<64x1xf32>
    %cst_67 = arith.constant 0.0666666701 : f32
    %226 = vector.broadcast %cst_67 : f32 to vector<64x1xf32>
    %227 = arith.mulf %225, %226 : vector<64x1xf32>
    %228 = math.sqrt %227 : vector<64x1xf32>
    %cst_68 = arith.constant 9.99999997E-7 : f32
    %229 = vector.broadcast %cst_68 : f32 to vector<64x1xf32>
    %230 = arith.addf %228, %229 : vector<64x1xf32>
    %231 = tpu.reciprocal %230 {approx = true} : vector<64x1xf32> -> vector<64x1xf32>
    %232 = arith.mulf %230, %231 : vector<64x1xf32>
    %cst_69 = arith.constant 2.000000e+00 : f32
    %233 = vector.broadcast %cst_69 : f32 to vector<64x1xf32>
    %234 = arith.subf %233, %232 : vector<64x1xf32>
    %235 = arith.mulf %231, %234 : vector<64x1xf32>
    %236 = arith.mulf %230, %235 : vector<64x1xf32>
    %cst_70 = arith.constant 2.000000e+00 : f32
    %237 = vector.broadcast %cst_70 : f32 to vector<64x1xf32>
    %238 = arith.subf %237, %236 : vector<64x1xf32>
    %239 = arith.mulf %235, %238 : vector<64x1xf32>
    %240 = vector.broadcast %221 : vector<64x1xf32> to vector<64x16xf32>
    %241 = arith.subf %177, %240 : vector<64x16xf32>
    %242 = vector.broadcast %239 : vector<64x1xf32> to vector<64x16xf32>
    %243 = arith.mulf %241, %242 : vector<64x16xf32>
    %244 = vector.broadcast %213 : vector<1x16xf32> to vector<64x16xf32>
    %245 = arith.mulf %244, %243 : vector<64x16xf32>
    %246 = vector.broadcast %214 : vector<1x16xf32> to vector<64x16xf32>
    %247 = arith.addf %245, %246 : vector<64x16xf32>
    %248 = tpu.concatenate %212, %247 in 1 : vector<64x16xf32>, vector<64x16xf32> -> vector<64x32xf32>
    %249 = vector.extract_strided_slice %3 {offsets = [0, 0], sizes = [32, 128], strides = [1, 1]} : vector<32x384xf32> to vector<32x128xf32>
    %cst_71 = arith.constant dense<0.000000e+00> : vector<64x128xf32>
    %250 = tpu.matmul %248, %249, %cst_71 {dimension_numbers = #tpu.dot_dimension_numbers<[1], [0], [0], [1], [0, 0, 1, 1], [], []>} : vector<64x32xf32>, vector<32x128xf32>, vector<64x128xf32> -> vector<64x128xf32>
    %c2 = arith.constant 2 : index
    %c0_72 = arith.constant 0 : index
    %251 = vector.load %arg4[%c2, %c0_72] : memref<32x128xf32, #tpu.memory_space<vmem>>, vector<1x128xf32>
    %252 = vector.broadcast %251 : vector<1x128xf32> to vector<64x128xf32>
    %253 = arith.addf %250, %252 : vector<64x128xf32>
    %cst_73 = arith.constant 0.000000e+00 : f32
    %254 = vector.broadcast %cst_73 : f32 to vector<64x128xf32>
    %255 = arith.maximumf %253, %254 : vector<64x128xf32>
    %c0_74 = arith.constant 0 : index
    %c0_75 = arith.constant 0 : index
    %c0_76 = arith.constant 0 : index
    %256 = vector.load %arg3[%c0_74, %c0_75, %c0_76] : memref<2x128x32xf32, #tpu.memory_space<vmem>>, vector<1x128x32xf32>
    %257 = vector.shape_cast %256 : vector<1x128x32xf32> to vector<128x32xf32>
    %cst_77 = arith.constant dense<0.000000e+00> : vector<64x32xf32>
    %258 = tpu.matmul %255, %257, %cst_77 {dimension_numbers = #tpu.dot_dimension_numbers<[1], [0], [0], [1], [0, 0, 1, 1], [], []>} : vector<64x128xf32>, vector<128x32xf32>, vector<64x32xf32> -> vector<64x32xf32>
    %c3 = arith.constant 3 : index
    %c0_78 = arith.constant 0 : index
    %259 = vector.load %arg4[%c3, %c0_78] : memref<32x128xf32, #tpu.memory_space<vmem>>, vector<1x32xf32>
    %260 = vector.broadcast %259 : vector<1x32xf32> to vector<64x32xf32>
    %261 = arith.addf %258, %260 : vector<64x32xf32>
    %262 = vector.extract_strided_slice %261 {offsets = [0, 0], sizes = [64, 16], strides = [1, 1]} : vector<64x32xf32> to vector<64x16xf32>
    %263 = arith.addf %175, %262 : vector<64x16xf32>
    %264 = vector.extract_strided_slice %261 {offsets = [0, 16], sizes = [64, 16], strides = [1, 1]} : vector<64x32xf32> to vector<64x16xf32>
    %265 = arith.addf %177, %264 : vector<64x16xf32>
    %266 = arith.addf %263, %265 : vector<64x16xf32>
    %c1_79 = arith.constant 1 : index
    %c0_80 = arith.constant 0 : index
    %c0_81 = arith.constant 0 : index
    %267 = vector.load %arg2[%c1_79, %c0_80, %c0_81] : memref<2x32x384xf32, #tpu.memory_space<vmem>>, vector<1x32x384xf32>
    %268 = vector.shape_cast %267 : vector<1x32x384xf32> to vector<32x384xf32>
    %cst_82 = arith.constant dense<0.000000e+00> : vector<64xf32>
    %269 = vector.multi_reduction <add>, %266, %cst_82 [1] : vector<64x16xf32> to vector<64xf32>
    %270 = vector.shape_cast %269 : vector<64xf32> to vector<64x1xf32>
    %271 = arith.mulf %266, %266 : vector<64x16xf32>
    %cst_83 = arith.constant dense<0.000000e+00> : vector<64xf32>
    %272 = vector.multi_reduction <add>, %271, %cst_83 [1] : vector<64x16xf32> to vector<64xf32>
    %273 = vector.shape_cast %272 : vector<64xf32> to vector<64x1xf32>
    %cst_84 = arith.constant 6.250000e-02 : f32
    %274 = vector.broadcast %cst_84 : f32 to vector<64x1xf32>
    %275 = arith.mulf %270, %274 : vector<64x1xf32>
    %276 = arith.mulf %270, %275 : vector<64x1xf32>
    %277 = arith.subf %273, %276 : vector<64x1xf32>
    %cst_85 = arith.constant 0.000000e+00 : f32
    %278 = vector.broadcast %cst_85 : f32 to vector<64x1xf32>
    %279 = arith.maximumf %277, %278 : vector<64x1xf32>
    %cst_86 = arith.constant 0.0666666701 : f32
    %280 = vector.broadcast %cst_86 : f32 to vector<64x1xf32>
    %281 = arith.mulf %279, %280 : vector<64x1xf32>
    %282 = math.sqrt %281 : vector<64x1xf32>
    %cst_87 = arith.constant 9.99999997E-7 : f32
    %283 = vector.broadcast %cst_87 : f32 to vector<64x1xf32>
    %284 = arith.addf %282, %283 : vector<64x1xf32>
    %285 = tpu.reciprocal %284 {approx = true} : vector<64x1xf32> -> vector<64x1xf32>
    %286 = arith.mulf %284, %285 : vector<64x1xf32>
    %cst_88 = arith.constant 2.000000e+00 : f32
    %287 = vector.broadcast %cst_88 : f32 to vector<64x1xf32>
    %288 = arith.subf %287, %286 : vector<64x1xf32>
    %289 = arith.mulf %285, %288 : vector<64x1xf32>
    %290 = arith.mulf %284, %289 : vector<64x1xf32>
    %cst_89 = arith.constant 2.000000e+00 : f32
    %291 = vector.broadcast %cst_89 : f32 to vector<64x1xf32>
    %292 = arith.subf %291, %290 : vector<64x1xf32>
    %293 = arith.mulf %289, %292 : vector<64x1xf32>
    %294 = vector.broadcast %275 : vector<64x1xf32> to vector<64x16xf32>
    %295 = arith.subf %266, %294 : vector<64x16xf32>
    %296 = vector.broadcast %293 : vector<64x1xf32> to vector<64x16xf32>
    %297 = arith.mulf %295, %296 : vector<64x16xf32>
    %c16 = arith.constant 16 : index
    %c0_90 = arith.constant 0 : index
    %298 = vector.load %arg4[%c16, %c0_90] : memref<32x128xf32, #tpu.memory_space<vmem>>, vector<1x16xf32>
    %299 = vector.broadcast %298 : vector<1x16xf32> to vector<64x16xf32>
    %300 = arith.mulf %299, %297 : vector<64x16xf32>
    %c17 = arith.constant 17 : index
    %c0_91 = arith.constant 0 : index
    %301 = vector.load %arg4[%c17, %c0_91] : memref<32x128xf32, #tpu.memory_space<vmem>>, vector<1x16xf32>
    %302 = vector.broadcast %301 : vector<1x16xf32> to vector<64x16xf32>
    %303 = arith.addf %300, %302 : vector<64x16xf32>
    %c18 = arith.constant 18 : index
    %c0_92 = arith.constant 0 : index
    %304 = vector.load %arg4[%c18, %c0_92] : memref<32x128xf32, #tpu.memory_space<vmem>>, vector<1x16xf32>
    %305 = vector.broadcast %304 : vector<1x16xf32> to vector<64x16xf32>
    %306 = arith.mulf %305, %297 : vector<64x16xf32>
    %c19 = arith.constant 19 : index
    %c0_93 = arith.constant 0 : index
    %307 = vector.load %arg4[%c19, %c0_93] : memref<32x128xf32, #tpu.memory_space<vmem>>, vector<1x16xf32>
    %308 = vector.broadcast %307 : vector<1x16xf32> to vector<64x16xf32>
    %309 = arith.addf %306, %308 : vector<64x16xf32>
    %310 = tpu.concatenate %303, %309 in 1 : vector<64x16xf32>, vector<64x16xf32> -> vector<64x32xf32>
    %311 = vector.extract_strided_slice %268 {offsets = [0, 128], sizes = [32, 96], strides = [1, 1]} : vector<32x384xf32> to vector<32x96xf32>
    %cst_94 = arith.constant dense<0.000000e+00> : vector<64x96xf32>
    %312 = tpu.matmul %310, %311, %cst_94 {dimension_numbers = #tpu.dot_dimension_numbers<[1], [0], [0], [1], [0, 0, 1, 1], [], []>} : vector<64x32xf32>, vector<32x96xf32>, vector<64x96xf32> -> vector<64x96xf32>
    %c12 = arith.constant 12 : index
    %c0_95 = arith.constant 0 : index
    %313 = vector.load %arg4[%c12, %c0_95] : memref<32x128xf32, #tpu.memory_space<vmem>>, vector<1x96xf32>
    %314 = vector.broadcast %313 : vector<1x96xf32> to vector<64x96xf32>
    %315 = arith.addf %312, %314 : vector<64x96xf32>
    %316 = vector.extract_strided_slice %315 {offsets = [0, 0], sizes = [64, 16], strides = [1, 1]} : vector<64x96xf32> to vector<64x16xf32>
    %317 = vector.shape_cast %316 : vector<64x16xf32> to vector<2x32x16xf32>
    %318 = vector.extract_strided_slice %315 {offsets = [0, 16], sizes = [64, 16], strides = [1, 1]} : vector<64x96xf32> to vector<64x16xf32>
    %319 = vector.shape_cast %318 : vector<64x16xf32> to vector<2x32x16xf32>
    %320 = vector.extract_strided_slice %315 {offsets = [0, 32], sizes = [64, 16], strides = [1, 1]} : vector<64x96xf32> to vector<64x16xf32>
    %321 = vector.shape_cast %320 : vector<64x16xf32> to vector<2x32x16xf32>
    %322 = vector.extract_strided_slice %317 {offsets = [0, 0, 0], sizes = [2, 32, 8], strides = [1, 1, 1]} : vector<2x32x16xf32> to vector<2x32x8xf32>
    %323 = vector.extract_strided_slice %319 {offsets = [0, 0, 0], sizes = [2, 32, 8], strides = [1, 1, 1]} : vector<2x32x16xf32> to vector<2x32x8xf32>
    "tpu.trace_start"() <{level = 10 : i32, message = "bqd,bkd->bqk"}> : () -> ()
    %cst_96 = arith.constant dense<0.000000e+00> : vector<2x32x32xf32>
    %324 = tpu.matmul %322, %323, %cst_96 {dimension_numbers = #tpu.dot_dimension_numbers<[2], [2], [1], [1], [0, 0, 0, 1, 1, 1], [0], [0]>} : vector<2x32x8xf32>, vector<2x32x8xf32>, vector<2x32x32xf32> -> vector<2x32x32xf32>
    "tpu.trace_stop"() : () -> ()
    %cst_97 = arith.constant 0.353553385 : f32
    %325 = vector.broadcast %cst_97 : f32 to vector<2x32x32xf32>
    %326 = arith.mulf %324, %325 : vector<2x32x32xf32>
    %327 = arith.addf %326, %1 : vector<2x32x32xf32>
    %cst_98 = arith.constant dense<0xFF800000> : vector<2x32xf32>
    %328 = vector.multi_reduction <maximumf>, %327, %cst_98 [2] : vector<2x32x32xf32> to vector<2x32xf32>
    %329 = vector.shape_cast %328 : vector<2x32xf32> to vector<2x32x1xf32>
    %330 = vector.broadcast %329 : vector<2x32x1xf32> to vector<2x32x32xf32>
    %331 = arith.subf %327, %330 : vector<2x32x32xf32>
    %332 = math.exp %331 : vector<2x32x32xf32>
    %cst_99 = arith.constant dense<0.000000e+00> : vector<2x32xf32>
    %333 = vector.multi_reduction <add>, %332, %cst_99 [2] : vector<2x32x32xf32> to vector<2x32xf32>
    %334 = vector.shape_cast %333 : vector<2x32xf32> to vector<2x32x1xf32>
    %335 = tpu.reciprocal %334 {approx = true} : vector<2x32x1xf32> -> vector<2x32x1xf32>
    %336 = arith.mulf %334, %335 : vector<2x32x1xf32>
    %cst_100 = arith.constant 2.000000e+00 : f32
    %337 = vector.broadcast %cst_100 : f32 to vector<2x32x1xf32>
    %338 = arith.subf %337, %336 : vector<2x32x1xf32>
    %339 = arith.mulf %335, %338 : vector<2x32x1xf32>
    %340 = arith.mulf %334, %339 : vector<2x32x1xf32>
    %cst_101 = arith.constant 2.000000e+00 : f32
    %341 = vector.broadcast %cst_101 : f32 to vector<2x32x1xf32>
    %342 = arith.subf %341, %340 : vector<2x32x1xf32>
    %343 = arith.mulf %339, %342 : vector<2x32x1xf32>
    %344 = vector.broadcast %343 : vector<2x32x1xf32> to vector<2x32x32xf32>
    %345 = arith.mulf %332, %344 : vector<2x32x32xf32>
    %346 = vector.extract_strided_slice %321 {offsets = [0, 0, 0], sizes = [2, 32, 8], strides = [1, 1, 1]} : vector<2x32x16xf32> to vector<2x32x8xf32>
    "tpu.trace_start"() <{level = 10 : i32, message = "bqk,bkd->bqd"}> : () -> ()
    %cst_102 = arith.constant dense<0.000000e+00> : vector<2x32x8xf32>
    %347 = tpu.matmul %345, %346, %cst_102 {dimension_numbers = #tpu.dot_dimension_numbers<[2], [1], [1], [2], [0, 0, 0, 1, 1, 2], [0], [0]>} : vector<2x32x32xf32>, vector<2x32x8xf32>, vector<2x32x8xf32> -> vector<2x32x8xf32>
    "tpu.trace_stop"() : () -> ()
    %348 = vector.extract_strided_slice %317 {offsets = [0, 0, 8], sizes = [2, 32, 8], strides = [1, 1, 1]} : vector<2x32x16xf32> to vector<2x32x8xf32>
    %349 = vector.extract_strided_slice %319 {offsets = [0, 0, 8], sizes = [2, 32, 8], strides = [1, 1, 1]} : vector<2x32x16xf32> to vector<2x32x8xf32>
    "tpu.trace_start"() <{level = 10 : i32, message = "bqd,bkd->bqk"}> : () -> ()
    %cst_103 = arith.constant dense<0.000000e+00> : vector<2x32x32xf32>
    %350 = tpu.matmul %348, %349, %cst_103 {dimension_numbers = #tpu.dot_dimension_numbers<[2], [2], [1], [1], [0, 0, 0, 1, 1, 1], [0], [0]>} : vector<2x32x8xf32>, vector<2x32x8xf32>, vector<2x32x32xf32> -> vector<2x32x32xf32>
    "tpu.trace_stop"() : () -> ()
    %cst_104 = arith.constant 0.353553385 : f32
    %351 = vector.broadcast %cst_104 : f32 to vector<2x32x32xf32>
    %352 = arith.mulf %350, %351 : vector<2x32x32xf32>
    %353 = arith.addf %352, %1 : vector<2x32x32xf32>
    %cst_105 = arith.constant dense<0xFF800000> : vector<2x32xf32>
    %354 = vector.multi_reduction <maximumf>, %353, %cst_105 [2] : vector<2x32x32xf32> to vector<2x32xf32>
    %355 = vector.shape_cast %354 : vector<2x32xf32> to vector<2x32x1xf32>
    %356 = vector.broadcast %355 : vector<2x32x1xf32> to vector<2x32x32xf32>
    %357 = arith.subf %353, %356 : vector<2x32x32xf32>
    %358 = math.exp %357 : vector<2x32x32xf32>
    %cst_106 = arith.constant dense<0.000000e+00> : vector<2x32xf32>
    %359 = vector.multi_reduction <add>, %358, %cst_106 [2] : vector<2x32x32xf32> to vector<2x32xf32>
    %360 = vector.shape_cast %359 : vector<2x32xf32> to vector<2x32x1xf32>
    %361 = tpu.reciprocal %360 {approx = true} : vector<2x32x1xf32> -> vector<2x32x1xf32>
    %362 = arith.mulf %360, %361 : vector<2x32x1xf32>
    %cst_107 = arith.constant 2.000000e+00 : f32
    %363 = vector.broadcast %cst_107 : f32 to vector<2x32x1xf32>
    %364 = arith.subf %363, %362 : vector<2x32x1xf32>
    %365 = arith.mulf %361, %364 : vector<2x32x1xf32>
    %366 = arith.mulf %360, %365 : vector<2x32x1xf32>
    %cst_108 = arith.constant 2.000000e+00 : f32
    %367 = vector.broadcast %cst_108 : f32 to vector<2x32x1xf32>
    %368 = arith.subf %367, %366 : vector<2x32x1xf32>
    %369 = arith.mulf %365, %368 : vector<2x32x1xf32>
    %370 = vector.broadcast %369 : vector<2x32x1xf32> to vector<2x32x32xf32>
    %371 = arith.mulf %358, %370 : vector<2x32x32xf32>
    %372 = vector.extract_strided_slice %321 {offsets = [0, 0, 8], sizes = [2, 32, 8], strides = [1, 1, 1]} : vector<2x32x16xf32> to vector<2x32x8xf32>
    "tpu.trace_start"() <{level = 10 : i32, message = "bqk,bkd->bqd"}> : () -> ()
    %cst_109 = arith.constant dense<0.000000e+00> : vector<2x32x8xf32>
    %373 = tpu.matmul %371, %372, %cst_109 {dimension_numbers = #tpu.dot_dimension_numbers<[2], [1], [1], [2], [0, 0, 0, 1, 1, 2], [0], [0]>} : vector<2x32x32xf32>, vector<2x32x8xf32>, vector<2x32x8xf32> -> vector<2x32x8xf32>
    "tpu.trace_stop"() : () -> ()
    %374 = vector.extract_strided_slice %315 {offsets = [0, 48], sizes = [64, 16], strides = [1, 1]} : vector<64x96xf32> to vector<64x16xf32>
    %375 = vector.shape_cast %374 : vector<64x16xf32> to vector<2x32x16xf32>
    %376 = vector.extract_strided_slice %315 {offsets = [0, 64], sizes = [64, 16], strides = [1, 1]} : vector<64x96xf32> to vector<64x16xf32>
    %377 = vector.shape_cast %376 : vector<64x16xf32> to vector<2x32x16xf32>
    %378 = vector.extract_strided_slice %315 {offsets = [0, 80], sizes = [64, 16], strides = [1, 1]} : vector<64x96xf32> to vector<64x16xf32>
    %379 = vector.shape_cast %378 : vector<64x16xf32> to vector<2x32x16xf32>
    %380 = vector.extract_strided_slice %375 {offsets = [0, 0, 0], sizes = [2, 32, 8], strides = [1, 1, 1]} : vector<2x32x16xf32> to vector<2x32x8xf32>
    %381 = vector.extract_strided_slice %377 {offsets = [0, 0, 0], sizes = [2, 32, 8], strides = [1, 1, 1]} : vector<2x32x16xf32> to vector<2x32x8xf32>
    "tpu.trace_start"() <{level = 10 : i32, message = "bqd,bkd->bqk"}> : () -> ()
    %cst_110 = arith.constant dense<0.000000e+00> : vector<2x32x32xf32>
    %382 = tpu.matmul %380, %381, %cst_110 {dimension_numbers = #tpu.dot_dimension_numbers<[2], [2], [1], [1], [0, 0, 0, 1, 1, 1], [0], [0]>} : vector<2x32x8xf32>, vector<2x32x8xf32>, vector<2x32x32xf32> -> vector<2x32x32xf32>
    "tpu.trace_stop"() : () -> ()
    %cst_111 = arith.constant 0.353553385 : f32
    %383 = vector.broadcast %cst_111 : f32 to vector<2x32x32xf32>
    %384 = arith.mulf %382, %383 : vector<2x32x32xf32>
    %385 = arith.addf %384, %1 : vector<2x32x32xf32>
    %cst_112 = arith.constant dense<0xFF800000> : vector<2x32xf32>
    %386 = vector.multi_reduction <maximumf>, %385, %cst_112 [2] : vector<2x32x32xf32> to vector<2x32xf32>
    %387 = vector.shape_cast %386 : vector<2x32xf32> to vector<2x32x1xf32>
    %388 = vector.broadcast %387 : vector<2x32x1xf32> to vector<2x32x32xf32>
    %389 = arith.subf %385, %388 : vector<2x32x32xf32>
    %390 = math.exp %389 : vector<2x32x32xf32>
    %cst_113 = arith.constant dense<0.000000e+00> : vector<2x32xf32>
    %391 = vector.multi_reduction <add>, %390, %cst_113 [2] : vector<2x32x32xf32> to vector<2x32xf32>
    %392 = vector.shape_cast %391 : vector<2x32xf32> to vector<2x32x1xf32>
    %393 = tpu.reciprocal %392 {approx = true} : vector<2x32x1xf32> -> vector<2x32x1xf32>
    %394 = arith.mulf %392, %393 : vector<2x32x1xf32>
    %cst_114 = arith.constant 2.000000e+00 : f32
    %395 = vector.broadcast %cst_114 : f32 to vector<2x32x1xf32>
    %396 = arith.subf %395, %394 : vector<2x32x1xf32>
    %397 = arith.mulf %393, %396 : vector<2x32x1xf32>
    %398 = arith.mulf %392, %397 : vector<2x32x1xf32>
    %cst_115 = arith.constant 2.000000e+00 : f32
    %399 = vector.broadcast %cst_115 : f32 to vector<2x32x1xf32>
    %400 = arith.subf %399, %398 : vector<2x32x1xf32>
    %401 = arith.mulf %397, %400 : vector<2x32x1xf32>
    %402 = vector.broadcast %401 : vector<2x32x1xf32> to vector<2x32x32xf32>
    %403 = arith.mulf %390, %402 : vector<2x32x32xf32>
    %404 = vector.extract_strided_slice %379 {offsets = [0, 0, 0], sizes = [2, 32, 8], strides = [1, 1, 1]} : vector<2x32x16xf32> to vector<2x32x8xf32>
    "tpu.trace_start"() <{level = 10 : i32, message = "bqk,bkd->bqd"}> : () -> ()
    %cst_116 = arith.constant dense<0.000000e+00> : vector<2x32x8xf32>
    %405 = tpu.matmul %403, %404, %cst_116 {dimension_numbers = #tpu.dot_dimension_numbers<[2], [1], [1], [2], [0, 0, 0, 1, 1, 2], [0], [0]>} : vector<2x32x32xf32>, vector<2x32x8xf32>, vector<2x32x8xf32> -> vector<2x32x8xf32>
    "tpu.trace_stop"() : () -> ()
    %406 = vector.extract_strided_slice %375 {offsets = [0, 0, 8], sizes = [2, 32, 8], strides = [1, 1, 1]} : vector<2x32x16xf32> to vector<2x32x8xf32>
    %407 = vector.extract_strided_slice %377 {offsets = [0, 0, 8], sizes = [2, 32, 8], strides = [1, 1, 1]} : vector<2x32x16xf32> to vector<2x32x8xf32>
    "tpu.trace_start"() <{level = 10 : i32, message = "bqd,bkd->bqk"}> : () -> ()
    %cst_117 = arith.constant dense<0.000000e+00> : vector<2x32x32xf32>
    %408 = tpu.matmul %406, %407, %cst_117 {dimension_numbers = #tpu.dot_dimension_numbers<[2], [2], [1], [1], [0, 0, 0, 1, 1, 1], [0], [0]>} : vector<2x32x8xf32>, vector<2x32x8xf32>, vector<2x32x32xf32> -> vector<2x32x32xf32>
    "tpu.trace_stop"() : () -> ()
    %cst_118 = arith.constant 0.353553385 : f32
    %409 = vector.broadcast %cst_118 : f32 to vector<2x32x32xf32>
    %410 = arith.mulf %408, %409 : vector<2x32x32xf32>
    %411 = arith.addf %410, %1 : vector<2x32x32xf32>
    %cst_119 = arith.constant dense<0xFF800000> : vector<2x32xf32>
    %412 = vector.multi_reduction <maximumf>, %411, %cst_119 [2] : vector<2x32x32xf32> to vector<2x32xf32>
    %413 = vector.shape_cast %412 : vector<2x32xf32> to vector<2x32x1xf32>
    %414 = vector.broadcast %413 : vector<2x32x1xf32> to vector<2x32x32xf32>
    %415 = arith.subf %411, %414 : vector<2x32x32xf32>
    %416 = math.exp %415 : vector<2x32x32xf32>
    %cst_120 = arith.constant dense<0.000000e+00> : vector<2x32xf32>
    %417 = vector.multi_reduction <add>, %416, %cst_120 [2] : vector<2x32x32xf32> to vector<2x32xf32>
    %418 = vector.shape_cast %417 : vector<2x32xf32> to vector<2x32x1xf32>
    %419 = tpu.reciprocal %418 {approx = true} : vector<2x32x1xf32> -> vector<2x32x1xf32>
    %420 = arith.mulf %418, %419 : vector<2x32x1xf32>
    %cst_121 = arith.constant 2.000000e+00 : f32
    %421 = vector.broadcast %cst_121 : f32 to vector<2x32x1xf32>
    %422 = arith.subf %421, %420 : vector<2x32x1xf32>
    %423 = arith.mulf %419, %422 : vector<2x32x1xf32>
    %424 = arith.mulf %418, %423 : vector<2x32x1xf32>
    %cst_122 = arith.constant 2.000000e+00 : f32
    %425 = vector.broadcast %cst_122 : f32 to vector<2x32x1xf32>
    %426 = arith.subf %425, %424 : vector<2x32x1xf32>
    %427 = arith.mulf %423, %426 : vector<2x32x1xf32>
    %428 = vector.broadcast %427 : vector<2x32x1xf32> to vector<2x32x32xf32>
    %429 = arith.mulf %416, %428 : vector<2x32x32xf32>
    %430 = vector.extract_strided_slice %379 {offsets = [0, 0, 8], sizes = [2, 32, 8], strides = [1, 1, 1]} : vector<2x32x16xf32> to vector<2x32x8xf32>
    "tpu.trace_start"() <{level = 10 : i32, message = "bqk,bkd->bqd"}> : () -> ()
    %cst_123 = arith.constant dense<0.000000e+00> : vector<2x32x8xf32>
    %431 = tpu.matmul %429, %430, %cst_123 {dimension_numbers = #tpu.dot_dimension_numbers<[2], [1], [1], [2], [0, 0, 0, 1, 1, 2], [0], [0]>} : vector<2x32x32xf32>, vector<2x32x8xf32>, vector<2x32x8xf32> -> vector<2x32x8xf32>
    "tpu.trace_stop"() : () -> ()
    %432 = tpu.concatenate %347, %373, %405, %431 in 2 : vector<2x32x8xf32>, vector<2x32x8xf32>, vector<2x32x8xf32>, vector<2x32x8xf32> -> vector<2x32x32xf32>
    %433 = vector.shape_cast %432 : vector<2x32x32xf32> to vector<64x32xf32>
    %434 = vector.extract_strided_slice %268 {offsets = [0, 256], sizes = [32, 32], strides = [1, 1]} : vector<32x384xf32> to vector<32x32xf32>
    %cst_124 = arith.constant dense<0.000000e+00> : vector<64x32xf32>
    %435 = tpu.matmul %433, %434, %cst_124 {dimension_numbers = #tpu.dot_dimension_numbers<[1], [0], [0], [1], [0, 0, 1, 1], [], []>} : vector<64x32xf32>, vector<32x32xf32>, vector<64x32xf32> -> vector<64x32xf32>
    %c13 = arith.constant 13 : index
    %c0_125 = arith.constant 0 : index
    %436 = vector.load %arg4[%c13, %c0_125] : memref<32x128xf32, #tpu.memory_space<vmem>>, vector<1x32xf32>
    %437 = vector.broadcast %436 : vector<1x32xf32> to vector<64x32xf32>
    %438 = arith.addf %435, %437 : vector<64x32xf32>
    %439 = vector.extract_strided_slice %438 {offsets = [0, 0], sizes = [64, 16], strides = [1, 1]} : vector<64x32xf32> to vector<64x16xf32>
    %440 = arith.addf %266, %439 : vector<64x16xf32>
    %441 = vector.extract_strided_slice %438 {offsets = [0, 16], sizes = [64, 16], strides = [1, 1]} : vector<64x32xf32> to vector<64x16xf32>
    %442 = arith.addf %266, %441 : vector<64x16xf32>
    %c20 = arith.constant 20 : index
    %c0_126 = arith.constant 0 : index
    %443 = vector.load %arg4[%c20, %c0_126] : memref<32x128xf32, #tpu.memory_space<vmem>>, vector<1x16xf32>
    %c21 = arith.constant 21 : index
    %c0_127 = arith.constant 0 : index
    %444 = vector.load %arg4[%c21, %c0_127] : memref<32x128xf32, #tpu.memory_space<vmem>>, vector<1x16xf32>
    %cst_128 = arith.constant dense<0.000000e+00> : vector<64xf32>
    %445 = vector.multi_reduction <add>, %440, %cst_128 [1] : vector<64x16xf32> to vector<64xf32>
    %446 = vector.shape_cast %445 : vector<64xf32> to vector<64x1xf32>
    %447 = arith.mulf %440, %440 : vector<64x16xf32>
    %cst_129 = arith.constant dense<0.000000e+00> : vector<64xf32>
    %448 = vector.multi_reduction <add>, %447, %cst_129 [1] : vector<64x16xf32> to vector<64xf32>
    %449 = vector.shape_cast %448 : vector<64xf32> to vector<64x1xf32>
    %cst_130 = arith.constant 6.250000e-02 : f32
    %450 = vector.broadcast %cst_130 : f32 to vector<64x1xf32>
    %451 = arith.mulf %446, %450 : vector<64x1xf32>
    %452 = arith.mulf %446, %451 : vector<64x1xf32>
    %453 = arith.subf %449, %452 : vector<64x1xf32>
    %cst_131 = arith.constant 0.000000e+00 : f32
    %454 = vector.broadcast %cst_131 : f32 to vector<64x1xf32>
    %455 = arith.maximumf %453, %454 : vector<64x1xf32>
    %cst_132 = arith.constant 0.0666666701 : f32
    %456 = vector.broadcast %cst_132 : f32 to vector<64x1xf32>
    %457 = arith.mulf %455, %456 : vector<64x1xf32>
    %458 = math.sqrt %457 : vector<64x1xf32>
    %cst_133 = arith.constant 9.99999997E-7 : f32
    %459 = vector.broadcast %cst_133 : f32 to vector<64x1xf32>
    %460 = arith.addf %458, %459 : vector<64x1xf32>
    %461 = tpu.reciprocal %460 {approx = true} : vector<64x1xf32> -> vector<64x1xf32>
    %462 = arith.mulf %460, %461 : vector<64x1xf32>
    %cst_134 = arith.constant 2.000000e+00 : f32
    %463 = vector.broadcast %cst_134 : f32 to vector<64x1xf32>
    %464 = arith.subf %463, %462 : vector<64x1xf32>
    %465 = arith.mulf %461, %464 : vector<64x1xf32>
    %466 = arith.mulf %460, %465 : vector<64x1xf32>
    %cst_135 = arith.constant 2.000000e+00 : f32
    %467 = vector.broadcast %cst_135 : f32 to vector<64x1xf32>
    %468 = arith.subf %467, %466 : vector<64x1xf32>
    %469 = arith.mulf %465, %468 : vector<64x1xf32>
    %470 = vector.broadcast %451 : vector<64x1xf32> to vector<64x16xf32>
    %471 = arith.subf %440, %470 : vector<64x16xf32>
    %472 = vector.broadcast %469 : vector<64x1xf32> to vector<64x16xf32>
    %473 = arith.mulf %471, %472 : vector<64x16xf32>
    %474 = vector.broadcast %443 : vector<1x16xf32> to vector<64x16xf32>
    %475 = arith.mulf %474, %473 : vector<64x16xf32>
    %476 = vector.broadcast %444 : vector<1x16xf32> to vector<64x16xf32>
    %477 = arith.addf %475, %476 : vector<64x16xf32>
    %c22 = arith.constant 22 : index
    %c0_136 = arith.constant 0 : index
    %478 = vector.load %arg4[%c22, %c0_136] : memref<32x128xf32, #tpu.memory_space<vmem>>, vector<1x16xf32>
    %c23 = arith.constant 23 : index
    %c0_137 = arith.constant 0 : index
    %479 = vector.load %arg4[%c23, %c0_137] : memref<32x128xf32, #tpu.memory_space<vmem>>, vector<1x16xf32>
    %cst_138 = arith.constant dense<0.000000e+00> : vector<64xf32>
    %480 = vector.multi_reduction <add>, %442, %cst_138 [1] : vector<64x16xf32> to vector<64xf32>
    %481 = vector.shape_cast %480 : vector<64xf32> to vector<64x1xf32>
    %482 = arith.mulf %442, %442 : vector<64x16xf32>
    %cst_139 = arith.constant dense<0.000000e+00> : vector<64xf32>
    %483 = vector.multi_reduction <add>, %482, %cst_139 [1] : vector<64x16xf32> to vector<64xf32>
    %484 = vector.shape_cast %483 : vector<64xf32> to vector<64x1xf32>
    %cst_140 = arith.constant 6.250000e-02 : f32
    %485 = vector.broadcast %cst_140 : f32 to vector<64x1xf32>
    %486 = arith.mulf %481, %485 : vector<64x1xf32>
    %487 = arith.mulf %481, %486 : vector<64x1xf32>
    %488 = arith.subf %484, %487 : vector<64x1xf32>
    %cst_141 = arith.constant 0.000000e+00 : f32
    %489 = vector.broadcast %cst_141 : f32 to vector<64x1xf32>
    %490 = arith.maximumf %488, %489 : vector<64x1xf32>
    %cst_142 = arith.constant 0.0666666701 : f32
    %491 = vector.broadcast %cst_142 : f32 to vector<64x1xf32>
    %492 = arith.mulf %490, %491 : vector<64x1xf32>
    %493 = math.sqrt %492 : vector<64x1xf32>
    %cst_143 = arith.constant 9.99999997E-7 : f32
    %494 = vector.broadcast %cst_143 : f32 to vector<64x1xf32>
    %495 = arith.addf %493, %494 : vector<64x1xf32>
    %496 = tpu.reciprocal %495 {approx = true} : vector<64x1xf32> -> vector<64x1xf32>
    %497 = arith.mulf %495, %496 : vector<64x1xf32>
    %cst_144 = arith.constant 2.000000e+00 : f32
    %498 = vector.broadcast %cst_144 : f32 to vector<64x1xf32>
    %499 = arith.subf %498, %497 : vector<64x1xf32>
    %500 = arith.mulf %496, %499 : vector<64x1xf32>
    %501 = arith.mulf %495, %500 : vector<64x1xf32>
    %cst_145 = arith.constant 2.000000e+00 : f32
    %502 = vector.broadcast %cst_145 : f32 to vector<64x1xf32>
    %503 = arith.subf %502, %501 : vector<64x1xf32>
    %504 = arith.mulf %500, %503 : vector<64x1xf32>
    %505 = vector.broadcast %486 : vector<64x1xf32> to vector<64x16xf32>
    %506 = arith.subf %442, %505 : vector<64x16xf32>
    %507 = vector.broadcast %504 : vector<64x1xf32> to vector<64x16xf32>
    %508 = arith.mulf %506, %507 : vector<64x16xf32>
    %509 = vector.broadcast %478 : vector<1x16xf32> to vector<64x16xf32>
    %510 = arith.mulf %509, %508 : vector<64x16xf32>
    %511 = vector.broadcast %479 : vector<1x16xf32> to vector<64x16xf32>
    %512 = arith.addf %510, %511 : vector<64x16xf32>
    %513 = tpu.concatenate %477, %512 in 1 : vector<64x16xf32>, vector<64x16xf32> -> vector<64x32xf32>
    %514 = vector.extract_strided_slice %268 {offsets = [0, 0], sizes = [32, 128], strides = [1, 1]} : vector<32x384xf32> to vector<32x128xf32>
    %cst_146 = arith.constant dense<0.000000e+00> : vector<64x128xf32>
    %515 = tpu.matmul %513, %514, %cst_146 {dimension_numbers = #tpu.dot_dimension_numbers<[1], [0], [0], [1], [0, 0, 1, 1], [], []>} : vector<64x32xf32>, vector<32x128xf32>, vector<64x128xf32> -> vector<64x128xf32>
    %c14 = arith.constant 14 : index
    %c0_147 = arith.constant 0 : index
    %516 = vector.load %arg4[%c14, %c0_147] : memref<32x128xf32, #tpu.memory_space<vmem>>, vector<1x128xf32>
    %517 = vector.broadcast %516 : vector<1x128xf32> to vector<64x128xf32>
    %518 = arith.addf %515, %517 : vector<64x128xf32>
    %cst_148 = arith.constant 0.000000e+00 : f32
    %519 = vector.broadcast %cst_148 : f32 to vector<64x128xf32>
    %520 = arith.maximumf %518, %519 : vector<64x128xf32>
    %c1_149 = arith.constant 1 : index
    %c0_150 = arith.constant 0 : index
    %c0_151 = arith.constant 0 : index
    %521 = vector.load %arg3[%c1_149, %c0_150, %c0_151] : memref<2x128x32xf32, #tpu.memory_space<vmem>>, vector<1x128x32xf32>
    %522 = vector.shape_cast %521 : vector<1x128x32xf32> to vector<128x32xf32>
    %cst_152 = arith.constant dense<0.000000e+00> : vector<64x32xf32>
    %523 = tpu.matmul %520, %522, %cst_152 {dimension_numbers = #tpu.dot_dimension_numbers<[1], [0], [0], [1], [0, 0, 1, 1], [], []>} : vector<64x128xf32>, vector<128x32xf32>, vector<64x32xf32> -> vector<64x32xf32>
    %c15 = arith.constant 15 : index
    %c0_153 = arith.constant 0 : index
    %524 = vector.load %arg4[%c15, %c0_153] : memref<32x128xf32, #tpu.memory_space<vmem>>, vector<1x32xf32>
    %525 = vector.broadcast %524 : vector<1x32xf32> to vector<64x32xf32>
    %526 = arith.addf %523, %525 : vector<64x32xf32>
    %527 = vector.extract_strided_slice %526 {offsets = [0, 0], sizes = [64, 16], strides = [1, 1]} : vector<64x32xf32> to vector<64x16xf32>
    %528 = arith.addf %440, %527 : vector<64x16xf32>
    %529 = vector.extract_strided_slice %526 {offsets = [0, 16], sizes = [64, 16], strides = [1, 1]} : vector<64x32xf32> to vector<64x16xf32>
    %530 = arith.addf %442, %529 : vector<64x16xf32>
    %531 = arith.addf %528, %530 : vector<64x16xf32>
    %532 = vector.shape_cast %531 : vector<64x16xf32> to vector<2x32x16xf32>
    %533 = vector.extract_strided_slice %532 {offsets = [0, 0, 0], sizes = [1, 32, 16], strides = [1, 1, 1]} : vector<2x32x16xf32> to vector<1x32x16xf32>
    %534 = vector.shape_cast %533 : vector<1x32x16xf32> to vector<32x16xf32>
    %535 = tpu.transpose %534, [1, 0] : vector<32x16xf32> -> vector<16x32xf32>
    %536 = vector.extract_strided_slice %532 {offsets = [1, 0, 0], sizes = [1, 32, 16], strides = [1, 1, 1]} : vector<2x32x16xf32> to vector<1x32x16xf32>
    %537 = vector.shape_cast %536 : vector<1x32x16xf32> to vector<32x16xf32>
    %538 = tpu.transpose %537, [1, 0] : vector<32x16xf32> -> vector<16x32xf32>
    %539 = tpu.concatenate %535, %538 in 0 : vector<16x32xf32>, vector<16x32xf32> -> vector<32x32xf32>
    %c24 = arith.constant 24 : index
    %c0_154 = arith.constant 0 : index
    %540 = vector.load %arg4[%c24, %c0_154] : memref<32x128xf32, #tpu.memory_space<vmem>>, vector<1x32xf32>
    %c25 = arith.constant 25 : index
    %c0_155 = arith.constant 0 : index
    %541 = vector.load %arg4[%c25, %c0_155] : memref<32x128xf32, #tpu.memory_space<vmem>>, vector<1x32xf32>
    %cst_156 = arith.constant dense<0.000000e+00> : vector<32xf32>
    %542 = vector.multi_reduction <add>, %539, %cst_156 [1] : vector<32x32xf32> to vector<32xf32>
    %543 = vector.shape_cast %542 : vector<32xf32> to vector<32x1xf32>
    %544 = arith.mulf %539, %539 : vector<32x32xf32>
    %cst_157 = arith.constant dense<0.000000e+00> : vector<32xf32>
    %545 = vector.multi_reduction <add>, %544, %cst_157 [1] : vector<32x32xf32> to vector<32xf32>
    %546 = vector.shape_cast %545 : vector<32xf32> to vector<32x1xf32>
    %cst_158 = arith.constant 3.125000e-02 : f32
    %547 = vector.broadcast %cst_158 : f32 to vector<32x1xf32>
    %548 = arith.mulf %543, %547 : vector<32x1xf32>
    %549 = arith.mulf %543, %548 : vector<32x1xf32>
    %550 = arith.subf %546, %549 : vector<32x1xf32>
    %cst_159 = arith.constant 0.000000e+00 : f32
    %551 = vector.broadcast %cst_159 : f32 to vector<32x1xf32>
    %552 = arith.maximumf %550, %551 : vector<32x1xf32>
    %cst_160 = arith.constant 0.0322580636 : f32
    %553 = vector.broadcast %cst_160 : f32 to vector<32x1xf32>
    %554 = arith.mulf %552, %553 : vector<32x1xf32>
    %555 = math.sqrt %554 : vector<32x1xf32>
    %cst_161 = arith.constant 9.99999997E-7 : f32
    %556 = vector.broadcast %cst_161 : f32 to vector<32x1xf32>
    %557 = arith.addf %555, %556 : vector<32x1xf32>
    %558 = tpu.reciprocal %557 {approx = true} : vector<32x1xf32> -> vector<32x1xf32>
    %559 = arith.mulf %557, %558 : vector<32x1xf32>
    %cst_162 = arith.constant 2.000000e+00 : f32
    %560 = vector.broadcast %cst_162 : f32 to vector<32x1xf32>
    %561 = arith.subf %560, %559 : vector<32x1xf32>
    %562 = arith.mulf %558, %561 : vector<32x1xf32>
    %563 = arith.mulf %557, %562 : vector<32x1xf32>
    %cst_163 = arith.constant 2.000000e+00 : f32
    %564 = vector.broadcast %cst_163 : f32 to vector<32x1xf32>
    %565 = arith.subf %564, %563 : vector<32x1xf32>
    %566 = arith.mulf %562, %565 : vector<32x1xf32>
    %567 = vector.broadcast %548 : vector<32x1xf32> to vector<32x32xf32>
    %568 = arith.subf %539, %567 : vector<32x32xf32>
    %569 = vector.broadcast %566 : vector<32x1xf32> to vector<32x32xf32>
    %570 = arith.mulf %568, %569 : vector<32x32xf32>
    %571 = vector.broadcast %540 : vector<1x32xf32> to vector<32x32xf32>
    %572 = arith.mulf %571, %570 : vector<32x32xf32>
    %573 = vector.broadcast %541 : vector<1x32xf32> to vector<32x32xf32>
    %574 = arith.addf %572, %573 : vector<32x32xf32>
    %575 = vector.shape_cast %574 : vector<32x32xf32> to vector<2x16x32xf32>
    %c0_164 = arith.constant 0 : index
    %c0_165 = arith.constant 0 : index
    %c0_166 = arith.constant 0 : index
    %576 = vector.load %arg5[%c0_164, %c0_165, %c0_166] : memref<2x16x32xf32, #tpu.memory_space<vmem>>, vector<2x16x32xf32>
    tpu.vector_store %arg5[%c0_164, %c0_165, %c0_166], %575 {strides = array<i32>} : memref<2x16x32xf32, #tpu.memory_space<vmem>>, vector<2x16x32xf32>,
    return
  }
}

</mosaic_0001>

<llo_original>
// kernel: double_sp_encoder.1
$region0: #{double_sp_encoder.1}
  #allocation0 [shape = 'u32[]', space=smem, size = 0x4, offset = 0x4, fixed_abs, tag = 'smem constant byte address 0x4 - core index']
  #allocation1 [shape = 'u32[144,128]{1,0:T(1,128)}', space=vmem, size = 0x12000, scoped, tag = 'internal scratch']
  %s0 = inlined_call_operand.vmem [shape: f32[64,16], index: 0, kind: input, shape index: {}]
  %s1 = inlined_call_operand.vmem [shape: f32[2,32,32], index: 1, kind: input, shape index: {}]
  %s2 = inlined_call_operand.vmem [shape: f32[2,32,384], index: 2, kind: input, shape index: {}]
  %s3 = inlined_call_operand.vmem [shape: f32[2,128,32], index: 3, kind: input, shape index: {}]
  %s4 = inlined_call_operand.vmem [shape: f32[32,128], index: 4, kind: input, shape index: {}]
  %s5 = inlined_call_operand.hbm [shape: f32[2,16,32], index: 5, kind: output, shape index: {}]
  %s6 = sld [smem:[#allocation0]]
  $region30: #{double_sp_encoder.1} parent=0
    _
  %s8 = ssub.s32 1, %s6
  %s9 = scalar_select 0, %s8, %s6
  $region1: #{double_sp_encoder.1} parent=0
    #allocation2 [shape = 'u8[16384]{0}', space=vmem, size = 0x4000, scoped, tag = 'output window, operand 0, single buffered']
    #allocation3 [shape = 's32[1]{0}', space=sflag, size = 0x4, scoped, tag = 'scoped memory for double_sp_encoder.1']
    %10 = vsyncpa [#allocation3], 0
    // Predicated region
    $region2: #{double_sp_encoder.1} parent=1 // pred_check
      _
    $region3: #{double_sp_encoder.1} parent=1 // pred_check_branch
      %12 = sbr.rel (0) target = $region5
    $region4: #{double_sp_encoder.1} parent=1 // pred_region
      _
    $region5: #{double_sp_encoder.1} parent=1 // pred_fallthru
      _
    // Predicated region
    $region6: #{double_sp_encoder.1} parent=1 // pred_check
      _
    $region7: #{double_sp_encoder.1} parent=1 // pred_check_branch
      %14 = sbr.rel (0) target = $region9
    $region8: #{double_sp_encoder.1} parent=1 // pred_region
      _
    $region9: #{double_sp_encoder.1} parent=1 // pred_fallthru
      _
    // Predicated region
    $region10: #{double_sp_encoder.1} parent=1 // pred_check
      _
    $region11: #{double_sp_encoder.1} parent=1 // pred_check_branch
      %16 = sbr.rel (0) target = $region13
    $region12: #{double_sp_encoder.1} parent=1 // pred_region
      _
    $region13: #{double_sp_encoder.1} parent=1 // pred_fallthru
      _
    // Predicated region
    $region14: #{double_sp_encoder.1} parent=1 // pred_check
      _
    $region15: #{double_sp_encoder.1} parent=1 // pred_check_branch
      %18 = sbr.rel (0) target = $region17
    $region16: #{double_sp_encoder.1} parent=1 // pred_region
      _
    $region17: #{double_sp_encoder.1} parent=1 // pred_fallthru
      _
    // Predicated region
    $region18: #{double_sp_encoder.1} parent=1 // pred_check
      _
    $region19: #{double_sp_encoder.1} parent=1 // pred_check_branch
      %20 = sbr.rel (0) target = $region21
    $region20: #{double_sp_encoder.1} parent=1 // pred_region
      _
    $region21: #{double_sp_encoder.1} parent=1 // pred_fallthru
      _
    %v21 = vld [vmem:[%s0] sm:$0xff]
    %v22 = vld [vmem:[%s0 + $0x8] sm:$0xff]
    %v23 = vld [vmem:[%s0 + $0x10] sm:$0xff]
    %v24 = vld [vmem:[%s0 + $0x18] sm:$0xff]
    %v25 = vld [vmem:[%s0 + $0x20] sm:$0xff]
    %v26 = vld [vmem:[%s0 + $0x28] sm:$0xff]
    %v27 = vld [vmem:[%s0 + $0x30] sm:$0xff]
    %v28 = vld [vmem:[%s0 + $0x38] sm:$0xff]
    %v29 = vld [vmem:[%s1] sm:$0xff]
    %v30 = vld [vmem:[%s1 + $0x8] sm:$0xff]
    %v31 = vld [vmem:[%s1 + $0x10] sm:$0xff]
    %v32 = vld [vmem:[%s1 + $0x18] sm:$0xff]
    %v33 = vld [vmem:[%s1 + $0x20] sm:$0xff]
    %v34 = vld [vmem:[%s1 + $0x28] sm:$0xff]
    %v35 = vld [vmem:[%s1 + $0x30] sm:$0xff]
    %v36 = vld [vmem:[%s1 + $0x38] sm:$0xff]
    %v37 = vld [vmem:[%s2] sm:$0xff]
    %v38 = vld [vmem:[%s2 + $0x8] sm:$0xff]
    %v39 = vld [vmem:[%s2 + $0x10] sm:$0xff]
    %v40 = vld [vmem:[%s2 + $0x18] sm:$0xff]
    %v41 = vld [vmem:[%s2 + $0x20] sm:$0xff]
    %v42 = vld [vmem:[%s2 + $0x28] sm:$0xff]
    %v43 = vld [vmem:[%s2 + $0x30] sm:$0xff]
    %v44 = vld [vmem:[%s2 + $0x38] sm:$0xff]
    %v45 = vld [vmem:[%s2 + $0x40] sm:$0xff]
    %v46 = vld [vmem:[%s2 + $0x48] sm:$0xff]
    %v47 = vld [vmem:[%s2 + $0x50] sm:$0xff]
    %v48 = vld [vmem:[%s2 + $0x58] sm:$0xff]
    %vm49 = vcmask 130048
    %v50 = vsel %vm49, %v21, 0.0
    %51 = vadd.xlane.f32.xlu0 %v50
    %v52 = vpop.xlane.xlu0 %51
    %v53 = vsel %vm49, %v22, 0.0
    %54 = vadd.xlane.f32.xlu0 %v53
    %v55 = vpop.xlane.xlu0 %54
    %v56 = vsel %vm49, %v23, 0.0
    %57 = vadd.xlane.f32.xlu0 %v56
    %v58 = vpop.xlane.xlu0 %57
    %v59 = vsel %vm49, %v24, 0.0
    %60 = vadd.xlane.f32.xlu0 %v59
    %v61 = vpop.xlane.xlu0 %60
    %v62 = vsel %vm49, %v25, 0.0
    %63 = vadd.xlane.f32.xlu0 %v62
    %v64 = vpop.xlane.xlu0 %63
    %v65 = vsel %vm49, %v26, 0.0
    %66 = vadd.xlane.f32.xlu0 %v65
    %v67 = vpop.xlane.xlu0 %66
    %v68 = vsel %vm49, %v27, 0.0
    %69 = vadd.xlane.f32.xlu0 %v68
    %v70 = vpop.xlane.xlu0 %69
    %v71 = vsel %vm49, %v28, 0.0
    %72 = vadd.xlane.f32.xlu0 %v71
    %v73 = vpop.xlane.xlu0 %72
    %v74 = vmul.f32 %v21, %v21
    %v75 = vmul.f32 %v22, %v22
    %v76 = vmul.f32 %v23, %v23
    %v77 = vmul.f32 %v24, %v24
    %v78 = vmul.f32 %v25, %v25
    %v79 = vmul.f32 %v26, %v26
    %v80 = vmul.f32 %v27, %v27
    %v81 = vmul.f32 %v28, %v28
    %v82 = vsel %vm49, %v74, 0.0
    %83 = vadd.xlane.f32.xlu0 %v82
    %v84 = vpop.xlane.xlu0 %83
    %v85 = vsel %vm49, %v75, 0.0
    %86 = vadd.xlane.f32.xlu0 %v85
    %v87 = vpop.xlane.xlu0 %86
    %v88 = vsel %vm49, %v76, 0.0
    %89 = vadd.xlane.f32.xlu0 %v88
    %v90 = vpop.xlane.xlu0 %89
    %v91 = vsel %vm49, %v77, 0.0
    %92 = vadd.xlane.f32.xlu0 %v91
    %v93 = vpop.xlane.xlu0 %92
    %v94 = vsel %vm49, %v78, 0.0
    %95 = vadd.xlane.f32.xlu0 %v94
    %v96 = vpop.xlane.xlu0 %95
    %v97 = vsel %vm49, %v79, 0.0
    %98 = vadd.xlane.f32.xlu0 %v97
    %v99 = vpop.xlane.xlu0 %98
    %v100 = vsel %vm49, %v80, 0.0
    %101 = vadd.xlane.f32.xlu0 %v100
    %v102 = vpop.xlane.xlu0 %101
    %v103 = vsel %vm49, %v81, 0.0
    %104 = vadd.xlane.f32.xlu0 %v103
    %v105 = vpop.xlane.xlu0 %104
    %v106 = vmul.f32 %v52, 0.0625
    %v107 = vmul.f32 %v55, 0.0625
    %v108 = vmul.f32 %v58, 0.0625
    %v109 = vmul.f32 %v61, 0.0625
    %v110 = vmul.f32 %v64, 0.0625
    %v111 = vmul.f32 %v67, 0.0625
    %v112 = vmul.f32 %v70, 0.0625
    %v113 = vmul.f32 %v73, 0.0625
    %v114 = vmul.f32 %v52, %v106
    %v115 = vmul.f32 %v55, %v107
    %v116 = vmul.f32 %v58, %v108
    %v117 = vmul.f32 %v61, %v109
    %v118 = vmul.f32 %v64, %v110
    %v119 = vmul.f32 %v67, %v111
    %v120 = vmul.f32 %v70, %v112
    %v121 = vmul.f32 %v73, %v113
    %v122 = vsub.f32 %v84, %v114
    %v123 = vsub.f32 %v87, %v115
    %v124 = vsub.f32 %v90, %v116
    %v125 = vsub.f32 %v93, %v117
    %v126 = vsub.f32 %v96, %v118
    %v127 = vsub.f32 %v99, %v119
    %v128 = vsub.f32 %v102, %v120
    %v129 = vsub.f32 %v105, %v121
    %v130 = vmax.f32 %v122, 0.0
    %v131 = vmax.f32 %v123, 0.0
    %v132 = vmax.f32 %v124, 0.0
    %v133 = vmax.f32 %v125, 0.0
    %v134 = vmax.f32 %v126, 0.0
    %v135 = vmax.f32 %v127, 0.0
    %v136 = vmax.f32 %v128, 0.0
    %v137 = vmax.f32 %v129, 0.0
    %v138 = vmul.f32 %v130, 0.06666667
    %v139 = vmul.f32 %v131, 0.06666667
    %v140 = vmul.f32 %v132, 0.06666667
    %v141 = vmul.f32 %v133, 0.06666667
    %v142 = vmul.f32 %v134, 0.06666667
    %v143 = vmul.f32 %v135, 0.06666667
    %v144 = vmul.f32 %v136, 0.06666667
    %v145 = vmul.f32 %v137, 0.06666667
    %v146 = vrsqrt.pop %v138
    %v147 = vmul.f32 %v138, %v146
    %vm148 = vcmp.eq.f32.partialorder %v138, inf
    %v149 = vsel %vm148, %v138, %v147
    %vm150 = vcmp.eq.f32.partialorder %v138, 0.0
    %v151 = vand.u32 %v138, 2147483648
    %v152 = vsel %vm150, %v151, %v149
    %v153 = vrsqrt.pop %v139
    %v154 = vmul.f32 %v139, %v153
    %vm155 = vcmp.eq.f32.partialorder %v139, inf
    %v156 = vsel %vm155, %v139, %v154
    %vm157 = vcmp.eq.f32.partialorder %v139, 0.0
    %v158 = vand.u32 %v139, 2147483648
    %v159 = vsel %vm157, %v158, %v156
    %v160 = vrsqrt.pop %v140
    %v161 = vmul.f32 %v140, %v160
    %vm162 = vcmp.eq.f32.partialorder %v140, inf
    %v163 = vsel %vm162, %v140, %v161
    %vm164 = vcmp.eq.f32.partialorder %v140, 0.0
    %v165 = vand.u32 %v140, 2147483648
    %v166 = vsel %vm164, %v165, %v163
    %v167 = vrsqrt.pop %v141
    %v168 = vmul.f32 %v141, %v167
    %vm169 = vcmp.eq.f32.partialorder %v141, inf
    %v170 = vsel %vm169, %v141, %v168
    %vm171 = vcmp.eq.f32.partialorder %v141, 0.0
    %v172 = vand.u32 %v141, 2147483648
    %v173 = vsel %vm171, %v172, %v170
    %v174 = vrsqrt.pop %v142
    %v175 = vmul.f32 %v142, %v174
    %vm176 = vcmp.eq.f32.partialorder %v142, inf
    %v177 = vsel %vm176, %v142, %v175
    %vm178 = vcmp.eq.f32.partialorder %v142, 0.0
    %v179 = vand.u32 %v142, 2147483648
    %v180 = vsel %vm178, %v179, %v177
    %v181 = vrsqrt.pop %v143
    %v182 = vmul.f32 %v143, %v181
    %vm183 = vcmp.eq.f32.partialorder %v143, inf
    %v184 = vsel %vm183, %v143, %v182
    %vm185 = vcmp.eq.f32.partialorder %v143, 0.0
    %v186 = vand.u32 %v143, 2147483648
    %v187 = vsel %vm185, %v186, %v184
    %v188 = vrsqrt.pop %v144
    %v189 = vmul.f32 %v144, %v188
    %vm190 = vcmp.eq.f32.partialorder %v144, inf
    %v191 = vsel %vm190, %v144, %v189
    %vm192 = vcmp.eq.f32.partialorder %v144, 0.0
    %v193 = vand.u32 %v144, 2147483648
    %v194 = vsel %vm192, %v193, %v191
    %v195 = vrsqrt.pop %v145
    %v196 = vmul.f32 %v145, %v195
    %vm197 = vcmp.eq.f32.partialorder %v145, inf
    %v198 = vsel %vm197, %v145, %v196
    %vm199 = vcmp.eq.f32.partialorder %v145, 0.0
    %v200 = vand.u32 %v145, 2147483648
    %v201 = vsel %vm199, %v200, %v198
    %v202 = vadd.f32 %v152, 1e-06
    %v203 = vadd.f32 %v159, 1e-06
    %v204 = vadd.f32 %v166, 1e-06
    %v205 = vadd.f32 %v173, 1e-06
    %v206 = vadd.f32 %v180, 1e-06
    %v207 = vadd.f32 %v187, 1e-06
    %v208 = vadd.f32 %v194, 1e-06
    %v209 = vadd.f32 %v201, 1e-06
    %v210 = vrcp.pop %v202
    %v211 = vrcp.pop %v203
    %v212 = vrcp.pop %v204
    %v213 = vrcp.pop %v205
    %v214 = vrcp.pop %v206
    %v215 = vrcp.pop %v207
    %v216 = vrcp.pop %v208
    %v217 = vrcp.pop %v209
    %v218 = vmul.f32 %v202, %v210
    %v219 = vmul.f32 %v203, %v211
    %v220 = vmul.f32 %v204, %v212
    %v221 = vmul.f32 %v205, %v213
    %v222 = vmul.f32 %v206, %v214
    %v223 = vmul.f32 %v207, %v215
    %v224 = vmul.f32 %v208, %v216
    %v225 = vmul.f32 %v209, %v217
    %v226 = vsub.f32 2.0, %v218
    %v227 = vsub.f32 2.0, %v219
    %v228 = vsub.f32 2.0, %v220
    %v229 = vsub.f32 2.0, %v221
    %v230 = vsub.f32 2.0, %v222
    %v231 = vsub.f32 2.0, %v223
    %v232 = vsub.f32 2.0, %v224
    %v233 = vsub.f32 2.0, %v225
    %v234 = vmul.f32 %v210, %v226
    %v235 = vmul.f32 %v211, %v227
    %v236 = vmul.f32 %v212, %v228
    %v237 = vmul.f32 %v213, %v229
    %v238 = vmul.f32 %v214, %v230
    %v239 = vmul.f32 %v215, %v231
    %v240 = vmul.f32 %v216, %v232
    %v241 = vmul.f32 %v217, %v233
    %v242 = vmul.f32 %v202, %v234
    %v243 = vmul.f32 %v203, %v235
    %v244 = vmul.f32 %v204, %v236
    %v245 = vmul.f32 %v205, %v237
    %v246 = vmul.f32 %v206, %v238
    %v247 = vmul.f32 %v207, %v239
    %v248 = vmul.f32 %v208, %v240
    %v249 = vmul.f32 %v209, %v241
    %v250 = vsub.f32 2.0, %v242
    %v251 = vsub.f32 2.0, %v243
    %v252 = vsub.f32 2.0, %v244
    %v253 = vsub.f32 2.0, %v245
    %v254 = vsub.f32 2.0, %v246
    %v255 = vsub.f32 2.0, %v247
    %v256 = vsub.f32 2.0, %v248
    %v257 = vsub.f32 2.0, %v249
    %v258 = vmul.f32 %v234, %v250
    %v259 = vmul.f32 %v235, %v251
    %v260 = vmul.f32 %v236, %v252
    %v261 = vmul.f32 %v237, %v253
    %v262 = vmul.f32 %v238, %v254
    %v263 = vmul.f32 %v239, %v255
    %v264 = vmul.f32 %v240, %v256
    %v265 = vmul.f32 %v241, %v257
    %v266 = vsub.f32 %v21, %v106
    %v267 = vsub.f32 %v22, %v107
    %v268 = vsub.f32 %v23, %v108
    %v269 = vsub.f32 %v24, %v109
    %v270 = vsub.f32 %v25, %v110
    %v271 = vsub.f32 %v26, %v111
    %v272 = vsub.f32 %v27, %v112
    %v273 = vsub.f32 %v28, %v113
    %v274 = vmul.f32 %v266, %v258
    %v275 = vmul.f32 %v267, %v259
    %v276 = vmul.f32 %v268, %v260
    %v277 = vmul.f32 %v269, %v261
    %v278 = vmul.f32 %v270, %v262
    %v279 = vmul.f32 %v271, %v263
    %v280 = vmul.f32 %v272, %v264
    %v281 = vmul.f32 %v273, %v265
    %v282 = vld [vmem:[%s4 + $0x4] sm:$0x1]
    %v283 = vlaneseq
    %v284 = vshrl.u32 %v283, 7
    %v285 = vsub.s32 0, %v284
    %v286 = vrot.slane %v282, %v285
    %v287 = vmul.f32 %v286, %v274
    %v288 = vmul.f32 %v286, %v275
    %v289 = vmul.f32 %v286, %v276
    %v290 = vmul.f32 %v286, %v277
    %v291 = vmul.f32 %v286, %v278
    %v292 = vmul.f32 %v286, %v279
    %v293 = vmul.f32 %v286, %v280
    %v294 = vmul.f32 %v286, %v281
    %v295 = vld [vmem:[%s4 + $0x5] sm:$0x1]
    %v296 = vlaneseq
    %v297 = vshrl.u32 %v296, 7
    %v298 = vsub.s32 0, %v297
    %v299 = vrot.slane %v295, %v298
    %v300 = vadd.f32 %v287, %v299
    %v301 = vadd.f32 %v288, %v299
    %v302 = vadd.f32 %v289, %v299
    %v303 = vadd.f32 %v290, %v299
    %v304 = vadd.f32 %v291, %v299
    %v305 = vadd.f32 %v292, %v299
    %v306 = vadd.f32 %v293, %v299
    %v307 = vadd.f32 %v294, %v299
    %v308 = vld [vmem:[%s4 + $0x6] sm:$0x1]
    %v309 = vlaneseq
    %v310 = vshrl.u32 %v309, 7
    %v311 = vsub.s32 0, %v310
    %v312 = vrot.slane %v308, %v311
    %v313 = vmul.f32 %v312, %v274
    %v314 = vmul.f32 %v312, %v275
    %v315 = vmul.f32 %v312, %v276
    %v316 = vmul.f32 %v312, %v277
    %v317 = vmul.f32 %v312, %v278
    %v318 = vmul.f32 %v312, %v279
    %v319 = vmul.f32 %v312, %v280
    %v320 = vmul.f32 %v312, %v281
    %v321 = vld [vmem:[%s4 + $0x7] sm:$0x1]
    %v322 = vlaneseq
    %v323 = vshrl.u32 %v322, 7
    %v324 = vsub.s32 0, %v323
    %v325 = vrot.slane %v321, %v324
    %v326 = vadd.f32 %v313, %v325
    %v327 = vadd.f32 %v314, %v325
    %v328 = vadd.f32 %v315, %v325
    %v329 = vadd.f32 %v316, %v325
    %v330 = vadd.f32 %v317, %v325
    %v331 = vadd.f32 %v318, %v325
    %v332 = vadd.f32 %v319, %v325
    %v333 = vadd.f32 %v320, %v325
    %342 = vrot.lane.b32.xlu0 %v326, 16
    %v343 = vpop.permute.xlu0 %342
    %344 = vrot.lane.b32.xlu0 %v327, 16
    %v345 = vpop.permute.xlu0 %344
    %346 = vrot.lane.b32.xlu0 %v328, 16
    %v347 = vpop.permute.xlu0 %346
    %348 = vrot.lane.b32.xlu0 %v329, 16
    %v349 = vpop.permute.xlu0 %348
    %350 = vrot.lane.b32.xlu0 %v330, 16
    %v351 = vpop.permute.xlu0 %350
    %352 = vrot.lane.b32.xlu0 %v331, 16
    %v353 = vpop.permute.xlu0 %352
    %354 = vrot.lane.b32.xlu0 %v332, 16
    %v355 = vpop.permute.xlu0 %354
    %356 = vrot.lane.b32.xlu0 %v333, 16
    %v357 = vpop.permute.xlu0 %356
    %v366 = vsel %vm49, %v300, %v343
    %v367 = vsel %vm49, %v301, %v345
    %v368 = vsel %vm49, %v302, %v347
    %v369 = vsel %vm49, %v303, %v349
    %v370 = vsel %vm49, %v304, %v351
    %v371 = vsel %vm49, %v305, %v353
    %v372 = vsel %vm49, %v306, %v355
    %v373 = vsel %vm49, %v307, %v357
    %v374 = vld [vmem:[%s4] sm:$0x1]
    %v375 = vlaneseq
    %v376 = vshrl.u32 %v375, 7
    %v377 = vsub.s32 0, %v376
    %v378 = vrot.slane %v374, %v377
    %vm379 = vcmask 261120
    %v381 = vsel %vm379, %v366, 0
    %v384 = vsel %vm379, %v367, 0
    %v387 = vsel %vm379, %v368, 0
    %v390 = vsel %vm379, %v369, 0
    %v393 = vsel %vm379, %v370, 0
    %v396 = vsel %vm379, %v371, 0
    %v399 = vsel %vm379, %v372, 0
    %v402 = vsel %vm379, %v373, 0
    %404 = vmatprep.subr.mxu0 0.0
    %405 = vmatpush1.msra.mxu0 0.0
    %406 = vmatprep.subr.mxu0 0.0
    %407 = vmatpush1.msra.mxu0 0.0
    %408 = vmatprep.subr.mxu0 0.0
    %409 = vmatpush1.msra.mxu0 0.0
    %410 = vmatprep.subr.mxu0 0.0
    %411 = vmatpush1.msra.mxu0 0.0
    %412 = vmatprep.subr.mxu0 0.0
    %413 = vmatpush1.msra.mxu0 0.0
    %414 = vmatprep.subr.mxu0 0.0
    %415 = vmatpush1.msra.mxu0 0.0
    %416 = vmatprep.subr.mxu0 0.0
    %417 = vmatpush1.msra.mxu0 0.0
    %418 = vmatprep.subr.mxu0 0.0
    %419 = vmatpush1.msra.mxu0 0.0
    %420 = vmatprep.subr.mxu0 0.0
    %421 = vmatpush1.msra.mxu0 0.0
    %422 = vmatprep.subr.mxu0 0.0
    %423 = vmatpush1.msra.mxu0 0.0
    %424 = vmatprep.subr.mxu0 0.0
    %425 = vmatpush1.msra.mxu0 0.0
    %426 = vmatprep.subr.mxu0 0.0
    %427 = vmatpush1.msra.mxu0 0.0
    %428 = vmatprep.subr.mxu0 0.0
    %429 = vmatpush1.msra.mxu0 %v47
    %430 = vmatprep.subr.mxu0 0.0
    %431 = vmatpush1.msra.mxu0 %v44
    %432 = vmatprep.subr.mxu0 0.0
    %433 = vmatpush1.msra.mxu0 %v41
    %434 = vmatprep.subr.mxu0 0.0
    %435 = vmatpush1.msra.mxu0 %v38
    %436 = vmatprep.subr.mxu0 0.0
    %437 = vmatpush2.msra.mxu0 0.0
    %438 = vmatprep.subr.mxu0 0.0
    %439 = vmatpush2.msra.mxu0 0.0
    %440 = vmatprep.subr.mxu0 0.0
    %441 = vmatpush2.msra.mxu0 0.0
    %442 = vmatprep.subr.mxu0 0.0
    %443 = vmatpush2.msra.mxu0 0.0
    %444 = vmatprep.subr.mxu0 0.0
    %445 = vmatpush2.msra.mxu0 0.0
    %446 = vmatprep.subr.mxu0 0.0
    %447 = vmatpush2.msra.mxu0 0.0
    %448 = vmatprep.subr.mxu0 0.0
    %449 = vmatpush2.msra.mxu0 0.0
    %450 = vmatprep.subr.mxu0 0.0
    %451 = vmatpush2.msra.mxu0 0.0
    %452 = vmatprep.subr.mxu0 0.0
    %453 = vmatpush2.msra.mxu0 0.0
    %454 = vmatprep.subr.mxu0 0.0
    %455 = vmatpush2.msra.mxu0 0.0
    %456 = vmatprep.subr.mxu0 0.0
    %457 = vmatpush2.msra.mxu0 0.0
    %458 = vmatprep.subr.mxu0 0.0
    %459 = vmatpush2.msra.mxu0 0.0
    %460 = vmatprep.subr.mxu0 0.0
    %461 = vmatpush2.msra.mxu0 0.0
    %462 = vmatprep.subr.mxu0 0.0
    %463 = vmatpush2.msra.mxu0 0.0
    %464 = vmatprep.subr.mxu0 0.0
    %465 = vmatpush2.msra.mxu0 0.0
    %466 = vmatprep.subr.mxu0 0.0
    %467 = vmatpush2.msra.mxu0 0.0
    %468 = vmatprep.mubr.f32.mxu0 0.0
    %469 = vmatmul.mubr.f32.gmra.mxu0 %v381
    %v470 = vpop.f32.mrf.mxu0
    %v471 = vadd.f32 %v378, %v470
    %v472 = vpop.f32.mrf.mxu0
    %473 = vmatprep.mubr.f32.mxu0 0.0
    %474 = vmatmul.mubr.f32.gmra.mxu0 %v384
    %v475 = vpop.f32.mrf.mxu0
    %v476 = vadd.f32 %v378, %v475
    %v477 = vpop.f32.mrf.mxu0
    %478 = vmatprep.mubr.f32.mxu0 0.0
    %479 = vmatmul.mubr.f32.gmra.mxu0 %v387
    %v480 = vpop.f32.mrf.mxu0
    %v481 = vadd.f32 %v378, %v480
    %v482 = vpop.f32.mrf.mxu0
    %483 = vmatprep.mubr.f32.mxu0 0.0
    %484 = vmatmul.mubr.f32.gmra.mxu0 %v390
    %v485 = vpop.f32.mrf.mxu0
    %v486 = vadd.f32 %v378, %v485
    %v487 = vpop.f32.mrf.mxu0
    %488 = vmatprep.mubr.f32.mxu0 0.0
    %489 = vmatmul.mubr.f32.gmra.mxu0 %v393
    %v490 = vpop.f32.mrf.mxu0
    %v491 = vadd.f32 %v378, %v490
    %v492 = vpop.f32.mrf.mxu0
    %493 = vmatprep.mubr.f32.mxu0 0.0
    %494 = vmatmul.mubr.f32.gmra.mxu0 %v396
    %v495 = vpop.f32.mrf.mxu0
    %v496 = vadd.f32 %v378, %v495
    %v497 = vpop.f32.mrf.mxu0
    %498 = vmatprep.mubr.f32.mxu0 0.0
    %499 = vmatmul.mubr.f32.gmra.mxu0 %v399
    %v500 = vpop.f32.mrf.mxu0
    %v501 = vadd.f32 %v378, %v500
    %v502 = vpop.f32.mrf.mxu0
    %503 = vmatprep.mubr.f32.mxu0 0.0
    %504 = vmatmul.mubr.f32.gmra.mxu0 %v402
    %v505 = vpop.f32.mrf.mxu0
    %v506 = vadd.f32 %v378, %v505
    %v507 = vpop.f32.mrf.mxu0
    %508 = vdwg.mxu0
    %513 = vrot.lane.b32.xlu0 %v471, 112
    %v514 = vpop.permute.xlu0 %513
    %515 = vrot.lane.b32.xlu0 %v476, 112
    %v516 = vpop.permute.xlu0 %515
    %517 = vrot.lane.b32.xlu0 %v481, 112
    %v518 = vpop.permute.xlu0 %517
    %519 = vrot.lane.b32.xlu0 %v486, 112
    %v520 = vpop.permute.xlu0 %519
    %vm521 = vcmask 64512
    %v522 = vsel %vm521, %v471, 0
    %v524 = vsel %vm521, %v476, 0
    %v526 = vsel %vm521, %v481, 0
    %v528 = vsel %vm521, %v486, 0
    %v530 = vsel %vm521, %v514, 0
    %v532 = vsel %vm521, %v516, 0
    %v534 = vsel %vm521, %v518, 0
    %v536 = vsel %vm521, %v520, 0
    %538 = vmatprep.subr.mxu0 0.0
    %539 = vmatpush1.xpose.msra.mxu0 0.0
    %540 = vmatprep.subr.mxu0 0.0
    %541 = vmatpush1.xpose.msra.mxu0 0.0
    %542 = vmatprep.subr.mxu0 0.0
    %543 = vmatpush1.xpose.msra.mxu0 0.0
    %544 = vmatprep.subr.mxu0 0.0
    %545 = vmatpush1.xpose.msra.mxu0 0.0
    %546 = vmatprep.subr.mxu0 0.0
    %547 = vmatpush1.xpose.msra.mxu0 0.0
    %548 = vmatprep.subr.mxu0 0.0
    %549 = vmatpush1.xpose.msra.mxu0 0.0
    %550 = vmatprep.subr.mxu0 0.0
    %551 = vmatpush1.xpose.msra.mxu0 0.0
    %552 = vmatprep.subr.mxu0 0.0
    %553 = vmatpush1.xpose.msra.mxu0 0.0
    %554 = vmatprep.subr.mxu0 0.0
    %555 = vmatpush1.xpose.msra.mxu0 0.0
    %556 = vmatprep.subr.mxu0 0.0
    %557 = vmatpush1.xpose.msra.mxu0 0.0
    %558 = vmatprep.subr.mxu0 0.0
    %559 = vmatpush1.xpose.msra.mxu0 0.0
    %560 = vmatprep.subr.mxu0 0.0
    %561 = vmatpush1.xpose.msra.mxu0 0.0
    %562 = vmatprep.subr.mxu0 0.0
    %563 = vmatpush1.xpose.msra.mxu0 %v536
    %564 = vmatprep.subr.mxu0 0.0
    %565 = vmatpush1.xpose.msra.mxu0 %v534
    %566 = vmatprep.subr.mxu0 0.0
    %567 = vmatpush1.xpose.msra.mxu0 %v532
    %568 = vmatprep.subr.mxu0 0.0
    %569 = vmatpush1.xpose.msra.mxu0 %v530
    %570 = vmatprep.subr.mxu0 0.0
    %571 = vmatpush2.xpose.msra.mxu0 0.0
    %572 = vmatprep.subr.mxu0 0.0
    %573 = vmatpush2.xpose.msra.mxu0 0.0
    %574 = vmatprep.subr.mxu0 0.0
    %575 = vmatpush2.xpose.msra.mxu0 0.0
    %576 = vmatprep.subr.mxu0 0.0
    %577 = vmatpush2.xpose.msra.mxu0 0.0
    %578 = vmatprep.subr.mxu0 0.0
    %579 = vmatpush2.xpose.msra.mxu0 0.0
    %580 = vmatprep.subr.mxu0 0.0
    %581 = vmatpush2.xpose.msra.mxu0 0.0
    %582 = vmatprep.subr.mxu0 0.0
    %583 = vmatpush2.xpose.msra.mxu0 0.0
    %584 = vmatprep.subr.mxu0 0.0
    %585 = vmatpush2.xpose.msra.mxu0 0.0
    %586 = vmatprep.subr.mxu0 0.0
    %587 = vmatpush2.xpose.msra.mxu0 0.0
    %588 = vmatprep.subr.mxu0 0.0
    %589 = vmatpush2.xpose.msra.mxu0 0.0
    %590 = vmatprep.subr.mxu0 0.0
    %591 = vmatpush2.xpose.msra.mxu0 0.0
    %592 = vmatprep.subr.mxu0 0.0
    %593 = vmatpush2.xpose.msra.mxu0 0.0
    %594 = vmatprep.subr.mxu0 0.0
    %595 = vmatpush2.xpose.msra.mxu0 0.0
    %596 = vmatprep.subr.mxu0 0.0
    %597 = vmatpush2.xpose.msra.mxu0 0.0
    %598 = vmatprep.subr.mxu0 0.0
    %599 = vmatpush2.xpose.msra.mxu0 0.0
    %600 = vmatprep.subr.mxu0 0.0
    %601 = vmatpush2.xpose.msra.mxu0 0.0
    %602 = vmatprep.mubr.f32.mxu0 0.0
    %603 = vmatmul.mubr.f32.gmra.mxu0 %v522
    %v604 = vpop.f32.mrf.mxu0
    %v605 = vadd.f32 0.0, %v604
    %v606 = vpop.f32.mrf.mxu0
    %607 = vmatprep.mubr.f32.mxu0 0.0
    %608 = vmatmul.mubr.f32.gmra.mxu0 %v524
    %v609 = vpop.f32.mrf.mxu0
    %v610 = vadd.f32 0.0, %v609
    %v611 = vpop.f32.mrf.mxu0
    %612 = vmatprep.mubr.f32.mxu0 0.0
    %613 = vmatmul.mubr.f32.gmra.mxu0 %v526
    %v614 = vpop.f32.mrf.mxu0
    %v615 = vadd.f32 0.0, %v614
    %v616 = vpop.f32.mrf.mxu0
    %617 = vmatprep.mubr.f32.mxu0 0.0
    %618 = vmatmul.mubr.f32.gmra.mxu0 %v528
    %v619 = vpop.f32.mrf.mxu0
    %v620 = vadd.f32 0.0, %v619
    %v621 = vpop.f32.mrf.mxu0
    %622 = vdwg.mxu0
    %627 = vrot.lane.b32.xlu0 %v491, 112
    %v628 = vpop.permute.xlu0 %627
    %629 = vrot.lane.b32.xlu0 %v496, 112
    %v630 = vpop.permute.xlu0 %629
    %631 = vrot.lane.b32.xlu0 %v501, 112
    %v632 = vpop.permute.xlu0 %631
    %633 = vrot.lane.b32.xlu0 %v506, 112
    %v634 = vpop.permute.xlu0 %633
    %v635 = vsel %vm521, %v491, 0
    %v637 = vsel %vm521, %v496, 0
    %v639 = vsel %vm521, %v501, 0
    %v641 = vsel %vm521, %v506, 0
    %v643 = vsel %vm521, %v628, 0
    %v645 = vsel %vm521, %v630, 0
    %v647 = vsel %vm521, %v632, 0
    %v649 = vsel %vm521, %v634, 0
    %651 = vmatprep.subr.mxu0 0.0
    %652 = vmatpush1.xpose.msra.mxu0 0.0
    %653 = vmatprep.subr.mxu0 0.0
    %654 = vmatpush1.xpose.msra.mxu0 0.0
    %655 = vmatprep.subr.mxu0 0.0
    %656 = vmatpush1.xpose.msra.mxu0 0.0
    %657 = vmatprep.subr.mxu0 0.0
    %658 = vmatpush1.xpose.msra.mxu0 0.0
    %659 = vmatprep.subr.mxu0 0.0
    %660 = vmatpush1.xpose.msra.mxu0 0.0
    %661 = vmatprep.subr.mxu0 0.0
    %662 = vmatpush1.xpose.msra.mxu0 0.0
    %663 = vmatprep.subr.mxu0 0.0
    %664 = vmatpush1.xpose.msra.mxu0 0.0
    %665 = vmatprep.subr.mxu0 0.0
    %666 = vmatpush1.xpose.msra.mxu0 0.0
    %667 = vmatprep.subr.mxu0 0.0
    %668 = vmatpush1.xpose.msra.mxu0 0.0
    %669 = vmatprep.subr.mxu0 0.0
    %670 = vmatpush1.xpose.msra.mxu0 0.0
    %671 = vmatprep.subr.mxu0 0.0
    %672 = vmatpush1.xpose.msra.mxu0 0.0
    %673 = vmatprep.subr.mxu0 0.0
    %674 = vmatpush1.xpose.msra.mxu0 0.0
    %675 = vmatprep.subr.mxu0 0.0
    %676 = vmatpush1.xpose.msra.mxu0 %v649
    %677 = vmatprep.subr.mxu0 0.0
    %678 = vmatpush1.xpose.msra.mxu0 %v647
    %679 = vmatprep.subr.mxu0 0.0
    %680 = vmatpush1.xpose.msra.mxu0 %v645
    %681 = vmatprep.subr.mxu0 0.0
    %682 = vmatpush1.xpose.msra.mxu0 %v643
    %683 = vmatprep.subr.mxu0 0.0
    %684 = vmatpush2.xpose.msra.mxu0 0.0
    %685 = vmatprep.subr.mxu0 0.0
    %686 = vmatpush2.xpose.msra.mxu0 0.0
    %687 = vmatprep.subr.mxu0 0.0
    %688 = vmatpush2.xpose.msra.mxu0 0.0
    %689 = vmatprep.subr.mxu0 0.0
    %690 = vmatpush2.xpose.msra.mxu0 0.0
    %691 = vmatprep.subr.mxu0 0.0
    %692 = vmatpush2.xpose.msra.mxu0 0.0
    %693 = vmatprep.subr.mxu0 0.0
    %694 = vmatpush2.xpose.msra.mxu0 0.0
    %695 = vmatprep.subr.mxu0 0.0
    %696 = vmatpush2.xpose.msra.mxu0 0.0
    %697 = vmatprep.subr.mxu0 0.0
    %698 = vmatpush2.xpose.msra.mxu0 0.0
    %699 = vmatprep.subr.mxu0 0.0
    %700 = vmatpush2.xpose.msra.mxu0 0.0
    %701 = vmatprep.subr.mxu0 0.0
    %702 = vmatpush2.xpose.msra.mxu0 0.0
    %703 = vmatprep.subr.mxu0 0.0
    %704 = vmatpush2.xpose.msra.mxu0 0.0
    %705 = vmatprep.subr.mxu0 0.0
    %706 = vmatpush2.xpose.msra.mxu0 0.0
    %707 = vmatprep.subr.mxu0 0.0
    %708 = vmatpush2.xpose.msra.mxu0 0.0
    %709 = vmatprep.subr.mxu0 0.0
    %710 = vmatpush2.xpose.msra.mxu0 0.0
    %711 = vmatprep.subr.mxu0 0.0
    %712 = vmatpush2.xpose.msra.mxu0 0.0
    %713 = vmatprep.subr.mxu0 0.0
    %714 = vmatpush2.xpose.msra.mxu0 0.0
    %715 = vmatprep.mubr.f32.mxu0 0.0
    %716 = vmatmul.mubr.f32.gmra.mxu0 %v635
    %v717 = vpop.f32.mrf.mxu0
    %v718 = vadd.f32 0.0, %v717
    %v719 = vpop.f32.mrf.mxu0
    %720 = vmatprep.mubr.f32.mxu0 0.0
    %721 = vmatmul.mubr.f32.gmra.mxu0 %v637
    %v722 = vpop.f32.mrf.mxu0
    %v723 = vadd.f32 0.0, %v722
    %v724 = vpop.f32.mrf.mxu0
    %725 = vmatprep.mubr.f32.mxu0 0.0
    %726 = vmatmul.mubr.f32.gmra.mxu0 %v639
    %v727 = vpop.f32.mrf.mxu0
    %v728 = vadd.f32 0.0, %v727
    %v729 = vpop.f32.mrf.mxu0
    %730 = vmatprep.mubr.f32.mxu0 0.0
    %731 = vmatmul.mubr.f32.gmra.mxu0 %v641
    %v732 = vpop.f32.mrf.mxu0
    %v733 = vadd.f32 0.0, %v732
    %v734 = vpop.f32.mrf.mxu0
    %735 = vdwg.mxu0
    %v736 = vmul.f32 %v605, 0.35355338
    %v737 = vmul.f32 %v610, 0.35355338
    %v738 = vmul.f32 %v615, 0.35355338
    %v739 = vmul.f32 %v620, 0.35355338
    %v740 = vmul.f32 %v718, 0.35355338
    %v741 = vmul.f32 %v723, 0.35355338
    %v742 = vmul.f32 %v728, 0.35355338
    %v743 = vmul.f32 %v733, 0.35355338
    %v744 = vadd.f32 %v736, %v29
    %v745 = vadd.f32 %v737, %v30
    %v746 = vadd.f32 %v738, %v31
    %v747 = vadd.f32 %v739, %v32
    %v748 = vadd.f32 %v740, %v33
    %v749 = vadd.f32 %v741, %v34
    %v750 = vadd.f32 %v742, %v35
    %v751 = vadd.f32 %v743, %v36
    %v752 = vsel %vm379, %v744, -inf
    %753 = vmax.xlane.f32.xlu0 %v752
    %v754 = vpop.xlane.xlu0 %753
    %v755 = vsel %vm379, %v745, -inf
    %756 = vmax.xlane.f32.xlu0 %v755
    %v757 = vpop.xlane.xlu0 %756
    %v758 = vsel %vm379, %v746, -inf
    %759 = vmax.xlane.f32.xlu0 %v758
    %v760 = vpop.xlane.xlu0 %759
    %v761 = vsel %vm379, %v747, -inf
    %762 = vmax.xlane.f32.xlu0 %v761
    %v763 = vpop.xlane.xlu0 %762
    %v764 = vsel %vm379, %v748, -inf
    %765 = vmax.xlane.f32.xlu0 %v764
    %v766 = vpop.xlane.xlu0 %765
    %v767 = vsel %vm379, %v749, -inf
    %768 = vmax.xlane.f32.xlu0 %v767
    %v769 = vpop.xlane.xlu0 %768
    %v770 = vsel %vm379, %v750, -inf
    %771 = vmax.xlane.f32.xlu0 %v770
    %v772 = vpop.xlane.xlu0 %771
    %v773 = vsel %vm379, %v751, -inf
    %774 = vmax.xlane.f32.xlu0 %v773
    %v775 = vpop.xlane.xlu0 %774
    %v776 = vsub.f32 %v744, %v754
    %v777 = vsub.f32 %v745, %v757
    %v778 = vsub.f32 %v746, %v760
    %v779 = vsub.f32 %v747, %v763
    %v780 = vsub.f32 %v748, %v766
    %v781 = vsub.f32 %v749, %v769
    %v782 = vsub.f32 %v750, %v772
    %v783 = vsub.f32 %v751, %v775
    %v784 = vmul.f32 %v776, 1.442695
    %v785 = vpow.pop %v784
    %v786 = vmul.f32 %v777, 1.442695
    %v787 = vpow.pop %v786
    %v788 = vmul.f32 %v778, 1.442695
    %v789 = vpow.pop %v788
    %v790 = vmul.f32 %v779, 1.442695
    %v791 = vpow.pop %v790
    %v792 = vmul.f32 %v780, 1.442695
    %v793 = vpow.pop %v792
    %v794 = vmul.f32 %v781, 1.442695
    %v795 = vpow.pop %v794
    %v796 = vmul.f32 %v782, 1.442695
    %v797 = vpow.pop %v796
    %v798 = vmul.f32 %v783, 1.442695
    %v799 = vpow.pop %v798
    %v800 = vsel %vm379, %v785, 0.0
    %801 = vadd.xlane.f32.xlu0 %v800
    %v802 = vpop.xlane.xlu0 %801
    %v803 = vsel %vm379, %v787, 0.0
    %804 = vadd.xlane.f32.xlu0 %v803
    %v805 = vpop.xlane.xlu0 %804
    %v806 = vsel %vm379, %v789, 0.0
    %807 = vadd.xlane.f32.xlu0 %v806
    %v808 = vpop.xlane.xlu0 %807
    %v809 = vsel %vm379, %v791, 0.0
    %810 = vadd.xlane.f32.xlu0 %v809
    %v811 = vpop.xlane.xlu0 %810
    %v812 = vsel %vm379, %v793, 0.0
    %813 = vadd.xlane.f32.xlu0 %v812
    %v814 = vpop.xlane.xlu0 %813
    %v815 = vsel %vm379, %v795, 0.0
    %816 = vadd.xlane.f32.xlu0 %v815
    %v817 = vpop.xlane.xlu0 %816
    %v818 = vsel %vm379, %v797, 0.0
    %819 = vadd.xlane.f32.xlu0 %v818
    %v820 = vpop.xlane.xlu0 %819
    %v821 = vsel %vm379, %v799, 0.0
    %822 = vadd.xlane.f32.xlu0 %v821
    %v823 = vpop.xlane.xlu0 %822
    %v824 = vrcp.pop %v802
    %v825 = vrcp.pop %v805
    %v826 = vrcp.pop %v808
    %v827 = vrcp.pop %v811
    %v828 = vrcp.pop %v814
    %v829 = vrcp.pop %v817
    %v830 = vrcp.pop %v820
    %v831 = vrcp.pop %v823
    %v832 = vmul.f32 %v802, %v824
    %v833 = vmul.f32 %v805, %v825
    %v834 = vmul.f32 %v808, %v826
    %v835 = vmul.f32 %v811, %v827
    %v836 = vmul.f32 %v814, %v828
    %v837 = vmul.f32 %v817, %v829
    %v838 = vmul.f32 %v820, %v830
    %v839 = vmul.f32 %v823, %v831
    %v840 = vsub.f32 2.0, %v832
    %v841 = vsub.f32 2.0, %v833
    %v842 = vsub.f32 2.0, %v834
    %v843 = vsub.f32 2.0, %v835
    %v844 = vsub.f32 2.0, %v836
    %v845 = vsub.f32 2.0, %v837
    %v846 = vsub.f32 2.0, %v838
    %v847 = vsub.f32 2.0, %v839
    %v848 = vmul.f32 %v824, %v840
    %v849 = vmul.f32 %v825, %v841
    %v850 = vmul.f32 %v826, %v842
    %v851 = vmul.f32 %v827, %v843
    %v852 = vmul.f32 %v828, %v844
    %v853 = vmul.f32 %v829, %v845
    %v854 = vmul.f32 %v830, %v846
    %v855 = vmul.f32 %v831, %v847
    %v856 = vmul.f32 %v802, %v848
    %v857 = vmul.f32 %v805, %v849
    %v858 = vmul.f32 %v808, %v850
    %v859 = vmul.f32 %v811, %v851
    %v860 = vmul.f32 %v814, %v852
    %v861 = vmul.f32 %v817, %v853
    %v862 = vmul.f32 %v820, %v854
    %v863 = vmul.f32 %v823, %v855
    %v864 = vsub.f32 2.0, %v856
    %v865 = vsub.f32 2.0, %v857
    %v866 = vsub.f32 2.0, %v858
    %v867 = vsub.f32 2.0, %v859
    %v868 = vsub.f32 2.0, %v860
    %v869 = vsub.f32 2.0, %v861
    %v870 = vsub.f32 2.0, %v862
    %v871 = vsub.f32 2.0, %v863
    %v872 = vmul.f32 %v848, %v864
    %v873 = vmul.f32 %v849, %v865
    %v874 = vmul.f32 %v850, %v866
    %v875 = vmul.f32 %v851, %v867
    %v876 = vmul.f32 %v852, %v868
    %v877 = vmul.f32 %v853, %v869
    %v878 = vmul.f32 %v854, %v870
    %v879 = vmul.f32 %v855, %v871
    %v880 = vmul.f32 %v785, %v872
    %v881 = vmul.f32 %v787, %v873
    %v882 = vmul.f32 %v789, %v874
    %v883 = vmul.f32 %v791, %v875
    %v884 = vmul.f32 %v793, %v876
    %v885 = vmul.f32 %v795, %v877
    %v886 = vmul.f32 %v797, %v878
    %v887 = vmul.f32 %v799, %v879
    %888 = vrot.lane.b32.xlu0 %v471, 96
    %v889 = vpop.permute.xlu0 %888
    %890 = vrot.lane.b32.xlu0 %v476, 96
    %v891 = vpop.permute.xlu0 %890
    %892 = vrot.lane.b32.xlu0 %v481, 96
    %v893 = vpop.permute.xlu0 %892
    %894 = vrot.lane.b32.xlu0 %v486, 96
    %v895 = vpop.permute.xlu0 %894
    %v901 = vsel %vm379, %v880, 0
    %v904 = vsel %vm379, %v881, 0
    %v907 = vsel %vm379, %v882, 0
    %v910 = vsel %vm379, %v883, 0
    %912 = vmatprep.subr.mxu0 0.0
    %913 = vmatpush1.msra.mxu0 0.0
    %914 = vmatprep.subr.mxu0 0.0
    %915 = vmatpush1.msra.mxu0 0.0
    %916 = vmatprep.subr.mxu0 0.0
    %917 = vmatpush1.msra.mxu0 0.0
    %918 = vmatprep.subr.mxu0 0.0
    %919 = vmatpush1.msra.mxu0 0.0
    %920 = vmatprep.subr.mxu0 0.0
    %921 = vmatpush1.msra.mxu0 0.0
    %922 = vmatprep.subr.mxu0 0.0
    %923 = vmatpush1.msra.mxu0 0.0
    %924 = vmatprep.subr.mxu0 0.0
    %925 = vmatpush1.msra.mxu0 0.0
    %926 = vmatprep.subr.mxu0 0.0
    %927 = vmatpush1.msra.mxu0 0.0
    %928 = vmatprep.subr.mxu0 0.0
    %929 = vmatpush1.msra.mxu0 0.0
    %930 = vmatprep.subr.mxu0 0.0
    %931 = vmatpush1.msra.mxu0 0.0
    %932 = vmatprep.subr.mxu0 0.0
    %933 = vmatpush1.msra.mxu0 0.0
    %934 = vmatprep.subr.mxu0 0.0
    %935 = vmatpush1.msra.mxu0 0.0
    %936 = vmatprep.subr.mxu0 0.0
    %937 = vmatpush1.msra.mxu0 %v895
    %938 = vmatprep.subr.mxu0 0.0
    %939 = vmatpush1.msra.mxu0 %v893
    %940 = vmatprep.subr.mxu0 0.0
    %941 = vmatpush1.msra.mxu0 %v891
    %942 = vmatprep.subr.mxu0 0.0
    %943 = vmatpush1.msra.mxu0 %v889
    %944 = vmatprep.subr.mxu0 0.0
    %945 = vmatpush2.msra.mxu0 0.0
    %946 = vmatprep.subr.mxu0 0.0
    %947 = vmatpush2.msra.mxu0 0.0
    %948 = vmatprep.subr.mxu0 0.0
    %949 = vmatpush2.msra.mxu0 0.0
    %950 = vmatprep.subr.mxu0 0.0
    %951 = vmatpush2.msra.mxu0 0.0
    %952 = vmatprep.subr.mxu0 0.0
    %953 = vmatpush2.msra.mxu0 0.0
    %954 = vmatprep.subr.mxu0 0.0
    %955 = vmatpush2.msra.mxu0 0.0
    %956 = vmatprep.subr.mxu0 0.0
    %957 = vmatpush2.msra.mxu0 0.0
    %958 = vmatprep.subr.mxu0 0.0
    %959 = vmatpush2.msra.mxu0 0.0
    %960 = vmatprep.subr.mxu0 0.0
    %961 = vmatpush2.msra.mxu0 0.0
    %962 = vmatprep.subr.mxu0 0.0
    %963 = vmatpush2.msra.mxu0 0.0
    %964 = vmatprep.subr.mxu0 0.0
    %965 = vmatpush2.msra.mxu0 0.0
    %966 = vmatprep.subr.mxu0 0.0
    %967 = vmatpush2.msra.mxu0 0.0
    %968 = vmatprep.subr.mxu0 0.0
    %969 = vmatpush2.msra.mxu0 0.0
    %970 = vmatprep.subr.mxu0 0.0
    %971 = vmatpush2.msra.mxu0 0.0
    %972 = vmatprep.subr.mxu0 0.0
    %973 = vmatpush2.msra.mxu0 0.0
    %974 = vmatprep.subr.mxu0 0.0
    %975 = vmatpush2.msra.mxu0 0.0
    %976 = vmatprep.mubr.f32.mxu0 0.0
    %977 = vmatmul.mubr.f32.gmra.mxu0 %v901
    %v978 = vpop.f32.mrf.mxu0
    %v979 = vadd.f32 0.0, %v978
    %v980 = vpop.f32.mrf.mxu0
    %981 = vmatprep.mubr.f32.mxu0 0.0
    %982 = vmatmul.mubr.f32.gmra.mxu0 %v904
    %v983 = vpop.f32.mrf.mxu0
    %v984 = vadd.f32 0.0, %v983
    %v985 = vpop.f32.mrf.mxu0
    %986 = vmatprep.mubr.f32.mxu0 0.0
    %987 = vmatmul.mubr.f32.gmra.mxu0 %v907
    %v988 = vpop.f32.mrf.mxu0
    %v989 = vadd.f32 0.0, %v988
    %v990 = vpop.f32.mrf.mxu0
    %991 = vmatprep.mubr.f32.mxu0 0.0
    %992 = vmatmul.mubr.f32.gmra.mxu0 %v910
    %v993 = vpop.f32.mrf.mxu0
    %v994 = vadd.f32 0.0, %v993
    %v995 = vpop.f32.mrf.mxu0
    %996 = vdwg.mxu0
    %997 = vrot.lane.b32.xlu0 %v491, 96
    %v998 = vpop.permute.xlu0 %997
    %999 = vrot.lane.b32.xlu0 %v496, 96
    %v1000 = vpop.permute.xlu0 %999
    %1001 = vrot.lane.b32.xlu0 %v501, 96
    %v1002 = vpop.permute.xlu0 %1001
    %1003 = vrot.lane.b32.xlu0 %v506, 96
    %v1004 = vpop.permute.xlu0 %1003
    %v1010 = vsel %vm379, %v884, 0
    %v1013 = vsel %vm379, %v885, 0
    %v1016 = vsel %vm379, %v886, 0
    %v1019 = vsel %vm379, %v887, 0
    %1021 = vmatprep.subr.mxu0 0.0
    %1022 = vmatpush1.msra.mxu0 0.0
    %1023 = vmatprep.subr.mxu0 0.0
    %1024 = vmatpush1.msra.mxu0 0.0
    %1025 = vmatprep.subr.mxu0 0.0
    %1026 = vmatpush1.msra.mxu0 0.0
    %1027 = vmatprep.subr.mxu0 0.0
    %1028 = vmatpush1.msra.mxu0 0.0
    %1029 = vmatprep.subr.mxu0 0.0
    %1030 = vmatpush1.msra.mxu0 0.0
    %1031 = vmatprep.subr.mxu0 0.0
    %1032 = vmatpush1.msra.mxu0 0.0
    %1033 = vmatprep.subr.mxu0 0.0
    %1034 = vmatpush1.msra.mxu0 0.0
    %1035 = vmatprep.subr.mxu0 0.0
    %1036 = vmatpush1.msra.mxu0 0.0
    %1037 = vmatprep.subr.mxu0 0.0
    %1038 = vmatpush1.msra.mxu0 0.0
    %1039 = vmatprep.subr.mxu0 0.0
    %1040 = vmatpush1.msra.mxu0 0.0
    %1041 = vmatprep.subr.mxu0 0.0
    %1042 = vmatpush1.msra.mxu0 0.0
    %1043 = vmatprep.subr.mxu0 0.0
    %1044 = vmatpush1.msra.mxu0 0.0
    %1045 = vmatprep.subr.mxu0 0.0
    %1046 = vmatpush1.msra.mxu0 %v1004
    %1047 = vmatprep.subr.mxu0 0.0
    %1048 = vmatpush1.msra.mxu0 %v1002
    %1049 = vmatprep.subr.mxu0 0.0
    %1050 = vmatpush1.msra.mxu0 %v1000
    %1051 = vmatprep.subr.mxu0 0.0
    %1052 = vmatpush1.msra.mxu0 %v998
    %1053 = vmatprep.subr.mxu0 0.0
    %1054 = vmatpush2.msra.mxu0 0.0
    %1055 = vmatprep.subr.mxu0 0.0
    %1056 = vmatpush2.msra.mxu0 0.0
    %1057 = vmatprep.subr.mxu0 0.0
    %1058 = vmatpush2.msra.mxu0 0.0
    %1059 = vmatprep.subr.mxu0 0.0
    %1060 = vmatpush2.msra.mxu0 0.0
    %1061 = vmatprep.subr.mxu0 0.0
    %1062 = vmatpush2.msra.mxu0 0.0
    %1063 = vmatprep.subr.mxu0 0.0
    %1064 = vmatpush2.msra.mxu0 0.0
    %1065 = vmatprep.subr.mxu0 0.0
    %1066 = vmatpush2.msra.mxu0 0.0
    %1067 = vmatprep.subr.mxu0 0.0
    %1068 = vmatpush2.msra.mxu0 0.0
    %1069 = vmatprep.subr.mxu0 0.0
    %1070 = vmatpush2.msra.mxu0 0.0
    %1071 = vmatprep.subr.mxu0 0.0
    %1072 = vmatpush2.msra.mxu0 0.0
    %1073 = vmatprep.subr.mxu0 0.0
    %1074 = vmatpush2.msra.mxu0 0.0
    %1075 = vmatprep.subr.mxu0 0.0
    %1076 = vmatpush2.msra.mxu0 0.0
    %1077 = vmatprep.subr.mxu0 0.0
    %1078 = vmatpush2.msra.mxu0 0.0
    %1079 = vmatprep.subr.mxu0 0.0
    %1080 = vmatpush2.msra.mxu0 0.0
    %1081 = vmatprep.subr.mxu0 0.0
    %1082 = vmatpush2.msra.mxu0 0.0
    %1083 = vmatprep.subr.mxu0 0.0
    %1084 = vmatpush2.msra.mxu0 0.0
    %1085 = vmatprep.mubr.f32.mxu0 0.0
    %1086 = vmatmul.mubr.f32.gmra.mxu0 %v1010
    %v1087 = vpop.f32.mrf.mxu0
    %v1088 = vadd.f32 0.0, %v1087
    %v1089 = vpop.f32.mrf.mxu0
    %1090 = vmatprep.mubr.f32.mxu0 0.0
    %1091 = vmatmul.mubr.f32.gmra.mxu0 %v1013
    %v1092 = vpop.f32.mrf.mxu0
    %v1093 = vadd.f32 0.0, %v1092
    %v1094 = vpop.f32.mrf.mxu0
    %1095 = vmatprep.mubr.f32.mxu0 0.0
    %1096 = vmatmul.mubr.f32.gmra.mxu0 %v1016
    %v1097 = vpop.f32.mrf.mxu0
    %v1098 = vadd.f32 0.0, %v1097
    %v1099 = vpop.f32.mrf.mxu0
    %1100 = vmatprep.mubr.f32.mxu0 0.0
    %1101 = vmatmul.mubr.f32.gmra.mxu0 %v1019
    %v1102 = vpop.f32.mrf.mxu0
    %v1103 = vadd.f32 0.0, %v1102
    %v1104 = vpop.f32.mrf.mxu0
    %1105 = vdwg.mxu0
    %1106 = vrot.lane.b32.xlu0 %v471, 120
    %v1107 = vpop.permute.xlu0 %1106
    %1108 = vrot.lane.b32.xlu0 %v476, 120
    %v1109 = vpop.permute.xlu0 %1108
    %1110 = vrot.lane.b32.xlu0 %v481, 120
    %v1111 = vpop.permute.xlu0 %1110
    %1112 = vrot.lane.b32.xlu0 %v486, 120
    %v1113 = vpop.permute.xlu0 %1112
    %1114 = vrot.lane.b32.xlu0 %v471, 104
    %v1115 = vpop.permute.xlu0 %1114
    %1116 = vrot.lane.b32.xlu0 %v476, 104
    %v1117 = vpop.permute.xlu0 %1116
    %1118 = vrot.lane.b32.xlu0 %v481, 104
    %v1119 = vpop.permute.xlu0 %1118
    %1120 = vrot.lane.b32.xlu0 %v486, 104
    %v1121 = vpop.permute.xlu0 %1120
    %v1122 = vsel %vm521, %v1107, 0
    %v1124 = vsel %vm521, %v1109, 0
    %v1126 = vsel %vm521, %v1111, 0
    %v1128 = vsel %vm521, %v1113, 0
    %v1130 = vsel %vm521, %v1115, 0
    %v1132 = vsel %vm521, %v1117, 0
    %v1134 = vsel %vm521, %v1119, 0
    %v1136 = vsel %vm521, %v1121, 0
    %1138 = vmatprep.subr.mxu0 0.0
    %1139 = vmatpush1.xpose.msra.mxu0 0.0
    %1140 = vmatprep.subr.mxu0 0.0
    %1141 = vmatpush1.xpose.msra.mxu0 0.0
    %1142 = vmatprep.subr.mxu0 0.0
    %1143 = vmatpush1.xpose.msra.mxu0 0.0
    %1144 = vmatprep.subr.mxu0 0.0
    %1145 = vmatpush1.xpose.msra.mxu0 0.0
    %1146 = vmatprep.subr.mxu0 0.0
    %1147 = vmatpush1.xpose.msra.mxu0 0.0
    %1148 = vmatprep.subr.mxu0 0.0
    %1149 = vmatpush1.xpose.msra.mxu0 0.0
    %1150 = vmatprep.subr.mxu0 0.0
    %1151 = vmatpush1.xpose.msra.mxu0 0.0
    %1152 = vmatprep.subr.mxu0 0.0
    %1153 = vmatpush1.xpose.msra.mxu0 0.0
    %1154 = vmatprep.subr.mxu0 0.0
    %1155 = vmatpush1.xpose.msra.mxu0 0.0
    %1156 = vmatprep.subr.mxu0 0.0
    %1157 = vmatpush1.xpose.msra.mxu0 0.0
    %1158 = vmatprep.subr.mxu0 0.0
    %1159 = vmatpush1.xpose.msra.mxu0 0.0
    %1160 = vmatprep.subr.mxu0 0.0
    %1161 = vmatpush1.xpose.msra.mxu0 0.0
    %1162 = vmatprep.subr.mxu0 0.0
    %1163 = vmatpush1.xpose.msra.mxu0 %v1136
    %1164 = vmatprep.subr.mxu0 0.0
    %1165 = vmatpush1.xpose.msra.mxu0 %v1134
    %1166 = vmatprep.subr.mxu0 0.0
    %1167 = vmatpush1.xpose.msra.mxu0 %v1132
    %1168 = vmatprep.subr.mxu0 0.0
    %1169 = vmatpush1.xpose.msra.mxu0 %v1130
    %1170 = vmatprep.subr.mxu0 0.0
    %1171 = vmatpush2.xpose.msra.mxu0 0.0
    %1172 = vmatprep.subr.mxu0 0.0
    %1173 = vmatpush2.xpose.msra.mxu0 0.0
    %1174 = vmatprep.subr.mxu0 0.0
    %1175 = vmatpush2.xpose.msra.mxu0 0.0
    %1176 = vmatprep.subr.mxu0 0.0
    %1177 = vmatpush2.xpose.msra.mxu0 0.0
    %1178 = vmatprep.subr.mxu0 0.0
    %1179 = vmatpush2.xpose.msra.mxu0 0.0
    %1180 = vmatprep.subr.mxu0 0.0
    %1181 = vmatpush2.xpose.msra.mxu0 0.0
    %1182 = vmatprep.subr.mxu0 0.0
    %1183 = vmatpush2.xpose.msra.mxu0 0.0
    %1184 = vmatprep.subr.mxu0 0.0
    %1185 = vmatpush2.xpose.msra.mxu0 0.0
    %1186 = vmatprep.subr.mxu0 0.0
    %1187 = vmatpush2.xpose.msra.mxu0 0.0
    %1188 = vmatprep.subr.mxu0 0.0
    %1189 = vmatpush2.xpose.msra.mxu0 0.0
    %1190 = vmatprep.subr.mxu0 0.0
    %1191 = vmatpush2.xpose.msra.mxu0 0.0
    %1192 = vmatprep.subr.mxu0 0.0
    %1193 = vmatpush2.xpose.msra.mxu0 0.0
    %1194 = vmatprep.subr.mxu0 0.0
    %1195 = vmatpush2.xpose.msra.mxu0 0.0
    %1196 = vmatprep.subr.mxu0 0.0
    %1197 = vmatpush2.xpose.msra.mxu0 0.0
    %1198 = vmatprep.subr.mxu0 0.0
    %1199 = vmatpush2.xpose.msra.mxu0 0.0
    %1200 = vmatprep.subr.mxu0 0.0
    %1201 = vmatpush2.xpose.msra.mxu0 0.0
    %1202 = vmatprep.mubr.f32.mxu0 0.0
    %1203 = vmatmul.mubr.f32.gmra.mxu0 %v1122
    %v1204 = vpop.f32.mrf.mxu0
    %v1205 = vadd.f32 0.0, %v1204
    %v1206 = vpop.f32.mrf.mxu0
    %1207 = vmatprep.mubr.f32.mxu0 0.0
    %1208 = vmatmul.mubr.f32.gmra.mxu0 %v1124
    %v1209 = vpop.f32.mrf.mxu0
    %v1210 = vadd.f32 0.0, %v1209
    %v1211 = vpop.f32.mrf.mxu0
    %1212 = vmatprep.mubr.f32.mxu0 0.0
    %1213 = vmatmul.mubr.f32.gmra.mxu0 %v1126
    %v1214 = vpop.f32.mrf.mxu0
    %v1215 = vadd.f32 0.0, %v1214
    %v1216 = vpop.f32.mrf.mxu0
    %1217 = vmatprep.mubr.f32.mxu0 0.0
    %1218 = vmatmul.mubr.f32.gmra.mxu0 %v1128
    %v1219 = vpop.f32.mrf.mxu0
    %v1220 = vadd.f32 0.0, %v1219
    %v1221 = vpop.f32.mrf.mxu0
    %1222 = vdwg.mxu0
    %1223 = vrot.lane.b32.xlu0 %v491, 120
    %v1224 = vpop.permute.xlu0 %1223
    %1225 = vrot.lane.b32.xlu0 %v496, 120
    %v1226 = vpop.permute.xlu0 %1225
    %1227 = vrot.lane.b32.xlu0 %v501, 120
    %v1228 = vpop.permute.xlu0 %1227
    %1229 = vrot.lane.b32.xlu0 %v506, 120
    %v1230 = vpop.permute.xlu0 %1229
    %1231 = vrot.lane.b32.xlu0 %v491, 104
    %v1232 = vpop.permute.xlu0 %1231
    %1233 = vrot.lane.b32.xlu0 %v496, 104
    %v1234 = vpop.permute.xlu0 %1233
    %1235 = vrot.lane.b32.xlu0 %v501, 104
    %v1236 = vpop.permute.xlu0 %1235
    %1237 = vrot.lane.b32.xlu0 %v506, 104
    %v1238 = vpop.permute.xlu0 %1237
    %v1239 = vsel %vm521, %v1224, 0
    %v1241 = vsel %vm521, %v1226, 0
    %v1243 = vsel %vm521, %v1228, 0
    %v1245 = vsel %vm521, %v1230, 0
    %v1247 = vsel %vm521, %v1232, 0
    %v1249 = vsel %vm521, %v1234, 0
    %v1251 = vsel %vm521, %v1236, 0
    %v1253 = vsel %vm521, %v1238, 0
    %1255 = vmatprep.subr.mxu0 0.0
    %1256 = vmatpush1.xpose.msra.mxu0 0.0
    %1257 = vmatprep.subr.mxu0 0.0
    %1258 = vmatpush1.xpose.msra.mxu0 0.0
    %1259 = vmatprep.subr.mxu0 0.0
    %1260 = vmatpush1.xpose.msra.mxu0 0.0
    %1261 = vmatprep.subr.mxu0 0.0
    %1262 = vmatpush1.xpose.msra.mxu0 0.0
    %1263 = vmatprep.subr.mxu0 0.0
    %1264 = vmatpush1.xpose.msra.mxu0 0.0
    %1265 = vmatprep.subr.mxu0 0.0
    %1266 = vmatpush1.xpose.msra.mxu0 0.0
    %1267 = vmatprep.subr.mxu0 0.0
    %1268 = vmatpush1.xpose.msra.mxu0 0.0
    %1269 = vmatprep.subr.mxu0 0.0
    %1270 = vmatpush1.xpose.msra.mxu0 0.0
    %1271 = vmatprep.subr.mxu0 0.0
    %1272 = vmatpush1.xpose.msra.mxu0 0.0
    %1273 = vmatprep.subr.mxu0 0.0
    %1274 = vmatpush1.xpose.msra.mxu0 0.0
    %1275 = vmatprep.subr.mxu0 0.0
    %1276 = vmatpush1.xpose.msra.mxu0 0.0
    %1277 = vmatprep.subr.mxu0 0.0
    %1278 = vmatpush1.xpose.msra.mxu0 0.0
    %1279 = vmatprep.subr.mxu0 0.0
    %1280 = vmatpush1.xpose.msra.mxu0 %v1253
    %1281 = vmatprep.subr.mxu0 0.0
    %1282 = vmatpush1.xpose.msra.mxu0 %v1251
    %1283 = vmatprep.subr.mxu0 0.0
    %1284 = vmatpush1.xpose.msra.mxu0 %v1249
    %1285 = vmatprep.subr.mxu0 0.0
    %1286 = vmatpush1.xpose.msra.mxu0 %v1247
    %1287 = vmatprep.subr.mxu0 0.0
    %1288 = vmatpush2.xpose.msra.mxu0 0.0
    %1289 = vmatprep.subr.mxu0 0.0
    %1290 = vmatpush2.xpose.msra.mxu0 0.0
    %1291 = vmatprep.subr.mxu0 0.0
    %1292 = vmatpush2.xpose.msra.mxu0 0.0
    %1293 = vmatprep.subr.mxu0 0.0
    %1294 = vmatpush2.xpose.msra.mxu0 0.0
    %1295 = vmatprep.subr.mxu0 0.0
    %1296 = vmatpush2.xpose.msra.mxu0 0.0
    %1297 = vmatprep.subr.mxu0 0.0
    %1298 = vmatpush2.xpose.msra.mxu0 0.0
    %1299 = vmatprep.subr.mxu0 0.0
    %1300 = vmatpush2.xpose.msra.mxu0 0.0
    %1301 = vmatprep.subr.mxu0 0.0
    %1302 = vmatpush2.xpose.msra.mxu0 0.0
    %1303 = vmatprep.subr.mxu0 0.0
    %1304 = vmatpush2.xpose.msra.mxu0 0.0
    %1305 = vmatprep.subr.mxu0 0.0
    %1306 = vmatpush2.xpose.msra.mxu0 0.0
    %1307 = vmatprep.subr.mxu0 0.0
    %1308 = vmatpush2.xpose.msra.mxu0 0.0
    %1309 = vmatprep.subr.mxu0 0.0
    %1310 = vmatpush2.xpose.msra.mxu0 0.0
    %1311 = vmatprep.subr.mxu0 0.0
    %1312 = vmatpush2.xpose.msra.mxu0 0.0
    %1313 = vmatprep.subr.mxu0 0.0
    %1314 = vmatpush2.xpose.msra.mxu0 0.0
    %1315 = vmatprep.subr.mxu0 0.0
    %1316 = vmatpush2.xpose.msra.mxu0 0.0
    %1317 = vmatprep.subr.mxu0 0.0
    %1318 = vmatpush2.xpose.msra.mxu0 0.0
    %1319 = vmatprep.mubr.f32.mxu0 0.0
    %1320 = vmatmul.mubr.f32.gmra.mxu0 %v1239
    %v1321 = vpop.f32.mrf.mxu0
    %v1322 = vadd.f32 0.0, %v1321
    %v1323 = vpop.f32.mrf.mxu0
    %1324 = vmatprep.mubr.f32.mxu0 0.0
    %1325 = vmatmul.mubr.f32.gmra.mxu0 %v1241
    %v1326 = vpop.f32.mrf.mxu0
    %v1327 = vadd.f32 0.0, %v1326
    %v1328 = vpop.f32.mrf.mxu0
    %1329 = vmatprep.mubr.f32.mxu0 0.0
    %1330 = vmatmul.mubr.f32.gmra.mxu0 %v1243
    %v1331 = vpop.f32.mrf.mxu0
    %v1332 = vadd.f32 0.0, %v1331
    %v1333 = vpop.f32.mrf.mxu0
    %1334 = vmatprep.mubr.f32.mxu0 0.0
    %1335 = vmatmul.mubr.f32.gmra.mxu0 %v1245
    %v1336 = vpop.f32.mrf.mxu0
    %v1337 = vadd.f32 0.0, %v1336
    %v1338 = vpop.f32.mrf.mxu0
    %1339 = vdwg.mxu0
    %v1340 = vmul.f32 %v1205, 0.35355338
    %v1341 = vmul.f32 %v1210, 0.35355338
    %v1342 = vmul.f32 %v1215, 0.35355338
    %v1343 = vmul.f32 %v1220, 0.35355338
    %v1344 = vmul.f32 %v1322, 0.35355338
    %v1345 = vmul.f32 %v1327, 0.35355338
    %v1346 = vmul.f32 %v1332, 0.35355338
    %v1347 = vmul.f32 %v1337, 0.35355338
    %v1348 = vadd.f32 %v1340, %v29
    %v1349 = vadd.f32 %v1341, %v30
    %v1350 = vadd.f32 %v1342, %v31
    %v1351 = vadd.f32 %v1343, %v32
    %v1352 = vadd.f32 %v1344, %v33
    %v1353 = vadd.f32 %v1345, %v34
    %v1354 = vadd.f32 %v1346, %v35
    %v1355 = vadd.f32 %v1347, %v36
    %v1356 = vsel %vm379, %v1348, -inf
    %1357 = vmax.xlane.f32.xlu0 %v1356
    %v1358 = vpop.xlane.xlu0 %1357
    %v1359 = vsel %vm379, %v1349, -inf
    %1360 = vmax.xlane.f32.xlu0 %v1359
    %v1361 = vpop.xlane.xlu0 %1360
    %v1362 = vsel %vm379, %v1350, -inf
    %1363 = vmax.xlane.f32.xlu0 %v1362
    %v1364 = vpop.xlane.xlu0 %1363
    %v1365 = vsel %vm379, %v1351, -inf
    %1366 = vmax.xlane.f32.xlu0 %v1365
    %v1367 = vpop.xlane.xlu0 %1366
    %v1368 = vsel %vm379, %v1352, -inf
    %1369 = vmax.xlane.f32.xlu0 %v1368
    %v1370 = vpop.xlane.xlu0 %1369
    %v1371 = vsel %vm379, %v1353, -inf
    %1372 = vmax.xlane.f32.xlu0 %v1371
    %v1373 = vpop.xlane.xlu0 %1372
    %v1374 = vsel %vm379, %v1354, -inf
    %1375 = vmax.xlane.f32.xlu0 %v1374
    %v1376 = vpop.xlane.xlu0 %1375
    %v1377 = vsel %vm379, %v1355, -inf
    %1378 = vmax.xlane.f32.xlu0 %v1377
    %v1379 = vpop.xlane.xlu0 %1378
    %v1380 = vsub.f32 %v1348, %v1358
    %v1381 = vsub.f32 %v1349, %v1361
    %v1382 = vsub.f32 %v1350, %v1364
    %v1383 = vsub.f32 %v1351, %v1367
    %v1384 = vsub.f32 %v1352, %v1370
    %v1385 = vsub.f32 %v1353, %v1373
    %v1386 = vsub.f32 %v1354, %v1376
    %v1387 = vsub.f32 %v1355, %v1379
    %v1388 = vmul.f32 %v1380, 1.442695
    %v1389 = vpow.pop %v1388
    %v1390 = vmul.f32 %v1381, 1.442695
    %v1391 = vpow.pop %v1390
    %v1392 = vmul.f32 %v1382, 1.442695
    %v1393 = vpow.pop %v1392
    %v1394 = vmul.f32 %v1383, 1.442695
    %v1395 = vpow.pop %v1394
    %v1396 = vmul.f32 %v1384, 1.442695
    %v1397 = vpow.pop %v1396
    %v1398 = vmul.f32 %v1385, 1.442695
    %v1399 = vpow.pop %v1398
    %v1400 = vmul.f32 %v1386, 1.442695
    %v1401 = vpow.pop %v1400
    %v1402 = vmul.f32 %v1387, 1.442695
    %v1403 = vpow.pop %v1402
    %v1404 = vsel %vm379, %v1389, 0.0
    %1405 = vadd.xlane.f32.xlu0 %v1404
    %v1406 = vpop.xlane.xlu0 %1405
    %v1407 = vsel %vm379, %v1391, 0.0
    %1408 = vadd.xlane.f32.xlu0 %v1407
    %v1409 = vpop.xlane.xlu0 %1408
    %v1410 = vsel %vm379, %v1393, 0.0
    %1411 = vadd.xlane.f32.xlu0 %v1410
    %v1412 = vpop.xlane.xlu0 %1411
    %v1413 = vsel %vm379, %v1395, 0.0
    %1414 = vadd.xlane.f32.xlu0 %v1413
    %v1415 = vpop.xlane.xlu0 %1414
    %v1416 = vsel %vm379, %v1397, 0.0
    %1417 = vadd.xlane.f32.xlu0 %v1416
    %v1418 = vpop.xlane.xlu0 %1417
    %v1419 = vsel %vm379, %v1399, 0.0
    %1420 = vadd.xlane.f32.xlu0 %v1419
    %v1421 = vpop.xlane.xlu0 %1420
    %v1422 = vsel %vm379, %v1401, 0.0
    %1423 = vadd.xlane.f32.xlu0 %v1422
    %v1424 = vpop.xlane.xlu0 %1423
    %v1425 = vsel %vm379, %v1403, 0.0
    %1426 = vadd.xlane.f32.xlu0 %v1425
    %v1427 = vpop.xlane.xlu0 %1426
    %v1428 = vrcp.pop %v1406
    %v1429 = vrcp.pop %v1409
    %v1430 = vrcp.pop %v1412
    %v1431 = vrcp.pop %v1415
    %v1432 = vrcp.pop %v1418
    %v1433 = vrcp.pop %v1421
    %v1434 = vrcp.pop %v1424
    %v1435 = vrcp.pop %v1427
    %v1436 = vmul.f32 %v1406, %v1428
    %v1437 = vmul.f32 %v1409, %v1429
    %v1438 = vmul.f32 %v1412, %v1430
    %v1439 = vmul.f32 %v1415, %v1431
    %v1440 = vmul.f32 %v1418, %v1432
    %v1441 = vmul.f32 %v1421, %v1433
    %v1442 = vmul.f32 %v1424, %v1434
    %v1443 = vmul.f32 %v1427, %v1435
    %v1444 = vsub.f32 2.0, %v1436
    %v1445 = vsub.f32 2.0, %v1437
    %v1446 = vsub.f32 2.0, %v1438
    %v1447 = vsub.f32 2.0, %v1439
    %v1448 = vsub.f32 2.0, %v1440
    %v1449 = vsub.f32 2.0, %v1441
    %v1450 = vsub.f32 2.0, %v1442
    %v1451 = vsub.f32 2.0, %v1443
    %v1452 = vmul.f32 %v1428, %v1444
    %v1453 = vmul.f32 %v1429, %v1445
    %v1454 = vmul.f32 %v1430, %v1446
    %v1455 = vmul.f32 %v1431, %v1447
    %v1456 = vmul.f32 %v1432, %v1448
    %v1457 = vmul.f32 %v1433, %v1449
    %v1458 = vmul.f32 %v1434, %v1450
    %v1459 = vmul.f32 %v1435, %v1451
    %v1460 = vmul.f32 %v1406, %v1452
    %v1461 = vmul.f32 %v1409, %v1453
    %v1462 = vmul.f32 %v1412, %v1454
    %v1463 = vmul.f32 %v1415, %v1455
    %v1464 = vmul.f32 %v1418, %v1456
    %v1465 = vmul.f32 %v1421, %v1457
    %v1466 = vmul.f32 %v1424, %v1458
    %v1467 = vmul.f32 %v1427, %v1459
    %v1468 = vsub.f32 2.0, %v1460
    %v1469 = vsub.f32 2.0, %v1461
    %v1470 = vsub.f32 2.0, %v1462
    %v1471 = vsub.f32 2.0, %v1463
    %v1472 = vsub.f32 2.0, %v1464
    %v1473 = vsub.f32 2.0, %v1465
    %v1474 = vsub.f32 2.0, %v1466
    %v1475 = vsub.f32 2.0, %v1467
    %v1476 = vmul.f32 %v1452, %v1468
    %v1477 = vmul.f32 %v1453, %v1469
    %v1478 = vmul.f32 %v1454, %v1470
    %v1479 = vmul.f32 %v1455, %v1471
    %v1480 = vmul.f32 %v1456, %v1472
    %v1481 = vmul.f32 %v1457, %v1473
    %v1482 = vmul.f32 %v1458, %v1474
    %v1483 = vmul.f32 %v1459, %v1475
    %v1484 = vmul.f32 %v1389, %v1476
    %v1485 = vmul.f32 %v1391, %v1477
    %v1486 = vmul.f32 %v1393, %v1478
    %v1487 = vmul.f32 %v1395, %v1479
    %v1488 = vmul.f32 %v1397, %v1480
    %v1489 = vmul.f32 %v1399, %v1481
    %v1490 = vmul.f32 %v1401, %v1482
    %v1491 = vmul.f32 %v1403, %v1483
    %1492 = vrot.lane.b32.xlu0 %v471, 88
    %v1493 = vpop.permute.xlu0 %1492
    %1494 = vrot.lane.b32.xlu0 %v476, 88
    %v1495 = vpop.permute.xlu0 %1494
    %1496 = vrot.lane.b32.xlu0 %v481, 88
    %v1497 = vpop.permute.xlu0 %1496
    %1498 = vrot.lane.b32.xlu0 %v486, 88
    %v1499 = vpop.permute.xlu0 %1498
    %v1505 = vsel %vm379, %v1484, 0
    %v1508 = vsel %vm379, %v1485, 0
    %v1511 = vsel %vm379, %v1486, 0
    %v1514 = vsel %vm379, %v1487, 0
    %1516 = vmatprep.subr.mxu0 0.0
    %1517 = vmatpush1.msra.mxu0 0.0
    %1518 = vmatprep.subr.mxu0 0.0
    %1519 = vmatpush1.msra.mxu0 0.0
    %1520 = vmatprep.subr.mxu0 0.0
    %1521 = vmatpush1.msra.mxu0 0.0
    %1522 = vmatprep.subr.mxu0 0.0
    %1523 = vmatpush1.msra.mxu0 0.0
    %1524 = vmatprep.subr.mxu0 0.0
    %1525 = vmatpush1.msra.mxu0 0.0
    %1526 = vmatprep.subr.mxu0 0.0
    %1527 = vmatpush1.msra.mxu0 0.0
    %1528 = vmatprep.subr.mxu0 0.0
    %1529 = vmatpush1.msra.mxu0 0.0
    %1530 = vmatprep.subr.mxu0 0.0
    %1531 = vmatpush1.msra.mxu0 0.0
    %1532 = vmatprep.subr.mxu0 0.0
    %1533 = vmatpush1.msra.mxu0 0.0
    %1534 = vmatprep.subr.mxu0 0.0
    %1535 = vmatpush1.msra.mxu0 0.0
    %1536 = vmatprep.subr.mxu0 0.0
    %1537 = vmatpush1.msra.mxu0 0.0
    %1538 = vmatprep.subr.mxu0 0.0
    %1539 = vmatpush1.msra.mxu0 0.0
    %1540 = vmatprep.subr.mxu0 0.0
    %1541 = vmatpush1.msra.mxu0 %v1499
    %1542 = vmatprep.subr.mxu0 0.0
    %1543 = vmatpush1.msra.mxu0 %v1497
    %1544 = vmatprep.subr.mxu0 0.0
    %1545 = vmatpush1.msra.mxu0 %v1495
    %1546 = vmatprep.subr.mxu0 0.0
    %1547 = vmatpush1.msra.mxu0 %v1493
    %1548 = vmatprep.subr.mxu0 0.0
    %1549 = vmatpush2.msra.mxu0 0.0
    %1550 = vmatprep.subr.mxu0 0.0
    %1551 = vmatpush2.msra.mxu0 0.0
    %1552 = vmatprep.subr.mxu0 0.0
    %1553 = vmatpush2.msra.mxu0 0.0
    %1554 = vmatprep.subr.mxu0 0.0
    %1555 = vmatpush2.msra.mxu0 0.0
    %1556 = vmatprep.subr.mxu0 0.0
    %1557 = vmatpush2.msra.mxu0 0.0
    %1558 = vmatprep.subr.mxu0 0.0
    %1559 = vmatpush2.msra.mxu0 0.0
    %1560 = vmatprep.subr.mxu0 0.0
    %1561 = vmatpush2.msra.mxu0 0.0
    %1562 = vmatprep.subr.mxu0 0.0
    %1563 = vmatpush2.msra.mxu0 0.0
    %1564 = vmatprep.subr.mxu0 0.0
    %1565 = vmatpush2.msra.mxu0 0.0
    %1566 = vmatprep.subr.mxu0 0.0
    %1567 = vmatpush2.msra.mxu0 0.0
    %1568 = vmatprep.subr.mxu0 0.0
    %1569 = vmatpush2.msra.mxu0 0.0
    %1570 = vmatprep.subr.mxu0 0.0
    %1571 = vmatpush2.msra.mxu0 0.0
    %1572 = vmatprep.subr.mxu0 0.0
    %1573 = vmatpush2.msra.mxu0 0.0
    %1574 = vmatprep.subr.mxu0 0.0
    %1575 = vmatpush2.msra.mxu0 0.0
    %1576 = vmatprep.subr.mxu0 0.0
    %1577 = vmatpush2.msra.mxu0 0.0
    %1578 = vmatprep.subr.mxu0 0.0
    %1579 = vmatpush2.msra.mxu0 0.0
    %1580 = vmatprep.mubr.f32.mxu0 0.0
    %1581 = vmatmul.mubr.f32.gmra.mxu0 %v1505
    %v1582 = vpop.f32.mrf.mxu0
    %v1583 = vadd.f32 0.0, %v1582
    %v1584 = vpop.f32.mrf.mxu0
    %1585 = vmatprep.mubr.f32.mxu0 0.0
    %1586 = vmatmul.mubr.f32.gmra.mxu0 %v1508
    %v1587 = vpop.f32.mrf.mxu0
    %v1588 = vadd.f32 0.0, %v1587
    %v1589 = vpop.f32.mrf.mxu0
    %1590 = vmatprep.mubr.f32.mxu0 0.0
    %1591 = vmatmul.mubr.f32.gmra.mxu0 %v1511
    %v1592 = vpop.f32.mrf.mxu0
    %v1593 = vadd.f32 0.0, %v1592
    %v1594 = vpop.f32.mrf.mxu0
    %1595 = vmatprep.mubr.f32.mxu0 0.0
    %1596 = vmatmul.mubr.f32.gmra.mxu0 %v1514
    %v1597 = vpop.f32.mrf.mxu0
    %v1598 = vadd.f32 0.0, %v1597
    %v1599 = vpop.f32.mrf.mxu0
    %1600 = vdwg.mxu0
    %1601 = vrot.lane.b32.xlu0 %v491, 88
    %v1602 = vpop.permute.xlu0 %1601
    %1603 = vrot.lane.b32.xlu0 %v496, 88
    %v1604 = vpop.permute.xlu0 %1603
    %1605 = vrot.lane.b32.xlu0 %v501, 88
    %v1606 = vpop.permute.xlu0 %1605
    %1607 = vrot.lane.b32.xlu0 %v506, 88
    %v1608 = vpop.permute.xlu0 %1607
    %v1614 = vsel %vm379, %v1488, 0
    %v1617 = vsel %vm379, %v1489, 0
    %v1620 = vsel %vm379, %v1490, 0
    %v1623 = vsel %vm379, %v1491, 0
    %1625 = vmatprep.subr.mxu0 0.0
    %1626 = vmatpush1.msra.mxu0 0.0
    %1627 = vmatprep.subr.mxu0 0.0
    %1628 = vmatpush1.msra.mxu0 0.0
    %1629 = vmatprep.subr.mxu0 0.0
    %1630 = vmatpush1.msra.mxu0 0.0
    %1631 = vmatprep.subr.mxu0 0.0
    %1632 = vmatpush1.msra.mxu0 0.0
    %1633 = vmatprep.subr.mxu0 0.0
    %1634 = vmatpush1.msra.mxu0 0.0
    %1635 = vmatprep.subr.mxu0 0.0
    %1636 = vmatpush1.msra.mxu0 0.0
    %1637 = vmatprep.subr.mxu0 0.0
    %1638 = vmatpush1.msra.mxu0 0.0
    %1639 = vmatprep.subr.mxu0 0.0
    %1640 = vmatpush1.msra.mxu0 0.0
    %1641 = vmatprep.subr.mxu0 0.0
    %1642 = vmatpush1.msra.mxu0 0.0
    %1643 = vmatprep.subr.mxu0 0.0
    %1644 = vmatpush1.msra.mxu0 0.0
    %1645 = vmatprep.subr.mxu0 0.0
    %1646 = vmatpush1.msra.mxu0 0.0
    %1647 = vmatprep.subr.mxu0 0.0
    %1648 = vmatpush1.msra.mxu0 0.0
    %1649 = vmatprep.subr.mxu0 0.0
    %1650 = vmatpush1.msra.mxu0 %v1608
    %1651 = vmatprep.subr.mxu0 0.0
    %1652 = vmatpush1.msra.mxu0 %v1606
    %1653 = vmatprep.subr.mxu0 0.0
    %1654 = vmatpush1.msra.mxu0 %v1604
    %1655 = vmatprep.subr.mxu0 0.0
    %1656 = vmatpush1.msra.mxu0 %v1602
    %1657 = vmatprep.subr.mxu0 0.0
    %1658 = vmatpush2.msra.mxu0 0.0
    %1659 = vmatprep.subr.mxu0 0.0
    %1660 = vmatpush2.msra.mxu0 0.0
    %1661 = vmatprep.subr.mxu0 0.0
    %1662 = vmatpush2.msra.mxu0 0.0
    %1663 = vmatprep.subr.mxu0 0.0
    %1664 = vmatpush2.msra.mxu0 0.0
    %1665 = vmatprep.subr.mxu0 0.0
    %1666 = vmatpush2.msra.mxu0 0.0
    %1667 = vmatprep.subr.mxu0 0.0
    %1668 = vmatpush2.msra.mxu0 0.0
    %1669 = vmatprep.subr.mxu0 0.0
    %1670 = vmatpush2.msra.mxu0 0.0
    %1671 = vmatprep.subr.mxu0 0.0
    %1672 = vmatpush2.msra.mxu0 0.0
    %1673 = vmatprep.subr.mxu0 0.0
    %1674 = vmatpush2.msra.mxu0 0.0
    %1675 = vmatprep.subr.mxu0 0.0
    %1676 = vmatpush2.msra.mxu0 0.0
    %1677 = vmatprep.subr.mxu0 0.0
    %1678 = vmatpush2.msra.mxu0 0.0
    %1679 = vmatprep.subr.mxu0 0.0
    %1680 = vmatpush2.msra.mxu0 0.0
    %1681 = vmatprep.subr.mxu0 0.0
    %1682 = vmatpush2.msra.mxu0 0.0
    %1683 = vmatprep.subr.mxu0 0.0
    %1684 = vmatpush2.msra.mxu0 0.0
    %1685 = vmatprep.subr.mxu0 0.0
    %1686 = vmatpush2.msra.mxu0 0.0
    %1687 = vmatprep.subr.mxu0 0.0
    %1688 = vmatpush2.msra.mxu0 0.0
    %1689 = vmatprep.mubr.f32.mxu0 0.0
    %1690 = vmatmul.mubr.f32.gmra.mxu0 %v1614
    %v1691 = vpop.f32.mrf.mxu0
    %v1692 = vadd.f32 0.0, %v1691
    %v1693 = vpop.f32.mrf.mxu0
    %1694 = vmatprep.mubr.f32.mxu0 0.0
    %1695 = vmatmul.mubr.f32.gmra.mxu0 %v1617
    %v1696 = vpop.f32.mrf.mxu0
    %v1697 = vadd.f32 0.0, %v1696
    %v1698 = vpop.f32.mrf.mxu0
    %1699 = vmatprep.mubr.f32.mxu0 0.0
    %1700 = vmatmul.mubr.f32.gmra.mxu0 %v1620
    %v1701 = vpop.f32.mrf.mxu0
    %v1702 = vadd.f32 0.0, %v1701
    %v1703 = vpop.f32.mrf.mxu0
    %1704 = vmatprep.mubr.f32.mxu0 0.0
    %1705 = vmatmul.mubr.f32.gmra.mxu0 %v1623
    %v1706 = vpop.f32.mrf.mxu0
    %v1707 = vadd.f32 0.0, %v1706
    %v1708 = vpop.f32.mrf.mxu0
    %1709 = vdwg.mxu0
    %1710 = vrot.lane.b32.xlu0 %v471, 80
    %v1711 = vpop.permute.xlu0 %1710
    %1712 = vrot.lane.b32.xlu0 %v476, 80
    %v1713 = vpop.permute.xlu0 %1712
    %1714 = vrot.lane.b32.xlu0 %v481, 80
    %v1715 = vpop.permute.xlu0 %1714
    %1716 = vrot.lane.b32.xlu0 %v486, 80
    %v1717 = vpop.permute.xlu0 %1716
    %1718 = vrot.lane.b32.xlu0 %v471, 64
    %v1719 = vpop.permute.xlu0 %1718
    %1720 = vrot.lane.b32.xlu0 %v476, 64
    %v1721 = vpop.permute.xlu0 %1720
    %1722 = vrot.lane.b32.xlu0 %v481, 64
    %v1723 = vpop.permute.xlu0 %1722
    %1724 = vrot.lane.b32.xlu0 %v486, 64
    %v1725 = vpop.permute.xlu0 %1724
    %v1726 = vsel %vm521, %v1711, 0
    %v1728 = vsel %vm521, %v1713, 0
    %v1730 = vsel %vm521, %v1715, 0
    %v1732 = vsel %vm521, %v1717, 0
    %v1734 = vsel %vm521, %v1719, 0
    %v1736 = vsel %vm521, %v1721, 0
    %v1738 = vsel %vm521, %v1723, 0
    %v1740 = vsel %vm521, %v1725, 0
    %1742 = vmatprep.subr.mxu0 0.0
    %1743 = vmatpush1.xpose.msra.mxu0 0.0
    %1744 = vmatprep.subr.mxu0 0.0
    %1745 = vmatpush1.xpose.msra.mxu0 0.0
    %1746 = vmatprep.subr.mxu0 0.0
    %1747 = vmatpush1.xpose.msra.mxu0 0.0
    %1748 = vmatprep.subr.mxu0 0.0
    %1749 = vmatpush1.xpose.msra.mxu0 0.0
    %1750 = vmatprep.subr.mxu0 0.0
    %1751 = vmatpush1.xpose.msra.mxu0 0.0
    %1752 = vmatprep.subr.mxu0 0.0
    %1753 = vmatpush1.xpose.msra.mxu0 0.0
    %1754 = vmatprep.subr.mxu0 0.0
    %1755 = vmatpush1.xpose.msra.mxu0 0.0
    %1756 = vmatprep.subr.mxu0 0.0
    %1757 = vmatpush1.xpose.msra.mxu0 0.0
    %1758 = vmatprep.subr.mxu0 0.0
    %1759 = vmatpush1.xpose.msra.mxu0 0.0
    %1760 = vmatprep.subr.mxu0 0.0
    %1761 = vmatpush1.xpose.msra.mxu0 0.0
    %1762 = vmatprep.subr.mxu0 0.0
    %1763 = vmatpush1.xpose.msra.mxu0 0.0
    %1764 = vmatprep.subr.mxu0 0.0
    %1765 = vmatpush1.xpose.msra.mxu0 0.0
    %1766 = vmatprep.subr.mxu0 0.0
    %1767 = vmatpush1.xpose.msra.mxu0 %v1740
    %1768 = vmatprep.subr.mxu0 0.0
    %1769 = vmatpush1.xpose.msra.mxu0 %v1738
    %1770 = vmatprep.subr.mxu0 0.0
    %1771 = vmatpush1.xpose.msra.mxu0 %v1736
    %1772 = vmatprep.subr.mxu0 0.0
    %1773 = vmatpush1.xpose.msra.mxu0 %v1734
    %1774 = vmatprep.subr.mxu0 0.0
    %1775 = vmatpush2.xpose.msra.mxu0 0.0
    %1776 = vmatprep.subr.mxu0 0.0
    %1777 = vmatpush2.xpose.msra.mxu0 0.0
    %1778 = vmatprep.subr.mxu0 0.0
    %1779 = vmatpush2.xpose.msra.mxu0 0.0
    %1780 = vmatprep.subr.mxu0 0.0
    %1781 = vmatpush2.xpose.msra.mxu0 0.0
    %1782 = vmatprep.subr.mxu0 0.0
    %1783 = vmatpush2.xpose.msra.mxu0 0.0
    %1784 = vmatprep.subr.mxu0 0.0
    %1785 = vmatpush2.xpose.msra.mxu0 0.0
    %1786 = vmatprep.subr.mxu0 0.0
    %1787 = vmatpush2.xpose.msra.mxu0 0.0
    %1788 = vmatprep.subr.mxu0 0.0
    %1789 = vmatpush2.xpose.msra.mxu0 0.0
    %1790 = vmatprep.subr.mxu0 0.0
    %1791 = vmatpush2.xpose.msra.mxu0 0.0
    %1792 = vmatprep.subr.mxu0 0.0
    %1793 = vmatpush2.xpose.msra.mxu0 0.0
    %1794 = vmatprep.subr.mxu0 0.0
    %1795 = vmatpush2.xpose.msra.mxu0 0.0
    %1796 = vmatprep.subr.mxu0 0.0
    %1797 = vmatpush2.xpose.msra.mxu0 0.0
    %1798 = vmatprep.subr.mxu0 0.0
    %1799 = vmatpush2.xpose.msra.mxu0 0.0
    %1800 = vmatprep.subr.mxu0 0.0
    %1801 = vmatpush2.xpose.msra.mxu0 0.0
    %1802 = vmatprep.subr.mxu0 0.0
    %1803 = vmatpush2.xpose.msra.mxu0 0.0
    %1804 = vmatprep.subr.mxu0 0.0
    %1805 = vmatpush2.xpose.msra.mxu0 0.0
    %1806 = vmatprep.mubr.f32.mxu0 0.0
    %1807 = vmatmul.mubr.f32.gmra.mxu0 %v1726
    %v1808 = vpop.f32.mrf.mxu0
    %v1809 = vadd.f32 0.0, %v1808
    %v1810 = vpop.f32.mrf.mxu0
    %1811 = vmatprep.mubr.f32.mxu0 0.0
    %1812 = vmatmul.mubr.f32.gmra.mxu0 %v1728
    %v1813 = vpop.f32.mrf.mxu0
    %v1814 = vadd.f32 0.0, %v1813
    %v1815 = vpop.f32.mrf.mxu0
    %1816 = vmatprep.mubr.f32.mxu0 0.0
    %1817 = vmatmul.mubr.f32.gmra.mxu0 %v1730
    %v1818 = vpop.f32.mrf.mxu0
    %v1819 = vadd.f32 0.0, %v1818
    %v1820 = vpop.f32.mrf.mxu0
    %1821 = vmatprep.mubr.f32.mxu0 0.0
    %1822 = vmatmul.mubr.f32.gmra.mxu0 %v1732
    %v1823 = vpop.f32.mrf.mxu0
    %v1824 = vadd.f32 0.0, %v1823
    %v1825 = vpop.f32.mrf.mxu0
    %1826 = vdwg.mxu0
    %1827 = vrot.lane.b32.xlu0 %v491, 80
    %v1828 = vpop.permute.xlu0 %1827
    %1829 = vrot.lane.b32.xlu0 %v496, 80
    %v1830 = vpop.permute.xlu0 %1829
    %1831 = vrot.lane.b32.xlu0 %v501, 80
    %v1832 = vpop.permute.xlu0 %1831
    %1833 = vrot.lane.b32.xlu0 %v506, 80
    %v1834 = vpop.permute.xlu0 %1833
    %1835 = vrot.lane.b32.xlu0 %v491, 64
    %v1836 = vpop.permute.xlu0 %1835
    %1837 = vrot.lane.b32.xlu0 %v496, 64
    %v1838 = vpop.permute.xlu0 %1837
    %1839 = vrot.lane.b32.xlu0 %v501, 64
    %v1840 = vpop.permute.xlu0 %1839
    %1841 = vrot.lane.b32.xlu0 %v506, 64
    %v1842 = vpop.permute.xlu0 %1841
    %v1843 = vsel %vm521, %v1828, 0
    %v1845 = vsel %vm521, %v1830, 0
    %v1847 = vsel %vm521, %v1832, 0
    %v1849 = vsel %vm521, %v1834, 0
    %v1851 = vsel %vm521, %v1836, 0
    %v1853 = vsel %vm521, %v1838, 0
    %v1855 = vsel %vm521, %v1840, 0
    %v1857 = vsel %vm521, %v1842, 0
    %1859 = vmatprep.subr.mxu0 0.0
    %1860 = vmatpush1.xpose.msra.mxu0 0.0
    %1861 = vmatprep.subr.mxu0 0.0
    %1862 = vmatpush1.xpose.msra.mxu0 0.0
    %1863 = vmatprep.subr.mxu0 0.0
    %1864 = vmatpush1.xpose.msra.mxu0 0.0
    %1865 = vmatprep.subr.mxu0 0.0
    %1866 = vmatpush1.xpose.msra.mxu0 0.0
    %1867 = vmatprep.subr.mxu0 0.0
    %1868 = vmatpush1.xpose.msra.mxu0 0.0
    %1869 = vmatprep.subr.mxu0 0.0
    %1870 = vmatpush1.xpose.msra.mxu0 0.0
    %1871 = vmatprep.subr.mxu0 0.0
    %1872 = vmatpush1.xpose.msra.mxu0 0.0
    %1873 = vmatprep.subr.mxu0 0.0
    %1874 = vmatpush1.xpose.msra.mxu0 0.0
    %1875 = vmatprep.subr.mxu0 0.0
    %1876 = vmatpush1.xpose.msra.mxu0 0.0
    %1877 = vmatprep.subr.mxu0 0.0
    %1878 = vmatpush1.xpose.msra.mxu0 0.0
    %1879 = vmatprep.subr.mxu0 0.0
    %1880 = vmatpush1.xpose.msra.mxu0 0.0
    %1881 = vmatprep.subr.mxu0 0.0
    %1882 = vmatpush1.xpose.msra.mxu0 0.0
    %1883 = vmatprep.subr.mxu0 0.0
    %1884 = vmatpush1.xpose.msra.mxu0 %v1857
    %1885 = vmatprep.subr.mxu0 0.0
    %1886 = vmatpush1.xpose.msra.mxu0 %v1855
    %1887 = vmatprep.subr.mxu0 0.0
    %1888 = vmatpush1.xpose.msra.mxu0 %v1853
    %1889 = vmatprep.subr.mxu0 0.0
    %1890 = vmatpush1.xpose.msra.mxu0 %v1851
    %1891 = vmatprep.subr.mxu0 0.0
    %1892 = vmatpush2.xpose.msra.mxu0 0.0
    %1893 = vmatprep.subr.mxu0 0.0
    %1894 = vmatpush2.xpose.msra.mxu0 0.0
    %1895 = vmatprep.subr.mxu0 0.0
    %1896 = vmatpush2.xpose.msra.mxu0 0.0
    %1897 = vmatprep.subr.mxu0 0.0
    %1898 = vmatpush2.xpose.msra.mxu0 0.0
    %1899 = vmatprep.subr.mxu0 0.0
    %1900 = vmatpush2.xpose.msra.mxu0 0.0
    %1901 = vmatprep.subr.mxu0 0.0
    %1902 = vmatpush2.xpose.msra.mxu0 0.0
    %1903 = vmatprep.subr.mxu0 0.0
    %1904 = vmatpush2.xpose.msra.mxu0 0.0
    %1905 = vmatprep.subr.mxu0 0.0
    %1906 = vmatpush2.xpose.msra.mxu0 0.0
    %1907 = vmatprep.subr.mxu0 0.0
    %1908 = vmatpush2.xpose.msra.mxu0 0.0
    %1909 = vmatprep.subr.mxu0 0.0
    %1910 = vmatpush2.xpose.msra.mxu0 0.0
    %1911 = vmatprep.subr.mxu0 0.0
    %1912 = vmatpush2.xpose.msra.mxu0 0.0
    %1913 = vmatprep.subr.mxu0 0.0
    %1914 = vmatpush2.xpose.msra.mxu0 0.0
    %1915 = vmatprep.subr.mxu0 0.0
    %1916 = vmatpush2.xpose.msra.mxu0 0.0
    %1917 = vmatprep.subr.mxu0 0.0
    %1918 = vmatpush2.xpose.msra.mxu0 0.0
    %1919 = vmatprep.subr.mxu0 0.0
    %1920 = vmatpush2.xpose.msra.mxu0 0.0
    %1921 = vmatprep.subr.mxu0 0.0
    %1922 = vmatpush2.xpose.msra.mxu0 0.0
    %1923 = vmatprep.mubr.f32.mxu0 0.0
    %1924 = vmatmul.mubr.f32.gmra.mxu0 %v1843
    %v1925 = vpop.f32.mrf.mxu0
    %v1926 = vadd.f32 0.0, %v1925
    %v1927 = vpop.f32.mrf.mxu0
    %1928 = vmatprep.mubr.f32.mxu0 0.0
    %1929 = vmatmul.mubr.f32.gmra.mxu0 %v1845
    %v1930 = vpop.f32.mrf.mxu0
    %v1931 = vadd.f32 0.0, %v1930
    %v1932 = vpop.f32.mrf.mxu0
    %1933 = vmatprep.mubr.f32.mxu0 0.0
    %1934 = vmatmul.mubr.f32.gmra.mxu0 %v1847
    %v1935 = vpop.f32.mrf.mxu0
    %v1936 = vadd.f32 0.0, %v1935
    %v1937 = vpop.f32.mrf.mxu0
    %1938 = vmatprep.mubr.f32.mxu0 0.0
    %1939 = vmatmul.mubr.f32.gmra.mxu0 %v1849
    %v1940 = vpop.f32.mrf.mxu0
    %v1941 = vadd.f32 0.0, %v1940
    %v1942 = vpop.f32.mrf.mxu0
    %1943 = vdwg.mxu0
    %v1944 = vmul.f32 %v1809, 0.35355338
    %v1945 = vmul.f32 %v1814, 0.35355338
    %v1946 = vmul.f32 %v1819, 0.35355338
    %v1947 = vmul.f32 %v1824, 0.35355338
    %v1948 = vmul.f32 %v1926, 0.35355338
    %v1949 = vmul.f32 %v1931, 0.35355338
    %v1950 = vmul.f32 %v1936, 0.35355338
    %v1951 = vmul.f32 %v1941, 0.35355338
    %v1952 = vadd.f32 %v1944, %v29
    %v1953 = vadd.f32 %v1945, %v30
    %v1954 = vadd.f32 %v1946, %v31
    %v1955 = vadd.f32 %v1947, %v32
    %v1956 = vadd.f32 %v1948, %v33
    %v1957 = vadd.f32 %v1949, %v34
    %v1958 = vadd.f32 %v1950, %v35
    %v1959 = vadd.f32 %v1951, %v36
    %v1960 = vsel %vm379, %v1952, -inf
    %1961 = vmax.xlane.f32.xlu0 %v1960
    %v1962 = vpop.xlane.xlu0 %1961
    %v1963 = vsel %vm379, %v1953, -inf
    %1964 = vmax.xlane.f32.xlu0 %v1963
    %v1965 = vpop.xlane.xlu0 %1964
    %v1966 = vsel %vm379, %v1954, -inf
    %1967 = vmax.xlane.f32.xlu0 %v1966
    %v1968 = vpop.xlane.xlu0 %1967
    %v1969 = vsel %vm379, %v1955, -inf
    %1970 = vmax.xlane.f32.xlu0 %v1969
    %v1971 = vpop.xlane.xlu0 %1970
    %v1972 = vsel %vm379, %v1956, -inf
    %1973 = vmax.xlane.f32.xlu0 %v1972
    %v1974 = vpop.xlane.xlu0 %1973
    %v1975 = vsel %vm379, %v1957, -inf
    %1976 = vmax.xlane.f32.xlu0 %v1975
    %v1977 = vpop.xlane.xlu0 %1976
    %v1978 = vsel %vm379, %v1958, -inf
    %1979 = vmax.xlane.f32.xlu0 %v1978
    %v1980 = vpop.xlane.xlu0 %1979
    %v1981 = vsel %vm379, %v1959, -inf
    %1982 = vmax.xlane.f32.xlu0 %v1981
    %v1983 = vpop.xlane.xlu0 %1982
    %v1984 = vsub.f32 %v1952, %v1962
    %v1985 = vsub.f32 %v1953, %v1965
    %v1986 = vsub.f32 %v1954, %v1968
    %v1987 = vsub.f32 %v1955, %v1971
    %v1988 = vsub.f32 %v1956, %v1974
    %v1989 = vsub.f32 %v1957, %v1977
    %v1990 = vsub.f32 %v1958, %v1980
    %v1991 = vsub.f32 %v1959, %v1983
    %v1992 = vmul.f32 %v1984, 1.442695
    %v1993 = vpow.pop %v1992
    %v1994 = vmul.f32 %v1985, 1.442695
    %v1995 = vpow.pop %v1994
    %v1996 = vmul.f32 %v1986, 1.442695
    %v1997 = vpow.pop %v1996
    %v1998 = vmul.f32 %v1987, 1.442695
    %v1999 = vpow.pop %v1998
    %v2000 = vmul.f32 %v1988, 1.442695
    %v2001 = vpow.pop %v2000
    %v2002 = vmul.f32 %v1989, 1.442695
    %v2003 = vpow.pop %v2002
    %v2004 = vmul.f32 %v1990, 1.442695
    %v2005 = vpow.pop %v2004
    %v2006 = vmul.f32 %v1991, 1.442695
    %v2007 = vpow.pop %v2006
    %v2008 = vsel %vm379, %v1993, 0.0
    %2009 = vadd.xlane.f32.xlu0 %v2008
    %v2010 = vpop.xlane.xlu0 %2009
    %v2011 = vsel %vm379, %v1995, 0.0
    %2012 = vadd.xlane.f32.xlu0 %v2011
    %v2013 = vpop.xlane.xlu0 %2012
    %v2014 = vsel %vm379, %v1997, 0.0
    %2015 = vadd.xlane.f32.xlu0 %v2014
    %v2016 = vpop.xlane.xlu0 %2015
    %v2017 = vsel %vm379, %v1999, 0.0
    %2018 = vadd.xlane.f32.xlu0 %v2017
    %v2019 = vpop.xlane.xlu0 %2018
    %v2020 = vsel %vm379, %v2001, 0.0
    %2021 = vadd.xlane.f32.xlu0 %v2020
    %v2022 = vpop.xlane.xlu0 %2021
    %v2023 = vsel %vm379, %v2003, 0.0
    %2024 = vadd.xlane.f32.xlu0 %v2023
    %v2025 = vpop.xlane.xlu0 %2024
    %v2026 = vsel %vm379, %v2005, 0.0
    %2027 = vadd.xlane.f32.xlu0 %v2026
    %v2028 = vpop.xlane.xlu0 %2027
    %v2029 = vsel %vm379, %v2007, 0.0
    %2030 = vadd.xlane.f32.xlu0 %v2029
    %v2031 = vpop.xlane.xlu0 %2030
    %v2032 = vrcp.pop %v2010
    %v2033 = vrcp.pop %v2013
    %v2034 = vrcp.pop %v2016
    %v2035 = vrcp.pop %v2019
    %v2036 = vrcp.pop %v2022
    %v2037 = vrcp.pop %v2025
    %v2038 = vrcp.pop %v2028
    %v2039 = vrcp.pop %v2031
    %v2040 = vmul.f32 %v2010, %v2032
    %v2041 = vmul.f32 %v2013, %v2033
    %v2042 = vmul.f32 %v2016, %v2034
    %v2043 = vmul.f32 %v2019, %v2035
    %v2044 = vmul.f32 %v2022, %v2036
    %v2045 = vmul.f32 %v2025, %v2037
    %v2046 = vmul.f32 %v2028, %v2038
    %v2047 = vmul.f32 %v2031, %v2039
    %v2048 = vsub.f32 2.0, %v2040
    %v2049 = vsub.f32 2.0, %v2041
    %v2050 = vsub.f32 2.0, %v2042
    %v2051 = vsub.f32 2.0, %v2043
    %v2052 = vsub.f32 2.0, %v2044
    %v2053 = vsub.f32 2.0, %v2045
    %v2054 = vsub.f32 2.0, %v2046
    %v2055 = vsub.f32 2.0, %v2047
    %v2056 = vmul.f32 %v2032, %v2048
    %v2057 = vmul.f32 %v2033, %v2049
    %v2058 = vmul.f32 %v2034, %v2050
    %v2059 = vmul.f32 %v2035, %v2051
    %v2060 = vmul.f32 %v2036, %v2052
    %v2061 = vmul.f32 %v2037, %v2053
    %v2062 = vmul.f32 %v2038, %v2054
    %v2063 = vmul.f32 %v2039, %v2055
    %v2064 = vmul.f32 %v2010, %v2056
    %v2065 = vmul.f32 %v2013, %v2057
    %v2066 = vmul.f32 %v2016, %v2058
    %v2067 = vmul.f32 %v2019, %v2059
    %v2068 = vmul.f32 %v2022, %v2060
    %v2069 = vmul.f32 %v2025, %v2061
    %v2070 = vmul.f32 %v2028, %v2062
    %v2071 = vmul.f32 %v2031, %v2063
    %v2072 = vsub.f32 2.0, %v2064
    %v2073 = vsub.f32 2.0, %v2065
    %v2074 = vsub.f32 2.0, %v2066
    %v2075 = vsub.f32 2.0, %v2067
    %v2076 = vsub.f32 2.0, %v2068
    %v2077 = vsub.f32 2.0, %v2069
    %v2078 = vsub.f32 2.0, %v2070
    %v2079 = vsub.f32 2.0, %v2071
    %v2080 = vmul.f32 %v2056, %v2072
    %v2081 = vmul.f32 %v2057, %v2073
    %v2082 = vmul.f32 %v2058, %v2074
    %v2083 = vmul.f32 %v2059, %v2075
    %v2084 = vmul.f32 %v2060, %v2076
    %v2085 = vmul.f32 %v2061, %v2077
    %v2086 = vmul.f32 %v2062, %v2078
    %v2087 = vmul.f32 %v2063, %v2079
    %v2088 = vmul.f32 %v1993, %v2080
    %v2089 = vmul.f32 %v1995, %v2081
    %v2090 = vmul.f32 %v1997, %v2082
    %v2091 = vmul.f32 %v1999, %v2083
    %v2092 = vmul.f32 %v2001, %v2084
    %v2093 = vmul.f32 %v2003, %v2085
    %v2094 = vmul.f32 %v2005, %v2086
    %v2095 = vmul.f32 %v2007, %v2087
    %2096 = vrot.lane.b32.xlu0 %v471, 48
    %v2097 = vpop.permute.xlu0 %2096
    %2098 = vrot.lane.b32.xlu0 %v476, 48
    %v2099 = vpop.permute.xlu0 %2098
    %2100 = vrot.lane.b32.xlu0 %v481, 48
    %v2101 = vpop.permute.xlu0 %2100
    %2102 = vrot.lane.b32.xlu0 %v486, 48
    %v2103 = vpop.permute.xlu0 %2102
    %v2109 = vsel %vm379, %v2088, 0
    %v2112 = vsel %vm379, %v2089, 0
    %v2115 = vsel %vm379, %v2090, 0
    %v2118 = vsel %vm379, %v2091, 0
    %2120 = vmatprep.subr.mxu0 0.0
    %2121 = vmatpush1.msra.mxu0 0.0
    %2122 = vmatprep.subr.mxu0 0.0
    %2123 = vmatpush1.msra.mxu0 0.0
    %2124 = vmatprep.subr.mxu0 0.0
    %2125 = vmatpush1.msra.mxu0 0.0
    %2126 = vmatprep.subr.mxu0 0.0
    %2127 = vmatpush1.msra.mxu0 0.0
    %2128 = vmatprep.subr.mxu0 0.0
    %2129 = vmatpush1.msra.mxu0 0.0
    %2130 = vmatprep.subr.mxu0 0.0
    %2131 = vmatpush1.msra.mxu0 0.0
    %2132 = vmatprep.subr.mxu0 0.0
    %2133 = vmatpush1.msra.mxu0 0.0
    %2134 = vmatprep.subr.mxu0 0.0
    %2135 = vmatpush1.msra.mxu0 0.0
    %2136 = vmatprep.subr.mxu0 0.0
    %2137 = vmatpush1.msra.mxu0 0.0
    %2138 = vmatprep.subr.mxu0 0.0
    %2139 = vmatpush1.msra.mxu0 0.0
    %2140 = vmatprep.subr.mxu0 0.0
    %2141 = vmatpush1.msra.mxu0 0.0
    %2142 = vmatprep.subr.mxu0 0.0
    %2143 = vmatpush1.msra.mxu0 0.0
    %2144 = vmatprep.subr.mxu0 0.0
    %2145 = vmatpush1.msra.mxu0 %v2103
    %2146 = vmatprep.subr.mxu0 0.0
    %2147 = vmatpush1.msra.mxu0 %v2101
    %2148 = vmatprep.subr.mxu0 0.0
    %2149 = vmatpush1.msra.mxu0 %v2099
    %2150 = vmatprep.subr.mxu0 0.0
    %2151 = vmatpush1.msra.mxu0 %v2097
    %2152 = vmatprep.subr.mxu0 0.0
    %2153 = vmatpush2.msra.mxu0 0.0
    %2154 = vmatprep.subr.mxu0 0.0
    %2155 = vmatpush2.msra.mxu0 0.0
    %2156 = vmatprep.subr.mxu0 0.0
    %2157 = vmatpush2.msra.mxu0 0.0
    %2158 = vmatprep.subr.mxu0 0.0
    %2159 = vmatpush2.msra.mxu0 0.0
    %2160 = vmatprep.subr.mxu0 0.0
    %2161 = vmatpush2.msra.mxu0 0.0
    %2162 = vmatprep.subr.mxu0 0.0
    %2163 = vmatpush2.msra.mxu0 0.0
    %2164 = vmatprep.subr.mxu0 0.0
    %2165 = vmatpush2.msra.mxu0 0.0
    %2166 = vmatprep.subr.mxu0 0.0
    %2167 = vmatpush2.msra.mxu0 0.0
    %2168 = vmatprep.subr.mxu0 0.0
    %2169 = vmatpush2.msra.mxu0 0.0
    %2170 = vmatprep.subr.mxu0 0.0
    %2171 = vmatpush2.msra.mxu0 0.0
    %2172 = vmatprep.subr.mxu0 0.0
    %2173 = vmatpush2.msra.mxu0 0.0
    %2174 = vmatprep.subr.mxu0 0.0
    %2175 = vmatpush2.msra.mxu0 0.0
    %2176 = vmatprep.subr.mxu0 0.0
    %2177 = vmatpush2.msra.mxu0 0.0
    %2178 = vmatprep.subr.mxu0 0.0
    %2179 = vmatpush2.msra.mxu0 0.0
    %2180 = vmatprep.subr.mxu0 0.0
    %2181 = vmatpush2.msra.mxu0 0.0
    %2182 = vmatprep.subr.mxu0 0.0
    %2183 = vmatpush2.msra.mxu0 0.0
    %2184 = vmatprep.mubr.f32.mxu0 0.0
    %2185 = vmatmul.mubr.f32.gmra.mxu0 %v2109
    %v2186 = vpop.f32.mrf.mxu0
    %v2187 = vadd.f32 0.0, %v2186
    %v2188 = vpop.f32.mrf.mxu0
    %2189 = vmatprep.mubr.f32.mxu0 0.0
    %2190 = vmatmul.mubr.f32.gmra.mxu0 %v2112
    %v2191 = vpop.f32.mrf.mxu0
    %v2192 = vadd.f32 0.0, %v2191
    %v2193 = vpop.f32.mrf.mxu0
    %2194 = vmatprep.mubr.f32.mxu0 0.0
    %2195 = vmatmul.mubr.f32.gmra.mxu0 %v2115
    %v2196 = vpop.f32.mrf.mxu0
    %v2197 = vadd.f32 0.0, %v2196
    %v2198 = vpop.f32.mrf.mxu0
    %2199 = vmatprep.mubr.f32.mxu0 0.0
    %2200 = vmatmul.mubr.f32.gmra.mxu0 %v2118
    %v2201 = vpop.f32.mrf.mxu0
    %v2202 = vadd.f32 0.0, %v2201
    %v2203 = vpop.f32.mrf.mxu0
    %2204 = vdwg.mxu0
    %2205 = vrot.lane.b32.xlu0 %v491, 48
    %v2206 = vpop.permute.xlu0 %2205
    %2207 = vrot.lane.b32.xlu0 %v496, 48
    %v2208 = vpop.permute.xlu0 %2207
    %2209 = vrot.lane.b32.xlu0 %v501, 48
    %v2210 = vpop.permute.xlu0 %2209
    %2211 = vrot.lane.b32.xlu0 %v506, 48
    %v2212 = vpop.permute.xlu0 %2211
    %v2218 = vsel %vm379, %v2092, 0
    %v2221 = vsel %vm379, %v2093, 0
    %v2224 = vsel %vm379, %v2094, 0
    %v2227 = vsel %vm379, %v2095, 0
    %2229 = vmatprep.subr.mxu0 0.0
    %2230 = vmatpush1.msra.mxu0 0.0
    %2231 = vmatprep.subr.mxu0 0.0
    %2232 = vmatpush1.msra.mxu0 0.0
    %2233 = vmatprep.subr.mxu0 0.0
    %2234 = vmatpush1.msra.mxu0 0.0
    %2235 = vmatprep.subr.mxu0 0.0
    %2236 = vmatpush1.msra.mxu0 0.0
    %2237 = vmatprep.subr.mxu0 0.0
    %2238 = vmatpush1.msra.mxu0 0.0
    %2239 = vmatprep.subr.mxu0 0.0
    %2240 = vmatpush1.msra.mxu0 0.0
    %2241 = vmatprep.subr.mxu0 0.0
    %2242 = vmatpush1.msra.mxu0 0.0
    %2243 = vmatprep.subr.mxu0 0.0
    %2244 = vmatpush1.msra.mxu0 0.0
    %2245 = vmatprep.subr.mxu0 0.0
    %2246 = vmatpush1.msra.mxu0 0.0
    %2247 = vmatprep.subr.mxu0 0.0
    %2248 = vmatpush1.msra.mxu0 0.0
    %2249 = vmatprep.subr.mxu0 0.0
    %2250 = vmatpush1.msra.mxu0 0.0
    %2251 = vmatprep.subr.mxu0 0.0
    %2252 = vmatpush1.msra.mxu0 0.0
    %2253 = vmatprep.subr.mxu0 0.0
    %2254 = vmatpush1.msra.mxu0 %v2212
    %2255 = vmatprep.subr.mxu0 0.0
    %2256 = vmatpush1.msra.mxu0 %v2210
    %2257 = vmatprep.subr.mxu0 0.0
    %2258 = vmatpush1.msra.mxu0 %v2208
    %2259 = vmatprep.subr.mxu0 0.0
    %2260 = vmatpush1.msra.mxu0 %v2206
    %2261 = vmatprep.subr.mxu0 0.0
    %2262 = vmatpush2.msra.mxu0 0.0
    %2263 = vmatprep.subr.mxu0 0.0
    %2264 = vmatpush2.msra.mxu0 0.0
    %2265 = vmatprep.subr.mxu0 0.0
    %2266 = vmatpush2.msra.mxu0 0.0
    %2267 = vmatprep.subr.mxu0 0.0
    %2268 = vmatpush2.msra.mxu0 0.0
    %2269 = vmatprep.subr.mxu0 0.0
    %2270 = vmatpush2.msra.mxu0 0.0
    %2271 = vmatprep.subr.mxu0 0.0
    %2272 = vmatpush2.msra.mxu0 0.0
    %2273 = vmatprep.subr.mxu0 0.0
    %2274 = vmatpush2.msra.mxu0 0.0
    %2275 = vmatprep.subr.mxu0 0.0
    %2276 = vmatpush2.msra.mxu0 0.0
    %2277 = vmatprep.subr.mxu0 0.0
    %2278 = vmatpush2.msra.mxu0 0.0
    %2279 = vmatprep.subr.mxu0 0.0
    %2280 = vmatpush2.msra.mxu0 0.0
    %2281 = vmatprep.subr.mxu0 0.0
    %2282 = vmatpush2.msra.mxu0 0.0
    %2283 = vmatprep.subr.mxu0 0.0
    %2284 = vmatpush2.msra.mxu0 0.0
    %2285 = vmatprep.subr.mxu0 0.0
    %2286 = vmatpush2.msra.mxu0 0.0
    %2287 = vmatprep.subr.mxu0 0.0
    %2288 = vmatpush2.msra.mxu0 0.0
    %2289 = vmatprep.subr.mxu0 0.0
    %2290 = vmatpush2.msra.mxu0 0.0
    %2291 = vmatprep.subr.mxu0 0.0
    %2292 = vmatpush2.msra.mxu0 0.0
    %2293 = vmatprep.mubr.f32.mxu0 0.0
    %2294 = vmatmul.mubr.f32.gmra.mxu0 %v2218
    %v2295 = vpop.f32.mrf.mxu0
    %v2296 = vadd.f32 0.0, %v2295
    %v2297 = vpop.f32.mrf.mxu0
    %2298 = vmatprep.mubr.f32.mxu0 0.0
    %2299 = vmatmul.mubr.f32.gmra.mxu0 %v2221
    %v2300 = vpop.f32.mrf.mxu0
    %v2301 = vadd.f32 0.0, %v2300
    %v2302 = vpop.f32.mrf.mxu0
    %2303 = vmatprep.mubr.f32.mxu0 0.0
    %2304 = vmatmul.mubr.f32.gmra.mxu0 %v2224
    %v2305 = vpop.f32.mrf.mxu0
    %v2306 = vadd.f32 0.0, %v2305
    %v2307 = vpop.f32.mrf.mxu0
    %2308 = vmatprep.mubr.f32.mxu0 0.0
    %2309 = vmatmul.mubr.f32.gmra.mxu0 %v2227
    %v2310 = vpop.f32.mrf.mxu0
    %v2311 = vadd.f32 0.0, %v2310
    %v2312 = vpop.f32.mrf.mxu0
    %2313 = vdwg.mxu0
    %2314 = vrot.lane.b32.xlu0 %v471, 72
    %v2315 = vpop.permute.xlu0 %2314
    %2316 = vrot.lane.b32.xlu0 %v476, 72
    %v2317 = vpop.permute.xlu0 %2316
    %2318 = vrot.lane.b32.xlu0 %v481, 72
    %v2319 = vpop.permute.xlu0 %2318
    %2320 = vrot.lane.b32.xlu0 %v486, 72
    %v2321 = vpop.permute.xlu0 %2320
    %2322 = vrot.lane.b32.xlu0 %v471, 56
    %v2323 = vpop.permute.xlu0 %2322
    %2324 = vrot.lane.b32.xlu0 %v476, 56
    %v2325 = vpop.permute.xlu0 %2324
    %2326 = vrot.lane.b32.xlu0 %v481, 56
    %v2327 = vpop.permute.xlu0 %2326
    %2328 = vrot.lane.b32.xlu0 %v486, 56
    %v2329 = vpop.permute.xlu0 %2328
    %v2330 = vsel %vm521, %v2315, 0
    %v2332 = vsel %vm521, %v2317, 0
    %v2334 = vsel %vm521, %v2319, 0
    %v2336 = vsel %vm521, %v2321, 0
    %v2338 = vsel %vm521, %v2323, 0
    %v2340 = vsel %vm521, %v2325, 0
    %v2342 = vsel %vm521, %v2327, 0
    %v2344 = vsel %vm521, %v2329, 0
    %2346 = vmatprep.subr.mxu0 0.0
    %2347 = vmatpush1.xpose.msra.mxu0 0.0
    %2348 = vmatprep.subr.mxu0 0.0
    %2349 = vmatpush1.xpose.msra.mxu0 0.0
    %2350 = vmatprep.subr.mxu0 0.0
    %2351 = vmatpush1.xpose.msra.mxu0 0.0
    %2352 = vmatprep.subr.mxu0 0.0
    %2353 = vmatpush1.xpose.msra.mxu0 0.0
    %2354 = vmatprep.subr.mxu0 0.0
    %2355 = vmatpush1.xpose.msra.mxu0 0.0
    %2356 = vmatprep.subr.mxu0 0.0
    %2357 = vmatpush1.xpose.msra.mxu0 0.0
    %2358 = vmatprep.subr.mxu0 0.0
    %2359 = vmatpush1.xpose.msra.mxu0 0.0
    %2360 = vmatprep.subr.mxu0 0.0
    %2361 = vmatpush1.xpose.msra.mxu0 0.0
    %2362 = vmatprep.subr.mxu0 0.0
    %2363 = vmatpush1.xpose.msra.mxu0 0.0
    %2364 = vmatprep.subr.mxu0 0.0
    %2365 = vmatpush1.xpose.msra.mxu0 0.0
    %2366 = vmatprep.subr.mxu0 0.0
    %2367 = vmatpush1.xpose.msra.mxu0 0.0
    %2368 = vmatprep.subr.mxu0 0.0
    %2369 = vmatpush1.xpose.msra.mxu0 0.0
    %2370 = vmatprep.subr.mxu0 0.0
    %2371 = vmatpush1.xpose.msra.mxu0 %v2344
    %2372 = vmatprep.subr.mxu0 0.0
    %2373 = vmatpush1.xpose.msra.mxu0 %v2342
    %2374 = vmatprep.subr.mxu0 0.0
    %2375 = vmatpush1.xpose.msra.mxu0 %v2340
    %2376 = vmatprep.subr.mxu0 0.0
    %2377 = vmatpush1.xpose.msra.mxu0 %v2338
    %2378 = vmatprep.subr.mxu0 0.0
    %2379 = vmatpush2.xpose.msra.mxu0 0.0
    %2380 = vmatprep.subr.mxu0 0.0
    %2381 = vmatpush2.xpose.msra.mxu0 0.0
    %2382 = vmatprep.subr.mxu0 0.0
    %2383 = vmatpush2.xpose.msra.mxu0 0.0
    %2384 = vmatprep.subr.mxu0 0.0
    %2385 = vmatpush2.xpose.msra.mxu0 0.0
    %2386 = vmatprep.subr.mxu0 0.0
    %2387 = vmatpush2.xpose.msra.mxu0 0.0
    %2388 = vmatprep.subr.mxu0 0.0
    %2389 = vmatpush2.xpose.msra.mxu0 0.0
    %2390 = vmatprep.subr.mxu0 0.0
    %2391 = vmatpush2.xpose.msra.mxu0 0.0
    %2392 = vmatprep.subr.mxu0 0.0
    %2393 = vmatpush2.xpose.msra.mxu0 0.0
    %2394 = vmatprep.subr.mxu0 0.0
    %2395 = vmatpush2.xpose.msra.mxu0 0.0
    %2396 = vmatprep.subr.mxu0 0.0
    %2397 = vmatpush2.xpose.msra.mxu0 0.0
    %2398 = vmatprep.subr.mxu0 0.0
    %2399 = vmatpush2.xpose.msra.mxu0 0.0
    %2400 = vmatprep.subr.mxu0 0.0
    %2401 = vmatpush2.xpose.msra.mxu0 0.0
    %2402 = vmatprep.subr.mxu0 0.0
    %2403 = vmatpush2.xpose.msra.mxu0 0.0
    %2404 = vmatprep.subr.mxu0 0.0
    %2405 = vmatpush2.xpose.msra.mxu0 0.0
    %2406 = vmatprep.subr.mxu0 0.0
    %2407 = vmatpush2.xpose.msra.mxu0 0.0
    %2408 = vmatprep.subr.mxu0 0.0
    %2409 = vmatpush2.xpose.msra.mxu0 0.0
    %2410 = vmatprep.mubr.f32.mxu0 0.0
    %2411 = vmatmul.mubr.f32.gmra.mxu0 %v2330
    %v2412 = vpop.f32.mrf.mxu0
    %v2413 = vadd.f32 0.0, %v2412
    %v2414 = vpop.f32.mrf.mxu0
    %2415 = vmatprep.mubr.f32.mxu0 0.0
    %2416 = vmatmul.mubr.f32.gmra.mxu0 %v2332
    %v2417 = vpop.f32.mrf.mxu0
    %v2418 = vadd.f32 0.0, %v2417
    %v2419 = vpop.f32.mrf.mxu0
    %2420 = vmatprep.mubr.f32.mxu0 0.0
    %2421 = vmatmul.mubr.f32.gmra.mxu0 %v2334
    %v2422 = vpop.f32.mrf.mxu0
    %v2423 = vadd.f32 0.0, %v2422
    %v2424 = vpop.f32.mrf.mxu0
    %2425 = vmatprep.mubr.f32.mxu0 0.0
    %2426 = vmatmul.mubr.f32.gmra.mxu0 %v2336
    %v2427 = vpop.f32.mrf.mxu0
    %v2428 = vadd.f32 0.0, %v2427
    %v2429 = vpop.f32.mrf.mxu0
    %2430 = vdwg.mxu0
    %2431 = vrot.lane.b32.xlu0 %v491, 72
    %v2432 = vpop.permute.xlu0 %2431
    %2433 = vrot.lane.b32.xlu0 %v496, 72
    %v2434 = vpop.permute.xlu0 %2433
    %2435 = vrot.lane.b32.xlu0 %v501, 72
    %v2436 = vpop.permute.xlu0 %2435
    %2437 = vrot.lane.b32.xlu0 %v506, 72
    %v2438 = vpop.permute.xlu0 %2437
    %2439 = vrot.lane.b32.xlu0 %v491, 56
    %v2440 = vpop.permute.xlu0 %2439
    %2441 = vrot.lane.b32.xlu0 %v496, 56
    %v2442 = vpop.permute.xlu0 %2441
    %2443 = vrot.lane.b32.xlu0 %v501, 56
    %v2444 = vpop.permute.xlu0 %2443
    %2445 = vrot.lane.b32.xlu0 %v506, 56
    %v2446 = vpop.permute.xlu0 %2445
    %v2447 = vsel %vm521, %v2432, 0
    %v2449 = vsel %vm521, %v2434, 0
    %v2451 = vsel %vm521, %v2436, 0
    %v2453 = vsel %vm521, %v2438, 0
    %v2455 = vsel %vm521, %v2440, 0
    %v2457 = vsel %vm521, %v2442, 0
    %v2459 = vsel %vm521, %v2444, 0
    %v2461 = vsel %vm521, %v2446, 0
    %2463 = vmatprep.subr.mxu0 0.0
    %2464 = vmatpush1.xpose.msra.mxu0 0.0
    %2465 = vmatprep.subr.mxu0 0.0
    %2466 = vmatpush1.xpose.msra.mxu0 0.0
    %2467 = vmatprep.subr.mxu0 0.0
    %2468 = vmatpush1.xpose.msra.mxu0 0.0
    %2469 = vmatprep.subr.mxu0 0.0
    %2470 = vmatpush1.xpose.msra.mxu0 0.0
    %2471 = vmatprep.subr.mxu0 0.0
    %2472 = vmatpush1.xpose.msra.mxu0 0.0
    %2473 = vmatprep.subr.mxu0 0.0
    %2474 = vmatpush1.xpose.msra.mxu0 0.0
    %2475 = vmatprep.subr.mxu0 0.0
    %2476 = vmatpush1.xpose.msra.mxu0 0.0
    %2477 = vmatprep.subr.mxu0 0.0
    %2478 = vmatpush1.xpose.msra.mxu0 0.0
    %2479 = vmatprep.subr.mxu0 0.0
    %2480 = vmatpush1.xpose.msra.mxu0 0.0
    %2481 = vmatprep.subr.mxu0 0.0
    %2482 = vmatpush1.xpose.msra.mxu0 0.0
    %2483 = vmatprep.subr.mxu0 0.0
    %2484 = vmatpush1.xpose.msra.mxu0 0.0
    %2485 = vmatprep.subr.mxu0 0.0
    %2486 = vmatpush1.xpose.msra.mxu0 0.0
    %2487 = vmatprep.subr.mxu0 0.0
    %2488 = vmatpush1.xpose.msra.mxu0 %v2461
    %2489 = vmatprep.subr.mxu0 0.0
    %2490 = vmatpush1.xpose.msra.mxu0 %v2459
    %2491 = vmatprep.subr.mxu0 0.0
    %2492 = vmatpush1.xpose.msra.mxu0 %v2457
    %2493 = vmatprep.subr.mxu0 0.0
    %2494 = vmatpush1.xpose.msra.mxu0 %v2455
    %2495 = vmatprep.subr.mxu0 0.0
    %2496 = vmatpush2.xpose.msra.mxu0 0.0
    %2497 = vmatprep.subr.mxu0 0.0
    %2498 = vmatpush2.xpose.msra.mxu0 0.0
    %2499 = vmatprep.subr.mxu0 0.0
    %2500 = vmatpush2.xpose.msra.mxu0 0.0
    %2501 = vmatprep.subr.mxu0 0.0
    %2502 = vmatpush2.xpose.msra.mxu0 0.0
    %2503 = vmatprep.subr.mxu0 0.0
    %2504 = vmatpush2.xpose.msra.mxu0 0.0
    %2505 = vmatprep.subr.mxu0 0.0
    %2506 = vmatpush2.xpose.msra.mxu0 0.0
    %2507 = vmatprep.subr.mxu0 0.0
    %2508 = vmatpush2.xpose.msra.mxu0 0.0
    %2509 = vmatprep.subr.mxu0 0.0
    %2510 = vmatpush2.xpose.msra.mxu0 0.0
    %2511 = vmatprep.subr.mxu0 0.0
    %2512 = vmatpush2.xpose.msra.mxu0 0.0
    %2513 = vmatprep.subr.mxu0 0.0
    %2514 = vmatpush2.xpose.msra.mxu0 0.0
    %2515 = vmatprep.subr.mxu0 0.0
    %2516 = vmatpush2.xpose.msra.mxu0 0.0
    %2517 = vmatprep.subr.mxu0 0.0
    %2518 = vmatpush2.xpose.msra.mxu0 0.0
    %2519 = vmatprep.subr.mxu0 0.0
    %2520 = vmatpush2.xpose.msra.mxu0 0.0
    %2521 = vmatprep.subr.mxu0 0.0
    %2522 = vmatpush2.xpose.msra.mxu0 0.0
    %2523 = vmatprep.subr.mxu0 0.0
    %2524 = vmatpush2.xpose.msra.mxu0 0.0
    %2525 = vmatprep.subr.mxu0 0.0
    %2526 = vmatpush2.xpose.msra.mxu0 0.0
    %2527 = vmatprep.mubr.f32.mxu0 0.0
    %2528 = vmatmul.mubr.f32.gmra.mxu0 %v2447
    %v2529 = vpop.f32.mrf.mxu0
    %v2530 = vadd.f32 0.0, %v2529
    %v2531 = vpop.f32.mrf.mxu0
    %2532 = vmatprep.mubr.f32.mxu0 0.0
    %2533 = vmatmul.mubr.f32.gmra.mxu0 %v2449
    %v2534 = vpop.f32.mrf.mxu0
    %v2535 = vadd.f32 0.0, %v2534
    %v2536 = vpop.f32.mrf.mxu0
    %2537 = vmatprep.mubr.f32.mxu0 0.0
    %2538 = vmatmul.mubr.f32.gmra.mxu0 %v2451
    %v2539 = vpop.f32.mrf.mxu0
    %v2540 = vadd.f32 0.0, %v2539
    %v2541 = vpop.f32.mrf.mxu0
    %2542 = vmatprep.mubr.f32.mxu0 0.0
    %2543 = vmatmul.mubr.f32.gmra.mxu0 %v2453
    %v2544 = vpop.f32.mrf.mxu0
    %v2545 = vadd.f32 0.0, %v2544
    %v2546 = vpop.f32.mrf.mxu0
    %2547 = vdwg.mxu0
    %v2548 = vmul.f32 %v2413, 0.35355338
    %v2549 = vmul.f32 %v2418, 0.35355338
    %v2550 = vmul.f32 %v2423, 0.35355338
    %v2551 = vmul.f32 %v2428, 0.35355338
    %v2552 = vmul.f32 %v2530, 0.35355338
    %v2553 = vmul.f32 %v2535, 0.35355338
    %v2554 = vmul.f32 %v2540, 0.35355338
    %v2555 = vmul.f32 %v2545, 0.35355338
    %v2556 = vadd.f32 %v2548, %v29
    %v2557 = vadd.f32 %v2549, %v30
    %v2558 = vadd.f32 %v2550, %v31
    %v2559 = vadd.f32 %v2551, %v32
    %v2560 = vadd.f32 %v2552, %v33
    %v2561 = vadd.f32 %v2553, %v34
    %v2562 = vadd.f32 %v2554, %v35
    %v2563 = vadd.f32 %v2555, %v36
    %v2564 = vsel %vm379, %v2556, -inf
    %2565 = vmax.xlane.f32.xlu0 %v2564
    %v2566 = vpop.xlane.xlu0 %2565
    %v2567 = vsel %vm379, %v2557, -inf
    %2568 = vmax.xlane.f32.xlu0 %v2567
    %v2569 = vpop.xlane.xlu0 %2568
    %v2570 = vsel %vm379, %v2558, -inf
    %2571 = vmax.xlane.f32.xlu0 %v2570
    %v2572 = vpop.xlane.xlu0 %2571
    %v2573 = vsel %vm379, %v2559, -inf
    %2574 = vmax.xlane.f32.xlu0 %v2573
    %v2575 = vpop.xlane.xlu0 %2574
    %v2576 = vsel %vm379, %v2560, -inf
    %2577 = vmax.xlane.f32.xlu0 %v2576
    %v2578 = vpop.xlane.xlu0 %2577
    %v2579 = vsel %vm379, %v2561, -inf
    %2580 = vmax.xlane.f32.xlu0 %v2579
    %v2581 = vpop.xlane.xlu0 %2580
    %v2582 = vsel %vm379, %v2562, -inf
    %2583 = vmax.xlane.f32.xlu0 %v2582
    %v2584 = vpop.xlane.xlu0 %2583
    %v2585 = vsel %vm379, %v2563, -inf
    %2586 = vmax.xlane.f32.xlu0 %v2585
    %v2587 = vpop.xlane.xlu0 %2586
    %v2588 = vsub.f32 %v2556, %v2566
    %v2589 = vsub.f32 %v2557, %v2569
    %v2590 = vsub.f32 %v2558, %v2572
    %v2591 = vsub.f32 %v2559, %v2575
    %v2592 = vsub.f32 %v2560, %v2578
    %v2593 = vsub.f32 %v2561, %v2581
    %v2594 = vsub.f32 %v2562, %v2584
    %v2595 = vsub.f32 %v2563, %v2587
    %v2596 = vmul.f32 %v2588, 1.442695
    %v2597 = vpow.pop %v2596
    %v2598 = vmul.f32 %v2589, 1.442695
    %v2599 = vpow.pop %v2598
    %v2600 = vmul.f32 %v2590, 1.442695
    %v2601 = vpow.pop %v2600
    %v2602 = vmul.f32 %v2591, 1.442695
    %v2603 = vpow.pop %v2602
    %v2604 = vmul.f32 %v2592, 1.442695
    %v2605 = vpow.pop %v2604
    %v2606 = vmul.f32 %v2593, 1.442695
    %v2607 = vpow.pop %v2606
    %v2608 = vmul.f32 %v2594, 1.442695
    %v2609 = vpow.pop %v2608
    %v2610 = vmul.f32 %v2595, 1.442695
    %v2611 = vpow.pop %v2610
    %v2612 = vsel %vm379, %v2597, 0.0
    %2613 = vadd.xlane.f32.xlu0 %v2612
    %v2614 = vpop.xlane.xlu0 %2613
    %v2615 = vsel %vm379, %v2599, 0.0
    %2616 = vadd.xlane.f32.xlu0 %v2615
    %v2617 = vpop.xlane.xlu0 %2616
    %v2618 = vsel %vm379, %v2601, 0.0
    %2619 = vadd.xlane.f32.xlu0 %v2618
    %v2620 = vpop.xlane.xlu0 %2619
    %v2621 = vsel %vm379, %v2603, 0.0
    %2622 = vadd.xlane.f32.xlu0 %v2621
    %v2623 = vpop.xlane.xlu0 %2622
    %v2624 = vsel %vm379, %v2605, 0.0
    %2625 = vadd.xlane.f32.xlu0 %v2624
    %v2626 = vpop.xlane.xlu0 %2625
    %v2627 = vsel %vm379, %v2607, 0.0
    %2628 = vadd.xlane.f32.xlu0 %v2627
    %v2629 = vpop.xlane.xlu0 %2628
    %v2630 = vsel %vm379, %v2609, 0.0
    %2631 = vadd.xlane.f32.xlu0 %v2630
    %v2632 = vpop.xlane.xlu0 %2631
    %v2633 = vsel %vm379, %v2611, 0.0
    %2634 = vadd.xlane.f32.xlu0 %v2633
    %v2635 = vpop.xlane.xlu0 %2634
    %v2636 = vrcp.pop %v2614
    %v2637 = vrcp.pop %v2617
    %v2638 = vrcp.pop %v2620
    %v2639 = vrcp.pop %v2623
    %v2640 = vrcp.pop %v2626
    %v2641 = vrcp.pop %v2629
    %v2642 = vrcp.pop %v2632
    %v2643 = vrcp.pop %v2635
    %v2644 = vmul.f32 %v2614, %v2636
    %v2645 = vmul.f32 %v2617, %v2637
    %v2646 = vmul.f32 %v2620, %v2638
    %v2647 = vmul.f32 %v2623, %v2639
    %v2648 = vmul.f32 %v2626, %v2640
    %v2649 = vmul.f32 %v2629, %v2641
    %v2650 = vmul.f32 %v2632, %v2642
    %v2651 = vmul.f32 %v2635, %v2643
    %v2652 = vsub.f32 2.0, %v2644
    %v2653 = vsub.f32 2.0, %v2645
    %v2654 = vsub.f32 2.0, %v2646
    %v2655 = vsub.f32 2.0, %v2647
    %v2656 = vsub.f32 2.0, %v2648
    %v2657 = vsub.f32 2.0, %v2649
    %v2658 = vsub.f32 2.0, %v2650
    %v2659 = vsub.f32 2.0, %v2651
    %v2660 = vmul.f32 %v2636, %v2652
    %v2661 = vmul.f32 %v2637, %v2653
    %v2662 = vmul.f32 %v2638, %v2654
    %v2663 = vmul.f32 %v2639, %v2655
    %v2664 = vmul.f32 %v2640, %v2656
    %v2665 = vmul.f32 %v2641, %v2657
    %v2666 = vmul.f32 %v2642, %v2658
    %v2667 = vmul.f32 %v2643, %v2659
    %v2668 = vmul.f32 %v2614, %v2660
    %v2669 = vmul.f32 %v2617, %v2661
    %v2670 = vmul.f32 %v2620, %v2662
    %v2671 = vmul.f32 %v2623, %v2663
    %v2672 = vmul.f32 %v2626, %v2664
    %v2673 = vmul.f32 %v2629, %v2665
    %v2674 = vmul.f32 %v2632, %v2666
    %v2675 = vmul.f32 %v2635, %v2667
    %v2676 = vsub.f32 2.0, %v2668
    %v2677 = vsub.f32 2.0, %v2669
    %v2678 = vsub.f32 2.0, %v2670
    %v2679 = vsub.f32 2.0, %v2671
    %v2680 = vsub.f32 2.0, %v2672
    %v2681 = vsub.f32 2.0, %v2673
    %v2682 = vsub.f32 2.0, %v2674
    %v2683 = vsub.f32 2.0, %v2675
    %v2684 = vmul.f32 %v2660, %v2676
    %v2685 = vmul.f32 %v2661, %v2677
    %v2686 = vmul.f32 %v2662, %v2678
    %v2687 = vmul.f32 %v2663, %v2679
    %v2688 = vmul.f32 %v2664, %v2680
    %v2689 = vmul.f32 %v2665, %v2681
    %v2690 = vmul.f32 %v2666, %v2682
    %v2691 = vmul.f32 %v2667, %v2683
    %v2692 = vmul.f32 %v2597, %v2684
    %v2693 = vmul.f32 %v2599, %v2685
    %v2694 = vmul.f32 %v2601, %v2686
    %v2695 = vmul.f32 %v2603, %v2687
    %v2696 = vmul.f32 %v2605, %v2688
    %v2697 = vmul.f32 %v2607, %v2689
    %v2698 = vmul.f32 %v2609, %v2690
    %v2699 = vmul.f32 %v2611, %v2691
    %2700 = vrot.lane.b32.xlu0 %v471, 40
    %v2701 = vpop.permute.xlu0 %2700
    %2702 = vrot.lane.b32.xlu0 %v476, 40
    %v2703 = vpop.permute.xlu0 %2702
    %2704 = vrot.lane.b32.xlu0 %v481, 40
    %v2705 = vpop.permute.xlu0 %2704
    %2706 = vrot.lane.b32.xlu0 %v486, 40
    %v2707 = vpop.permute.xlu0 %2706
    %v2713 = vsel %vm379, %v2692, 0
    %v2716 = vsel %vm379, %v2693, 0
    %v2719 = vsel %vm379, %v2694, 0
    %v2722 = vsel %vm379, %v2695, 0
    %2724 = vmatprep.subr.mxu0 0.0
    %2725 = vmatpush1.msra.mxu0 0.0
    %2726 = vmatprep.subr.mxu0 0.0
    %2727 = vmatpush1.msra.mxu0 0.0
    %2728 = vmatprep.subr.mxu0 0.0
    %2729 = vmatpush1.msra.mxu0 0.0
    %2730 = vmatprep.subr.mxu0 0.0
    %2731 = vmatpush1.msra.mxu0 0.0
    %2732 = vmatprep.subr.mxu0 0.0
    %2733 = vmatpush1.msra.mxu0 0.0
    %2734 = vmatprep.subr.mxu0 0.0
    %2735 = vmatpush1.msra.mxu0 0.0
    %2736 = vmatprep.subr.mxu0 0.0
    %2737 = vmatpush1.msra.mxu0 0.0
    %2738 = vmatprep.subr.mxu0 0.0
    %2739 = vmatpush1.msra.mxu0 0.0
    %2740 = vmatprep.subr.mxu0 0.0
    %2741 = vmatpush1.msra.mxu0 0.0
    %2742 = vmatprep.subr.mxu0 0.0
    %2743 = vmatpush1.msra.mxu0 0.0
    %2744 = vmatprep.subr.mxu0 0.0
    %2745 = vmatpush1.msra.mxu0 0.0
    %2746 = vmatprep.subr.mxu0 0.0
    %2747 = vmatpush1.msra.mxu0 0.0
    %2748 = vmatprep.subr.mxu0 0.0
    %2749 = vmatpush1.msra.mxu0 %v2707
    %2750 = vmatprep.subr.mxu0 0.0
    %2751 = vmatpush1.msra.mxu0 %v2705
    %2752 = vmatprep.subr.mxu0 0.0
    %2753 = vmatpush1.msra.mxu0 %v2703
    %2754 = vmatprep.subr.mxu0 0.0
    %2755 = vmatpush1.msra.mxu0 %v2701
    %2756 = vmatprep.subr.mxu0 0.0
    %2757 = vmatpush2.msra.mxu0 0.0
    %2758 = vmatprep.subr.mxu0 0.0
    %2759 = vmatpush2.msra.mxu0 0.0
    %2760 = vmatprep.subr.mxu0 0.0
    %2761 = vmatpush2.msra.mxu0 0.0
    %2762 = vmatprep.subr.mxu0 0.0
    %2763 = vmatpush2.msra.mxu0 0.0
    %2764 = vmatprep.subr.mxu0 0.0
    %2765 = vmatpush2.msra.mxu0 0.0
    %2766 = vmatprep.subr.mxu0 0.0
    %2767 = vmatpush2.msra.mxu0 0.0
    %2768 = vmatprep.subr.mxu0 0.0
    %2769 = vmatpush2.msra.mxu0 0.0
    %2770 = vmatprep.subr.mxu0 0.0
    %2771 = vmatpush2.msra.mxu0 0.0
    %2772 = vmatprep.subr.mxu0 0.0
    %2773 = vmatpush2.msra.mxu0 0.0
    %2774 = vmatprep.subr.mxu0 0.0
    %2775 = vmatpush2.msra.mxu0 0.0
    %2776 = vmatprep.subr.mxu0 0.0
    %2777 = vmatpush2.msra.mxu0 0.0
    %2778 = vmatprep.subr.mxu0 0.0
    %2779 = vmatpush2.msra.mxu0 0.0
    %2780 = vmatprep.subr.mxu0 0.0
    %2781 = vmatpush2.msra.mxu0 0.0
    %2782 = vmatprep.subr.mxu0 0.0
    %2783 = vmatpush2.msra.mxu0 0.0
    %2784 = vmatprep.subr.mxu0 0.0
    %2785 = vmatpush2.msra.mxu0 0.0
    %2786 = vmatprep.subr.mxu0 0.0
    %2787 = vmatpush2.msra.mxu0 0.0
    %2788 = vmatprep.mubr.f32.mxu0 0.0
    %2789 = vmatmul.mubr.f32.gmra.mxu0 %v2713
    %v2790 = vpop.f32.mrf.mxu0
    %v2791 = vadd.f32 0.0, %v2790
    %v2792 = vpop.f32.mrf.mxu0
    %2793 = vmatprep.mubr.f32.mxu0 0.0
    %2794 = vmatmul.mubr.f32.gmra.mxu0 %v2716
    %v2795 = vpop.f32.mrf.mxu0
    %v2796 = vadd.f32 0.0, %v2795
    %v2797 = vpop.f32.mrf.mxu0
    %2798 = vmatprep.mubr.f32.mxu0 0.0
    %2799 = vmatmul.mubr.f32.gmra.mxu0 %v2719
    %v2800 = vpop.f32.mrf.mxu0
    %v2801 = vadd.f32 0.0, %v2800
    %v2802 = vpop.f32.mrf.mxu0
    %2803 = vmatprep.mubr.f32.mxu0 0.0
    %2804 = vmatmul.mubr.f32.gmra.mxu0 %v2722
    %v2805 = vpop.f32.mrf.mxu0
    %v2806 = vadd.f32 0.0, %v2805
    %v2807 = vpop.f32.mrf.mxu0
    %2808 = vdwg.mxu0
    %2809 = vrot.lane.b32.xlu0 %v491, 40
    %v2810 = vpop.permute.xlu0 %2809
    %2811 = vrot.lane.b32.xlu0 %v496, 40
    %v2812 = vpop.permute.xlu0 %2811
    %2813 = vrot.lane.b32.xlu0 %v501, 40
    %v2814 = vpop.permute.xlu0 %2813
    %2815 = vrot.lane.b32.xlu0 %v506, 40
    %v2816 = vpop.permute.xlu0 %2815
    %v2822 = vsel %vm379, %v2696, 0
    %v2825 = vsel %vm379, %v2697, 0
    %v2828 = vsel %vm379, %v2698, 0
    %v2831 = vsel %vm379, %v2699, 0
    %2833 = vmatprep.subr.mxu0 0.0
    %2834 = vmatpush1.msra.mxu0 0.0
    %2835 = vmatprep.subr.mxu0 0.0
    %2836 = vmatpush1.msra.mxu0 0.0
    %2837 = vmatprep.subr.mxu0 0.0
    %2838 = vmatpush1.msra.mxu0 0.0
    %2839 = vmatprep.subr.mxu0 0.0
    %2840 = vmatpush1.msra.mxu0 0.0
    %2841 = vmatprep.subr.mxu0 0.0
    %2842 = vmatpush1.msra.mxu0 0.0
    %2843 = vmatprep.subr.mxu0 0.0
    %2844 = vmatpush1.msra.mxu0 0.0
    %2845 = vmatprep.subr.mxu0 0.0
    %2846 = vmatpush1.msra.mxu0 0.0
    %2847 = vmatprep.subr.mxu0 0.0
    %2848 = vmatpush1.msra.mxu0 0.0
    %2849 = vmatprep.subr.mxu0 0.0
    %2850 = vmatpush1.msra.mxu0 0.0
    %2851 = vmatprep.subr.mxu0 0.0
    %2852 = vmatpush1.msra.mxu0 0.0
    %2853 = vmatprep.subr.mxu0 0.0
    %2854 = vmatpush1.msra.mxu0 0.0
    %2855 = vmatprep.subr.mxu0 0.0
    %2856 = vmatpush1.msra.mxu0 0.0
    %2857 = vmatprep.subr.mxu0 0.0
    %2858 = vmatpush1.msra.mxu0 %v2816
    %2859 = vmatprep.subr.mxu0 0.0
    %2860 = vmatpush1.msra.mxu0 %v2814
    %2861 = vmatprep.subr.mxu0 0.0
    %2862 = vmatpush1.msra.mxu0 %v2812
    %2863 = vmatprep.subr.mxu0 0.0
    %2864 = vmatpush1.msra.mxu0 %v2810
    %2865 = vmatprep.subr.mxu0 0.0
    %2866 = vmatpush2.msra.mxu0 0.0
    %2867 = vmatprep.subr.mxu0 0.0
    %2868 = vmatpush2.msra.mxu0 0.0
    %2869 = vmatprep.subr.mxu0 0.0
    %2870 = vmatpush2.msra.mxu0 0.0
    %2871 = vmatprep.subr.mxu0 0.0
    %2872 = vmatpush2.msra.mxu0 0.0
    %2873 = vmatprep.subr.mxu0 0.0
    %2874 = vmatpush2.msra.mxu0 0.0
    %2875 = vmatprep.subr.mxu0 0.0
    %2876 = vmatpush2.msra.mxu0 0.0
    %2877 = vmatprep.subr.mxu0 0.0
    %2878 = vmatpush2.msra.mxu0 0.0
    %2879 = vmatprep.subr.mxu0 0.0
    %2880 = vmatpush2.msra.mxu0 0.0
    %2881 = vmatprep.subr.mxu0 0.0
    %2882 = vmatpush2.msra.mxu0 0.0
    %2883 = vmatprep.subr.mxu0 0.0
    %2884 = vmatpush2.msra.mxu0 0.0
    %2885 = vmatprep.subr.mxu0 0.0
    %2886 = vmatpush2.msra.mxu0 0.0
    %2887 = vmatprep.subr.mxu0 0.0
    %2888 = vmatpush2.msra.mxu0 0.0
    %2889 = vmatprep.subr.mxu0 0.0
    %2890 = vmatpush2.msra.mxu0 0.0
    %2891 = vmatprep.subr.mxu0 0.0
    %2892 = vmatpush2.msra.mxu0 0.0
    %2893 = vmatprep.subr.mxu0 0.0
    %2894 = vmatpush2.msra.mxu0 0.0
    %2895 = vmatprep.subr.mxu0 0.0
    %2896 = vmatpush2.msra.mxu0 0.0
    %2897 = vmatprep.mubr.f32.mxu0 0.0
    %2898 = vmatmul.mubr.f32.gmra.mxu0 %v2822
    %v2899 = vpop.f32.mrf.mxu0
    %v2900 = vadd.f32 0.0, %v2899
    %v2901 = vpop.f32.mrf.mxu0
    %2902 = vmatprep.mubr.f32.mxu0 0.0
    %2903 = vmatmul.mubr.f32.gmra.mxu0 %v2825
    %v2904 = vpop.f32.mrf.mxu0
    %v2905 = vadd.f32 0.0, %v2904
    %v2906 = vpop.f32.mrf.mxu0
    %2907 = vmatprep.mubr.f32.mxu0 0.0
    %2908 = vmatmul.mubr.f32.gmra.mxu0 %v2828
    %v2909 = vpop.f32.mrf.mxu0
    %v2910 = vadd.f32 0.0, %v2909
    %v2911 = vpop.f32.mrf.mxu0
    %2912 = vmatprep.mubr.f32.mxu0 0.0
    %2913 = vmatmul.mubr.f32.gmra.mxu0 %v2831
    %v2914 = vpop.f32.mrf.mxu0
    %v2915 = vadd.f32 0.0, %v2914
    %v2916 = vpop.f32.mrf.mxu0
    %2917 = vdwg.mxu0
    %2926 = vrot.lane.b32.xlu0 %v1583, 8
    %v2927 = vpop.permute.xlu0 %2926
    %2928 = vrot.lane.b32.xlu0 %v1588, 8
    %v2929 = vpop.permute.xlu0 %2928
    %2930 = vrot.lane.b32.xlu0 %v1593, 8
    %v2931 = vpop.permute.xlu0 %2930
    %2932 = vrot.lane.b32.xlu0 %v1598, 8
    %v2933 = vpop.permute.xlu0 %2932
    %2934 = vrot.lane.b32.xlu0 %v1692, 8
    %v2935 = vpop.permute.xlu0 %2934
    %2936 = vrot.lane.b32.xlu0 %v1697, 8
    %v2937 = vpop.permute.xlu0 %2936
    %2938 = vrot.lane.b32.xlu0 %v1702, 8
    %v2939 = vpop.permute.xlu0 %2938
    %2940 = vrot.lane.b32.xlu0 %v1707, 8
    %v2941 = vpop.permute.xlu0 %2940
    %2958 = vrot.lane.b32.xlu0 %v2187, 16
    %v2959 = vpop.permute.xlu0 %2958
    %2960 = vrot.lane.b32.xlu0 %v2192, 16
    %v2961 = vpop.permute.xlu0 %2960
    %2962 = vrot.lane.b32.xlu0 %v2197, 16
    %v2963 = vpop.permute.xlu0 %2962
    %2964 = vrot.lane.b32.xlu0 %v2202, 16
    %v2965 = vpop.permute.xlu0 %2964
    %2966 = vrot.lane.b32.xlu0 %v2296, 16
    %v2967 = vpop.permute.xlu0 %2966
    %2968 = vrot.lane.b32.xlu0 %v2301, 16
    %v2969 = vpop.permute.xlu0 %2968
    %2970 = vrot.lane.b32.xlu0 %v2306, 16
    %v2971 = vpop.permute.xlu0 %2970
    %2972 = vrot.lane.b32.xlu0 %v2311, 16
    %v2973 = vpop.permute.xlu0 %2972
    %2990 = vrot.lane.b32.xlu0 %v2791, 24
    %v2991 = vpop.permute.xlu0 %2990
    %2992 = vrot.lane.b32.xlu0 %v2796, 24
    %v2993 = vpop.permute.xlu0 %2992
    %2994 = vrot.lane.b32.xlu0 %v2801, 24
    %v2995 = vpop.permute.xlu0 %2994
    %2996 = vrot.lane.b32.xlu0 %v2806, 24
    %v2997 = vpop.permute.xlu0 %2996
    %2998 = vrot.lane.b32.xlu0 %v2900, 24
    %v2999 = vpop.permute.xlu0 %2998
    %3000 = vrot.lane.b32.xlu0 %v2905, 24
    %v3001 = vpop.permute.xlu0 %3000
    %3002 = vrot.lane.b32.xlu0 %v2910, 24
    %v3003 = vpop.permute.xlu0 %3002
    %3004 = vrot.lane.b32.xlu0 %v2915, 24
    %v3005 = vpop.permute.xlu0 %3004
    %v3014 = vsel %vm521, %v979, %v2927
    %v3015 = vsel %vm521, %v984, %v2929
    %v3016 = vsel %vm521, %v989, %v2931
    %v3017 = vsel %vm521, %v994, %v2933
    %v3018 = vsel %vm521, %v1088, %v2935
    %v3019 = vsel %vm521, %v1093, %v2937
    %v3020 = vsel %vm521, %v1098, %v2939
    %v3021 = vsel %vm521, %v1103, %v2941
    %v3022 = vsel %vm49, %v3014, %v2959
    %v3023 = vsel %vm49, %v3015, %v2961
    %v3024 = vsel %vm49, %v3016, %v2963
    %v3025 = vsel %vm49, %v3017, %v2965
    %v3026 = vsel %vm49, %v3018, %v2967
    %v3027 = vsel %vm49, %v3019, %v2969
    %v3028 = vsel %vm49, %v3020, %v2971
    %v3029 = vsel %vm49, %v3021, %v2973
    %vm3030 = vcmask 195584
    %v3031 = vsel %vm3030, %v3022, %v2991
    %v3032 = vsel %vm3030, %v3023, %v2993
    %v3033 = vsel %vm3030, %v3024, %v2995
    %v3034 = vsel %vm3030, %v3025, %v2997
    %v3035 = vsel %vm3030, %v3026, %v2999
    %v3036 = vsel %vm3030, %v3027, %v3001
    %v3037 = vsel %vm3030, %v3028, %v3003
    %v3038 = vsel %vm3030, %v3029, %v3005
    %v3039 = vld [vmem:[%s4 + $0x1] sm:$0x1]
    %v3040 = vlaneseq
    %v3041 = vshrl.u32 %v3040, 7
    %v3042 = vsub.s32 0, %v3041
    %v3043 = vrot.slane %v3039, %v3042
    %v3045 = vsel %vm379, %v3031, 0
    %v3048 = vsel %vm379, %v3032, 0
    %v3051 = vsel %vm379, %v3033, 0
    %v3054 = vsel %vm379, %v3034, 0
    %v3057 = vsel %vm379, %v3035, 0
    %v3060 = vsel %vm379, %v3036, 0
    %v3063 = vsel %vm379, %v3037, 0
    %v3066 = vsel %vm379, %v3038, 0
    %3068 = vmatprep.subr.mxu0 0.0
    %3069 = vmatpush1.msra.mxu0 0.0
    %3070 = vmatprep.subr.mxu0 0.0
    %3071 = vmatpush1.msra.mxu0 0.0
    %3072 = vmatprep.subr.mxu0 0.0
    %3073 = vmatpush1.msra.mxu0 0.0
    %3074 = vmatprep.subr.mxu0 0.0
    %3075 = vmatpush1.msra.mxu0 0.0
    %3076 = vmatprep.subr.mxu0 0.0
    %3077 = vmatpush1.msra.mxu0 0.0
    %3078 = vmatprep.subr.mxu0 0.0
    %3079 = vmatpush1.msra.mxu0 0.0
    %3080 = vmatprep.subr.mxu0 0.0
    %3081 = vmatpush1.msra.mxu0 0.0
    %3082 = vmatprep.subr.mxu0 0.0
    %3083 = vmatpush1.msra.mxu0 0.0
    %3084 = vmatprep.subr.mxu0 0.0
    %3085 = vmatpush1.msra.mxu0 0.0
    %3086 = vmatprep.subr.mxu0 0.0
    %3087 = vmatpush1.msra.mxu0 0.0
    %3088 = vmatprep.subr.mxu0 0.0
    %3089 = vmatpush1.msra.mxu0 0.0
    %3090 = vmatprep.subr.mxu0 0.0
    %3091 = vmatpush1.msra.mxu0 0.0
    %3092 = vmatprep.subr.mxu0 0.0
    %3093 = vmatpush1.msra.mxu0 %v48
    %3094 = vmatprep.subr.mxu0 0.0
    %3095 = vmatpush1.msra.mxu0 %v45
    %3096 = vmatprep.subr.mxu0 0.0
    %3097 = vmatpush1.msra.mxu0 %v42
    %3098 = vmatprep.subr.mxu0 0.0
    %3099 = vmatpush1.msra.mxu0 %v39
    %3100 = vmatprep.subr.mxu0 0.0
    %3101 = vmatpush2.msra.mxu0 0.0
    %3102 = vmatprep.subr.mxu0 0.0
    %3103 = vmatpush2.msra.mxu0 0.0
    %3104 = vmatprep.subr.mxu0 0.0
    %3105 = vmatpush2.msra.mxu0 0.0
    %3106 = vmatprep.subr.mxu0 0.0
    %3107 = vmatpush2.msra.mxu0 0.0
    %3108 = vmatprep.subr.mxu0 0.0
    %3109 = vmatpush2.msra.mxu0 0.0
    %3110 = vmatprep.subr.mxu0 0.0
    %3111 = vmatpush2.msra.mxu0 0.0
    %3112 = vmatprep.subr.mxu0 0.0
    %3113 = vmatpush2.msra.mxu0 0.0
    %3114 = vmatprep.subr.mxu0 0.0
    %3115 = vmatpush2.msra.mxu0 0.0
    %3116 = vmatprep.subr.mxu0 0.0
    %3117 = vmatpush2.msra.mxu0 0.0
    %3118 = vmatprep.subr.mxu0 0.0
    %3119 = vmatpush2.msra.mxu0 0.0
    %3120 = vmatprep.subr.mxu0 0.0
    %3121 = vmatpush2.msra.mxu0 0.0
    %3122 = vmatprep.subr.mxu0 0.0
    %3123 = vmatpush2.msra.mxu0 0.0
    %3124 = vmatprep.subr.mxu0 0.0
    %3125 = vmatpush2.msra.mxu0 0.0
    %3126 = vmatprep.subr.mxu0 0.0
    %3127 = vmatpush2.msra.mxu0 0.0
    %3128 = vmatprep.subr.mxu0 0.0
    %3129 = vmatpush2.msra.mxu0 0.0
    %3130 = vmatprep.subr.mxu0 0.0
    %3131 = vmatpush2.msra.mxu0 0.0
    %3132 = vmatprep.mubr.f32.mxu0 0.0
    %3133 = vmatmul.mubr.f32.gmra.mxu0 %v3045
    %v3134 = vpop.f32.mrf.mxu0
    %v3135 = vadd.f32 %v3043, %v3134
    %v3136 = vpop.f32.mrf.mxu0
    %3137 = vmatprep.mubr.f32.mxu0 0.0
    %3138 = vmatmul.mubr.f32.gmra.mxu0 %v3048
    %v3139 = vpop.f32.mrf.mxu0
    %v3140 = vadd.f32 %v3043, %v3139
    %v3141 = vpop.f32.mrf.mxu0
    %3142 = vmatprep.mubr.f32.mxu0 0.0
    %3143 = vmatmul.mubr.f32.gmra.mxu0 %v3051
    %v3144 = vpop.f32.mrf.mxu0
    %v3145 = vadd.f32 %v3043, %v3144
    %v3146 = vpop.f32.mrf.mxu0
    %3147 = vmatprep.mubr.f32.mxu0 0.0
    %3148 = vmatmul.mubr.f32.gmra.mxu0 %v3054
    %v3149 = vpop.f32.mrf.mxu0
    %v3150 = vadd.f32 %v3043, %v3149
    %v3151 = vpop.f32.mrf.mxu0
    %3152 = vmatprep.mubr.f32.mxu0 0.0
    %3153 = vmatmul.mubr.f32.gmra.mxu0 %v3057
    %v3154 = vpop.f32.mrf.mxu0
    %v3155 = vadd.f32 %v3043, %v3154
    %v3156 = vpop.f32.mrf.mxu0
    %3157 = vmatprep.mubr.f32.mxu0 0.0
    %3158 = vmatmul.mubr.f32.gmra.mxu0 %v3060
    %v3159 = vpop.f32.mrf.mxu0
    %v3160 = vadd.f32 %v3043, %v3159
    %v3161 = vpop.f32.mrf.mxu0
    %3162 = vmatprep.mubr.f32.mxu0 0.0
    %3163 = vmatmul.mubr.f32.gmra.mxu0 %v3063
    %v3164 = vpop.f32.mrf.mxu0
    %v3165 = vadd.f32 %v3043, %v3164
    %v3166 = vpop.f32.mrf.mxu0
    %3167 = vmatprep.mubr.f32.mxu0 0.0
    %3168 = vmatmul.mubr.f32.gmra.mxu0 %v3066
    %v3169 = vpop.f32.mrf.mxu0
    %v3170 = vadd.f32 %v3043, %v3169
    %v3171 = vpop.f32.mrf.mxu0
    %3172 = vdwg.mxu0
    %v3173 = vadd.f32 %v21, %v3135
    %v3174 = vadd.f32 %v22, %v3140
    %v3175 = vadd.f32 %v23, %v3145
    %v3176 = vadd.f32 %v24, %v3150
    %v3177 = vadd.f32 %v25, %v3155
    %v3178 = vadd.f32 %v26, %v3160
    %v3179 = vadd.f32 %v27, %v3165
    %v3180 = vadd.f32 %v28, %v3170
    %3189 = vrot.lane.b32.xlu0 %v3135, 112
    %v3190 = vpop.permute.xlu0 %3189
    %3191 = vrot.lane.b32.xlu0 %v3140, 112
    %v3192 = vpop.permute.xlu0 %3191
    %3193 = vrot.lane.b32.xlu0 %v3145, 112
    %v3194 = vpop.permute.xlu0 %3193
    %3195 = vrot.lane.b32.xlu0 %v3150, 112
    %v3196 = vpop.permute.xlu0 %3195
    %3197 = vrot.lane.b32.xlu0 %v3155, 112
    %v3198 = vpop.permute.xlu0 %3197
    %3199 = vrot.lane.b32.xlu0 %v3160, 112
    %v3200 = vpop.permute.xlu0 %3199
    %3201 = vrot.lane.b32.xlu0 %v3165, 112
    %v3202 = vpop.permute.xlu0 %3201
    %3203 = vrot.lane.b32.xlu0 %v3170, 112
    %v3204 = vpop.permute.xlu0 %3203
    %v3213 = vadd.f32 %v21, %v3190
    %v3214 = vadd.f32 %v22, %v3192
    %v3215 = vadd.f32 %v23, %v3194
    %v3216 = vadd.f32 %v24, %v3196
    %v3217 = vadd.f32 %v25, %v3198
    %v3218 = vadd.f32 %v26, %v3200
    %v3219 = vadd.f32 %v27, %v3202
    %v3220 = vadd.f32 %v28, %v3204
    %v3221 = vld [vmem:[%s4 + $0x8] sm:$0x1]
    %v3222 = vld [vmem:[%s4 + $0x9] sm:$0x1]
    %v3223 = vsel %vm49, %v3173, 0.0
    %3224 = vadd.xlane.f32.xlu0 %v3223
    %v3225 = vpop.xlane.xlu0 %3224
    %v3226 = vsel %vm49, %v3174, 0.0
    %3227 = vadd.xlane.f32.xlu0 %v3226
    %v3228 = vpop.xlane.xlu0 %3227
    %v3229 = vsel %vm49, %v3175, 0.0
    %3230 = vadd.xlane.f32.xlu0 %v3229
    %v3231 = vpop.xlane.xlu0 %3230
    %v3232 = vsel %vm49, %v3176, 0.0
    %3233 = vadd.xlane.f32.xlu0 %v3232
    %v3234 = vpop.xlane.xlu0 %3233
    %v3235 = vsel %vm49, %v3177, 0.0
    %3236 = vadd.xlane.f32.xlu0 %v3235
    %v3237 = vpop.xlane.xlu0 %3236
    %v3238 = vsel %vm49, %v3178, 0.0
    %3239 = vadd.xlane.f32.xlu0 %v3238
    %v3240 = vpop.xlane.xlu0 %3239
    %v3241 = vsel %vm49, %v3179, 0.0
    %3242 = vadd.xlane.f32.xlu0 %v3241
    %v3243 = vpop.xlane.xlu0 %3242
    %v3244 = vsel %vm49, %v3180, 0.0
    %3245 = vadd.xlane.f32.xlu0 %v3244
    %v3246 = vpop.xlane.xlu0 %3245
    %v3247 = vmul.f32 %v3173, %v3173
    %v3248 = vmul.f32 %v3174, %v3174
    %v3249 = vmul.f32 %v3175, %v3175
    %v3250 = vmul.f32 %v3176, %v3176
    %v3251 = vmul.f32 %v3177, %v3177
    %v3252 = vmul.f32 %v3178, %v3178
    %v3253 = vmul.f32 %v3179, %v3179
    %v3254 = vmul.f32 %v3180, %v3180
    %v3255 = vsel %vm49, %v3247, 0.0
    %3256 = vadd.xlane.f32.xlu0 %v3255
    %v3257 = vpop.xlane.xlu0 %3256
    %v3258 = vsel %vm49, %v3248, 0.0
    %3259 = vadd.xlane.f32.xlu0 %v3258
    %v3260 = vpop.xlane.xlu0 %3259
    %v3261 = vsel %vm49, %v3249, 0.0
    %3262 = vadd.xlane.f32.xlu0 %v3261
    %v3263 = vpop.xlane.xlu0 %3262
    %v3264 = vsel %vm49, %v3250, 0.0
    %3265 = vadd.xlane.f32.xlu0 %v3264
    %v3266 = vpop.xlane.xlu0 %3265
    %v3267 = vsel %vm49, %v3251, 0.0
    %3268 = vadd.xlane.f32.xlu0 %v3267
    %v3269 = vpop.xlane.xlu0 %3268
    %v3270 = vsel %vm49, %v3252, 0.0
    %3271 = vadd.xlane.f32.xlu0 %v3270
    %v3272 = vpop.xlane.xlu0 %3271
    %v3273 = vsel %vm49, %v3253, 0.0
    %3274 = vadd.xlane.f32.xlu0 %v3273
    %v3275 = vpop.xlane.xlu0 %3274
    %v3276 = vsel %vm49, %v3254, 0.0
    %3277 = vadd.xlane.f32.xlu0 %v3276
    %v3278 = vpop.xlane.xlu0 %3277
    %v3279 = vmul.f32 %v3225, 0.0625
    %v3280 = vmul.f32 %v3228, 0.0625
    %v3281 = vmul.f32 %v3231, 0.0625
    %v3282 = vmul.f32 %v3234, 0.0625
    %v3283 = vmul.f32 %v3237, 0.0625
    %v3284 = vmul.f32 %v3240, 0.0625
    %v3285 = vmul.f32 %v3243, 0.0625
    %v3286 = vmul.f32 %v3246, 0.0625
    %v3287 = vmul.f32 %v3225, %v3279
    %v3288 = vmul.f32 %v3228, %v3280
    %v3289 = vmul.f32 %v3231, %v3281
    %v3290 = vmul.f32 %v3234, %v3282
    %v3291 = vmul.f32 %v3237, %v3283
    %v3292 = vmul.f32 %v3240, %v3284
    %v3293 = vmul.f32 %v3243, %v3285
    %v3294 = vmul.f32 %v3246, %v3286
    %v3295 = vsub.f32 %v3257, %v3287
    %v3296 = vsub.f32 %v3260, %v3288
    %v3297 = vsub.f32 %v3263, %v3289
    %v3298 = vsub.f32 %v3266, %v3290
    %v3299 = vsub.f32 %v3269, %v3291
    %v3300 = vsub.f32 %v3272, %v3292
    %v3301 = vsub.f32 %v3275, %v3293
    %v3302 = vsub.f32 %v3278, %v3294
    %v3303 = vmax.f32 %v3295, 0.0
    %v3304 = vmax.f32 %v3296, 0.0
    %v3305 = vmax.f32 %v3297, 0.0
    %v3306 = vmax.f32 %v3298, 0.0
    %v3307 = vmax.f32 %v3299, 0.0
    %v3308 = vmax.f32 %v3300, 0.0
    %v3309 = vmax.f32 %v3301, 0.0
    %v3310 = vmax.f32 %v3302, 0.0
    %v3311 = vmul.f32 %v3303, 0.06666667
    %v3312 = vmul.f32 %v3304, 0.06666667
    %v3313 = vmul.f32 %v3305, 0.06666667
    %v3314 = vmul.f32 %v3306, 0.06666667
    %v3315 = vmul.f32 %v3307, 0.06666667
    %v3316 = vmul.f32 %v3308, 0.06666667
    %v3317 = vmul.f32 %v3309, 0.06666667
    %v3318 = vmul.f32 %v3310, 0.06666667
    %v3319 = vrsqrt.pop %v3311
    %v3320 = vmul.f32 %v3311, %v3319
    %vm3321 = vcmp.eq.f32.partialorder %v3311, inf
    %v3322 = vsel %vm3321, %v3311, %v3320
    %vm3323 = vcmp.eq.f32.partialorder %v3311, 0.0
    %v3324 = vand.u32 %v3311, 2147483648
    %v3325 = vsel %vm3323, %v3324, %v3322
    %v3326 = vrsqrt.pop %v3312
    %v3327 = vmul.f32 %v3312, %v3326
    %vm3328 = vcmp.eq.f32.partialorder %v3312, inf
    %v3329 = vsel %vm3328, %v3312, %v3327
    %vm3330 = vcmp.eq.f32.partialorder %v3312, 0.0
    %v3331 = vand.u32 %v3312, 2147483648
    %v3332 = vsel %vm3330, %v3331, %v3329
    %v3333 = vrsqrt.pop %v3313
    %v3334 = vmul.f32 %v3313, %v3333
    %vm3335 = vcmp.eq.f32.partialorder %v3313, inf
    %v3336 = vsel %vm3335, %v3313, %v3334
    %vm3337 = vcmp.eq.f32.partialorder %v3313, 0.0
    %v3338 = vand.u32 %v3313, 2147483648
    %v3339 = vsel %vm3337, %v3338, %v3336
    %v3340 = vrsqrt.pop %v3314
    %v3341 = vmul.f32 %v3314, %v3340
    %vm3342 = vcmp.eq.f32.partialorder %v3314, inf
    %v3343 = vsel %vm3342, %v3314, %v3341
    %vm3344 = vcmp.eq.f32.partialorder %v3314, 0.0
    %v3345 = vand.u32 %v3314, 2147483648
    %v3346 = vsel %vm3344, %v3345, %v3343
    %v3347 = vrsqrt.pop %v3315
    %v3348 = vmul.f32 %v3315, %v3347
    %vm3349 = vcmp.eq.f32.partialorder %v3315, inf
    %v3350 = vsel %vm3349, %v3315, %v3348
    %vm3351 = vcmp.eq.f32.partialorder %v3315, 0.0
    %v3352 = vand.u32 %v3315, 2147483648
    %v3353 = vsel %vm3351, %v3352, %v3350
    %v3354 = vrsqrt.pop %v3316
    %v3355 = vmul.f32 %v3316, %v3354
    %vm3356 = vcmp.eq.f32.partialorder %v3316, inf
    %v3357 = vsel %vm3356, %v3316, %v3355
    %vm3358 = vcmp.eq.f32.partialorder %v3316, 0.0
    %v3359 = vand.u32 %v3316, 2147483648
    %v3360 = vsel %vm3358, %v3359, %v3357
    %v3361 = vrsqrt.pop %v3317
    %v3362 = vmul.f32 %v3317, %v3361
    %vm3363 = vcmp.eq.f32.partialorder %v3317, inf
    %v3364 = vsel %vm3363, %v3317, %v3362
    %vm3365 = vcmp.eq.f32.partialorder %v3317, 0.0
    %v3366 = vand.u32 %v3317, 2147483648
    %v3367 = vsel %vm3365, %v3366, %v3364
    %v3368 = vrsqrt.pop %v3318
    %v3369 = vmul.f32 %v3318, %v3368
    %vm3370 = vcmp.eq.f32.partialorder %v3318, inf
    %v3371 = vsel %vm3370, %v3318, %v3369
    %vm3372 = vcmp.eq.f32.partialorder %v3318, 0.0
    %v3373 = vand.u32 %v3318, 2147483648
    %v3374 = vsel %vm3372, %v3373, %v3371
    %v3375 = vadd.f32 %v3325, 1e-06
    %v3376 = vadd.f32 %v3332, 1e-06
    %v3377 = vadd.f32 %v3339, 1e-06
    %v3378 = vadd.f32 %v3346, 1e-06
    %v3379 = vadd.f32 %v3353, 1e-06
    %v3380 = vadd.f32 %v3360, 1e-06
    %v3381 = vadd.f32 %v3367, 1e-06
    %v3382 = vadd.f32 %v3374, 1e-06
    %v3383 = vrcp.pop %v3375
    %v3384 = vrcp.pop %v3376
    %v3385 = vrcp.pop %v3377
    %v3386 = vrcp.pop %v3378
    %v3387 = vrcp.pop %v3379
    %v3388 = vrcp.pop %v3380
    %v3389 = vrcp.pop %v3381
    %v3390 = vrcp.pop %v3382
    %v3391 = vmul.f32 %v3375, %v3383
    %v3392 = vmul.f32 %v3376, %v3384
    %v3393 = vmul.f32 %v3377, %v3385
    %v3394 = vmul.f32 %v3378, %v3386
    %v3395 = vmul.f32 %v3379, %v3387
    %v3396 = vmul.f32 %v3380, %v3388
    %v3397 = vmul.f32 %v3381, %v3389
    %v3398 = vmul.f32 %v3382, %v3390
    %v3399 = vsub.f32 2.0, %v3391
    %v3400 = vsub.f32 2.0, %v3392
    %v3401 = vsub.f32 2.0, %v3393
    %v3402 = vsub.f32 2.0, %v3394
    %v3403 = vsub.f32 2.0, %v3395
    %v3404 = vsub.f32 2.0, %v3396
    %v3405 = vsub.f32 2.0, %v3397
    %v3406 = vsub.f32 2.0, %v3398
    %v3407 = vmul.f32 %v3383, %v3399
    %v3408 = vmul.f32 %v3384, %v3400
    %v3409 = vmul.f32 %v3385, %v3401
    %v3410 = vmul.f32 %v3386, %v3402
    %v3411 = vmul.f32 %v3387, %v3403
    %v3412 = vmul.f32 %v3388, %v3404
    %v3413 = vmul.f32 %v3389, %v3405
    %v3414 = vmul.f32 %v3390, %v3406
    %v3415 = vmul.f32 %v3375, %v3407
    %v3416 = vmul.f32 %v3376, %v3408
    %v3417 = vmul.f32 %v3377, %v3409
    %v3418 = vmul.f32 %v3378, %v3410
    %v3419 = vmul.f32 %v3379, %v3411
    %v3420 = vmul.f32 %v3380, %v3412
    %v3421 = vmul.f32 %v3381, %v3413
    %v3422 = vmul.f32 %v3382, %v3414
    %v3423 = vsub.f32 2.0, %v3415
    %v3424 = vsub.f32 2.0, %v3416
    %v3425 = vsub.f32 2.0, %v3417
    %v3426 = vsub.f32 2.0, %v3418
    %v3427 = vsub.f32 2.0, %v3419
    %v3428 = vsub.f32 2.0, %v3420
    %v3429 = vsub.f32 2.0, %v3421
    %v3430 = vsub.f32 2.0, %v3422
    %v3431 = vmul.f32 %v3407, %v3423
    %v3432 = vmul.f32 %v3408, %v3424
    %v3433 = vmul.f32 %v3409, %v3425
    %v3434 = vmul.f32 %v3410, %v3426
    %v3435 = vmul.f32 %v3411, %v3427
    %v3436 = vmul.f32 %v3412, %v3428
    %v3437 = vmul.f32 %v3413, %v3429
    %v3438 = vmul.f32 %v3414, %v3430
    %v3439 = vsub.f32 %v3173, %v3279
    %v3440 = vsub.f32 %v3174, %v3280
    %v3441 = vsub.f32 %v3175, %v3281
    %v3442 = vsub.f32 %v3176, %v3282
    %v3443 = vsub.f32 %v3177, %v3283
    %v3444 = vsub.f32 %v3178, %v3284
    %v3445 = vsub.f32 %v3179, %v3285
    %v3446 = vsub.f32 %v3180, %v3286
    %v3447 = vmul.f32 %v3439, %v3431
    %v3448 = vmul.f32 %v3440, %v3432
    %v3449 = vmul.f32 %v3441, %v3433
    %v3450 = vmul.f32 %v3442, %v3434
    %v3451 = vmul.f32 %v3443, %v3435
    %v3452 = vmul.f32 %v3444, %v3436
    %v3453 = vmul.f32 %v3445, %v3437
    %v3454 = vmul.f32 %v3446, %v3438
    %v3455 = vlaneseq
    %v3456 = vshrl.u32 %v3455, 7
    %v3457 = vsub.s32 0, %v3456
    %v3458 = vrot.slane %v3221, %v3457
    %v3459 = vmul.f32 %v3458, %v3447
    %v3460 = vmul.f32 %v3458, %v3448
    %v3461 = vmul.f32 %v3458, %v3449
    %v3462 = vmul.f32 %v3458, %v3450
    %v3463 = vmul.f32 %v3458, %v3451
    %v3464 = vmul.f32 %v3458, %v3452
    %v3465 = vmul.f32 %v3458, %v3453
    %v3466 = vmul.f32 %v3458, %v3454
    %v3467 = vlaneseq
    %v3468 = vshrl.u32 %v3467, 7
    %v3469 = vsub.s32 0, %v3468
    %v3470 = vrot.slane %v3222, %v3469
    %v3471 = vadd.f32 %v3459, %v3470
    %v3472 = vadd.f32 %v3460, %v3470
    %v3473 = vadd.f32 %v3461, %v3470
    %v3474 = vadd.f32 %v3462, %v3470
    %v3475 = vadd.f32 %v3463, %v3470
    %v3476 = vadd.f32 %v3464, %v3470
    %v3477 = vadd.f32 %v3465, %v3470
    %v3478 = vadd.f32 %v3466, %v3470
    %v3479 = vld [vmem:[%s4 + $0xa] sm:$0x1]
    %v3480 = vld [vmem:[%s4 + $0xb] sm:$0x1]
    %v3481 = vsel %vm49, %v3213, 0.0
    %3482 = vadd.xlane.f32.xlu0 %v3481
    %v3483 = vpop.xlane.xlu0 %3482
    %v3484 = vsel %vm49, %v3214, 0.0
    %3485 = vadd.xlane.f32.xlu0 %v3484
    %v3486 = vpop.xlane.xlu0 %3485
    %v3487 = vsel %vm49, %v3215, 0.0
    %3488 = vadd.xlane.f32.xlu0 %v3487
    %v3489 = vpop.xlane.xlu0 %3488
    %v3490 = vsel %vm49, %v3216, 0.0
    %3491 = vadd.xlane.f32.xlu0 %v3490
    %v3492 = vpop.xlane.xlu0 %3491
    %v3493 = vsel %vm49, %v3217, 0.0
    %3494 = vadd.xlane.f32.xlu0 %v3493
    %v3495 = vpop.xlane.xlu0 %3494
    %v3496 = vsel %vm49, %v3218, 0.0
    %3497 = vadd.xlane.f32.xlu0 %v3496
    %v3498 = vpop.xlane.xlu0 %3497
    %v3499 = vsel %vm49, %v3219, 0.0
    %3500 = vadd.xlane.f32.xlu0 %v3499
    %v3501 = vpop.xlane.xlu0 %3500
    %v3502 = vsel %vm49, %v3220, 0.0
    %3503 = vadd.xlane.f32.xlu0 %v3502
    %v3504 = vpop.xlane.xlu0 %3503
    %v3505 = vmul.f32 %v3213, %v3213
    %v3506 = vmul.f32 %v3214, %v3214
    %v3507 = vmul.f32 %v3215, %v3215
    %v3508 = vmul.f32 %v3216, %v3216
    %v3509 = vmul.f32 %v3217, %v3217
    %v3510 = vmul.f32 %v3218, %v3218
    %v3511 = vmul.f32 %v3219, %v3219
    %v3512 = vmul.f32 %v3220, %v3220
    %v3513 = vsel %vm49, %v3505, 0.0
    %3514 = vadd.xlane.f32.xlu0 %v3513
    %v3515 = vpop.xlane.xlu0 %3514
    %v3516 = vsel %vm49, %v3506, 0.0
    %3517 = vadd.xlane.f32.xlu0 %v3516
    %v3518 = vpop.xlane.xlu0 %3517
    %v3519 = vsel %vm49, %v3507, 0.0
    %3520 = vadd.xlane.f32.xlu0 %v3519
    %v3521 = vpop.xlane.xlu0 %3520
    %v3522 = vsel %vm49, %v3508, 0.0
    %3523 = vadd.xlane.f32.xlu0 %v3522
    %v3524 = vpop.xlane.xlu0 %3523
    %v3525 = vsel %vm49, %v3509, 0.0
    %3526 = vadd.xlane.f32.xlu0 %v3525
    %v3527 = vpop.xlane.xlu0 %3526
    %v3528 = vsel %vm49, %v3510, 0.0
    %3529 = vadd.xlane.f32.xlu0 %v3528
    %v3530 = vpop.xlane.xlu0 %3529
    %v3531 = vsel %vm49, %v3511, 0.0
    %3532 = vadd.xlane.f32.xlu0 %v3531
    %v3533 = vpop.xlane.xlu0 %3532
    %v3534 = vsel %vm49, %v3512, 0.0
    %3535 = vadd.xlane.f32.xlu0 %v3534
    %v3536 = vpop.xlane.xlu0 %3535
    %v3537 = vmul.f32 %v3483, 0.0625
    %v3538 = vmul.f32 %v3486, 0.0625
    %v3539 = vmul.f32 %v3489, 0.0625
    %v3540 = vmul.f32 %v3492, 0.0625
    %v3541 = vmul.f32 %v3495, 0.0625
    %v3542 = vmul.f32 %v3498, 0.0625
    %v3543 = vmul.f32 %v3501, 0.0625
    %v3544 = vmul.f32 %v3504, 0.0625
    %v3545 = vmul.f32 %v3483, %v3537
    %v3546 = vmul.f32 %v3486, %v3538
    %v3547 = vmul.f32 %v3489, %v3539
    %v3548 = vmul.f32 %v3492, %v3540
    %v3549 = vmul.f32 %v3495, %v3541
    %v3550 = vmul.f32 %v3498, %v3542
    %v3551 = vmul.f32 %v3501, %v3543
    %v3552 = vmul.f32 %v3504, %v3544
    %v3553 = vsub.f32 %v3515, %v3545
    %v3554 = vsub.f32 %v3518, %v3546
    %v3555 = vsub.f32 %v3521, %v3547
    %v3556 = vsub.f32 %v3524, %v3548
    %v3557 = vsub.f32 %v3527, %v3549
    %v3558 = vsub.f32 %v3530, %v3550
    %v3559 = vsub.f32 %v3533, %v3551
    %v3560 = vsub.f32 %v3536, %v3552
    %v3561 = vmax.f32 %v3553, 0.0
    %v3562 = vmax.f32 %v3554, 0.0
    %v3563 = vmax.f32 %v3555, 0.0
    %v3564 = vmax.f32 %v3556, 0.0
    %v3565 = vmax.f32 %v3557, 0.0
    %v3566 = vmax.f32 %v3558, 0.0
    %v3567 = vmax.f32 %v3559, 0.0
    %v3568 = vmax.f32 %v3560, 0.0
    %v3569 = vmul.f32 %v3561, 0.06666667
    %v3570 = vmul.f32 %v3562, 0.06666667
    %v3571 = vmul.f32 %v3563, 0.06666667
    %v3572 = vmul.f32 %v3564, 0.06666667
    %v3573 = vmul.f32 %v3565, 0.06666667
    %v3574 = vmul.f32 %v3566, 0.06666667
    %v3575 = vmul.f32 %v3567, 0.06666667
    %v3576 = vmul.f32 %v3568, 0.06666667
    %v3577 = vrsqrt.pop %v3569
    %v3578 = vmul.f32 %v3569, %v3577
    %vm3579 = vcmp.eq.f32.partialorder %v3569, inf
    %v3580 = vsel %vm3579, %v3569, %v3578
    %vm3581 = vcmp.eq.f32.partialorder %v3569, 0.0
    %v3582 = vand.u32 %v3569, 2147483648
    %v3583 = vsel %vm3581, %v3582, %v3580
    %v3584 = vrsqrt.pop %v3570
    %v3585 = vmul.f32 %v3570, %v3584
    %vm3586 = vcmp.eq.f32.partialorder %v3570, inf
    %v3587 = vsel %vm3586, %v3570, %v3585
    %vm3588 = vcmp.eq.f32.partialorder %v3570, 0.0
    %v3589 = vand.u32 %v3570, 2147483648
    %v3590 = vsel %vm3588, %v3589, %v3587
    %v3591 = vrsqrt.pop %v3571
    %v3592 = vmul.f32 %v3571, %v3591
    %vm3593 = vcmp.eq.f32.partialorder %v3571, inf
    %v3594 = vsel %vm3593, %v3571, %v3592
    %vm3595 = vcmp.eq.f32.partialorder %v3571, 0.0
    %v3596 = vand.u32 %v3571, 2147483648
    %v3597 = vsel %vm3595, %v3596, %v3594
    %v3598 = vrsqrt.pop %v3572
    %v3599 = vmul.f32 %v3572, %v3598
    %vm3600 = vcmp.eq.f32.partialorder %v3572, inf
    %v3601 = vsel %vm3600, %v3572, %v3599
    %vm3602 = vcmp.eq.f32.partialorder %v3572, 0.0
    %v3603 = vand.u32 %v3572, 2147483648
    %v3604 = vsel %vm3602, %v3603, %v3601
    %v3605 = vrsqrt.pop %v3573
    %v3606 = vmul.f32 %v3573, %v3605
    %vm3607 = vcmp.eq.f32.partialorder %v3573, inf
    %v3608 = vsel %vm3607, %v3573, %v3606
    %vm3609 = vcmp.eq.f32.partialorder %v3573, 0.0
    %v3610 = vand.u32 %v3573, 2147483648
    %v3611 = vsel %vm3609, %v3610, %v3608
    %v3612 = vrsqrt.pop %v3574
    %v3613 = vmul.f32 %v3574, %v3612
    %vm3614 = vcmp.eq.f32.partialorder %v3574, inf
    %v3615 = vsel %vm3614, %v3574, %v3613
    %vm3616 = vcmp.eq.f32.partialorder %v3574, 0.0
    %v3617 = vand.u32 %v3574, 2147483648
    %v3618 = vsel %vm3616, %v3617, %v3615
    %v3619 = vrsqrt.pop %v3575
    %v3620 = vmul.f32 %v3575, %v3619
    %vm3621 = vcmp.eq.f32.partialorder %v3575, inf
    %v3622 = vsel %vm3621, %v3575, %v3620
    %vm3623 = vcmp.eq.f32.partialorder %v3575, 0.0
    %v3624 = vand.u32 %v3575, 2147483648
    %v3625 = vsel %vm3623, %v3624, %v3622
    %v3626 = vrsqrt.pop %v3576
    %v3627 = vmul.f32 %v3576, %v3626
    %vm3628 = vcmp.eq.f32.partialorder %v3576, inf
    %v3629 = vsel %vm3628, %v3576, %v3627
    %vm3630 = vcmp.eq.f32.partialorder %v3576, 0.0
    %v3631 = vand.u32 %v3576, 2147483648
    %v3632 = vsel %vm3630, %v3631, %v3629
    %v3633 = vadd.f32 %v3583, 1e-06
    %v3634 = vadd.f32 %v3590, 1e-06
    %v3635 = vadd.f32 %v3597, 1e-06
    %v3636 = vadd.f32 %v3604, 1e-06
    %v3637 = vadd.f32 %v3611, 1e-06
    %v3638 = vadd.f32 %v3618, 1e-06
    %v3639 = vadd.f32 %v3625, 1e-06
    %v3640 = vadd.f32 %v3632, 1e-06
    %v3641 = vrcp.pop %v3633
    %v3642 = vrcp.pop %v3634
    %v3643 = vrcp.pop %v3635
    %v3644 = vrcp.pop %v3636
    %v3645 = vrcp.pop %v3637
    %v3646 = vrcp.pop %v3638
    %v3647 = vrcp.pop %v3639
    %v3648 = vrcp.pop %v3640
    %v3649 = vmul.f32 %v3633, %v3641
    %v3650 = vmul.f32 %v3634, %v3642
    %v3651 = vmul.f32 %v3635, %v3643
    %v3652 = vmul.f32 %v3636, %v3644
    %v3653 = vmul.f32 %v3637, %v3645
    %v3654 = vmul.f32 %v3638, %v3646
    %v3655 = vmul.f32 %v3639, %v3647
    %v3656 = vmul.f32 %v3640, %v3648
    %v3657 = vsub.f32 2.0, %v3649
    %v3658 = vsub.f32 2.0, %v3650
    %v3659 = vsub.f32 2.0, %v3651
    %v3660 = vsub.f32 2.0, %v3652
    %v3661 = vsub.f32 2.0, %v3653
    %v3662 = vsub.f32 2.0, %v3654
    %v3663 = vsub.f32 2.0, %v3655
    %v3664 = vsub.f32 2.0, %v3656
    %v3665 = vmul.f32 %v3641, %v3657
    %v3666 = vmul.f32 %v3642, %v3658
    %v3667 = vmul.f32 %v3643, %v3659
    %v3668 = vmul.f32 %v3644, %v3660
    %v3669 = vmul.f32 %v3645, %v3661
    %v3670 = vmul.f32 %v3646, %v3662
    %v3671 = vmul.f32 %v3647, %v3663
    %v3672 = vmul.f32 %v3648, %v3664
    %v3673 = vmul.f32 %v3633, %v3665
    %v3674 = vmul.f32 %v3634, %v3666
    %v3675 = vmul.f32 %v3635, %v3667
    %v3676 = vmul.f32 %v3636, %v3668
    %v3677 = vmul.f32 %v3637, %v3669
    %v3678 = vmul.f32 %v3638, %v3670
    %v3679 = vmul.f32 %v3639, %v3671
    %v3680 = vmul.f32 %v3640, %v3672
    %v3681 = vsub.f32 2.0, %v3673
    %v3682 = vsub.f32 2.0, %v3674
    %v3683 = vsub.f32 2.0, %v3675
    %v3684 = vsub.f32 2.0, %v3676
    %v3685 = vsub.f32 2.0, %v3677
    %v3686 = vsub.f32 2.0, %v3678
    %v3687 = vsub.f32 2.0, %v3679
    %v3688 = vsub.f32 2.0, %v3680
    %v3689 = vmul.f32 %v3665, %v3681
    %v3690 = vmul.f32 %v3666, %v3682
    %v3691 = vmul.f32 %v3667, %v3683
    %v3692 = vmul.f32 %v3668, %v3684
    %v3693 = vmul.f32 %v3669, %v3685
    %v3694 = vmul.f32 %v3670, %v3686
    %v3695 = vmul.f32 %v3671, %v3687
    %v3696 = vmul.f32 %v3672, %v3688
    %v3697 = vsub.f32 %v3213, %v3537
    %v3698 = vsub.f32 %v3214, %v3538
    %v3699 = vsub.f32 %v3215, %v3539
    %v3700 = vsub.f32 %v3216, %v3540
    %v3701 = vsub.f32 %v3217, %v3541
    %v3702 = vsub.f32 %v3218, %v3542
    %v3703 = vsub.f32 %v3219, %v3543
    %v3704 = vsub.f32 %v3220, %v3544
    %v3705 = vmul.f32 %v3697, %v3689
    %v3706 = vmul.f32 %v3698, %v3690
    %v3707 = vmul.f32 %v3699, %v3691
    %v3708 = vmul.f32 %v3700, %v3692
    %v3709 = vmul.f32 %v3701, %v3693
    %v3710 = vmul.f32 %v3702, %v3694
    %v3711 = vmul.f32 %v3703, %v3695
    %v3712 = vmul.f32 %v3704, %v3696
    %v3713 = vlaneseq
    %v3714 = vshrl.u32 %v3713, 7
    %v3715 = vsub.s32 0, %v3714
    %v3716 = vrot.slane %v3479, %v3715
    %v3717 = vmul.f32 %v3716, %v3705
    %v3718 = vmul.f32 %v3716, %v3706
    %v3719 = vmul.f32 %v3716, %v3707
    %v3720 = vmul.f32 %v3716, %v3708
    %v3721 = vmul.f32 %v3716, %v3709
    %v3722 = vmul.f32 %v3716, %v3710
    %v3723 = vmul.f32 %v3716, %v3711
    %v3724 = vmul.f32 %v3716, %v3712
    %v3725 = vlaneseq
    %v3726 = vshrl.u32 %v3725, 7
    %v3727 = vsub.s32 0, %v3726
    %v3728 = vrot.slane %v3480, %v3727
    %v3729 = vadd.f32 %v3717, %v3728
    %v3730 = vadd.f32 %v3718, %v3728
    %v3731 = vadd.f32 %v3719, %v3728
    %v3732 = vadd.f32 %v3720, %v3728
    %v3733 = vadd.f32 %v3721, %v3728
    %v3734 = vadd.f32 %v3722, %v3728
    %v3735 = vadd.f32 %v3723, %v3728
    %v3736 = vadd.f32 %v3724, %v3728
    %3745 = vrot.lane.b32.xlu0 %v3729, 16
    %v3746 = vpop.permute.xlu0 %3745
    %3747 = vrot.lane.b32.xlu0 %v3730, 16
    %v3748 = vpop.permute.xlu0 %3747
    %3749 = vrot.lane.b32.xlu0 %v3731, 16
    %v3750 = vpop.permute.xlu0 %3749
    %3751 = vrot.lane.b32.xlu0 %v3732, 16
    %v3752 = vpop.permute.xlu0 %3751
    %3753 = vrot.lane.b32.xlu0 %v3733, 16
    %v3754 = vpop.permute.xlu0 %3753
    %3755 = vrot.lane.b32.xlu0 %v3734, 16
    %v3756 = vpop.permute.xlu0 %3755
    %3757 = vrot.lane.b32.xlu0 %v3735, 16
    %v3758 = vpop.permute.xlu0 %3757
    %3759 = vrot.lane.b32.xlu0 %v3736, 16
    %v3760 = vpop.permute.xlu0 %3759
    %v3769 = vsel %vm49, %v3471, %v3746
    %v3770 = vsel %vm49, %v3472, %v3748
    %v3771 = vsel %vm49, %v3473, %v3750
    %v3772 = vsel %vm49, %v3474, %v3752
    %v3773 = vsel %vm49, %v3475, %v3754
    %v3774 = vsel %vm49, %v3476, %v3756
    %v3775 = vsel %vm49, %v3477, %v3758
    %v3776 = vsel %vm49, %v3478, %v3760
    %v3777 = vld [vmem:[%s4 + $0x2] sm:$0x1]
    %v3778 = vlaneseq
    %v3779 = vshrl.u32 %v3778, 7
    %v3780 = vsub.s32 0, %v3779
    %v3781 = vrot.slane %v3777, %v3780
    %v3783 = vsel %vm379, %v3769, 0
    %v3786 = vsel %vm379, %v3770, 0
    %v3789 = vsel %vm379, %v3771, 0
    %v3792 = vsel %vm379, %v3772, 0
    %v3795 = vsel %vm379, %v3773, 0
    %v3798 = vsel %vm379, %v3774, 0
    %v3801 = vsel %vm379, %v3775, 0
    %v3804 = vsel %vm379, %v3776, 0
    %3806 = vmatprep.subr.mxu0 0.0
    %3807 = vmatpush1.msra.mxu0 0.0
    %3808 = vmatprep.subr.mxu0 0.0
    %3809 = vmatpush1.msra.mxu0 0.0
    %3810 = vmatprep.subr.mxu0 0.0
    %3811 = vmatpush1.msra.mxu0 0.0
    %3812 = vmatprep.subr.mxu0 0.0
    %3813 = vmatpush1.msra.mxu0 0.0
    %3814 = vmatprep.subr.mxu0 0.0
    %3815 = vmatpush1.msra.mxu0 0.0
    %3816 = vmatprep.subr.mxu0 0.0
    %3817 = vmatpush1.msra.mxu0 0.0
    %3818 = vmatprep.subr.mxu0 0.0
    %3819 = vmatpush1.msra.mxu0 0.0
    %3820 = vmatprep.subr.mxu0 0.0
    %3821 = vmatpush1.msra.mxu0 0.0
    %3822 = vmatprep.subr.mxu0 0.0
    %3823 = vmatpush1.msra.mxu0 0.0
    %3824 = vmatprep.subr.mxu0 0.0
    %3825 = vmatpush1.msra.mxu0 0.0
    %3826 = vmatprep.subr.mxu0 0.0
    %3827 = vmatpush1.msra.mxu0 0.0
    %3828 = vmatprep.subr.mxu0 0.0
    %3829 = vmatpush1.msra.mxu0 0.0
    %3830 = vmatprep.subr.mxu0 0.0
    %3831 = vmatpush1.msra.mxu0 %v46
    %3832 = vmatprep.subr.mxu0 0.0
    %3833 = vmatpush1.msra.mxu0 %v43
    %3834 = vmatprep.subr.mxu0 0.0
    %3835 = vmatpush1.msra.mxu0 %v40
    %3836 = vmatprep.subr.mxu0 0.0
    %3837 = vmatpush1.msra.mxu0 %v37
    %3838 = vmatprep.subr.mxu0 0.0
    %3839 = vmatpush2.msra.mxu0 0.0
    %3840 = vmatprep.subr.mxu0 0.0
    %3841 = vmatpush2.msra.mxu0 0.0
    %3842 = vmatprep.subr.mxu0 0.0
    %3843 = vmatpush2.msra.mxu0 0.0
    %3844 = vmatprep.subr.mxu0 0.0
    %3845 = vmatpush2.msra.mxu0 0.0
    %3846 = vmatprep.subr.mxu0 0.0
    %3847 = vmatpush2.msra.mxu0 0.0
    %3848 = vmatprep.subr.mxu0 0.0
    %3849 = vmatpush2.msra.mxu0 0.0
    %3850 = vmatprep.subr.mxu0 0.0
    %3851 = vmatpush2.msra.mxu0 0.0
    %3852 = vmatprep.subr.mxu0 0.0
    %3853 = vmatpush2.msra.mxu0 0.0
    %3854 = vmatprep.subr.mxu0 0.0
    %3855 = vmatpush2.msra.mxu0 0.0
    %3856 = vmatprep.subr.mxu0 0.0
    %3857 = vmatpush2.msra.mxu0 0.0
    %3858 = vmatprep.subr.mxu0 0.0
    %3859 = vmatpush2.msra.mxu0 0.0
    %3860 = vmatprep.subr.mxu0 0.0
    %3861 = vmatpush2.msra.mxu0 0.0
    %3862 = vmatprep.subr.mxu0 0.0
    %3863 = vmatpush2.msra.mxu0 0.0
    %3864 = vmatprep.subr.mxu0 0.0
    %3865 = vmatpush2.msra.mxu0 0.0
    %3866 = vmatprep.subr.mxu0 0.0
    %3867 = vmatpush2.msra.mxu0 0.0
    %3868 = vmatprep.subr.mxu0 0.0
    %3869 = vmatpush2.msra.mxu0 0.0
    %3870 = vmatprep.mubr.f32.mxu0 0.0
    %3871 = vmatmul.mubr.f32.gmra.mxu0 %v3783
    %v3872 = vpop.f32.mrf.mxu0
    %v3873 = vadd.f32 %v3781, %v3872
    %v3874 = vpop.f32.mrf.mxu0
    %3875 = vmatprep.mubr.f32.mxu0 0.0
    %3876 = vmatmul.mubr.f32.gmra.mxu0 %v3786
    %v3877 = vpop.f32.mrf.mxu0
    %v3878 = vadd.f32 %v3781, %v3877
    %v3879 = vpop.f32.mrf.mxu0
    %3880 = vmatprep.mubr.f32.mxu0 0.0
    %3881 = vmatmul.mubr.f32.gmra.mxu0 %v3789
    %v3882 = vpop.f32.mrf.mxu0
    %v3883 = vadd.f32 %v3781, %v3882
    %v3884 = vpop.f32.mrf.mxu0
    %3885 = vmatprep.mubr.f32.mxu0 0.0
    %3886 = vmatmul.mubr.f32.gmra.mxu0 %v3792
    %v3887 = vpop.f32.mrf.mxu0
    %v3888 = vadd.f32 %v3781, %v3887
    %v3889 = vpop.f32.mrf.mxu0
    %3890 = vmatprep.mubr.f32.mxu0 0.0
    %3891 = vmatmul.mubr.f32.gmra.mxu0 %v3795
    %v3892 = vpop.f32.mrf.mxu0
    %v3893 = vadd.f32 %v3781, %v3892
    %v3894 = vpop.f32.mrf.mxu0
    %3895 = vmatprep.mubr.f32.mxu0 0.0
    %3896 = vmatmul.mubr.f32.gmra.mxu0 %v3798
    %v3897 = vpop.f32.mrf.mxu0
    %v3898 = vadd.f32 %v3781, %v3897
    %v3899 = vpop.f32.mrf.mxu0
    %3900 = vmatprep.mubr.f32.mxu0 0.0
    %3901 = vmatmul.mubr.f32.gmra.mxu0 %v3801
    %v3902 = vpop.f32.mrf.mxu0
    %v3903 = vadd.f32 %v3781, %v3902
    %v3904 = vpop.f32.mrf.mxu0
    %3905 = vmatprep.mubr.f32.mxu0 0.0
    %3906 = vmatmul.mubr.f32.gmra.mxu0 %v3804
    %v3907 = vpop.f32.mrf.mxu0
    %v3908 = vadd.f32 %v3781, %v3907
    %v3909 = vpop.f32.mrf.mxu0
    %3910 = vdwg.mxu0
    %v3911 = vmax.f32 %v3873, 0.0
    %v3912 = vmax.f32 %v3878, 0.0
    %v3913 = vmax.f32 %v3883, 0.0
    %v3914 = vmax.f32 %v3888, 0.0
    %v3915 = vmax.f32 %v3893, 0.0
    %v3916 = vmax.f32 %v3898, 0.0
    %v3917 = vmax.f32 %v3903, 0.0
    %v3918 = vmax.f32 %v3908, 0.0
    %v3919 = vld [vmem:[%s3] sm:$0xff]
    %v3920 = vld [vmem:[%s3 + $0x8] sm:$0xff]
    %v3921 = vld [vmem:[%s3 + $0x10] sm:$0xff]
    %v3922 = vld [vmem:[%s3 + $0x18] sm:$0xff]
    %v3923 = vld [vmem:[%s3 + $0x20] sm:$0xff]
    %v3924 = vld [vmem:[%s3 + $0x28] sm:$0xff]
    %v3925 = vld [vmem:[%s3 + $0x30] sm:$0xff]
    %v3926 = vld [vmem:[%s3 + $0x38] sm:$0xff]
    %v3927 = vld [vmem:[%s3 + $0x40] sm:$0xff]
    %v3928 = vld [vmem:[%s3 + $0x48] sm:$0xff]
    %v3929 = vld [vmem:[%s3 + $0x50] sm:$0xff]
    %v3930 = vld [vmem:[%s3 + $0x58] sm:$0xff]
    %v3931 = vld [vmem:[%s3 + $0x60] sm:$0xff]
    %v3932 = vld [vmem:[%s3 + $0x68] sm:$0xff]
    %v3933 = vld [vmem:[%s3 + $0x70] sm:$0xff]
    %v3934 = vld [vmem:[%s3 + $0x78] sm:$0xff]
    %v3935 = vld [vmem:[%s4 + $0x3] sm:$0x1]
    %v3936 = vlaneseq
    %v3937 = vshrl.u32 %v3936, 7
    %v3938 = vsub.s32 0, %v3937
    %v3939 = vrot.slane %v3935, %v3938
    %3940 = vmatprep.subr.mxu0 0.0
    %3941 = vmatpush1.msra.mxu0 %v3934
    %3942 = vmatprep.subr.mxu0 0.0
    %3943 = vmatpush1.msra.mxu0 %v3933
    %3944 = vmatprep.subr.mxu0 0.0
    %3945 = vmatpush1.msra.mxu0 %v3932
    %3946 = vmatprep.subr.mxu0 0.0
    %3947 = vmatpush1.msra.mxu0 %v3931
    %3948 = vmatprep.subr.mxu0 0.0
    %3949 = vmatpush1.msra.mxu0 %v3930
    %3950 = vmatprep.subr.mxu0 0.0
    %3951 = vmatpush1.msra.mxu0 %v3929
    %3952 = vmatprep.subr.mxu0 0.0
    %3953 = vmatpush1.msra.mxu0 %v3928
    %3954 = vmatprep.subr.mxu0 0.0
    %3955 = vmatpush1.msra.mxu0 %v3927
    %3956 = vmatprep.subr.mxu0 0.0
    %3957 = vmatpush1.msra.mxu0 %v3926
    %3958 = vmatprep.subr.mxu0 0.0
    %3959 = vmatpush1.msra.mxu0 %v3925
    %3960 = vmatprep.subr.mxu0 0.0
    %3961 = vmatpush1.msra.mxu0 %v3924
    %3962 = vmatprep.subr.mxu0 0.0
    %3963 = vmatpush1.msra.mxu0 %v3923
    %3964 = vmatprep.subr.mxu0 0.0
    %3965 = vmatpush1.msra.mxu0 %v3922
    %3966 = vmatprep.subr.mxu0 0.0
    %3967 = vmatpush1.msra.mxu0 %v3921
    %3968 = vmatprep.subr.mxu0 0.0
    %3969 = vmatpush1.msra.mxu0 %v3920
    %3970 = vmatprep.subr.mxu0 0.0
    %3971 = vmatpush1.msra.mxu0 %v3919
    %3972 = vmatprep.subr.mxu0 0.0
    %3973 = vmatpush2.msra.mxu0 0.0
    %3974 = vmatprep.subr.mxu0 0.0
    %3975 = vmatpush2.msra.mxu0 0.0
    %3976 = vmatprep.subr.mxu0 0.0
    %3977 = vmatpush2.msra.mxu0 0.0
    %3978 = vmatprep.subr.mxu0 0.0
    %3979 = vmatpush2.msra.mxu0 0.0
    %3980 = vmatprep.subr.mxu0 0.0
    %3981 = vmatpush2.msra.mxu0 0.0
    %3982 = vmatprep.subr.mxu0 0.0
    %3983 = vmatpush2.msra.mxu0 0.0
    %3984 = vmatprep.subr.mxu0 0.0
    %3985 = vmatpush2.msra.mxu0 0.0
    %3986 = vmatprep.subr.mxu0 0.0
    %3987 = vmatpush2.msra.mxu0 0.0
    %3988 = vmatprep.subr.mxu0 0.0
    %3989 = vmatpush2.msra.mxu0 0.0
    %3990 = vmatprep.subr.mxu0 0.0
    %3991 = vmatpush2.msra.mxu0 0.0
    %3992 = vmatprep.subr.mxu0 0.0
    %3993 = vmatpush2.msra.mxu0 0.0
    %3994 = vmatprep.subr.mxu0 0.0
    %3995 = vmatpush2.msra.mxu0 0.0
    %3996 = vmatprep.subr.mxu0 0.0
    %3997 = vmatpush2.msra.mxu0 0.0
    %3998 = vmatprep.subr.mxu0 0.0
    %3999 = vmatpush2.msra.mxu0 0.0
    %4000 = vmatprep.subr.mxu0 0.0
    %4001 = vmatpush2.msra.mxu0 0.0
    %4002 = vmatprep.subr.mxu0 0.0
    %4003 = vmatpush2.msra.mxu0 0.0
    %4004 = vmatprep.mubr.f32.mxu0 0.0
    %4005 = vmatmul.mubr.f32.gmra.mxu0 %v3911
    %v4006 = vpop.f32.mrf.mxu0
    %v4007 = vadd.f32 %v3939, %v4006
    %v4008 = vpop.f32.mrf.mxu0
    %4009 = vmatprep.mubr.f32.mxu0 0.0
    %4010 = vmatmul.mubr.f32.gmra.mxu0 %v3912
    %v4011 = vpop.f32.mrf.mxu0
    %v4012 = vadd.f32 %v3939, %v4011
    %v4013 = vpop.f32.mrf.mxu0
    %4014 = vmatprep.mubr.f32.mxu0 0.0
    %4015 = vmatmul.mubr.f32.gmra.mxu0 %v3913
    %v4016 = vpop.f32.mrf.mxu0
    %v4017 = vadd.f32 %v3939, %v4016
    %v4018 = vpop.f32.mrf.mxu0
    %4019 = vmatprep.mubr.f32.mxu0 0.0
    %4020 = vmatmul.mubr.f32.gmra.mxu0 %v3914
    %v4021 = vpop.f32.mrf.mxu0
    %v4022 = vadd.f32 %v3939, %v4021
    %v4023 = vpop.f32.mrf.mxu0
    %4024 = vmatprep.mubr.f32.mxu0 0.0
    %4025 = vmatmul.mubr.f32.gmra.mxu0 %v3915
    %v4026 = vpop.f32.mrf.mxu0
    %v4027 = vadd.f32 %v3939, %v4026
    %v4028 = vpop.f32.mrf.mxu0
    %4029 = vmatprep.mubr.f32.mxu0 0.0
    %4030 = vmatmul.mubr.f32.gmra.mxu0 %v3916
    %v4031 = vpop.f32.mrf.mxu0
    %v4032 = vadd.f32 %v3939, %v4031
    %v4033 = vpop.f32.mrf.mxu0
    %4034 = vmatprep.mubr.f32.mxu0 0.0
    %4035 = vmatmul.mubr.f32.gmra.mxu0 %v3917
    %v4036 = vpop.f32.mrf.mxu0
    %v4037 = vadd.f32 %v3939, %v4036
    %v4038 = vpop.f32.mrf.mxu0
    %4039 = vmatprep.mubr.f32.mxu0 0.0
    %4040 = vmatmul.mubr.f32.gmra.mxu0 %v3918
    %v4041 = vpop.f32.mrf.mxu0
    %v4042 = vadd.f32 %v3939, %v4041
    %v4043 = vpop.f32.mrf.mxu0
    %4044 = vdwg.mxu0
    %v4045 = vadd.f32 %v3173, %v4007
    %v4046 = vadd.f32 %v3174, %v4012
    %v4047 = vadd.f32 %v3175, %v4017
    %v4048 = vadd.f32 %v3176, %v4022
    %v4049 = vadd.f32 %v3177, %v4027
    %v4050 = vadd.f32 %v3178, %v4032
    %v4051 = vadd.f32 %v3179, %v4037
    %v4052 = vadd.f32 %v3180, %v4042
    %4061 = vrot.lane.b32.xlu0 %v4007, 112
    %v4062 = vpop.permute.xlu0 %4061
    %4063 = vrot.lane.b32.xlu0 %v4012, 112
    %v4064 = vpop.permute.xlu0 %4063
    %4065 = vrot.lane.b32.xlu0 %v4017, 112
    %v4066 = vpop.permute.xlu0 %4065
    %4067 = vrot.lane.b32.xlu0 %v4022, 112
    %v4068 = vpop.permute.xlu0 %4067
    %4069 = vrot.lane.b32.xlu0 %v4027, 112
    %v4070 = vpop.permute.xlu0 %4069
    %4071 = vrot.lane.b32.xlu0 %v4032, 112
    %v4072 = vpop.permute.xlu0 %4071
    %4073 = vrot.lane.b32.xlu0 %v4037, 112
    %v4074 = vpop.permute.xlu0 %4073
    %4075 = vrot.lane.b32.xlu0 %v4042, 112
    %v4076 = vpop.permute.xlu0 %4075
    %v4085 = vadd.f32 %v3213, %v4062
    %v4086 = vadd.f32 %v3214, %v4064
    %v4087 = vadd.f32 %v3215, %v4066
    %v4088 = vadd.f32 %v3216, %v4068
    %v4089 = vadd.f32 %v3217, %v4070
    %v4090 = vadd.f32 %v3218, %v4072
    %v4091 = vadd.f32 %v3219, %v4074
    %v4092 = vadd.f32 %v3220, %v4076
    %v4093 = vadd.f32 %v4045, %v4085
    %v4094 = vadd.f32 %v4046, %v4086
    %v4095 = vadd.f32 %v4047, %v4087
    %v4096 = vadd.f32 %v4048, %v4088
    %v4097 = vadd.f32 %v4049, %v4089
    %v4098 = vadd.f32 %v4050, %v4090
    %v4099 = vadd.f32 %v4051, %v4091
    %v4100 = vadd.f32 %v4052, %v4092
    %s4101 = scalar_lea.vmem %s2, 96
    %v4102 = vld [vmem:[%s4101] sm:$0xff]
    %v4103 = vld [vmem:[%s4101 + $0x8] sm:$0xff]
    %v4104 = vld [vmem:[%s4101 + $0x10] sm:$0xff]
    %v4105 = vld [vmem:[%s4101 + $0x18] sm:$0xff]
    %v4106 = vld [vmem:[%s4101 + $0x20] sm:$0xff]
    %v4107 = vld [vmem:[%s4101 + $0x28] sm:$0xff]
    %v4108 = vld [vmem:[%s4101 + $0x30] sm:$0xff]
    %v4109 = vld [vmem:[%s4101 + $0x38] sm:$0xff]
    %v4110 = vld [vmem:[%s4101 + $0x40] sm:$0xff]
    %v4111 = vld [vmem:[%s4101 + $0x48] sm:$0xff]
    %v4112 = vld [vmem:[%s4101 + $0x50] sm:$0xff]
    %v4113 = vld [vmem:[%s4101 + $0x58] sm:$0xff]
    %v4114 = vsel %vm49, %v4093, 0.0
    %4115 = vadd.xlane.f32.xlu0 %v4114
    %v4116 = vpop.xlane.xlu0 %4115
    %v4117 = vsel %vm49, %v4094, 0.0
    %4118 = vadd.xlane.f32.xlu0 %v4117
    %v4119 = vpop.xlane.xlu0 %4118
    %v4120 = vsel %vm49, %v4095, 0.0
    %4121 = vadd.xlane.f32.xlu0 %v4120
    %v4122 = vpop.xlane.xlu0 %4121
    %v4123 = vsel %vm49, %v4096, 0.0
    %4124 = vadd.xlane.f32.xlu0 %v4123
    %v4125 = vpop.xlane.xlu0 %4124
    %v4126 = vsel %vm49, %v4097, 0.0
    %4127 = vadd.xlane.f32.xlu0 %v4126
    %v4128 = vpop.xlane.xlu0 %4127
    %v4129 = vsel %vm49, %v4098, 0.0
    %4130 = vadd.xlane.f32.xlu0 %v4129
    %v4131 = vpop.xlane.xlu0 %4130
    %v4132 = vsel %vm49, %v4099, 0.0
    %4133 = vadd.xlane.f32.xlu0 %v4132
    %v4134 = vpop.xlane.xlu0 %4133
    %v4135 = vsel %vm49, %v4100, 0.0
    %4136 = vadd.xlane.f32.xlu0 %v4135
    %v4137 = vpop.xlane.xlu0 %4136
    %v4138 = vmul.f32 %v4093, %v4093
    %v4139 = vmul.f32 %v4094, %v4094
    %v4140 = vmul.f32 %v4095, %v4095
    %v4141 = vmul.f32 %v4096, %v4096
    %v4142 = vmul.f32 %v4097, %v4097
    %v4143 = vmul.f32 %v4098, %v4098
    %v4144 = vmul.f32 %v4099, %v4099
    %v4145 = vmul.f32 %v4100, %v4100
    %v4146 = vsel %vm49, %v4138, 0.0
    %4147 = vadd.xlane.f32.xlu0 %v4146
    %v4148 = vpop.xlane.xlu0 %4147
    %v4149 = vsel %vm49, %v4139, 0.0
    %4150 = vadd.xlane.f32.xlu0 %v4149
    %v4151 = vpop.xlane.xlu0 %4150
    %v4152 = vsel %vm49, %v4140, 0.0
    %4153 = vadd.xlane.f32.xlu0 %v4152
    %v4154 = vpop.xlane.xlu0 %4153
    %v4155 = vsel %vm49, %v4141, 0.0
    %4156 = vadd.xlane.f32.xlu0 %v4155
    %v4157 = vpop.xlane.xlu0 %4156
    %v4158 = vsel %vm49, %v4142, 0.0
    %4159 = vadd.xlane.f32.xlu0 %v4158
    %v4160 = vpop.xlane.xlu0 %4159
    %v4161 = vsel %vm49, %v4143, 0.0
    %4162 = vadd.xlane.f32.xlu0 %v4161
    %v4163 = vpop.xlane.xlu0 %4162
    %v4164 = vsel %vm49, %v4144, 0.0
    %4165 = vadd.xlane.f32.xlu0 %v4164
    %v4166 = vpop.xlane.xlu0 %4165
    %v4167 = vsel %vm49, %v4145, 0.0
    %4168 = vadd.xlane.f32.xlu0 %v4167
    %v4169 = vpop.xlane.xlu0 %4168
    %v4170 = vmul.f32 %v4116, 0.0625
    %v4171 = vmul.f32 %v4119, 0.0625
    %v4172 = vmul.f32 %v4122, 0.0625
    %v4173 = vmul.f32 %v4125, 0.0625
    %v4174 = vmul.f32 %v4128, 0.0625
    %v4175 = vmul.f32 %v4131, 0.0625
    %v4176 = vmul.f32 %v4134, 0.0625
    %v4177 = vmul.f32 %v4137, 0.0625
    %v4178 = vmul.f32 %v4116, %v4170
    %v4179 = vmul.f32 %v4119, %v4171
    %v4180 = vmul.f32 %v4122, %v4172
    %v4181 = vmul.f32 %v4125, %v4173
    %v4182 = vmul.f32 %v4128, %v4174
    %v4183 = vmul.f32 %v4131, %v4175
    %v4184 = vmul.f32 %v4134, %v4176
    %v4185 = vmul.f32 %v4137, %v4177
    %v4186 = vsub.f32 %v4148, %v4178
    %v4187 = vsub.f32 %v4151, %v4179
    %v4188 = vsub.f32 %v4154, %v4180
    %v4189 = vsub.f32 %v4157, %v4181
    %v4190 = vsub.f32 %v4160, %v4182
    %v4191 = vsub.f32 %v4163, %v4183
    %v4192 = vsub.f32 %v4166, %v4184
    %v4193 = vsub.f32 %v4169, %v4185
    %v4194 = vmax.f32 %v4186, 0.0
    %v4195 = vmax.f32 %v4187, 0.0
    %v4196 = vmax.f32 %v4188, 0.0
    %v4197 = vmax.f32 %v4189, 0.0
    %v4198 = vmax.f32 %v4190, 0.0
    %v4199 = vmax.f32 %v4191, 0.0
    %v4200 = vmax.f32 %v4192, 0.0
    %v4201 = vmax.f32 %v4193, 0.0
    %v4202 = vmul.f32 %v4194, 0.06666667
    %v4203 = vmul.f32 %v4195, 0.06666667
    %v4204 = vmul.f32 %v4196, 0.06666667
    %v4205 = vmul.f32 %v4197, 0.06666667
    %v4206 = vmul.f32 %v4198, 0.06666667
    %v4207 = vmul.f32 %v4199, 0.06666667
    %v4208 = vmul.f32 %v4200, 0.06666667
    %v4209 = vmul.f32 %v4201, 0.06666667
    %v4210 = vrsqrt.pop %v4202
    %v4211 = vmul.f32 %v4202, %v4210
    %vm4212 = vcmp.eq.f32.partialorder %v4202, inf
    %v4213 = vsel %vm4212, %v4202, %v4211
    %vm4214 = vcmp.eq.f32.partialorder %v4202, 0.0
    %v4215 = vand.u32 %v4202, 2147483648
    %v4216 = vsel %vm4214, %v4215, %v4213
    %v4217 = vrsqrt.pop %v4203
    %v4218 = vmul.f32 %v4203, %v4217
    %vm4219 = vcmp.eq.f32.partialorder %v4203, inf
    %v4220 = vsel %vm4219, %v4203, %v4218
    %vm4221 = vcmp.eq.f32.partialorder %v4203, 0.0
    %v4222 = vand.u32 %v4203, 2147483648
    %v4223 = vsel %vm4221, %v4222, %v4220
    %v4224 = vrsqrt.pop %v4204
    %v4225 = vmul.f32 %v4204, %v4224
    %vm4226 = vcmp.eq.f32.partialorder %v4204, inf
    %v4227 = vsel %vm4226, %v4204, %v4225
    %vm4228 = vcmp.eq.f32.partialorder %v4204, 0.0
    %v4229 = vand.u32 %v4204, 2147483648
    %v4230 = vsel %vm4228, %v4229, %v4227
    %v4231 = vrsqrt.pop %v4205
    %v4232 = vmul.f32 %v4205, %v4231
    %vm4233 = vcmp.eq.f32.partialorder %v4205, inf
    %v4234 = vsel %vm4233, %v4205, %v4232
    %vm4235 = vcmp.eq.f32.partialorder %v4205, 0.0
    %v4236 = vand.u32 %v4205, 2147483648
    %v4237 = vsel %vm4235, %v4236, %v4234
    %v4238 = vrsqrt.pop %v4206
    %v4239 = vmul.f32 %v4206, %v4238
    %vm4240 = vcmp.eq.f32.partialorder %v4206, inf
    %v4241 = vsel %vm4240, %v4206, %v4239
    %vm4242 = vcmp.eq.f32.partialorder %v4206, 0.0
    %v4243 = vand.u32 %v4206, 2147483648
    %v4244 = vsel %vm4242, %v4243, %v4241
    %v4245 = vrsqrt.pop %v4207
    %v4246 = vmul.f32 %v4207, %v4245
    %vm4247 = vcmp.eq.f32.partialorder %v4207, inf
    %v4248 = vsel %vm4247, %v4207, %v4246
    %vm4249 = vcmp.eq.f32.partialorder %v4207, 0.0
    %v4250 = vand.u32 %v4207, 2147483648
    %v4251 = vsel %vm4249, %v4250, %v4248
    %v4252 = vrsqrt.pop %v4208
    %v4253 = vmul.f32 %v4208, %v4252
    %vm4254 = vcmp.eq.f32.partialorder %v4208, inf
    %v4255 = vsel %vm4254, %v4208, %v4253
    %vm4256 = vcmp.eq.f32.partialorder %v4208, 0.0
    %v4257 = vand.u32 %v4208, 2147483648
    %v4258 = vsel %vm4256, %v4257, %v4255
    %v4259 = vrsqrt.pop %v4209
    %v4260 = vmul.f32 %v4209, %v4259
    %vm4261 = vcmp.eq.f32.partialorder %v4209, inf
    %v4262 = vsel %vm4261, %v4209, %v4260
    %vm4263 = vcmp.eq.f32.partialorder %v4209, 0.0
    %v4264 = vand.u32 %v4209, 2147483648
    %v4265 = vsel %vm4263, %v4264, %v4262
    %v4266 = vadd.f32 %v4216, 1e-06
    %v4267 = vadd.f32 %v4223, 1e-06
    %v4268 = vadd.f32 %v4230, 1e-06
    %v4269 = vadd.f32 %v4237, 1e-06
    %v4270 = vadd.f32 %v4244, 1e-06
    %v4271 = vadd.f32 %v4251, 1e-06
    %v4272 = vadd.f32 %v4258, 1e-06
    %v4273 = vadd.f32 %v4265, 1e-06
    %v4274 = vrcp.pop %v4266
    %v4275 = vrcp.pop %v4267
    %v4276 = vrcp.pop %v4268
    %v4277 = vrcp.pop %v4269
    %v4278 = vrcp.pop %v4270
    %v4279 = vrcp.pop %v4271
    %v4280 = vrcp.pop %v4272
    %v4281 = vrcp.pop %v4273
    %v4282 = vmul.f32 %v4266, %v4274
    %v4283 = vmul.f32 %v4267, %v4275
    %v4284 = vmul.f32 %v4268, %v4276
    %v4285 = vmul.f32 %v4269, %v4277
    %v4286 = vmul.f32 %v4270, %v4278
    %v4287 = vmul.f32 %v4271, %v4279
    %v4288 = vmul.f32 %v4272, %v4280
    %v4289 = vmul.f32 %v4273, %v4281
    %v4290 = vsub.f32 2.0, %v4282
    %v4291 = vsub.f32 2.0, %v4283
    %v4292 = vsub.f32 2.0, %v4284
    %v4293 = vsub.f32 2.0, %v4285
    %v4294 = vsub.f32 2.0, %v4286
    %v4295 = vsub.f32 2.0, %v4287
    %v4296 = vsub.f32 2.0, %v4288
    %v4297 = vsub.f32 2.0, %v4289
    %v4298 = vmul.f32 %v4274, %v4290
    %v4299 = vmul.f32 %v4275, %v4291
    %v4300 = vmul.f32 %v4276, %v4292
    %v4301 = vmul.f32 %v4277, %v4293
    %v4302 = vmul.f32 %v4278, %v4294
    %v4303 = vmul.f32 %v4279, %v4295
    %v4304 = vmul.f32 %v4280, %v4296
    %v4305 = vmul.f32 %v4281, %v4297
    %v4306 = vmul.f32 %v4266, %v4298
    %v4307 = vmul.f32 %v4267, %v4299
    %v4308 = vmul.f32 %v4268, %v4300
    %v4309 = vmul.f32 %v4269, %v4301
    %v4310 = vmul.f32 %v4270, %v4302
    %v4311 = vmul.f32 %v4271, %v4303
    %v4312 = vmul.f32 %v4272, %v4304
    %v4313 = vmul.f32 %v4273, %v4305
    %v4314 = vsub.f32 2.0, %v4306
    %v4315 = vsub.f32 2.0, %v4307
    %v4316 = vsub.f32 2.0, %v4308
    %v4317 = vsub.f32 2.0, %v4309
    %v4318 = vsub.f32 2.0, %v4310
    %v4319 = vsub.f32 2.0, %v4311
    %v4320 = vsub.f32 2.0, %v4312
    %v4321 = vsub.f32 2.0, %v4313
    %v4322 = vmul.f32 %v4298, %v4314
    %v4323 = vmul.f32 %v4299, %v4315
    %v4324 = vmul.f32 %v4300, %v4316
    %v4325 = vmul.f32 %v4301, %v4317
    %v4326 = vmul.f32 %v4302, %v4318
    %v4327 = vmul.f32 %v4303, %v4319
    %v4328 = vmul.f32 %v4304, %v4320
    %v4329 = vmul.f32 %v4305, %v4321
    %v4330 = vsub.f32 %v4093, %v4170
    %v4331 = vsub.f32 %v4094, %v4171
    %v4332 = vsub.f32 %v4095, %v4172
    %v4333 = vsub.f32 %v4096, %v4173
    %v4334 = vsub.f32 %v4097, %v4174
    %v4335 = vsub.f32 %v4098, %v4175
    %v4336 = vsub.f32 %v4099, %v4176
    %v4337 = vsub.f32 %v4100, %v4177
    %v4338 = vmul.f32 %v4330, %v4322
    %v4339 = vmul.f32 %v4331, %v4323
    %v4340 = vmul.f32 %v4332, %v4324
    %v4341 = vmul.f32 %v4333, %v4325
    %v4342 = vmul.f32 %v4334, %v4326
    %v4343 = vmul.f32 %v4335, %v4327
    %v4344 = vmul.f32 %v4336, %v4328
    %v4345 = vmul.f32 %v4337, %v4329
    %v4346 = vld [vmem:[%s4 + $0x10] sm:$0x1]
    %v4347 = vlaneseq
    %v4348 = vshrl.u32 %v4347, 7
    %v4349 = vsub.s32 0, %v4348
    %v4350 = vrot.slane %v4346, %v4349
    %v4351 = vmul.f32 %v4350, %v4338
    %v4352 = vmul.f32 %v4350, %v4339
    %v4353 = vmul.f32 %v4350, %v4340
    %v4354 = vmul.f32 %v4350, %v4341
    %v4355 = vmul.f32 %v4350, %v4342
    %v4356 = vmul.f32 %v4350, %v4343
    %v4357 = vmul.f32 %v4350, %v4344
    %v4358 = vmul.f32 %v4350, %v4345
    %v4359 = vld [vmem:[%s4 + $0x11] sm:$0x1]
    %v4360 = vlaneseq
    %v4361 = vshrl.u32 %v4360, 7
    %v4362 = vsub.s32 0, %v4361
    %v4363 = vrot.slane %v4359, %v4362
    %v4364 = vadd.f32 %v4351, %v4363
    %v4365 = vadd.f32 %v4352, %v4363
    %v4366 = vadd.f32 %v4353, %v4363
    %v4367 = vadd.f32 %v4354, %v4363
    %v4368 = vadd.f32 %v4355, %v4363
    %v4369 = vadd.f32 %v4356, %v4363
    %v4370 = vadd.f32 %v4357, %v4363
    %v4371 = vadd.f32 %v4358, %v4363
    %v4372 = vld [vmem:[%s4 + $0x12] sm:$0x1]
    %v4373 = vlaneseq
    %v4374 = vshrl.u32 %v4373, 7
    %v4375 = vsub.s32 0, %v4374
    %v4376 = vrot.slane %v4372, %v4375
    %v4377 = vmul.f32 %v4376, %v4338
    %v4378 = vmul.f32 %v4376, %v4339
    %v4379 = vmul.f32 %v4376, %v4340
    %v4380 = vmul.f32 %v4376, %v4341
    %v4381 = vmul.f32 %v4376, %v4342
    %v4382 = vmul.f32 %v4376, %v4343
    %v4383 = vmul.f32 %v4376, %v4344
    %v4384 = vmul.f32 %v4376, %v4345
    %v4385 = vld [vmem:[%s4 + $0x13] sm:$0x1]
    %v4386 = vlaneseq
    %v4387 = vshrl.u32 %v4386, 7
    %v4388 = vsub.s32 0, %v4387
    %v4389 = vrot.slane %v4385, %v4388
    %v4390 = vadd.f32 %v4377, %v4389
    %v4391 = vadd.f32 %v4378, %v4389
    %v4392 = vadd.f32 %v4379, %v4389
    %v4393 = vadd.f32 %v4380, %v4389
    %v4394 = vadd.f32 %v4381, %v4389
    %v4395 = vadd.f32 %v4382, %v4389
    %v4396 = vadd.f32 %v4383, %v4389
    %v4397 = vadd.f32 %v4384, %v4389
    %4406 = vrot.lane.b32.xlu0 %v4390, 16
    %v4407 = vpop.permute.xlu0 %4406
    %4408 = vrot.lane.b32.xlu0 %v4391, 16
    %v4409 = vpop.permute.xlu0 %4408
    %4410 = vrot.lane.b32.xlu0 %v4392, 16
    %v4411 = vpop.permute.xlu0 %4410
    %4412 = vrot.lane.b32.xlu0 %v4393, 16
    %v4413 = vpop.permute.xlu0 %4412
    %4414 = vrot.lane.b32.xlu0 %v4394, 16
    %v4415 = vpop.permute.xlu0 %4414
    %4416 = vrot.lane.b32.xlu0 %v4395, 16
    %v4417 = vpop.permute.xlu0 %4416
    %4418 = vrot.lane.b32.xlu0 %v4396, 16
    %v4419 = vpop.permute.xlu0 %4418
    %4420 = vrot.lane.b32.xlu0 %v4397, 16
    %v4421 = vpop.permute.xlu0 %4420
    %v4430 = vsel %vm49, %v4364, %v4407
    %v4431 = vsel %vm49, %v4365, %v4409
    %v4432 = vsel %vm49, %v4366, %v4411
    %v4433 = vsel %vm49, %v4367, %v4413
    %v4434 = vsel %vm49, %v4368, %v4415
    %v4435 = vsel %vm49, %v4369, %v4417
    %v4436 = vsel %vm49, %v4370, %v4419
    %v4437 = vsel %vm49, %v4371, %v4421
    %v4438 = vld [vmem:[%s4 + $0xc] sm:$0x1]
    %v4439 = vlaneseq
    %v4440 = vshrl.u32 %v4439, 7
    %v4441 = vsub.s32 0, %v4440
    %v4442 = vrot.slane %v4438, %v4441
    %v4444 = vsel %vm379, %v4430, 0
    %v4447 = vsel %vm379, %v4431, 0
    %v4450 = vsel %vm379, %v4432, 0
    %v4453 = vsel %vm379, %v4433, 0
    %v4456 = vsel %vm379, %v4434, 0
    %v4459 = vsel %vm379, %v4435, 0
    %v4462 = vsel %vm379, %v4436, 0
    %v4465 = vsel %vm379, %v4437, 0
    %4467 = vmatprep.subr.mxu0 0.0
    %4468 = vmatpush1.msra.mxu0 0.0
    %4469 = vmatprep.subr.mxu0 0.0
    %4470 = vmatpush1.msra.mxu0 0.0
    %4471 = vmatprep.subr.mxu0 0.0
    %4472 = vmatpush1.msra.mxu0 0.0
    %4473 = vmatprep.subr.mxu0 0.0
    %4474 = vmatpush1.msra.mxu0 0.0
    %4475 = vmatprep.subr.mxu0 0.0
    %4476 = vmatpush1.msra.mxu0 0.0
    %4477 = vmatprep.subr.mxu0 0.0
    %4478 = vmatpush1.msra.mxu0 0.0
    %4479 = vmatprep.subr.mxu0 0.0
    %4480 = vmatpush1.msra.mxu0 0.0
    %4481 = vmatprep.subr.mxu0 0.0
    %4482 = vmatpush1.msra.mxu0 0.0
    %4483 = vmatprep.subr.mxu0 0.0
    %4484 = vmatpush1.msra.mxu0 0.0
    %4485 = vmatprep.subr.mxu0 0.0
    %4486 = vmatpush1.msra.mxu0 0.0
    %4487 = vmatprep.subr.mxu0 0.0
    %4488 = vmatpush1.msra.mxu0 0.0
    %4489 = vmatprep.subr.mxu0 0.0
    %4490 = vmatpush1.msra.mxu0 0.0
    %4491 = vmatprep.subr.mxu0 0.0
    %4492 = vmatpush1.msra.mxu0 %v4112
    %4493 = vmatprep.subr.mxu0 0.0
    %4494 = vmatpush1.msra.mxu0 %v4109
    %4495 = vmatprep.subr.mxu0 0.0
    %4496 = vmatpush1.msra.mxu0 %v4106
    %4497 = vmatprep.subr.mxu0 0.0
    %4498 = vmatpush1.msra.mxu0 %v4103
    %4499 = vmatprep.subr.mxu0 0.0
    %4500 = vmatpush2.msra.mxu0 0.0
    %4501 = vmatprep.subr.mxu0 0.0
    %4502 = vmatpush2.msra.mxu0 0.0
    %4503 = vmatprep.subr.mxu0 0.0
    %4504 = vmatpush2.msra.mxu0 0.0
    %4505 = vmatprep.subr.mxu0 0.0
    %4506 = vmatpush2.msra.mxu0 0.0
    %4507 = vmatprep.subr.mxu0 0.0
    %4508 = vmatpush2.msra.mxu0 0.0
    %4509 = vmatprep.subr.mxu0 0.0
    %4510 = vmatpush2.msra.mxu0 0.0
    %4511 = vmatprep.subr.mxu0 0.0
    %4512 = vmatpush2.msra.mxu0 0.0
    %4513 = vmatprep.subr.mxu0 0.0
    %4514 = vmatpush2.msra.mxu0 0.0
    %4515 = vmatprep.subr.mxu0 0.0
    %4516 = vmatpush2.msra.mxu0 0.0
    %4517 = vmatprep.subr.mxu0 0.0
    %4518 = vmatpush2.msra.mxu0 0.0
    %4519 = vmatprep.subr.mxu0 0.0
    %4520 = vmatpush2.msra.mxu0 0.0
    %4521 = vmatprep.subr.mxu0 0.0
    %4522 = vmatpush2.msra.mxu0 0.0
    %4523 = vmatprep.subr.mxu0 0.0
    %4524 = vmatpush2.msra.mxu0 0.0
    %4525 = vmatprep.subr.mxu0 0.0
    %4526 = vmatpush2.msra.mxu0 0.0
    %4527 = vmatprep.subr.mxu0 0.0
    %4528 = vmatpush2.msra.mxu0 0.0
    %4529 = vmatprep.subr.mxu0 0.0
    %4530 = vmatpush2.msra.mxu0 0.0
    %4531 = vmatprep.mubr.f32.mxu0 0.0
    %4532 = vmatmul.mubr.f32.gmra.mxu0 %v4444
    %v4533 = vpop.f32.mrf.mxu0
    %v4534 = vadd.f32 %v4442, %v4533
    %v4535 = vpop.f32.mrf.mxu0
    %4536 = vmatprep.mubr.f32.mxu0 0.0
    %4537 = vmatmul.mubr.f32.gmra.mxu0 %v4447
    %v4538 = vpop.f32.mrf.mxu0
    %v4539 = vadd.f32 %v4442, %v4538
    %v4540 = vpop.f32.mrf.mxu0
    %4541 = vmatprep.mubr.f32.mxu0 0.0
    %4542 = vmatmul.mubr.f32.gmra.mxu0 %v4450
    %v4543 = vpop.f32.mrf.mxu0
    %v4544 = vadd.f32 %v4442, %v4543
    %v4545 = vpop.f32.mrf.mxu0
    %4546 = vmatprep.mubr.f32.mxu0 0.0
    %4547 = vmatmul.mubr.f32.gmra.mxu0 %v4453
    %v4548 = vpop.f32.mrf.mxu0
    %v4549 = vadd.f32 %v4442, %v4548
    %v4550 = vpop.f32.mrf.mxu0
    %4551 = vmatprep.mubr.f32.mxu0 0.0
    %4552 = vmatmul.mubr.f32.gmra.mxu0 %v4456
    %v4553 = vpop.f32.mrf.mxu0
    %v4554 = vadd.f32 %v4442, %v4553
    %v4555 = vpop.f32.mrf.mxu0
    %4556 = vmatprep.mubr.f32.mxu0 0.0
    %4557 = vmatmul.mubr.f32.gmra.mxu0 %v4459
    %v4558 = vpop.f32.mrf.mxu0
    %v4559 = vadd.f32 %v4442, %v4558
    %v4560 = vpop.f32.mrf.mxu0
    %4561 = vmatprep.mubr.f32.mxu0 0.0
    %4562 = vmatmul.mubr.f32.gmra.mxu0 %v4462
    %v4563 = vpop.f32.mrf.mxu0
    %v4564 = vadd.f32 %v4442, %v4563
    %v4565 = vpop.f32.mrf.mxu0
    %4566 = vmatprep.mubr.f32.mxu0 0.0
    %4567 = vmatmul.mubr.f32.gmra.mxu0 %v4465
    %v4568 = vpop.f32.mrf.mxu0
    %v4569 = vadd.f32 %v4442, %v4568
    %v4570 = vpop.f32.mrf.mxu0
    %4571 = vdwg.mxu0
    %4576 = vrot.lane.b32.xlu0 %v4534, 112
    %v4577 = vpop.permute.xlu0 %4576
    %4578 = vrot.lane.b32.xlu0 %v4539, 112
    %v4579 = vpop.permute.xlu0 %4578
    %4580 = vrot.lane.b32.xlu0 %v4544, 112
    %v4581 = vpop.permute.xlu0 %4580
    %4582 = vrot.lane.b32.xlu0 %v4549, 112
    %v4583 = vpop.permute.xlu0 %4582
    %v4584 = vsel %vm521, %v4534, 0
    %v4586 = vsel %vm521, %v4539, 0
    %v4588 = vsel %vm521, %v4544, 0
    %v4590 = vsel %vm521, %v4549, 0
    %v4592 = vsel %vm521, %v4577, 0
    %v4594 = vsel %vm521, %v4579, 0
    %v4596 = vsel %vm521, %v4581, 0
    %v4598 = vsel %vm521, %v4583, 0
    %4600 = vmatprep.subr.mxu0 0.0
    %4601 = vmatpush1.xpose.msra.mxu0 0.0
    %4602 = vmatprep.subr.mxu0 0.0
    %4603 = vmatpush1.xpose.msra.mxu0 0.0
    %4604 = vmatprep.subr.mxu0 0.0
    %4605 = vmatpush1.xpose.msra.mxu0 0.0
    %4606 = vmatprep.subr.mxu0 0.0
    %4607 = vmatpush1.xpose.msra.mxu0 0.0
    %4608 = vmatprep.subr.mxu0 0.0
    %4609 = vmatpush1.xpose.msra.mxu0 0.0
    %4610 = vmatprep.subr.mxu0 0.0
    %4611 = vmatpush1.xpose.msra.mxu0 0.0
    %4612 = vmatprep.subr.mxu0 0.0
    %4613 = vmatpush1.xpose.msra.mxu0 0.0
    %4614 = vmatprep.subr.mxu0 0.0
    %4615 = vmatpush1.xpose.msra.mxu0 0.0
    %4616 = vmatprep.subr.mxu0 0.0
    %4617 = vmatpush1.xpose.msra.mxu0 0.0
    %4618 = vmatprep.subr.mxu0 0.0
    %4619 = vmatpush1.xpose.msra.mxu0 0.0
    %4620 = vmatprep.subr.mxu0 0.0
    %4621 = vmatpush1.xpose.msra.mxu0 0.0
    %4622 = vmatprep.subr.mxu0 0.0
    %4623 = vmatpush1.xpose.msra.mxu0 0.0
    %4624 = vmatprep.subr.mxu0 0.0
    %4625 = vmatpush1.xpose.msra.mxu0 %v4598
    %4626 = vmatprep.subr.mxu0 0.0
    %4627 = vmatpush1.xpose.msra.mxu0 %v4596
    %4628 = vmatprep.subr.mxu0 0.0
    %4629 = vmatpush1.xpose.msra.mxu0 %v4594
    %4630 = vmatprep.subr.mxu0 0.0
    %4631 = vmatpush1.xpose.msra.mxu0 %v4592
    %4632 = vmatprep.subr.mxu0 0.0
    %4633 = vmatpush2.xpose.msra.mxu0 0.0
    %4634 = vmatprep.subr.mxu0 0.0
    %4635 = vmatpush2.xpose.msra.mxu0 0.0
    %4636 = vmatprep.subr.mxu0 0.0
    %4637 = vmatpush2.xpose.msra.mxu0 0.0
    %4638 = vmatprep.subr.mxu0 0.0
    %4639 = vmatpush2.xpose.msra.mxu0 0.0
    %4640 = vmatprep.subr.mxu0 0.0
    %4641 = vmatpush2.xpose.msra.mxu0 0.0
    %4642 = vmatprep.subr.mxu0 0.0
    %4643 = vmatpush2.xpose.msra.mxu0 0.0
    %4644 = vmatprep.subr.mxu0 0.0
    %4645 = vmatpush2.xpose.msra.mxu0 0.0
    %4646 = vmatprep.subr.mxu0 0.0
    %4647 = vmatpush2.xpose.msra.mxu0 0.0
    %4648 = vmatprep.subr.mxu0 0.0
    %4649 = vmatpush2.xpose.msra.mxu0 0.0
    %4650 = vmatprep.subr.mxu0 0.0
    %4651 = vmatpush2.xpose.msra.mxu0 0.0
    %4652 = vmatprep.subr.mxu0 0.0
    %4653 = vmatpush2.xpose.msra.mxu0 0.0
    %4654 = vmatprep.subr.mxu0 0.0
    %4655 = vmatpush2.xpose.msra.mxu0 0.0
    %4656 = vmatprep.subr.mxu0 0.0
    %4657 = vmatpush2.xpose.msra.mxu0 0.0
    %4658 = vmatprep.subr.mxu0 0.0
    %4659 = vmatpush2.xpose.msra.mxu0 0.0
    %4660 = vmatprep.subr.mxu0 0.0
    %4661 = vmatpush2.xpose.msra.mxu0 0.0
    %4662 = vmatprep.subr.mxu0 0.0
    %4663 = vmatpush2.xpose.msra.mxu0 0.0
    %4664 = vmatprep.mubr.f32.mxu0 0.0
    %4665 = vmatmul.mubr.f32.gmra.mxu0 %v4584
    %v4666 = vpop.f32.mrf.mxu0
    %v4667 = vadd.f32 0.0, %v4666
    %v4668 = vpop.f32.mrf.mxu0
    %4669 = vmatprep.mubr.f32.mxu0 0.0
    %4670 = vmatmul.mubr.f32.gmra.mxu0 %v4586
    %v4671 = vpop.f32.mrf.mxu0
    %v4672 = vadd.f32 0.0, %v4671
    %v4673 = vpop.f32.mrf.mxu0
    %4674 = vmatprep.mubr.f32.mxu0 0.0
    %4675 = vmatmul.mubr.f32.gmra.mxu0 %v4588
    %v4676 = vpop.f32.mrf.mxu0
    %v4677 = vadd.f32 0.0, %v4676
    %v4678 = vpop.f32.mrf.mxu0
    %4679 = vmatprep.mubr.f32.mxu0 0.0
    %4680 = vmatmul.mubr.f32.gmra.mxu0 %v4590
    %v4681 = vpop.f32.mrf.mxu0
    %v4682 = vadd.f32 0.0, %v4681
    %v4683 = vpop.f32.mrf.mxu0
    %4684 = vdwg.mxu0
    %4689 = vrot.lane.b32.xlu0 %v4554, 112
    %v4690 = vpop.permute.xlu0 %4689
    %4691 = vrot.lane.b32.xlu0 %v4559, 112
    %v4692 = vpop.permute.xlu0 %4691
    %4693 = vrot.lane.b32.xlu0 %v4564, 112
    %v4694 = vpop.permute.xlu0 %4693
    %4695 = vrot.lane.b32.xlu0 %v4569, 112
    %v4696 = vpop.permute.xlu0 %4695
    %v4697 = vsel %vm521, %v4554, 0
    %v4699 = vsel %vm521, %v4559, 0
    %v4701 = vsel %vm521, %v4564, 0
    %v4703 = vsel %vm521, %v4569, 0
    %v4705 = vsel %vm521, %v4690, 0
    %v4707 = vsel %vm521, %v4692, 0
    %v4709 = vsel %vm521, %v4694, 0
    %v4711 = vsel %vm521, %v4696, 0
    %4713 = vmatprep.subr.mxu0 0.0
    %4714 = vmatpush1.xpose.msra.mxu0 0.0
    %4715 = vmatprep.subr.mxu0 0.0
    %4716 = vmatpush1.xpose.msra.mxu0 0.0
    %4717 = vmatprep.subr.mxu0 0.0
    %4718 = vmatpush1.xpose.msra.mxu0 0.0
    %4719 = vmatprep.subr.mxu0 0.0
    %4720 = vmatpush1.xpose.msra.mxu0 0.0
    %4721 = vmatprep.subr.mxu0 0.0
    %4722 = vmatpush1.xpose.msra.mxu0 0.0
    %4723 = vmatprep.subr.mxu0 0.0
    %4724 = vmatpush1.xpose.msra.mxu0 0.0
    %4725 = vmatprep.subr.mxu0 0.0
    %4726 = vmatpush1.xpose.msra.mxu0 0.0
    %4727 = vmatprep.subr.mxu0 0.0
    %4728 = vmatpush1.xpose.msra.mxu0 0.0
    %4729 = vmatprep.subr.mxu0 0.0
    %4730 = vmatpush1.xpose.msra.mxu0 0.0
    %4731 = vmatprep.subr.mxu0 0.0
    %4732 = vmatpush1.xpose.msra.mxu0 0.0
    %4733 = vmatprep.subr.mxu0 0.0
    %4734 = vmatpush1.xpose.msra.mxu0 0.0
    %4735 = vmatprep.subr.mxu0 0.0
    %4736 = vmatpush1.xpose.msra.mxu0 0.0
    %4737 = vmatprep.subr.mxu0 0.0
    %4738 = vmatpush1.xpose.msra.mxu0 %v4711
    %4739 = vmatprep.subr.mxu0 0.0
    %4740 = vmatpush1.xpose.msra.mxu0 %v4709
    %4741 = vmatprep.subr.mxu0 0.0
    %4742 = vmatpush1.xpose.msra.mxu0 %v4707
    %4743 = vmatprep.subr.mxu0 0.0
    %4744 = vmatpush1.xpose.msra.mxu0 %v4705
    %4745 = vmatprep.subr.mxu0 0.0
    %4746 = vmatpush2.xpose.msra.mxu0 0.0
    %4747 = vmatprep.subr.mxu0 0.0
    %4748 = vmatpush2.xpose.msra.mxu0 0.0
    %4749 = vmatprep.subr.mxu0 0.0
    %4750 = vmatpush2.xpose.msra.mxu0 0.0
    %4751 = vmatprep.subr.mxu0 0.0
    %4752 = vmatpush2.xpose.msra.mxu0 0.0
    %4753 = vmatprep.subr.mxu0 0.0
    %4754 = vmatpush2.xpose.msra.mxu0 0.0
    %4755 = vmatprep.subr.mxu0 0.0
    %4756 = vmatpush2.xpose.msra.mxu0 0.0
    %4757 = vmatprep.subr.mxu0 0.0
    %4758 = vmatpush2.xpose.msra.mxu0 0.0
    %4759 = vmatprep.subr.mxu0 0.0
    %4760 = vmatpush2.xpose.msra.mxu0 0.0
    %4761 = vmatprep.subr.mxu0 0.0
    %4762 = vmatpush2.xpose.msra.mxu0 0.0
    %4763 = vmatprep.subr.mxu0 0.0
    %4764 = vmatpush2.xpose.msra.mxu0 0.0
    %4765 = vmatprep.subr.mxu0 0.0
    %4766 = vmatpush2.xpose.msra.mxu0 0.0
    %4767 = vmatprep.subr.mxu0 0.0
    %4768 = vmatpush2.xpose.msra.mxu0 0.0
    %4769 = vmatprep.subr.mxu0 0.0
    %4770 = vmatpush2.xpose.msra.mxu0 0.0
    %4771 = vmatprep.subr.mxu0 0.0
    %4772 = vmatpush2.xpose.msra.mxu0 0.0
    %4773 = vmatprep.subr.mxu0 0.0
    %4774 = vmatpush2.xpose.msra.mxu0 0.0
    %4775 = vmatprep.subr.mxu0 0.0
    %4776 = vmatpush2.xpose.msra.mxu0 0.0
    %4777 = vmatprep.mubr.f32.mxu0 0.0
    %4778 = vmatmul.mubr.f32.gmra.mxu0 %v4697
    %v4779 = vpop.f32.mrf.mxu0
    %v4780 = vadd.f32 0.0, %v4779
    %v4781 = vpop.f32.mrf.mxu0
    %4782 = vmatprep.mubr.f32.mxu0 0.0
    %4783 = vmatmul.mubr.f32.gmra.mxu0 %v4699
    %v4784 = vpop.f32.mrf.mxu0
    %v4785 = vadd.f32 0.0, %v4784
    %v4786 = vpop.f32.mrf.mxu0
    %4787 = vmatprep.mubr.f32.mxu0 0.0
    %4788 = vmatmul.mubr.f32.gmra.mxu0 %v4701
    %v4789 = vpop.f32.mrf.mxu0
    %v4790 = vadd.f32 0.0, %v4789
    %v4791 = vpop.f32.mrf.mxu0
    %4792 = vmatprep.mubr.f32.mxu0 0.0
    %4793 = vmatmul.mubr.f32.gmra.mxu0 %v4703
    %v4794 = vpop.f32.mrf.mxu0
    %v4795 = vadd.f32 0.0, %v4794
    %v4796 = vpop.f32.mrf.mxu0
    %4797 = vdwg.mxu0
    %v4798 = vmul.f32 %v4667, 0.35355338
    %v4799 = vmul.f32 %v4672, 0.35355338
    %v4800 = vmul.f32 %v4677, 0.35355338
    %v4801 = vmul.f32 %v4682, 0.35355338
    %v4802 = vmul.f32 %v4780, 0.35355338
    %v4803 = vmul.f32 %v4785, 0.35355338
    %v4804 = vmul.f32 %v4790, 0.35355338
    %v4805 = vmul.f32 %v4795, 0.35355338
    %v4806 = vadd.f32 %v4798, %v29
    %v4807 = vadd.f32 %v4799, %v30
    %v4808 = vadd.f32 %v4800, %v31
    %v4809 = vadd.f32 %v4801, %v32
    %v4810 = vadd.f32 %v4802, %v33
    %v4811 = vadd.f32 %v4803, %v34
    %v4812 = vadd.f32 %v4804, %v35
    %v4813 = vadd.f32 %v4805, %v36
    %v4814 = vsel %vm379, %v4806, -inf
    %4815 = vmax.xlane.f32.xlu0 %v4814
    %v4816 = vpop.xlane.xlu0 %4815
    %v4817 = vsel %vm379, %v4807, -inf
    %4818 = vmax.xlane.f32.xlu0 %v4817
    %v4819 = vpop.xlane.xlu0 %4818
    %v4820 = vsel %vm379, %v4808, -inf
    %4821 = vmax.xlane.f32.xlu0 %v4820
    %v4822 = vpop.xlane.xlu0 %4821
    %v4823 = vsel %vm379, %v4809, -inf
    %4824 = vmax.xlane.f32.xlu0 %v4823
    %v4825 = vpop.xlane.xlu0 %4824
    %v4826 = vsel %vm379, %v4810, -inf
    %4827 = vmax.xlane.f32.xlu0 %v4826
    %v4828 = vpop.xlane.xlu0 %4827
    %v4829 = vsel %vm379, %v4811, -inf
    %4830 = vmax.xlane.f32.xlu0 %v4829
    %v4831 = vpop.xlane.xlu0 %4830
    %v4832 = vsel %vm379, %v4812, -inf
    %4833 = vmax.xlane.f32.xlu0 %v4832
    %v4834 = vpop.xlane.xlu0 %4833
    %v4835 = vsel %vm379, %v4813, -inf
    %4836 = vmax.xlane.f32.xlu0 %v4835
    %v4837 = vpop.xlane.xlu0 %4836
    %v4838 = vsub.f32 %v4806, %v4816
    %v4839 = vsub.f32 %v4807, %v4819
    %v4840 = vsub.f32 %v4808, %v4822
    %v4841 = vsub.f32 %v4809, %v4825
    %v4842 = vsub.f32 %v4810, %v4828
    %v4843 = vsub.f32 %v4811, %v4831
    %v4844 = vsub.f32 %v4812, %v4834
    %v4845 = vsub.f32 %v4813, %v4837
    %v4846 = vmul.f32 %v4838, 1.442695
    %v4847 = vpow.pop %v4846
    %v4848 = vmul.f32 %v4839, 1.442695
    %v4849 = vpow.pop %v4848
    %v4850 = vmul.f32 %v4840, 1.442695
    %v4851 = vpow.pop %v4850
    %v4852 = vmul.f32 %v4841, 1.442695
    %v4853 = vpow.pop %v4852
    %v4854 = vmul.f32 %v4842, 1.442695
    %v4855 = vpow.pop %v4854
    %v4856 = vmul.f32 %v4843, 1.442695
    %v4857 = vpow.pop %v4856
    %v4858 = vmul.f32 %v4844, 1.442695
    %v4859 = vpow.pop %v4858
    %v4860 = vmul.f32 %v4845, 1.442695
    %v4861 = vpow.pop %v4860
    %v4862 = vsel %vm379, %v4847, 0.0
    %4863 = vadd.xlane.f32.xlu0 %v4862
    %v4864 = vpop.xlane.xlu0 %4863
    %v4865 = vsel %vm379, %v4849, 0.0
    %4866 = vadd.xlane.f32.xlu0 %v4865
    %v4867 = vpop.xlane.xlu0 %4866
    %v4868 = vsel %vm379, %v4851, 0.0
    %4869 = vadd.xlane.f32.xlu0 %v4868
    %v4870 = vpop.xlane.xlu0 %4869
    %v4871 = vsel %vm379, %v4853, 0.0
    %4872 = vadd.xlane.f32.xlu0 %v4871
    %v4873 = vpop.xlane.xlu0 %4872
    %v4874 = vsel %vm379, %v4855, 0.0
    %4875 = vadd.xlane.f32.xlu0 %v4874
    %v4876 = vpop.xlane.xlu0 %4875
    %v4877 = vsel %vm379, %v4857, 0.0
    %4878 = vadd.xlane.f32.xlu0 %v4877
    %v4879 = vpop.xlane.xlu0 %4878
    %v4880 = vsel %vm379, %v4859, 0.0
    %4881 = vadd.xlane.f32.xlu0 %v4880
    %v4882 = vpop.xlane.xlu0 %4881
    %v4883 = vsel %vm379, %v4861, 0.0
    %4884 = vadd.xlane.f32.xlu0 %v4883
    %v4885 = vpop.xlane.xlu0 %4884
    %v4886 = vrcp.pop %v4864
    %v4887 = vrcp.pop %v4867
    %v4888 = vrcp.pop %v4870
    %v4889 = vrcp.pop %v4873
    %v4890 = vrcp.pop %v4876
    %v4891 = vrcp.pop %v4879
    %v4892 = vrcp.pop %v4882
    %v4893 = vrcp.pop %v4885
    %v4894 = vmul.f32 %v4864, %v4886
    %v4895 = vmul.f32 %v4867, %v4887
    %v4896 = vmul.f32 %v4870, %v4888
    %v4897 = vmul.f32 %v4873, %v4889
    %v4898 = vmul.f32 %v4876, %v4890
    %v4899 = vmul.f32 %v4879, %v4891
    %v4900 = vmul.f32 %v4882, %v4892
    %v4901 = vmul.f32 %v4885, %v4893
    %v4902 = vsub.f32 2.0, %v4894
    %v4903 = vsub.f32 2.0, %v4895
    %v4904 = vsub.f32 2.0, %v4896
    %v4905 = vsub.f32 2.0, %v4897
    %v4906 = vsub.f32 2.0, %v4898
    %v4907 = vsub.f32 2.0, %v4899
    %v4908 = vsub.f32 2.0, %v4900
    %v4909 = vsub.f32 2.0, %v4901
    %v4910 = vmul.f32 %v4886, %v4902
    %v4911 = vmul.f32 %v4887, %v4903
    %v4912 = vmul.f32 %v4888, %v4904
    %v4913 = vmul.f32 %v4889, %v4905
    %v4914 = vmul.f32 %v4890, %v4906
    %v4915 = vmul.f32 %v4891, %v4907
    %v4916 = vmul.f32 %v4892, %v4908
    %v4917 = vmul.f32 %v4893, %v4909
    %v4918 = vmul.f32 %v4864, %v4910
    %v4919 = vmul.f32 %v4867, %v4911
    %v4920 = vmul.f32 %v4870, %v4912
    %v4921 = vmul.f32 %v4873, %v4913
    %v4922 = vmul.f32 %v4876, %v4914
    %v4923 = vmul.f32 %v4879, %v4915
    %v4924 = vmul.f32 %v4882, %v4916
    %v4925 = vmul.f32 %v4885, %v4917
    %v4926 = vsub.f32 2.0, %v4918
    %v4927 = vsub.f32 2.0, %v4919
    %v4928 = vsub.f32 2.0, %v4920
    %v4929 = vsub.f32 2.0, %v4921
    %v4930 = vsub.f32 2.0, %v4922
    %v4931 = vsub.f32 2.0, %v4923
    %v4932 = vsub.f32 2.0, %v4924
    %v4933 = vsub.f32 2.0, %v4925
    %v4934 = vmul.f32 %v4910, %v4926
    %v4935 = vmul.f32 %v4911, %v4927
    %v4936 = vmul.f32 %v4912, %v4928
    %v4937 = vmul.f32 %v4913, %v4929
    %v4938 = vmul.f32 %v4914, %v4930
    %v4939 = vmul.f32 %v4915, %v4931
    %v4940 = vmul.f32 %v4916, %v4932
    %v4941 = vmul.f32 %v4917, %v4933
    %v4942 = vmul.f32 %v4847, %v4934
    %v4943 = vmul.f32 %v4849, %v4935
    %v4944 = vmul.f32 %v4851, %v4936
    %v4945 = vmul.f32 %v4853, %v4937
    %v4946 = vmul.f32 %v4855, %v4938
    %v4947 = vmul.f32 %v4857, %v4939
    %v4948 = vmul.f32 %v4859, %v4940
    %v4949 = vmul.f32 %v4861, %v4941
    %4950 = vrot.lane.b32.xlu0 %v4534, 96
    %v4951 = vpop.permute.xlu0 %4950
    %4952 = vrot.lane.b32.xlu0 %v4539, 96
    %v4953 = vpop.permute.xlu0 %4952
    %4954 = vrot.lane.b32.xlu0 %v4544, 96
    %v4955 = vpop.permute.xlu0 %4954
    %4956 = vrot.lane.b32.xlu0 %v4549, 96
    %v4957 = vpop.permute.xlu0 %4956
    %v4963 = vsel %vm379, %v4942, 0
    %v4966 = vsel %vm379, %v4943, 0
    %v4969 = vsel %vm379, %v4944, 0
    %v4972 = vsel %vm379, %v4945, 0
    %4974 = vmatprep.subr.mxu0 0.0
    %4975 = vmatpush1.msra.mxu0 0.0
    %4976 = vmatprep.subr.mxu0 0.0
    %4977 = vmatpush1.msra.mxu0 0.0
    %4978 = vmatprep.subr.mxu0 0.0
    %4979 = vmatpush1.msra.mxu0 0.0
    %4980 = vmatprep.subr.mxu0 0.0
    %4981 = vmatpush1.msra.mxu0 0.0
    %4982 = vmatprep.subr.mxu0 0.0
    %4983 = vmatpush1.msra.mxu0 0.0
    %4984 = vmatprep.subr.mxu0 0.0
    %4985 = vmatpush1.msra.mxu0 0.0
    %4986 = vmatprep.subr.mxu0 0.0
    %4987 = vmatpush1.msra.mxu0 0.0
    %4988 = vmatprep.subr.mxu0 0.0
    %4989 = vmatpush1.msra.mxu0 0.0
    %4990 = vmatprep.subr.mxu0 0.0
    %4991 = vmatpush1.msra.mxu0 0.0
    %4992 = vmatprep.subr.mxu0 0.0
    %4993 = vmatpush1.msra.mxu0 0.0
    %4994 = vmatprep.subr.mxu0 0.0
    %4995 = vmatpush1.msra.mxu0 0.0
    %4996 = vmatprep.subr.mxu0 0.0
    %4997 = vmatpush1.msra.mxu0 0.0
    %4998 = vmatprep.subr.mxu0 0.0
    %4999 = vmatpush1.msra.mxu0 %v4957
    %5000 = vmatprep.subr.mxu0 0.0
    %5001 = vmatpush1.msra.mxu0 %v4955
    %5002 = vmatprep.subr.mxu0 0.0
    %5003 = vmatpush1.msra.mxu0 %v4953
    %5004 = vmatprep.subr.mxu0 0.0
    %5005 = vmatpush1.msra.mxu0 %v4951
    %5006 = vmatprep.subr.mxu0 0.0
    %5007 = vmatpush2.msra.mxu0 0.0
    %5008 = vmatprep.subr.mxu0 0.0
    %5009 = vmatpush2.msra.mxu0 0.0
    %5010 = vmatprep.subr.mxu0 0.0
    %5011 = vmatpush2.msra.mxu0 0.0
    %5012 = vmatprep.subr.mxu0 0.0
    %5013 = vmatpush2.msra.mxu0 0.0
    %5014 = vmatprep.subr.mxu0 0.0
    %5015 = vmatpush2.msra.mxu0 0.0
    %5016 = vmatprep.subr.mxu0 0.0
    %5017 = vmatpush2.msra.mxu0 0.0
    %5018 = vmatprep.subr.mxu0 0.0
    %5019 = vmatpush2.msra.mxu0 0.0
    %5020 = vmatprep.subr.mxu0 0.0
    %5021 = vmatpush2.msra.mxu0 0.0
    %5022 = vmatprep.subr.mxu0 0.0
    %5023 = vmatpush2.msra.mxu0 0.0
    %5024 = vmatprep.subr.mxu0 0.0
    %5025 = vmatpush2.msra.mxu0 0.0
    %5026 = vmatprep.subr.mxu0 0.0
    %5027 = vmatpush2.msra.mxu0 0.0
    %5028 = vmatprep.subr.mxu0 0.0
    %5029 = vmatpush2.msra.mxu0 0.0
    %5030 = vmatprep.subr.mxu0 0.0
    %5031 = vmatpush2.msra.mxu0 0.0
    %5032 = vmatprep.subr.mxu0 0.0
    %5033 = vmatpush2.msra.mxu0 0.0
    %5034 = vmatprep.subr.mxu0 0.0
    %5035 = vmatpush2.msra.mxu0 0.0
    %5036 = vmatprep.subr.mxu0 0.0
    %5037 = vmatpush2.msra.mxu0 0.0
    %5038 = vmatprep.mubr.f32.mxu0 0.0
    %5039 = vmatmul.mubr.f32.gmra.mxu0 %v4963
    %v5040 = vpop.f32.mrf.mxu0
    %v5041 = vadd.f32 0.0, %v5040
    %v5042 = vpop.f32.mrf.mxu0
    %5043 = vmatprep.mubr.f32.mxu0 0.0
    %5044 = vmatmul.mubr.f32.gmra.mxu0 %v4966
    %v5045 = vpop.f32.mrf.mxu0
    %v5046 = vadd.f32 0.0, %v5045
    %v5047 = vpop.f32.mrf.mxu0
    %5048 = vmatprep.mubr.f32.mxu0 0.0
    %5049 = vmatmul.mubr.f32.gmra.mxu0 %v4969
    %v5050 = vpop.f32.mrf.mxu0
    %v5051 = vadd.f32 0.0, %v5050
    %v5052 = vpop.f32.mrf.mxu0
    %5053 = vmatprep.mubr.f32.mxu0 0.0
    %5054 = vmatmul.mubr.f32.gmra.mxu0 %v4972
    %v5055 = vpop.f32.mrf.mxu0
    %v5056 = vadd.f32 0.0, %v5055
    %v5057 = vpop.f32.mrf.mxu0
    %5058 = vdwg.mxu0
    %5059 = vrot.lane.b32.xlu0 %v4554, 96
    %v5060 = vpop.permute.xlu0 %5059
    %5061 = vrot.lane.b32.xlu0 %v4559, 96
    %v5062 = vpop.permute.xlu0 %5061
    %5063 = vrot.lane.b32.xlu0 %v4564, 96
    %v5064 = vpop.permute.xlu0 %5063
    %5065 = vrot.lane.b32.xlu0 %v4569, 96
    %v5066 = vpop.permute.xlu0 %5065
    %v5072 = vsel %vm379, %v4946, 0
    %v5075 = vsel %vm379, %v4947, 0
    %v5078 = vsel %vm379, %v4948, 0
    %v5081 = vsel %vm379, %v4949, 0
    %5083 = vmatprep.subr.mxu0 0.0
    %5084 = vmatpush1.msra.mxu0 0.0
    %5085 = vmatprep.subr.mxu0 0.0
    %5086 = vmatpush1.msra.mxu0 0.0
    %5087 = vmatprep.subr.mxu0 0.0
    %5088 = vmatpush1.msra.mxu0 0.0
    %5089 = vmatprep.subr.mxu0 0.0
    %5090 = vmatpush1.msra.mxu0 0.0
    %5091 = vmatprep.subr.mxu0 0.0
    %5092 = vmatpush1.msra.mxu0 0.0
    %5093 = vmatprep.subr.mxu0 0.0
    %5094 = vmatpush1.msra.mxu0 0.0
    %5095 = vmatprep.subr.mxu0 0.0
    %5096 = vmatpush1.msra.mxu0 0.0
    %5097 = vmatprep.subr.mxu0 0.0
    %5098 = vmatpush1.msra.mxu0 0.0
    %5099 = vmatprep.subr.mxu0 0.0
    %5100 = vmatpush1.msra.mxu0 0.0
    %5101 = vmatprep.subr.mxu0 0.0
    %5102 = vmatpush1.msra.mxu0 0.0
    %5103 = vmatprep.subr.mxu0 0.0
    %5104 = vmatpush1.msra.mxu0 0.0
    %5105 = vmatprep.subr.mxu0 0.0
    %5106 = vmatpush1.msra.mxu0 0.0
    %5107 = vmatprep.subr.mxu0 0.0
    %5108 = vmatpush1.msra.mxu0 %v5066
    %5109 = vmatprep.subr.mxu0 0.0
    %5110 = vmatpush1.msra.mxu0 %v5064
    %5111 = vmatprep.subr.mxu0 0.0
    %5112 = vmatpush1.msra.mxu0 %v5062
    %5113 = vmatprep.subr.mxu0 0.0
    %5114 = vmatpush1.msra.mxu0 %v5060
    %5115 = vmatprep.subr.mxu0 0.0
    %5116 = vmatpush2.msra.mxu0 0.0
    %5117 = vmatprep.subr.mxu0 0.0
    %5118 = vmatpush2.msra.mxu0 0.0
    %5119 = vmatprep.subr.mxu0 0.0
    %5120 = vmatpush2.msra.mxu0 0.0
    %5121 = vmatprep.subr.mxu0 0.0
    %5122 = vmatpush2.msra.mxu0 0.0
    %5123 = vmatprep.subr.mxu0 0.0
    %5124 = vmatpush2.msra.mxu0 0.0
    %5125 = vmatprep.subr.mxu0 0.0
    %5126 = vmatpush2.msra.mxu0 0.0
    %5127 = vmatprep.subr.mxu0 0.0
    %5128 = vmatpush2.msra.mxu0 0.0
    %5129 = vmatprep.subr.mxu0 0.0
    %5130 = vmatpush2.msra.mxu0 0.0
    %5131 = vmatprep.subr.mxu0 0.0
    %5132 = vmatpush2.msra.mxu0 0.0
    %5133 = vmatprep.subr.mxu0 0.0
    %5134 = vmatpush2.msra.mxu0 0.0
    %5135 = vmatprep.subr.mxu0 0.0
    %5136 = vmatpush2.msra.mxu0 0.0
    %5137 = vmatprep.subr.mxu0 0.0
    %5138 = vmatpush2.msra.mxu0 0.0
    %5139 = vmatprep.subr.mxu0 0.0
    %5140 = vmatpush2.msra.mxu0 0.0
    %5141 = vmatprep.subr.mxu0 0.0
    %5142 = vmatpush2.msra.mxu0 0.0
    %5143 = vmatprep.subr.mxu0 0.0
    %5144 = vmatpush2.msra.mxu0 0.0
    %5145 = vmatprep.subr.mxu0 0.0
    %5146 = vmatpush2.msra.mxu0 0.0
    %5147 = vmatprep.mubr.f32.mxu0 0.0
    %5148 = vmatmul.mubr.f32.gmra.mxu0 %v5072
    %v5149 = vpop.f32.mrf.mxu0
    %v5150 = vadd.f32 0.0, %v5149
    %v5151 = vpop.f32.mrf.mxu0
    %5152 = vmatprep.mubr.f32.mxu0 0.0
    %5153 = vmatmul.mubr.f32.gmra.mxu0 %v5075
    %v5154 = vpop.f32.mrf.mxu0
    %v5155 = vadd.f32 0.0, %v5154
    %v5156 = vpop.f32.mrf.mxu0
    %5157 = vmatprep.mubr.f32.mxu0 0.0
    %5158 = vmatmul.mubr.f32.gmra.mxu0 %v5078
    %v5159 = vpop.f32.mrf.mxu0
    %v5160 = vadd.f32 0.0, %v5159
    %v5161 = vpop.f32.mrf.mxu0
    %5162 = vmatprep.mubr.f32.mxu0 0.0
    %5163 = vmatmul.mubr.f32.gmra.mxu0 %v5081
    %v5164 = vpop.f32.mrf.mxu0
    %v5165 = vadd.f32 0.0, %v5164
    %v5166 = vpop.f32.mrf.mxu0
    %5167 = vdwg.mxu0
    %5168 = vrot.lane.b32.xlu0 %v4534, 120
    %v5169 = vpop.permute.xlu0 %5168
    %5170 = vrot.lane.b32.xlu0 %v4539, 120
    %v5171 = vpop.permute.xlu0 %5170
    %5172 = vrot.lane.b32.xlu0 %v4544, 120
    %v5173 = vpop.permute.xlu0 %5172
    %5174 = vrot.lane.b32.xlu0 %v4549, 120
    %v5175 = vpop.permute.xlu0 %5174
    %5176 = vrot.lane.b32.xlu0 %v4534, 104
    %v5177 = vpop.permute.xlu0 %5176
    %5178 = vrot.lane.b32.xlu0 %v4539, 104
    %v5179 = vpop.permute.xlu0 %5178
    %5180 = vrot.lane.b32.xlu0 %v4544, 104
    %v5181 = vpop.permute.xlu0 %5180
    %5182 = vrot.lane.b32.xlu0 %v4549, 104
    %v5183 = vpop.permute.xlu0 %5182
    %v5184 = vsel %vm521, %v5169, 0
    %v5186 = vsel %vm521, %v5171, 0
    %v5188 = vsel %vm521, %v5173, 0
    %v5190 = vsel %vm521, %v5175, 0
    %v5192 = vsel %vm521, %v5177, 0
    %v5194 = vsel %vm521, %v5179, 0
    %v5196 = vsel %vm521, %v5181, 0
    %v5198 = vsel %vm521, %v5183, 0
    %5200 = vmatprep.subr.mxu0 0.0
    %5201 = vmatpush1.xpose.msra.mxu0 0.0
    %5202 = vmatprep.subr.mxu0 0.0
    %5203 = vmatpush1.xpose.msra.mxu0 0.0
    %5204 = vmatprep.subr.mxu0 0.0
    %5205 = vmatpush1.xpose.msra.mxu0 0.0
    %5206 = vmatprep.subr.mxu0 0.0
    %5207 = vmatpush1.xpose.msra.mxu0 0.0
    %5208 = vmatprep.subr.mxu0 0.0
    %5209 = vmatpush1.xpose.msra.mxu0 0.0
    %5210 = vmatprep.subr.mxu0 0.0
    %5211 = vmatpush1.xpose.msra.mxu0 0.0
    %5212 = vmatprep.subr.mxu0 0.0
    %5213 = vmatpush1.xpose.msra.mxu0 0.0
    %5214 = vmatprep.subr.mxu0 0.0
    %5215 = vmatpush1.xpose.msra.mxu0 0.0
    %5216 = vmatprep.subr.mxu0 0.0
    %5217 = vmatpush1.xpose.msra.mxu0 0.0
    %5218 = vmatprep.subr.mxu0 0.0
    %5219 = vmatpush1.xpose.msra.mxu0 0.0
    %5220 = vmatprep.subr.mxu0 0.0
    %5221 = vmatpush1.xpose.msra.mxu0 0.0
    %5222 = vmatprep.subr.mxu0 0.0
    %5223 = vmatpush1.xpose.msra.mxu0 0.0
    %5224 = vmatprep.subr.mxu0 0.0
    %5225 = vmatpush1.xpose.msra.mxu0 %v5198
    %5226 = vmatprep.subr.mxu0 0.0
    %5227 = vmatpush1.xpose.msra.mxu0 %v5196
    %5228 = vmatprep.subr.mxu0 0.0
    %5229 = vmatpush1.xpose.msra.mxu0 %v5194
    %5230 = vmatprep.subr.mxu0 0.0
    %5231 = vmatpush1.xpose.msra.mxu0 %v5192
    %5232 = vmatprep.subr.mxu0 0.0
    %5233 = vmatpush2.xpose.msra.mxu0 0.0
    %5234 = vmatprep.subr.mxu0 0.0
    %5235 = vmatpush2.xpose.msra.mxu0 0.0
    %5236 = vmatprep.subr.mxu0 0.0
    %5237 = vmatpush2.xpose.msra.mxu0 0.0
    %5238 = vmatprep.subr.mxu0 0.0
    %5239 = vmatpush2.xpose.msra.mxu0 0.0
    %5240 = vmatprep.subr.mxu0 0.0
    %5241 = vmatpush2.xpose.msra.mxu0 0.0
    %5242 = vmatprep.subr.mxu0 0.0
    %5243 = vmatpush2.xpose.msra.mxu0 0.0
    %5244 = vmatprep.subr.mxu0 0.0
    %5245 = vmatpush2.xpose.msra.mxu0 0.0
    %5246 = vmatprep.subr.mxu0 0.0
    %5247 = vmatpush2.xpose.msra.mxu0 0.0
    %5248 = vmatprep.subr.mxu0 0.0
    %5249 = vmatpush2.xpose.msra.mxu0 0.0
    %5250 = vmatprep.subr.mxu0 0.0
    %5251 = vmatpush2.xpose.msra.mxu0 0.0
    %5252 = vmatprep.subr.mxu0 0.0
    %5253 = vmatpush2.xpose.msra.mxu0 0.0
    %5254 = vmatprep.subr.mxu0 0.0
    %5255 = vmatpush2.xpose.msra.mxu0 0.0
    %5256 = vmatprep.subr.mxu0 0.0
    %5257 = vmatpush2.xpose.msra.mxu0 0.0
    %5258 = vmatprep.subr.mxu0 0.0
    %5259 = vmatpush2.xpose.msra.mxu0 0.0
    %5260 = vmatprep.subr.mxu0 0.0
    %5261 = vmatpush2.xpose.msra.mxu0 0.0
    %5262 = vmatprep.subr.mxu0 0.0
    %5263 = vmatpush2.xpose.msra.mxu0 0.0
    %5264 = vmatprep.mubr.f32.mxu0 0.0
    %5265 = vmatmul.mubr.f32.gmra.mxu0 %v5184
    %v5266 = vpop.f32.mrf.mxu0
    %v5267 = vadd.f32 0.0, %v5266
    %v5268 = vpop.f32.mrf.mxu0
    %5269 = vmatprep.mubr.f32.mxu0 0.0
    %5270 = vmatmul.mubr.f32.gmra.mxu0 %v5186
    %v5271 = vpop.f32.mrf.mxu0
    %v5272 = vadd.f32 0.0, %v5271
    %v5273 = vpop.f32.mrf.mxu0
    %5274 = vmatprep.mubr.f32.mxu0 0.0
    %5275 = vmatmul.mubr.f32.gmra.mxu0 %v5188
    %v5276 = vpop.f32.mrf.mxu0
    %v5277 = vadd.f32 0.0, %v5276
    %v5278 = vpop.f32.mrf.mxu0
    %5279 = vmatprep.mubr.f32.mxu0 0.0
    %5280 = vmatmul.mubr.f32.gmra.mxu0 %v5190
    %v5281 = vpop.f32.mrf.mxu0
    %v5282 = vadd.f32 0.0, %v5281
    %v5283 = vpop.f32.mrf.mxu0
    %5284 = vdwg.mxu0
    %5285 = vrot.lane.b32.xlu0 %v4554, 120
    %v5286 = vpop.permute.xlu0 %5285
    %5287 = vrot.lane.b32.xlu0 %v4559, 120
    %v5288 = vpop.permute.xlu0 %5287
    %5289 = vrot.lane.b32.xlu0 %v4564, 120
    %v5290 = vpop.permute.xlu0 %5289
    %5291 = vrot.lane.b32.xlu0 %v4569, 120
    %v5292 = vpop.permute.xlu0 %5291
    %5293 = vrot.lane.b32.xlu0 %v4554, 104
    %v5294 = vpop.permute.xlu0 %5293
    %5295 = vrot.lane.b32.xlu0 %v4559, 104
    %v5296 = vpop.permute.xlu0 %5295
    %5297 = vrot.lane.b32.xlu0 %v4564, 104
    %v5298 = vpop.permute.xlu0 %5297
    %5299 = vrot.lane.b32.xlu0 %v4569, 104
    %v5300 = vpop.permute.xlu0 %5299
    %v5301 = vsel %vm521, %v5286, 0
    %v5303 = vsel %vm521, %v5288, 0
    %v5305 = vsel %vm521, %v5290, 0
    %v5307 = vsel %vm521, %v5292, 0
    %v5309 = vsel %vm521, %v5294, 0
    %v5311 = vsel %vm521, %v5296, 0
    %v5313 = vsel %vm521, %v5298, 0
    %v5315 = vsel %vm521, %v5300, 0
    %5317 = vmatprep.subr.mxu0 0.0
    %5318 = vmatpush1.xpose.msra.mxu0 0.0
    %5319 = vmatprep.subr.mxu0 0.0
    %5320 = vmatpush1.xpose.msra.mxu0 0.0
    %5321 = vmatprep.subr.mxu0 0.0
    %5322 = vmatpush1.xpose.msra.mxu0 0.0
    %5323 = vmatprep.subr.mxu0 0.0
    %5324 = vmatpush1.xpose.msra.mxu0 0.0
    %5325 = vmatprep.subr.mxu0 0.0
    %5326 = vmatpush1.xpose.msra.mxu0 0.0
    %5327 = vmatprep.subr.mxu0 0.0
    %5328 = vmatpush1.xpose.msra.mxu0 0.0
    %5329 = vmatprep.subr.mxu0 0.0
    %5330 = vmatpush1.xpose.msra.mxu0 0.0
    %5331 = vmatprep.subr.mxu0 0.0
    %5332 = vmatpush1.xpose.msra.mxu0 0.0
    %5333 = vmatprep.subr.mxu0 0.0
    %5334 = vmatpush1.xpose.msra.mxu0 0.0
    %5335 = vmatprep.subr.mxu0 0.0
    %5336 = vmatpush1.xpose.msra.mxu0 0.0
    %5337 = vmatprep.subr.mxu0 0.0
    %5338 = vmatpush1.xpose.msra.mxu0 0.0
    %5339 = vmatprep.subr.mxu0 0.0
    %5340 = vmatpush1.xpose.msra.mxu0 0.0
    %5341 = vmatprep.subr.mxu0 0.0
    %5342 = vmatpush1.xpose.msra.mxu0 %v5315
    %5343 = vmatprep.subr.mxu0 0.0
    %5344 = vmatpush1.xpose.msra.mxu0 %v5313
    %5345 = vmatprep.subr.mxu0 0.0
    %5346 = vmatpush1.xpose.msra.mxu0 %v5311
    %5347 = vmatprep.subr.mxu0 0.0
    %5348 = vmatpush1.xpose.msra.mxu0 %v5309
    %5349 = vmatprep.subr.mxu0 0.0
    %5350 = vmatpush2.xpose.msra.mxu0 0.0
    %5351 = vmatprep.subr.mxu0 0.0
    %5352 = vmatpush2.xpose.msra.mxu0 0.0
    %5353 = vmatprep.subr.mxu0 0.0
    %5354 = vmatpush2.xpose.msra.mxu0 0.0
    %5355 = vmatprep.subr.mxu0 0.0
    %5356 = vmatpush2.xpose.msra.mxu0 0.0
    %5357 = vmatprep.subr.mxu0 0.0
    %5358 = vmatpush2.xpose.msra.mxu0 0.0
    %5359 = vmatprep.subr.mxu0 0.0
    %5360 = vmatpush2.xpose.msra.mxu0 0.0
    %5361 = vmatprep.subr.mxu0 0.0
    %5362 = vmatpush2.xpose.msra.mxu0 0.0
    %5363 = vmatprep.subr.mxu0 0.0
    %5364 = vmatpush2.xpose.msra.mxu0 0.0
    %5365 = vmatprep.subr.mxu0 0.0
    %5366 = vmatpush2.xpose.msra.mxu0 0.0
    %5367 = vmatprep.subr.mxu0 0.0
    %5368 = vmatpush2.xpose.msra.mxu0 0.0
    %5369 = vmatprep.subr.mxu0 0.0
    %5370 = vmatpush2.xpose.msra.mxu0 0.0
    %5371 = vmatprep.subr.mxu0 0.0
    %5372 = vmatpush2.xpose.msra.mxu0 0.0
    %5373 = vmatprep.subr.mxu0 0.0
    %5374 = vmatpush2.xpose.msra.mxu0 0.0
    %5375 = vmatprep.subr.mxu0 0.0
    %5376 = vmatpush2.xpose.msra.mxu0 0.0
    %5377 = vmatprep.subr.mxu0 0.0
    %5378 = vmatpush2.xpose.msra.mxu0 0.0
    %5379 = vmatprep.subr.mxu0 0.0
    %5380 = vmatpush2.xpose.msra.mxu0 0.0
    %5381 = vmatprep.mubr.f32.mxu0 0.0
    %5382 = vmatmul.mubr.f32.gmra.mxu0 %v5301
    %v5383 = vpop.f32.mrf.mxu0
    %v5384 = vadd.f32 0.0, %v5383
    %v5385 = vpop.f32.mrf.mxu0
    %5386 = vmatprep.mubr.f32.mxu0 0.0
    %5387 = vmatmul.mubr.f32.gmra.mxu0 %v5303
    %v5388 = vpop.f32.mrf.mxu0
    %v5389 = vadd.f32 0.0, %v5388
    %v5390 = vpop.f32.mrf.mxu0
    %5391 = vmatprep.mubr.f32.mxu0 0.0
    %5392 = vmatmul.mubr.f32.gmra.mxu0 %v5305
    %v5393 = vpop.f32.mrf.mxu0
    %v5394 = vadd.f32 0.0, %v5393
    %v5395 = vpop.f32.mrf.mxu0
    %5396 = vmatprep.mubr.f32.mxu0 0.0
    %5397 = vmatmul.mubr.f32.gmra.mxu0 %v5307
    %v5398 = vpop.f32.mrf.mxu0
    %v5399 = vadd.f32 0.0, %v5398
    %v5400 = vpop.f32.mrf.mxu0
    %5401 = vdwg.mxu0
    %v5402 = vmul.f32 %v5267, 0.35355338
    %v5403 = vmul.f32 %v5272, 0.35355338
    %v5404 = vmul.f32 %v5277, 0.35355338
    %v5405 = vmul.f32 %v5282, 0.35355338
    %v5406 = vmul.f32 %v5384, 0.35355338
    %v5407 = vmul.f32 %v5389, 0.35355338
    %v5408 = vmul.f32 %v5394, 0.35355338
    %v5409 = vmul.f32 %v5399, 0.35355338
    %v5410 = vadd.f32 %v5402, %v29
    %v5411 = vadd.f32 %v5403, %v30
    %v5412 = vadd.f32 %v5404, %v31
    %v5413 = vadd.f32 %v5405, %v32
    %v5414 = vadd.f32 %v5406, %v33
    %v5415 = vadd.f32 %v5407, %v34
    %v5416 = vadd.f32 %v5408, %v35
    %v5417 = vadd.f32 %v5409, %v36
    %v5418 = vsel %vm379, %v5410, -inf
    %5419 = vmax.xlane.f32.xlu0 %v5418
    %v5420 = vpop.xlane.xlu0 %5419
    %v5421 = vsel %vm379, %v5411, -inf
    %5422 = vmax.xlane.f32.xlu0 %v5421
    %v5423 = vpop.xlane.xlu0 %5422
    %v5424 = vsel %vm379, %v5412, -inf
    %5425 = vmax.xlane.f32.xlu0 %v5424
    %v5426 = vpop.xlane.xlu0 %5425
    %v5427 = vsel %vm379, %v5413, -inf
    %5428 = vmax.xlane.f32.xlu0 %v5427
    %v5429 = vpop.xlane.xlu0 %5428
    %v5430 = vsel %vm379, %v5414, -inf
    %5431 = vmax.xlane.f32.xlu0 %v5430
    %v5432 = vpop.xlane.xlu0 %5431
    %v5433 = vsel %vm379, %v5415, -inf
    %5434 = vmax.xlane.f32.xlu0 %v5433
    %v5435 = vpop.xlane.xlu0 %5434
    %v5436 = vsel %vm379, %v5416, -inf
    %5437 = vmax.xlane.f32.xlu0 %v5436
    %v5438 = vpop.xlane.xlu0 %5437
    %v5439 = vsel %vm379, %v5417, -inf
    %5440 = vmax.xlane.f32.xlu0 %v5439
    %v5441 = vpop.xlane.xlu0 %5440
    %v5442 = vsub.f32 %v5410, %v5420
    %v5443 = vsub.f32 %v5411, %v5423
    %v5444 = vsub.f32 %v5412, %v5426
    %v5445 = vsub.f32 %v5413, %v5429
    %v5446 = vsub.f32 %v5414, %v5432
    %v5447 = vsub.f32 %v5415, %v5435
    %v5448 = vsub.f32 %v5416, %v5438
    %v5449 = vsub.f32 %v5417, %v5441
    %v5450 = vmul.f32 %v5442, 1.442695
    %v5451 = vpow.pop %v5450
    %v5452 = vmul.f32 %v5443, 1.442695
    %v5453 = vpow.pop %v5452
    %v5454 = vmul.f32 %v5444, 1.442695
    %v5455 = vpow.pop %v5454
    %v5456 = vmul.f32 %v5445, 1.442695
    %v5457 = vpow.pop %v5456
    %v5458 = vmul.f32 %v5446, 1.442695
    %v5459 = vpow.pop %v5458
    %v5460 = vmul.f32 %v5447, 1.442695
    %v5461 = vpow.pop %v5460
    %v5462 = vmul.f32 %v5448, 1.442695
    %v5463 = vpow.pop %v5462
    %v5464 = vmul.f32 %v5449, 1.442695
    %v5465 = vpow.pop %v5464
    %v5466 = vsel %vm379, %v5451, 0.0
    %5467 = vadd.xlane.f32.xlu0 %v5466
    %v5468 = vpop.xlane.xlu0 %5467
    %v5469 = vsel %vm379, %v5453, 0.0
    %5470 = vadd.xlane.f32.xlu0 %v5469
    %v5471 = vpop.xlane.xlu0 %5470
    %v5472 = vsel %vm379, %v5455, 0.0
    %5473 = vadd.xlane.f32.xlu0 %v5472
    %v5474 = vpop.xlane.xlu0 %5473
    %v5475 = vsel %vm379, %v5457, 0.0
    %5476 = vadd.xlane.f32.xlu0 %v5475
    %v5477 = vpop.xlane.xlu0 %5476
    %v5478 = vsel %vm379, %v5459, 0.0
    %5479 = vadd.xlane.f32.xlu0 %v5478
    %v5480 = vpop.xlane.xlu0 %5479
    %v5481 = vsel %vm379, %v5461, 0.0
    %5482 = vadd.xlane.f32.xlu0 %v5481
    %v5483 = vpop.xlane.xlu0 %5482
    %v5484 = vsel %vm379, %v5463, 0.0
    %5485 = vadd.xlane.f32.xlu0 %v5484
    %v5486 = vpop.xlane.xlu0 %5485
    %v5487 = vsel %vm379, %v5465, 0.0
    %5488 = vadd.xlane.f32.xlu0 %v5487
    %v5489 = vpop.xlane.xlu0 %5488
    %v5490 = vrcp.pop %v5468
    %v5491 = vrcp.pop %v5471
    %v5492 = vrcp.pop %v5474
    %v5493 = vrcp.pop %v5477
    %v5494 = vrcp.pop %v5480
    %v5495 = vrcp.pop %v5483
    %v5496 = vrcp.pop %v5486
    %v5497 = vrcp.pop %v5489
    %v5498 = vmul.f32 %v5468, %v5490
    %v5499 = vmul.f32 %v5471, %v5491
    %v5500 = vmul.f32 %v5474, %v5492
    %v5501 = vmul.f32 %v5477, %v5493
    %v5502 = vmul.f32 %v5480, %v5494
    %v5503 = vmul.f32 %v5483, %v5495
    %v5504 = vmul.f32 %v5486, %v5496
    %v5505 = vmul.f32 %v5489, %v5497
    %v5506 = vsub.f32 2.0, %v5498
    %v5507 = vsub.f32 2.0, %v5499
    %v5508 = vsub.f32 2.0, %v5500
    %v5509 = vsub.f32 2.0, %v5501
    %v5510 = vsub.f32 2.0, %v5502
    %v5511 = vsub.f32 2.0, %v5503
    %v5512 = vsub.f32 2.0, %v5504
    %v5513 = vsub.f32 2.0, %v5505
    %v5514 = vmul.f32 %v5490, %v5506
    %v5515 = vmul.f32 %v5491, %v5507
    %v5516 = vmul.f32 %v5492, %v5508
    %v5517 = vmul.f32 %v5493, %v5509
    %v5518 = vmul.f32 %v5494, %v5510
    %v5519 = vmul.f32 %v5495, %v5511
    %v5520 = vmul.f32 %v5496, %v5512
    %v5521 = vmul.f32 %v5497, %v5513
    %v5522 = vmul.f32 %v5468, %v5514
    %v5523 = vmul.f32 %v5471, %v5515
    %v5524 = vmul.f32 %v5474, %v5516
    %v5525 = vmul.f32 %v5477, %v5517
    %v5526 = vmul.f32 %v5480, %v5518
    %v5527 = vmul.f32 %v5483, %v5519
    %v5528 = vmul.f32 %v5486, %v5520
    %v5529 = vmul.f32 %v5489, %v5521
    %v5530 = vsub.f32 2.0, %v5522
    %v5531 = vsub.f32 2.0, %v5523
    %v5532 = vsub.f32 2.0, %v5524
    %v5533 = vsub.f32 2.0, %v5525
    %v5534 = vsub.f32 2.0, %v5526
    %v5535 = vsub.f32 2.0, %v5527
    %v5536 = vsub.f32 2.0, %v5528
    %v5537 = vsub.f32 2.0, %v5529
    %v5538 = vmul.f32 %v5514, %v5530
    %v5539 = vmul.f32 %v5515, %v5531
    %v5540 = vmul.f32 %v5516, %v5532
    %v5541 = vmul.f32 %v5517, %v5533
    %v5542 = vmul.f32 %v5518, %v5534
    %v5543 = vmul.f32 %v5519, %v5535
    %v5544 = vmul.f32 %v5520, %v5536
    %v5545 = vmul.f32 %v5521, %v5537
    %v5546 = vmul.f32 %v5451, %v5538
    %v5547 = vmul.f32 %v5453, %v5539
    %v5548 = vmul.f32 %v5455, %v5540
    %v5549 = vmul.f32 %v5457, %v5541
    %v5550 = vmul.f32 %v5459, %v5542
    %v5551 = vmul.f32 %v5461, %v5543
    %v5552 = vmul.f32 %v5463, %v5544
    %v5553 = vmul.f32 %v5465, %v5545
    %5554 = vrot.lane.b32.xlu0 %v4534, 88
    %v5555 = vpop.permute.xlu0 %5554
    %5556 = vrot.lane.b32.xlu0 %v4539, 88
    %v5557 = vpop.permute.xlu0 %5556
    %5558 = vrot.lane.b32.xlu0 %v4544, 88
    %v5559 = vpop.permute.xlu0 %5558
    %5560 = vrot.lane.b32.xlu0 %v4549, 88
    %v5561 = vpop.permute.xlu0 %5560
    %v5567 = vsel %vm379, %v5546, 0
    %v5570 = vsel %vm379, %v5547, 0
    %v5573 = vsel %vm379, %v5548, 0
    %v5576 = vsel %vm379, %v5549, 0
    %5578 = vmatprep.subr.mxu0 0.0
    %5579 = vmatpush1.msra.mxu0 0.0
    %5580 = vmatprep.subr.mxu0 0.0
    %5581 = vmatpush1.msra.mxu0 0.0
    %5582 = vmatprep.subr.mxu0 0.0
    %5583 = vmatpush1.msra.mxu0 0.0
    %5584 = vmatprep.subr.mxu0 0.0
    %5585 = vmatpush1.msra.mxu0 0.0
    %5586 = vmatprep.subr.mxu0 0.0
    %5587 = vmatpush1.msra.mxu0 0.0
    %5588 = vmatprep.subr.mxu0 0.0
    %5589 = vmatpush1.msra.mxu0 0.0
    %5590 = vmatprep.subr.mxu0 0.0
    %5591 = vmatpush1.msra.mxu0 0.0
    %5592 = vmatprep.subr.mxu0 0.0
    %5593 = vmatpush1.msra.mxu0 0.0
    %5594 = vmatprep.subr.mxu0 0.0
    %5595 = vmatpush1.msra.mxu0 0.0
    %5596 = vmatprep.subr.mxu0 0.0
    %5597 = vmatpush1.msra.mxu0 0.0
    %5598 = vmatprep.subr.mxu0 0.0
    %5599 = vmatpush1.msra.mxu0 0.0
    %5600 = vmatprep.subr.mxu0 0.0
    %5601 = vmatpush1.msra.mxu0 0.0
    %5602 = vmatprep.subr.mxu0 0.0
    %5603 = vmatpush1.msra.mxu0 %v5561
    %5604 = vmatprep.subr.mxu0 0.0
    %5605 = vmatpush1.msra.mxu0 %v5559
    %5606 = vmatprep.subr.mxu0 0.0
    %5607 = vmatpush1.msra.mxu0 %v5557
    %5608 = vmatprep.subr.mxu0 0.0
    %5609 = vmatpush1.msra.mxu0 %v5555
    %5610 = vmatprep.subr.mxu0 0.0
    %5611 = vmatpush2.msra.mxu0 0.0
    %5612 = vmatprep.subr.mxu0 0.0
    %5613 = vmatpush2.msra.mxu0 0.0
    %5614 = vmatprep.subr.mxu0 0.0
    %5615 = vmatpush2.msra.mxu0 0.0
    %5616 = vmatprep.subr.mxu0 0.0
    %5617 = vmatpush2.msra.mxu0 0.0
    %5618 = vmatprep.subr.mxu0 0.0
    %5619 = vmatpush2.msra.mxu0 0.0
    %5620 = vmatprep.subr.mxu0 0.0
    %5621 = vmatpush2.msra.mxu0 0.0
    %5622 = vmatprep.subr.mxu0 0.0
    %5623 = vmatpush2.msra.mxu0 0.0
    %5624 = vmatprep.subr.mxu0 0.0
    %5625 = vmatpush2.msra.mxu0 0.0
    %5626 = vmatprep.subr.mxu0 0.0
    %5627 = vmatpush2.msra.mxu0 0.0
    %5628 = vmatprep.subr.mxu0 0.0
    %5629 = vmatpush2.msra.mxu0 0.0
    %5630 = vmatprep.subr.mxu0 0.0
    %5631 = vmatpush2.msra.mxu0 0.0
    %5632 = vmatprep.subr.mxu0 0.0
    %5633 = vmatpush2.msra.mxu0 0.0
    %5634 = vmatprep.subr.mxu0 0.0
    %5635 = vmatpush2.msra.mxu0 0.0
    %5636 = vmatprep.subr.mxu0 0.0
    %5637 = vmatpush2.msra.mxu0 0.0
    %5638 = vmatprep.subr.mxu0 0.0
    %5639 = vmatpush2.msra.mxu0 0.0
    %5640 = vmatprep.subr.mxu0 0.0
    %5641 = vmatpush2.msra.mxu0 0.0
    %5642 = vmatprep.mubr.f32.mxu0 0.0
    %5643 = vmatmul.mubr.f32.gmra.mxu0 %v5567
    %v5644 = vpop.f32.mrf.mxu0
    %v5645 = vadd.f32 0.0, %v5644
    %v5646 = vpop.f32.mrf.mxu0
    %5647 = vmatprep.mubr.f32.mxu0 0.0
    %5648 = vmatmul.mubr.f32.gmra.mxu0 %v5570
    %v5649 = vpop.f32.mrf.mxu0
    %v5650 = vadd.f32 0.0, %v5649
    %v5651 = vpop.f32.mrf.mxu0
    %5652 = vmatprep.mubr.f32.mxu0 0.0
    %5653 = vmatmul.mubr.f32.gmra.mxu0 %v5573
    %v5654 = vpop.f32.mrf.mxu0
    %v5655 = vadd.f32 0.0, %v5654
    %v5656 = vpop.f32.mrf.mxu0
    %5657 = vmatprep.mubr.f32.mxu0 0.0
    %5658 = vmatmul.mubr.f32.gmra.mxu0 %v5576
    %v5659 = vpop.f32.mrf.mxu0
    %v5660 = vadd.f32 0.0, %v5659
    %v5661 = vpop.f32.mrf.mxu0
    %5662 = vdwg.mxu0
    %5663 = vrot.lane.b32.xlu0 %v4554, 88
    %v5664 = vpop.permute.xlu0 %5663
    %5665 = vrot.lane.b32.xlu0 %v4559, 88
    %v5666 = vpop.permute.xlu0 %5665
    %5667 = vrot.lane.b32.xlu0 %v4564, 88
    %v5668 = vpop.permute.xlu0 %5667
    %5669 = vrot.lane.b32.xlu0 %v4569, 88
    %v5670 = vpop.permute.xlu0 %5669
    %v5676 = vsel %vm379, %v5550, 0
    %v5679 = vsel %vm379, %v5551, 0
    %v5682 = vsel %vm379, %v5552, 0
    %v5685 = vsel %vm379, %v5553, 0
    %5687 = vmatprep.subr.mxu0 0.0
    %5688 = vmatpush1.msra.mxu0 0.0
    %5689 = vmatprep.subr.mxu0 0.0
    %5690 = vmatpush1.msra.mxu0 0.0
    %5691 = vmatprep.subr.mxu0 0.0
    %5692 = vmatpush1.msra.mxu0 0.0
    %5693 = vmatprep.subr.mxu0 0.0
    %5694 = vmatpush1.msra.mxu0 0.0
    %5695 = vmatprep.subr.mxu0 0.0
    %5696 = vmatpush1.msra.mxu0 0.0
    %5697 = vmatprep.subr.mxu0 0.0
    %5698 = vmatpush1.msra.mxu0 0.0
    %5699 = vmatprep.subr.mxu0 0.0
    %5700 = vmatpush1.msra.mxu0 0.0
    %5701 = vmatprep.subr.mxu0 0.0
    %5702 = vmatpush1.msra.mxu0 0.0
    %5703 = vmatprep.subr.mxu0 0.0
    %5704 = vmatpush1.msra.mxu0 0.0
    %5705 = vmatprep.subr.mxu0 0.0
    %5706 = vmatpush1.msra.mxu0 0.0
    %5707 = vmatprep.subr.mxu0 0.0
    %5708 = vmatpush1.msra.mxu0 0.0
    %5709 = vmatprep.subr.mxu0 0.0
    %5710 = vmatpush1.msra.mxu0 0.0
    %5711 = vmatprep.subr.mxu0 0.0
    %5712 = vmatpush1.msra.mxu0 %v5670
    %5713 = vmatprep.subr.mxu0 0.0
    %5714 = vmatpush1.msra.mxu0 %v5668
    %5715 = vmatprep.subr.mxu0 0.0
    %5716 = vmatpush1.msra.mxu0 %v5666
    %5717 = vmatprep.subr.mxu0 0.0
    %5718 = vmatpush1.msra.mxu0 %v5664
    %5719 = vmatprep.subr.mxu0 0.0
    %5720 = vmatpush2.msra.mxu0 0.0
    %5721 = vmatprep.subr.mxu0 0.0
    %5722 = vmatpush2.msra.mxu0 0.0
    %5723 = vmatprep.subr.mxu0 0.0
    %5724 = vmatpush2.msra.mxu0 0.0
    %5725 = vmatprep.subr.mxu0 0.0
    %5726 = vmatpush2.msra.mxu0 0.0
    %5727 = vmatprep.subr.mxu0 0.0
    %5728 = vmatpush2.msra.mxu0 0.0
    %5729 = vmatprep.subr.mxu0 0.0
    %5730 = vmatpush2.msra.mxu0 0.0
    %5731 = vmatprep.subr.mxu0 0.0
    %5732 = vmatpush2.msra.mxu0 0.0
    %5733 = vmatprep.subr.mxu0 0.0
    %5734 = vmatpush2.msra.mxu0 0.0
    %5735 = vmatprep.subr.mxu0 0.0
    %5736 = vmatpush2.msra.mxu0 0.0
    %5737 = vmatprep.subr.mxu0 0.0
    %5738 = vmatpush2.msra.mxu0 0.0
    %5739 = vmatprep.subr.mxu0 0.0
    %5740 = vmatpush2.msra.mxu0 0.0
    %5741 = vmatprep.subr.mxu0 0.0
    %5742 = vmatpush2.msra.mxu0 0.0
    %5743 = vmatprep.subr.mxu0 0.0
    %5744 = vmatpush2.msra.mxu0 0.0
    %5745 = vmatprep.subr.mxu0 0.0
    %5746 = vmatpush2.msra.mxu0 0.0
    %5747 = vmatprep.subr.mxu0 0.0
    %5748 = vmatpush2.msra.mxu0 0.0
    %5749 = vmatprep.subr.mxu0 0.0
    %5750 = vmatpush2.msra.mxu0 0.0
    %5751 = vmatprep.mubr.f32.mxu0 0.0
    %5752 = vmatmul.mubr.f32.gmra.mxu0 %v5676
    %v5753 = vpop.f32.mrf.mxu0
    %v5754 = vadd.f32 0.0, %v5753
    %v5755 = vpop.f32.mrf.mxu0
    %5756 = vmatprep.mubr.f32.mxu0 0.0
    %5757 = vmatmul.mubr.f32.gmra.mxu0 %v5679
    %v5758 = vpop.f32.mrf.mxu0
    %v5759 = vadd.f32 0.0, %v5758
    %v5760 = vpop.f32.mrf.mxu0
    %5761 = vmatprep.mubr.f32.mxu0 0.0
    %5762 = vmatmul.mubr.f32.gmra.mxu0 %v5682
    %v5763 = vpop.f32.mrf.mxu0
    %v5764 = vadd.f32 0.0, %v5763
    %v5765 = vpop.f32.mrf.mxu0
    %5766 = vmatprep.mubr.f32.mxu0 0.0
    %5767 = vmatmul.mubr.f32.gmra.mxu0 %v5685
    %v5768 = vpop.f32.mrf.mxu0
    %v5769 = vadd.f32 0.0, %v5768
    %v5770 = vpop.f32.mrf.mxu0
    %5771 = vdwg.mxu0
    %5772 = vrot.lane.b32.xlu0 %v4534, 80
    %v5773 = vpop.permute.xlu0 %5772
    %5774 = vrot.lane.b32.xlu0 %v4539, 80
    %v5775 = vpop.permute.xlu0 %5774
    %5776 = vrot.lane.b32.xlu0 %v4544, 80
    %v5777 = vpop.permute.xlu0 %5776
    %5778 = vrot.lane.b32.xlu0 %v4549, 80
    %v5779 = vpop.permute.xlu0 %5778
    %5780 = vrot.lane.b32.xlu0 %v4534, 64
    %v5781 = vpop.permute.xlu0 %5780
    %5782 = vrot.lane.b32.xlu0 %v4539, 64
    %v5783 = vpop.permute.xlu0 %5782
    %5784 = vrot.lane.b32.xlu0 %v4544, 64
    %v5785 = vpop.permute.xlu0 %5784
    %5786 = vrot.lane.b32.xlu0 %v4549, 64
    %v5787 = vpop.permute.xlu0 %5786
    %v5788 = vsel %vm521, %v5773, 0
    %v5790 = vsel %vm521, %v5775, 0
    %v5792 = vsel %vm521, %v5777, 0
    %v5794 = vsel %vm521, %v5779, 0
    %v5796 = vsel %vm521, %v5781, 0
    %v5798 = vsel %vm521, %v5783, 0
    %v5800 = vsel %vm521, %v5785, 0
    %v5802 = vsel %vm521, %v5787, 0
    %5804 = vmatprep.subr.mxu0 0.0
    %5805 = vmatpush1.xpose.msra.mxu0 0.0
    %5806 = vmatprep.subr.mxu0 0.0
    %5807 = vmatpush1.xpose.msra.mxu0 0.0
    %5808 = vmatprep.subr.mxu0 0.0
    %5809 = vmatpush1.xpose.msra.mxu0 0.0
    %5810 = vmatprep.subr.mxu0 0.0
    %5811 = vmatpush1.xpose.msra.mxu0 0.0
    %5812 = vmatprep.subr.mxu0 0.0
    %5813 = vmatpush1.xpose.msra.mxu0 0.0
    %5814 = vmatprep.subr.mxu0 0.0
    %5815 = vmatpush1.xpose.msra.mxu0 0.0
    %5816 = vmatprep.subr.mxu0 0.0
    %5817 = vmatpush1.xpose.msra.mxu0 0.0
    %5818 = vmatprep.subr.mxu0 0.0
    %5819 = vmatpush1.xpose.msra.mxu0 0.0
    %5820 = vmatprep.subr.mxu0 0.0
    %5821 = vmatpush1.xpose.msra.mxu0 0.0
    %5822 = vmatprep.subr.mxu0 0.0
    %5823 = vmatpush1.xpose.msra.mxu0 0.0
    %5824 = vmatprep.subr.mxu0 0.0
    %5825 = vmatpush1.xpose.msra.mxu0 0.0
    %5826 = vmatprep.subr.mxu0 0.0
    %5827 = vmatpush1.xpose.msra.mxu0 0.0
    %5828 = vmatprep.subr.mxu0 0.0
    %5829 = vmatpush1.xpose.msra.mxu0 %v5802
    %5830 = vmatprep.subr.mxu0 0.0
    %5831 = vmatpush1.xpose.msra.mxu0 %v5800
    %5832 = vmatprep.subr.mxu0 0.0
    %5833 = vmatpush1.xpose.msra.mxu0 %v5798
    %5834 = vmatprep.subr.mxu0 0.0
    %5835 = vmatpush1.xpose.msra.mxu0 %v5796
    %5836 = vmatprep.subr.mxu0 0.0
    %5837 = vmatpush2.xpose.msra.mxu0 0.0
    %5838 = vmatprep.subr.mxu0 0.0
    %5839 = vmatpush2.xpose.msra.mxu0 0.0
    %5840 = vmatprep.subr.mxu0 0.0
    %5841 = vmatpush2.xpose.msra.mxu0 0.0
    %5842 = vmatprep.subr.mxu0 0.0
    %5843 = vmatpush2.xpose.msra.mxu0 0.0
    %5844 = vmatprep.subr.mxu0 0.0
    %5845 = vmatpush2.xpose.msra.mxu0 0.0
    %5846 = vmatprep.subr.mxu0 0.0
    %5847 = vmatpush2.xpose.msra.mxu0 0.0
    %5848 = vmatprep.subr.mxu0 0.0
    %5849 = vmatpush2.xpose.msra.mxu0 0.0
    %5850 = vmatprep.subr.mxu0 0.0
    %5851 = vmatpush2.xpose.msra.mxu0 0.0
    %5852 = vmatprep.subr.mxu0 0.0
    %5853 = vmatpush2.xpose.msra.mxu0 0.0
    %5854 = vmatprep.subr.mxu0 0.0
    %5855 = vmatpush2.xpose.msra.mxu0 0.0
    %5856 = vmatprep.subr.mxu0 0.0
    %5857 = vmatpush2.xpose.msra.mxu0 0.0
    %5858 = vmatprep.subr.mxu0 0.0
    %5859 = vmatpush2.xpose.msra.mxu0 0.0
    %5860 = vmatprep.subr.mxu0 0.0
    %5861 = vmatpush2.xpose.msra.mxu0 0.0
    %5862 = vmatprep.subr.mxu0 0.0
    %5863 = vmatpush2.xpose.msra.mxu0 0.0
    %5864 = vmatprep.subr.mxu0 0.0
    %5865 = vmatpush2.xpose.msra.mxu0 0.0
    %5866 = vmatprep.subr.mxu0 0.0
    %5867 = vmatpush2.xpose.msra.mxu0 0.0
    %5868 = vmatprep.mubr.f32.mxu0 0.0
    %5869 = vmatmul.mubr.f32.gmra.mxu0 %v5788
    %v5870 = vpop.f32.mrf.mxu0
    %v5871 = vadd.f32 0.0, %v5870
    %v5872 = vpop.f32.mrf.mxu0
    %5873 = vmatprep.mubr.f32.mxu0 0.0
    %5874 = vmatmul.mubr.f32.gmra.mxu0 %v5790
    %v5875 = vpop.f32.mrf.mxu0
    %v5876 = vadd.f32 0.0, %v5875
    %v5877 = vpop.f32.mrf.mxu0
    %5878 = vmatprep.mubr.f32.mxu0 0.0
    %5879 = vmatmul.mubr.f32.gmra.mxu0 %v5792
    %v5880 = vpop.f32.mrf.mxu0
    %v5881 = vadd.f32 0.0, %v5880
    %v5882 = vpop.f32.mrf.mxu0
    %5883 = vmatprep.mubr.f32.mxu0 0.0
    %5884 = vmatmul.mubr.f32.gmra.mxu0 %v5794
    %v5885 = vpop.f32.mrf.mxu0
    %v5886 = vadd.f32 0.0, %v5885
    %v5887 = vpop.f32.mrf.mxu0
    %5888 = vdwg.mxu0
    %5889 = vrot.lane.b32.xlu0 %v4554, 80
    %v5890 = vpop.permute.xlu0 %5889
    %5891 = vrot.lane.b32.xlu0 %v4559, 80
    %v5892 = vpop.permute.xlu0 %5891
    %5893 = vrot.lane.b32.xlu0 %v4564, 80
    %v5894 = vpop.permute.xlu0 %5893
    %5895 = vrot.lane.b32.xlu0 %v4569, 80
    %v5896 = vpop.permute.xlu0 %5895
    %5897 = vrot.lane.b32.xlu0 %v4554, 64
    %v5898 = vpop.permute.xlu0 %5897
    %5899 = vrot.lane.b32.xlu0 %v4559, 64
    %v5900 = vpop.permute.xlu0 %5899
    %5901 = vrot.lane.b32.xlu0 %v4564, 64
    %v5902 = vpop.permute.xlu0 %5901
    %5903 = vrot.lane.b32.xlu0 %v4569, 64
    %v5904 = vpop.permute.xlu0 %5903
    %v5905 = vsel %vm521, %v5890, 0
    %v5907 = vsel %vm521, %v5892, 0
    %v5909 = vsel %vm521, %v5894, 0
    %v5911 = vsel %vm521, %v5896, 0
    %v5913 = vsel %vm521, %v5898, 0
    %v5915 = vsel %vm521, %v5900, 0
    %v5917 = vsel %vm521, %v5902, 0
    %v5919 = vsel %vm521, %v5904, 0
    %5921 = vmatprep.subr.mxu0 0.0
    %5922 = vmatpush1.xpose.msra.mxu0 0.0
    %5923 = vmatprep.subr.mxu0 0.0
    %5924 = vmatpush1.xpose.msra.mxu0 0.0
    %5925 = vmatprep.subr.mxu0 0.0
    %5926 = vmatpush1.xpose.msra.mxu0 0.0
    %5927 = vmatprep.subr.mxu0 0.0
    %5928 = vmatpush1.xpose.msra.mxu0 0.0
    %5929 = vmatprep.subr.mxu0 0.0
    %5930 = vmatpush1.xpose.msra.mxu0 0.0
    %5931 = vmatprep.subr.mxu0 0.0
    %5932 = vmatpush1.xpose.msra.mxu0 0.0
    %5933 = vmatprep.subr.mxu0 0.0
    %5934 = vmatpush1.xpose.msra.mxu0 0.0
    %5935 = vmatprep.subr.mxu0 0.0
    %5936 = vmatpush1.xpose.msra.mxu0 0.0
    %5937 = vmatprep.subr.mxu0 0.0
    %5938 = vmatpush1.xpose.msra.mxu0 0.0
    %5939 = vmatprep.subr.mxu0 0.0
    %5940 = vmatpush1.xpose.msra.mxu0 0.0
    %5941 = vmatprep.subr.mxu0 0.0
    %5942 = vmatpush1.xpose.msra.mxu0 0.0
    %5943 = vmatprep.subr.mxu0 0.0
    %5944 = vmatpush1.xpose.msra.mxu0 0.0
    %5945 = vmatprep.subr.mxu0 0.0
    %5946 = vmatpush1.xpose.msra.mxu0 %v5919
    %5947 = vmatprep.subr.mxu0 0.0
    %5948 = vmatpush1.xpose.msra.mxu0 %v5917
    %5949 = vmatprep.subr.mxu0 0.0
    %5950 = vmatpush1.xpose.msra.mxu0 %v5915
    %5951 = vmatprep.subr.mxu0 0.0
    %5952 = vmatpush1.xpose.msra.mxu0 %v5913
    %5953 = vmatprep.subr.mxu0 0.0
    %5954 = vmatpush2.xpose.msra.mxu0 0.0
    %5955 = vmatprep.subr.mxu0 0.0
    %5956 = vmatpush2.xpose.msra.mxu0 0.0
    %5957 = vmatprep.subr.mxu0 0.0
    %5958 = vmatpush2.xpose.msra.mxu0 0.0
    %5959 = vmatprep.subr.mxu0 0.0
    %5960 = vmatpush2.xpose.msra.mxu0 0.0
    %5961 = vmatprep.subr.mxu0 0.0
    %5962 = vmatpush2.xpose.msra.mxu0 0.0
    %5963 = vmatprep.subr.mxu0 0.0
    %5964 = vmatpush2.xpose.msra.mxu0 0.0
    %5965 = vmatprep.subr.mxu0 0.0
    %5966 = vmatpush2.xpose.msra.mxu0 0.0
    %5967 = vmatprep.subr.mxu0 0.0
    %5968 = vmatpush2.xpose.msra.mxu0 0.0
    %5969 = vmatprep.subr.mxu0 0.0
    %5970 = vmatpush2.xpose.msra.mxu0 0.0
    %5971 = vmatprep.subr.mxu0 0.0
    %5972 = vmatpush2.xpose.msra.mxu0 0.0
    %5973 = vmatprep.subr.mxu0 0.0
    %5974 = vmatpush2.xpose.msra.mxu0 0.0
    %5975 = vmatprep.subr.mxu0 0.0
    %5976 = vmatpush2.xpose.msra.mxu0 0.0
    %5977 = vmatprep.subr.mxu0 0.0
    %5978 = vmatpush2.xpose.msra.mxu0 0.0
    %5979 = vmatprep.subr.mxu0 0.0
    %5980 = vmatpush2.xpose.msra.mxu0 0.0
    %5981 = vmatprep.subr.mxu0 0.0
    %5982 = vmatpush2.xpose.msra.mxu0 0.0
    %5983 = vmatprep.subr.mxu0 0.0
    %5984 = vmatpush2.xpose.msra.mxu0 0.0
    %5985 = vmatprep.mubr.f32.mxu0 0.0
    %5986 = vmatmul.mubr.f32.gmra.mxu0 %v5905
    %v5987 = vpop.f32.mrf.mxu0
    %v5988 = vadd.f32 0.0, %v5987
    %v5989 = vpop.f32.mrf.mxu0
    %5990 = vmatprep.mubr.f32.mxu0 0.0
    %5991 = vmatmul.mubr.f32.gmra.mxu0 %v5907
    %v5992 = vpop.f32.mrf.mxu0
    %v5993 = vadd.f32 0.0, %v5992
    %v5994 = vpop.f32.mrf.mxu0
    %5995 = vmatprep.mubr.f32.mxu0 0.0
    %5996 = vmatmul.mubr.f32.gmra.mxu0 %v5909
    %v5997 = vpop.f32.mrf.mxu0
    %v5998 = vadd.f32 0.0, %v5997
    %v5999 = vpop.f32.mrf.mxu0
    %6000 = vmatprep.mubr.f32.mxu0 0.0
    %6001 = vmatmul.mubr.f32.gmra.mxu0 %v5911
    %v6002 = vpop.f32.mrf.mxu0
    %v6003 = vadd.f32 0.0, %v6002
    %v6004 = vpop.f32.mrf.mxu0
    %6005 = vdwg.mxu0
    %v6006 = vmul.f32 %v5871, 0.35355338
    %v6007 = vmul.f32 %v5876, 0.35355338
    %v6008 = vmul.f32 %v5881, 0.35355338
    %v6009 = vmul.f32 %v5886, 0.35355338
    %v6010 = vmul.f32 %v5988, 0.35355338
    %v6011 = vmul.f32 %v5993, 0.35355338
    %v6012 = vmul.f32 %v5998, 0.35355338
    %v6013 = vmul.f32 %v6003, 0.35355338
    %v6014 = vadd.f32 %v6006, %v29
    %v6015 = vadd.f32 %v6007, %v30
    %v6016 = vadd.f32 %v6008, %v31
    %v6017 = vadd.f32 %v6009, %v32
    %v6018 = vadd.f32 %v6010, %v33
    %v6019 = vadd.f32 %v6011, %v34
    %v6020 = vadd.f32 %v6012, %v35
    %v6021 = vadd.f32 %v6013, %v36
    %v6022 = vsel %vm379, %v6014, -inf
    %6023 = vmax.xlane.f32.xlu0 %v6022
    %v6024 = vpop.xlane.xlu0 %6023
    %v6025 = vsel %vm379, %v6015, -inf
    %6026 = vmax.xlane.f32.xlu0 %v6025
    %v6027 = vpop.xlane.xlu0 %6026
    %v6028 = vsel %vm379, %v6016, -inf
    %6029 = vmax.xlane.f32.xlu0 %v6028
    %v6030 = vpop.xlane.xlu0 %6029
    %v6031 = vsel %vm379, %v6017, -inf
    %6032 = vmax.xlane.f32.xlu0 %v6031
    %v6033 = vpop.xlane.xlu0 %6032
    %v6034 = vsel %vm379, %v6018, -inf
    %6035 = vmax.xlane.f32.xlu0 %v6034
    %v6036 = vpop.xlane.xlu0 %6035
    %v6037 = vsel %vm379, %v6019, -inf
    %6038 = vmax.xlane.f32.xlu0 %v6037
    %v6039 = vpop.xlane.xlu0 %6038
    %v6040 = vsel %vm379, %v6020, -inf
    %6041 = vmax.xlane.f32.xlu0 %v6040
    %v6042 = vpop.xlane.xlu0 %6041
    %v6043 = vsel %vm379, %v6021, -inf
    %6044 = vmax.xlane.f32.xlu0 %v6043
    %v6045 = vpop.xlane.xlu0 %6044
    %v6046 = vsub.f32 %v6014, %v6024
    %v6047 = vsub.f32 %v6015, %v6027
    %v6048 = vsub.f32 %v6016, %v6030
    %v6049 = vsub.f32 %v6017, %v6033
    %v6050 = vsub.f32 %v6018, %v6036
    %v6051 = vsub.f32 %v6019, %v6039
    %v6052 = vsub.f32 %v6020, %v6042
    %v6053 = vsub.f32 %v6021, %v6045
    %v6054 = vmul.f32 %v6046, 1.442695
    %v6055 = vpow.pop %v6054
    %v6056 = vmul.f32 %v6047, 1.442695
    %v6057 = vpow.pop %v6056
    %v6058 = vmul.f32 %v6048, 1.442695
    %v6059 = vpow.pop %v6058
    %v6060 = vmul.f32 %v6049, 1.442695
    %v6061 = vpow.pop %v6060
    %v6062 = vmul.f32 %v6050, 1.442695
    %v6063 = vpow.pop %v6062
    %v6064 = vmul.f32 %v6051, 1.442695
    %v6065 = vpow.pop %v6064
    %v6066 = vmul.f32 %v6052, 1.442695
    %v6067 = vpow.pop %v6066
    %v6068 = vmul.f32 %v6053, 1.442695
    %v6069 = vpow.pop %v6068
    %v6070 = vsel %vm379, %v6055, 0.0
    %6071 = vadd.xlane.f32.xlu0 %v6070
    %v6072 = vpop.xlane.xlu0 %6071
    %v6073 = vsel %vm379, %v6057, 0.0
    %6074 = vadd.xlane.f32.xlu0 %v6073
    %v6075 = vpop.xlane.xlu0 %6074
    %v6076 = vsel %vm379, %v6059, 0.0
    %6077 = vadd.xlane.f32.xlu0 %v6076
    %v6078 = vpop.xlane.xlu0 %6077
    %v6079 = vsel %vm379, %v6061, 0.0
    %6080 = vadd.xlane.f32.xlu0 %v6079
    %v6081 = vpop.xlane.xlu0 %6080
    %v6082 = vsel %vm379, %v6063, 0.0
    %6083 = vadd.xlane.f32.xlu0 %v6082
    %v6084 = vpop.xlane.xlu0 %6083
    %v6085 = vsel %vm379, %v6065, 0.0
    %6086 = vadd.xlane.f32.xlu0 %v6085
    %v6087 = vpop.xlane.xlu0 %6086
    %v6088 = vsel %vm379, %v6067, 0.0
    %6089 = vadd.xlane.f32.xlu0 %v6088
    %v6090 = vpop.xlane.xlu0 %6089
    %v6091 = vsel %vm379, %v6069, 0.0
    %6092 = vadd.xlane.f32.xlu0 %v6091
    %v6093 = vpop.xlane.xlu0 %6092
    %v6094 = vrcp.pop %v6072
    %v6095 = vrcp.pop %v6075
    %v6096 = vrcp.pop %v6078
    %v6097 = vrcp.pop %v6081
    %v6098 = vrcp.pop %v6084
    %v6099 = vrcp.pop %v6087
    %v6100 = vrcp.pop %v6090
    %v6101 = vrcp.pop %v6093
    %v6102 = vmul.f32 %v6072, %v6094
    %v6103 = vmul.f32 %v6075, %v6095
    %v6104 = vmul.f32 %v6078, %v6096
    %v6105 = vmul.f32 %v6081, %v6097
    %v6106 = vmul.f32 %v6084, %v6098
    %v6107 = vmul.f32 %v6087, %v6099
    %v6108 = vmul.f32 %v6090, %v6100
    %v6109 = vmul.f32 %v6093, %v6101
    %v6110 = vsub.f32 2.0, %v6102
    %v6111 = vsub.f32 2.0, %v6103
    %v6112 = vsub.f32 2.0, %v6104
    %v6113 = vsub.f32 2.0, %v6105
    %v6114 = vsub.f32 2.0, %v6106
    %v6115 = vsub.f32 2.0, %v6107
    %v6116 = vsub.f32 2.0, %v6108
    %v6117 = vsub.f32 2.0, %v6109
    %v6118 = vmul.f32 %v6094, %v6110
    %v6119 = vmul.f32 %v6095, %v6111
    %v6120 = vmul.f32 %v6096, %v6112
    %v6121 = vmul.f32 %v6097, %v6113
    %v6122 = vmul.f32 %v6098, %v6114
    %v6123 = vmul.f32 %v6099, %v6115
    %v6124 = vmul.f32 %v6100, %v6116
    %v6125 = vmul.f32 %v6101, %v6117
    %v6126 = vmul.f32 %v6072, %v6118
    %v6127 = vmul.f32 %v6075, %v6119
    %v6128 = vmul.f32 %v6078, %v6120
    %v6129 = vmul.f32 %v6081, %v6121
    %v6130 = vmul.f32 %v6084, %v6122
    %v6131 = vmul.f32 %v6087, %v6123
    %v6132 = vmul.f32 %v6090, %v6124
    %v6133 = vmul.f32 %v6093, %v6125
    %v6134 = vsub.f32 2.0, %v6126
    %v6135 = vsub.f32 2.0, %v6127
    %v6136 = vsub.f32 2.0, %v6128
    %v6137 = vsub.f32 2.0, %v6129
    %v6138 = vsub.f32 2.0, %v6130
    %v6139 = vsub.f32 2.0, %v6131
    %v6140 = vsub.f32 2.0, %v6132
    %v6141 = vsub.f32 2.0, %v6133
    %v6142 = vmul.f32 %v6118, %v6134
    %v6143 = vmul.f32 %v6119, %v6135
    %v6144 = vmul.f32 %v6120, %v6136
    %v6145 = vmul.f32 %v6121, %v6137
    %v6146 = vmul.f32 %v6122, %v6138
    %v6147 = vmul.f32 %v6123, %v6139
    %v6148 = vmul.f32 %v6124, %v6140
    %v6149 = vmul.f32 %v6125, %v6141
    %v6150 = vmul.f32 %v6055, %v6142
    %v6151 = vmul.f32 %v6057, %v6143
    %v6152 = vmul.f32 %v6059, %v6144
    %v6153 = vmul.f32 %v6061, %v6145
    %v6154 = vmul.f32 %v6063, %v6146
    %v6155 = vmul.f32 %v6065, %v6147
    %v6156 = vmul.f32 %v6067, %v6148
    %v6157 = vmul.f32 %v6069, %v6149
    %6158 = vrot.lane.b32.xlu0 %v4534, 48
    %v6159 = vpop.permute.xlu0 %6158
    %6160 = vrot.lane.b32.xlu0 %v4539, 48
    %v6161 = vpop.permute.xlu0 %6160
    %6162 = vrot.lane.b32.xlu0 %v4544, 48
    %v6163 = vpop.permute.xlu0 %6162
    %6164 = vrot.lane.b32.xlu0 %v4549, 48
    %v6165 = vpop.permute.xlu0 %6164
    %v6171 = vsel %vm379, %v6150, 0
    %v6174 = vsel %vm379, %v6151, 0
    %v6177 = vsel %vm379, %v6152, 0
    %v6180 = vsel %vm379, %v6153, 0
    %6182 = vmatprep.subr.mxu0 0.0
    %6183 = vmatpush1.msra.mxu0 0.0
    %6184 = vmatprep.subr.mxu0 0.0
    %6185 = vmatpush1.msra.mxu0 0.0
    %6186 = vmatprep.subr.mxu0 0.0
    %6187 = vmatpush1.msra.mxu0 0.0
    %6188 = vmatprep.subr.mxu0 0.0
    %6189 = vmatpush1.msra.mxu0 0.0
    %6190 = vmatprep.subr.mxu0 0.0
    %6191 = vmatpush1.msra.mxu0 0.0
    %6192 = vmatprep.subr.mxu0 0.0
    %6193 = vmatpush1.msra.mxu0 0.0
    %6194 = vmatprep.subr.mxu0 0.0
    %6195 = vmatpush1.msra.mxu0 0.0
    %6196 = vmatprep.subr.mxu0 0.0
    %6197 = vmatpush1.msra.mxu0 0.0
    %6198 = vmatprep.subr.mxu0 0.0
    %6199 = vmatpush1.msra.mxu0 0.0
    %6200 = vmatprep.subr.mxu0 0.0
    %6201 = vmatpush1.msra.mxu0 0.0
    %6202 = vmatprep.subr.mxu0 0.0
    %6203 = vmatpush1.msra.mxu0 0.0
    %6204 = vmatprep.subr.mxu0 0.0
    %6205 = vmatpush1.msra.mxu0 0.0
    %6206 = vmatprep.subr.mxu0 0.0
    %6207 = vmatpush1.msra.mxu0 %v6165
    %6208 = vmatprep.subr.mxu0 0.0
    %6209 = vmatpush1.msra.mxu0 %v6163
    %6210 = vmatprep.subr.mxu0 0.0
    %6211 = vmatpush1.msra.mxu0 %v6161
    %6212 = vmatprep.subr.mxu0 0.0
    %6213 = vmatpush1.msra.mxu0 %v6159
    %6214 = vmatprep.subr.mxu0 0.0
    %6215 = vmatpush2.msra.mxu0 0.0
    %6216 = vmatprep.subr.mxu0 0.0
    %6217 = vmatpush2.msra.mxu0 0.0
    %6218 = vmatprep.subr.mxu0 0.0
    %6219 = vmatpush2.msra.mxu0 0.0
    %6220 = vmatprep.subr.mxu0 0.0
    %6221 = vmatpush2.msra.mxu0 0.0
    %6222 = vmatprep.subr.mxu0 0.0
    %6223 = vmatpush2.msra.mxu0 0.0
    %6224 = vmatprep.subr.mxu0 0.0
    %6225 = vmatpush2.msra.mxu0 0.0
    %6226 = vmatprep.subr.mxu0 0.0
    %6227 = vmatpush2.msra.mxu0 0.0
    %6228 = vmatprep.subr.mxu0 0.0
    %6229 = vmatpush2.msra.mxu0 0.0
    %6230 = vmatprep.subr.mxu0 0.0
    %6231 = vmatpush2.msra.mxu0 0.0
    %6232 = vmatprep.subr.mxu0 0.0
    %6233 = vmatpush2.msra.mxu0 0.0
    %6234 = vmatprep.subr.mxu0 0.0
    %6235 = vmatpush2.msra.mxu0 0.0
    %6236 = vmatprep.subr.mxu0 0.0
    %6237 = vmatpush2.msra.mxu0 0.0
    %6238 = vmatprep.subr.mxu0 0.0
    %6239 = vmatpush2.msra.mxu0 0.0
    %6240 = vmatprep.subr.mxu0 0.0
    %6241 = vmatpush2.msra.mxu0 0.0
    %6242 = vmatprep.subr.mxu0 0.0
    %6243 = vmatpush2.msra.mxu0 0.0
    %6244 = vmatprep.subr.mxu0 0.0
    %6245 = vmatpush2.msra.mxu0 0.0
    %6246 = vmatprep.mubr.f32.mxu0 0.0
    %6247 = vmatmul.mubr.f32.gmra.mxu0 %v6171
    %v6248 = vpop.f32.mrf.mxu0
    %v6249 = vadd.f32 0.0, %v6248
    %v6250 = vpop.f32.mrf.mxu0
    %6251 = vmatprep.mubr.f32.mxu0 0.0
    %6252 = vmatmul.mubr.f32.gmra.mxu0 %v6174
    %v6253 = vpop.f32.mrf.mxu0
    %v6254 = vadd.f32 0.0, %v6253
    %v6255 = vpop.f32.mrf.mxu0
    %6256 = vmatprep.mubr.f32.mxu0 0.0
    %6257 = vmatmul.mubr.f32.gmra.mxu0 %v6177
    %v6258 = vpop.f32.mrf.mxu0
    %v6259 = vadd.f32 0.0, %v6258
    %v6260 = vpop.f32.mrf.mxu0
    %6261 = vmatprep.mubr.f32.mxu0 0.0
    %6262 = vmatmul.mubr.f32.gmra.mxu0 %v6180
    %v6263 = vpop.f32.mrf.mxu0
    %v6264 = vadd.f32 0.0, %v6263
    %v6265 = vpop.f32.mrf.mxu0
    %6266 = vdwg.mxu0
    %6267 = vrot.lane.b32.xlu0 %v4554, 48
    %v6268 = vpop.permute.xlu0 %6267
    %6269 = vrot.lane.b32.xlu0 %v4559, 48
    %v6270 = vpop.permute.xlu0 %6269
    %6271 = vrot.lane.b32.xlu0 %v4564, 48
    %v6272 = vpop.permute.xlu0 %6271
    %6273 = vrot.lane.b32.xlu0 %v4569, 48
    %v6274 = vpop.permute.xlu0 %6273
    %v6280 = vsel %vm379, %v6154, 0
    %v6283 = vsel %vm379, %v6155, 0
    %v6286 = vsel %vm379, %v6156, 0
    %v6289 = vsel %vm379, %v6157, 0
    %6291 = vmatprep.subr.mxu0 0.0
    %6292 = vmatpush1.msra.mxu0 0.0
    %6293 = vmatprep.subr.mxu0 0.0
    %6294 = vmatpush1.msra.mxu0 0.0
    %6295 = vmatprep.subr.mxu0 0.0
    %6296 = vmatpush1.msra.mxu0 0.0
    %6297 = vmatprep.subr.mxu0 0.0
    %6298 = vmatpush1.msra.mxu0 0.0
    %6299 = vmatprep.subr.mxu0 0.0
    %6300 = vmatpush1.msra.mxu0 0.0
    %6301 = vmatprep.subr.mxu0 0.0
    %6302 = vmatpush1.msra.mxu0 0.0
    %6303 = vmatprep.subr.mxu0 0.0
    %6304 = vmatpush1.msra.mxu0 0.0
    %6305 = vmatprep.subr.mxu0 0.0
    %6306 = vmatpush1.msra.mxu0 0.0
    %6307 = vmatprep.subr.mxu0 0.0
    %6308 = vmatpush1.msra.mxu0 0.0
    %6309 = vmatprep.subr.mxu0 0.0
    %6310 = vmatpush1.msra.mxu0 0.0
    %6311 = vmatprep.subr.mxu0 0.0
    %6312 = vmatpush1.msra.mxu0 0.0
    %6313 = vmatprep.subr.mxu0 0.0
    %6314 = vmatpush1.msra.mxu0 0.0
    %6315 = vmatprep.subr.mxu0 0.0
    %6316 = vmatpush1.msra.mxu0 %v6274
    %6317 = vmatprep.subr.mxu0 0.0
    %6318 = vmatpush1.msra.mxu0 %v6272
    %6319 = vmatprep.subr.mxu0 0.0
    %6320 = vmatpush1.msra.mxu0 %v6270
    %6321 = vmatprep.subr.mxu0 0.0
    %6322 = vmatpush1.msra.mxu0 %v6268
    %6323 = vmatprep.subr.mxu0 0.0
    %6324 = vmatpush2.msra.mxu0 0.0
    %6325 = vmatprep.subr.mxu0 0.0
    %6326 = vmatpush2.msra.mxu0 0.0
    %6327 = vmatprep.subr.mxu0 0.0
    %6328 = vmatpush2.msra.mxu0 0.0
    %6329 = vmatprep.subr.mxu0 0.0
    %6330 = vmatpush2.msra.mxu0 0.0
    %6331 = vmatprep.subr.mxu0 0.0
    %6332 = vmatpush2.msra.mxu0 0.0
    %6333 = vmatprep.subr.mxu0 0.0
    %6334 = vmatpush2.msra.mxu0 0.0
    %6335 = vmatprep.subr.mxu0 0.0
    %6336 = vmatpush2.msra.mxu0 0.0
    %6337 = vmatprep.subr.mxu0 0.0
    %6338 = vmatpush2.msra.mxu0 0.0
    %6339 = vmatprep.subr.mxu0 0.0
    %6340 = vmatpush2.msra.mxu0 0.0
    %6341 = vmatprep.subr.mxu0 0.0
    %6342 = vmatpush2.msra.mxu0 0.0
    %6343 = vmatprep.subr.mxu0 0.0
    %6344 = vmatpush2.msra.mxu0 0.0
    %6345 = vmatprep.subr.mxu0 0.0
    %6346 = vmatpush2.msra.mxu0 0.0
    %6347 = vmatprep.subr.mxu0 0.0
    %6348 = vmatpush2.msra.mxu0 0.0
    %6349 = vmatprep.subr.mxu0 0.0
    %6350 = vmatpush2.msra.mxu0 0.0
    %6351 = vmatprep.subr.mxu0 0.0
    %6352 = vmatpush2.msra.mxu0 0.0
    %6353 = vmatprep.subr.mxu0 0.0
    %6354 = vmatpush2.msra.mxu0 0.0
    %6355 = vmatprep.mubr.f32.mxu0 0.0
    %6356 = vmatmul.mubr.f32.gmra.mxu0 %v6280
    %v6357 = vpop.f32.mrf.mxu0
    %v6358 = vadd.f32 0.0, %v6357
    %v6359 = vpop.f32.mrf.mxu0
    %6360 = vmatprep.mubr.f32.mxu0 0.0
    %6361 = vmatmul.mubr.f32.gmra.mxu0 %v6283
    %v6362 = vpop.f32.mrf.mxu0
    %v6363 = vadd.f32 0.0, %v6362
    %v6364 = vpop.f32.mrf.mxu0
    %6365 = vmatprep.mubr.f32.mxu0 0.0
    %6366 = vmatmul.mubr.f32.gmra.mxu0 %v6286
    %v6367 = vpop.f32.mrf.mxu0
    %v6368 = vadd.f32 0.0, %v6367
    %v6369 = vpop.f32.mrf.mxu0
    %6370 = vmatprep.mubr.f32.mxu0 0.0
    %6371 = vmatmul.mubr.f32.gmra.mxu0 %v6289
    %v6372 = vpop.f32.mrf.mxu0
    %v6373 = vadd.f32 0.0, %v6372
    %v6374 = vpop.f32.mrf.mxu0
    %6375 = vdwg.mxu0
    %6376 = vrot.lane.b32.xlu0 %v4534, 72
    %v6377 = vpop.permute.xlu0 %6376
    %6378 = vrot.lane.b32.xlu0 %v4539, 72
    %v6379 = vpop.permute.xlu0 %6378
    %6380 = vrot.lane.b32.xlu0 %v4544, 72
    %v6381 = vpop.permute.xlu0 %6380
    %6382 = vrot.lane.b32.xlu0 %v4549, 72
    %v6383 = vpop.permute.xlu0 %6382
    %6384 = vrot.lane.b32.xlu0 %v4534, 56
    %v6385 = vpop.permute.xlu0 %6384
    %6386 = vrot.lane.b32.xlu0 %v4539, 56
    %v6387 = vpop.permute.xlu0 %6386
    %6388 = vrot.lane.b32.xlu0 %v4544, 56
    %v6389 = vpop.permute.xlu0 %6388
    %6390 = vrot.lane.b32.xlu0 %v4549, 56
    %v6391 = vpop.permute.xlu0 %6390
    %v6392 = vsel %vm521, %v6377, 0
    %v6394 = vsel %vm521, %v6379, 0
    %v6396 = vsel %vm521, %v6381, 0
    %v6398 = vsel %vm521, %v6383, 0
    %v6400 = vsel %vm521, %v6385, 0
    %v6402 = vsel %vm521, %v6387, 0
    %v6404 = vsel %vm521, %v6389, 0
    %v6406 = vsel %vm521, %v6391, 0
    %6408 = vmatprep.subr.mxu0 0.0
    %6409 = vmatpush1.xpose.msra.mxu0 0.0
    %6410 = vmatprep.subr.mxu0 0.0
    %6411 = vmatpush1.xpose.msra.mxu0 0.0
    %6412 = vmatprep.subr.mxu0 0.0
    %6413 = vmatpush1.xpose.msra.mxu0 0.0
    %6414 = vmatprep.subr.mxu0 0.0
    %6415 = vmatpush1.xpose.msra.mxu0 0.0
    %6416 = vmatprep.subr.mxu0 0.0
    %6417 = vmatpush1.xpose.msra.mxu0 0.0
    %6418 = vmatprep.subr.mxu0 0.0
    %6419 = vmatpush1.xpose.msra.mxu0 0.0
    %6420 = vmatprep.subr.mxu0 0.0
    %6421 = vmatpush1.xpose.msra.mxu0 0.0
    %6422 = vmatprep.subr.mxu0 0.0
    %6423 = vmatpush1.xpose.msra.mxu0 0.0
    %6424 = vmatprep.subr.mxu0 0.0
    %6425 = vmatpush1.xpose.msra.mxu0 0.0
    %6426 = vmatprep.subr.mxu0 0.0
    %6427 = vmatpush1.xpose.msra.mxu0 0.0
    %6428 = vmatprep.subr.mxu0 0.0
    %6429 = vmatpush1.xpose.msra.mxu0 0.0
    %6430 = vmatprep.subr.mxu0 0.0
    %6431 = vmatpush1.xpose.msra.mxu0 0.0
    %6432 = vmatprep.subr.mxu0 0.0
    %6433 = vmatpush1.xpose.msra.mxu0 %v6406
    %6434 = vmatprep.subr.mxu0 0.0
    %6435 = vmatpush1.xpose.msra.mxu0 %v6404
    %6436 = vmatprep.subr.mxu0 0.0
    %6437 = vmatpush1.xpose.msra.mxu0 %v6402
    %6438 = vmatprep.subr.mxu0 0.0
    %6439 = vmatpush1.xpose.msra.mxu0 %v6400
    %6440 = vmatprep.subr.mxu0 0.0
    %6441 = vmatpush2.xpose.msra.mxu0 0.0
    %6442 = vmatprep.subr.mxu0 0.0
    %6443 = vmatpush2.xpose.msra.mxu0 0.0
    %6444 = vmatprep.subr.mxu0 0.0
    %6445 = vmatpush2.xpose.msra.mxu0 0.0
    %6446 = vmatprep.subr.mxu0 0.0
    %6447 = vmatpush2.xpose.msra.mxu0 0.0
    %6448 = vmatprep.subr.mxu0 0.0
    %6449 = vmatpush2.xpose.msra.mxu0 0.0
    %6450 = vmatprep.subr.mxu0 0.0
    %6451 = vmatpush2.xpose.msra.mxu0 0.0
    %6452 = vmatprep.subr.mxu0 0.0
    %6453 = vmatpush2.xpose.msra.mxu0 0.0
    %6454 = vmatprep.subr.mxu0 0.0
    %6455 = vmatpush2.xpose.msra.mxu0 0.0
    %6456 = vmatprep.subr.mxu0 0.0
    %6457 = vmatpush2.xpose.msra.mxu0 0.0
    %6458 = vmatprep.subr.mxu0 0.0
    %6459 = vmatpush2.xpose.msra.mxu0 0.0
    %6460 = vmatprep.subr.mxu0 0.0
    %6461 = vmatpush2.xpose.msra.mxu0 0.0
    %6462 = vmatprep.subr.mxu0 0.0
    %6463 = vmatpush2.xpose.msra.mxu0 0.0
    %6464 = vmatprep.subr.mxu0 0.0
    %6465 = vmatpush2.xpose.msra.mxu0 0.0
    %6466 = vmatprep.subr.mxu0 0.0
    %6467 = vmatpush2.xpose.msra.mxu0 0.0
    %6468 = vmatprep.subr.mxu0 0.0
    %6469 = vmatpush2.xpose.msra.mxu0 0.0
    %6470 = vmatprep.subr.mxu0 0.0
    %6471 = vmatpush2.xpose.msra.mxu0 0.0
    %6472 = vmatprep.mubr.f32.mxu0 0.0
    %6473 = vmatmul.mubr.f32.gmra.mxu0 %v6392
    %v6474 = vpop.f32.mrf.mxu0
    %v6475 = vadd.f32 0.0, %v6474
    %v6476 = vpop.f32.mrf.mxu0
    %6477 = vmatprep.mubr.f32.mxu0 0.0
    %6478 = vmatmul.mubr.f32.gmra.mxu0 %v6394
    %v6479 = vpop.f32.mrf.mxu0
    %v6480 = vadd.f32 0.0, %v6479
    %v6481 = vpop.f32.mrf.mxu0
    %6482 = vmatprep.mubr.f32.mxu0 0.0
    %6483 = vmatmul.mubr.f32.gmra.mxu0 %v6396
    %v6484 = vpop.f32.mrf.mxu0
    %v6485 = vadd.f32 0.0, %v6484
    %v6486 = vpop.f32.mrf.mxu0
    %6487 = vmatprep.mubr.f32.mxu0 0.0
    %6488 = vmatmul.mubr.f32.gmra.mxu0 %v6398
    %v6489 = vpop.f32.mrf.mxu0
    %v6490 = vadd.f32 0.0, %v6489
    %v6491 = vpop.f32.mrf.mxu0
    %6492 = vdwg.mxu0
    %6493 = vrot.lane.b32.xlu0 %v4554, 72
    %v6494 = vpop.permute.xlu0 %6493
    %6495 = vrot.lane.b32.xlu0 %v4559, 72
    %v6496 = vpop.permute.xlu0 %6495
    %6497 = vrot.lane.b32.xlu0 %v4564, 72
    %v6498 = vpop.permute.xlu0 %6497
    %6499 = vrot.lane.b32.xlu0 %v4569, 72
    %v6500 = vpop.permute.xlu0 %6499
    %6501 = vrot.lane.b32.xlu0 %v4554, 56
    %v6502 = vpop.permute.xlu0 %6501
    %6503 = vrot.lane.b32.xlu0 %v4559, 56
    %v6504 = vpop.permute.xlu0 %6503
    %6505 = vrot.lane.b32.xlu0 %v4564, 56
    %v6506 = vpop.permute.xlu0 %6505
    %6507 = vrot.lane.b32.xlu0 %v4569, 56
    %v6508 = vpop.permute.xlu0 %6507
    %v6509 = vsel %vm521, %v6494, 0
    %v6511 = vsel %vm521, %v6496, 0
    %v6513 = vsel %vm521, %v6498, 0
    %v6515 = vsel %vm521, %v6500, 0
    %v6517 = vsel %vm521, %v6502, 0
    %v6519 = vsel %vm521, %v6504, 0
    %v6521 = vsel %vm521, %v6506, 0
    %v6523 = vsel %vm521, %v6508, 0
    %6525 = vmatprep.subr.mxu0 0.0
    %6526 = vmatpush1.xpose.msra.mxu0 0.0
    %6527 = vmatprep.subr.mxu0 0.0
    %6528 = vmatpush1.xpose.msra.mxu0 0.0
    %6529 = vmatprep.subr.mxu0 0.0
    %6530 = vmatpush1.xpose.msra.mxu0 0.0
    %6531 = vmatprep.subr.mxu0 0.0
    %6532 = vmatpush1.xpose.msra.mxu0 0.0
    %6533 = vmatprep.subr.mxu0 0.0
    %6534 = vmatpush1.xpose.msra.mxu0 0.0
    %6535 = vmatprep.subr.mxu0 0.0
    %6536 = vmatpush1.xpose.msra.mxu0 0.0
    %6537 = vmatprep.subr.mxu0 0.0
    %6538 = vmatpush1.xpose.msra.mxu0 0.0
    %6539 = vmatprep.subr.mxu0 0.0
    %6540 = vmatpush1.xpose.msra.mxu0 0.0
    %6541 = vmatprep.subr.mxu0 0.0
    %6542 = vmatpush1.xpose.msra.mxu0 0.0
    %6543 = vmatprep.subr.mxu0 0.0
    %6544 = vmatpush1.xpose.msra.mxu0 0.0
    %6545 = vmatprep.subr.mxu0 0.0
    %6546 = vmatpush1.xpose.msra.mxu0 0.0
    %6547 = vmatprep.subr.mxu0 0.0
    %6548 = vmatpush1.xpose.msra.mxu0 0.0
    %6549 = vmatprep.subr.mxu0 0.0
    %6550 = vmatpush1.xpose.msra.mxu0 %v6523
    %6551 = vmatprep.subr.mxu0 0.0
    %6552 = vmatpush1.xpose.msra.mxu0 %v6521
    %6553 = vmatprep.subr.mxu0 0.0
    %6554 = vmatpush1.xpose.msra.mxu0 %v6519
    %6555 = vmatprep.subr.mxu0 0.0
    %6556 = vmatpush1.xpose.msra.mxu0 %v6517
    %6557 = vmatprep.subr.mxu0 0.0
    %6558 = vmatpush2.xpose.msra.mxu0 0.0
    %6559 = vmatprep.subr.mxu0 0.0
    %6560 = vmatpush2.xpose.msra.mxu0 0.0
    %6561 = vmatprep.subr.mxu0 0.0
    %6562 = vmatpush2.xpose.msra.mxu0 0.0
    %6563 = vmatprep.subr.mxu0 0.0
    %6564 = vmatpush2.xpose.msra.mxu0 0.0
    %6565 = vmatprep.subr.mxu0 0.0
    %6566 = vmatpush2.xpose.msra.mxu0 0.0
    %6567 = vmatprep.subr.mxu0 0.0
    %6568 = vmatpush2.xpose.msra.mxu0 0.0
    %6569 = vmatprep.subr.mxu0 0.0
    %6570 = vmatpush2.xpose.msra.mxu0 0.0
    %6571 = vmatprep.subr.mxu0 0.0
    %6572 = vmatpush2.xpose.msra.mxu0 0.0
    %6573 = vmatprep.subr.mxu0 0.0
    %6574 = vmatpush2.xpose.msra.mxu0 0.0
    %6575 = vmatprep.subr.mxu0 0.0
    %6576 = vmatpush2.xpose.msra.mxu0 0.0
    %6577 = vmatprep.subr.mxu0 0.0
    %6578 = vmatpush2.xpose.msra.mxu0 0.0
    %6579 = vmatprep.subr.mxu0 0.0
    %6580 = vmatpush2.xpose.msra.mxu0 0.0
    %6581 = vmatprep.subr.mxu0 0.0
    %6582 = vmatpush2.xpose.msra.mxu0 0.0
    %6583 = vmatprep.subr.mxu0 0.0
    %6584 = vmatpush2.xpose.msra.mxu0 0.0
    %6585 = vmatprep.subr.mxu0 0.0
    %6586 = vmatpush2.xpose.msra.mxu0 0.0
    %6587 = vmatprep.subr.mxu0 0.0
    %6588 = vmatpush2.xpose.msra.mxu0 0.0
    %6589 = vmatprep.mubr.f32.mxu0 0.0
    %6590 = vmatmul.mubr.f32.gmra.mxu0 %v6509
    %v6591 = vpop.f32.mrf.mxu0
    %v6592 = vadd.f32 0.0, %v6591
    %v6593 = vpop.f32.mrf.mxu0
    %6594 = vmatprep.mubr.f32.mxu0 0.0
    %6595 = vmatmul.mubr.f32.gmra.mxu0 %v6511
    %v6596 = vpop.f32.mrf.mxu0
    %v6597 = vadd.f32 0.0, %v6596
    %v6598 = vpop.f32.mrf.mxu0
    %6599 = vmatprep.mubr.f32.mxu0 0.0
    %6600 = vmatmul.mubr.f32.gmra.mxu0 %v6513
    %v6601 = vpop.f32.mrf.mxu0
    %v6602 = vadd.f32 0.0, %v6601
    %v6603 = vpop.f32.mrf.mxu0
    %6604 = vmatprep.mubr.f32.mxu0 0.0
    %6605 = vmatmul.mubr.f32.gmra.mxu0 %v6515
    %v6606 = vpop.f32.mrf.mxu0
    %v6607 = vadd.f32 0.0, %v6606
    %v6608 = vpop.f32.mrf.mxu0
    %6609 = vdwg.mxu0
    %v6610 = vmul.f32 %v6475, 0.35355338
    %v6611 = vmul.f32 %v6480, 0.35355338
    %v6612 = vmul.f32 %v6485, 0.35355338
    %v6613 = vmul.f32 %v6490, 0.35355338
    %v6614 = vmul.f32 %v6592, 0.35355338
    %v6615 = vmul.f32 %v6597, 0.35355338
    %v6616 = vmul.f32 %v6602, 0.35355338
    %v6617 = vmul.f32 %v6607, 0.35355338
    %v6618 = vadd.f32 %v6610, %v29
    %v6619 = vadd.f32 %v6611, %v30
    %v6620 = vadd.f32 %v6612, %v31
    %v6621 = vadd.f32 %v6613, %v32
    %v6622 = vadd.f32 %v6614, %v33
    %v6623 = vadd.f32 %v6615, %v34
    %v6624 = vadd.f32 %v6616, %v35
    %v6625 = vadd.f32 %v6617, %v36
    %v6626 = vsel %vm379, %v6618, -inf
    %6627 = vmax.xlane.f32.xlu0 %v6626
    %v6628 = vpop.xlane.xlu0 %6627
    %v6629 = vsel %vm379, %v6619, -inf
    %6630 = vmax.xlane.f32.xlu0 %v6629
    %v6631 = vpop.xlane.xlu0 %6630
    %v6632 = vsel %vm379, %v6620, -inf
    %6633 = vmax.xlane.f32.xlu0 %v6632
    %v6634 = vpop.xlane.xlu0 %6633
    %v6635 = vsel %vm379, %v6621, -inf
    %6636 = vmax.xlane.f32.xlu0 %v6635
    %v6637 = vpop.xlane.xlu0 %6636
    %v6638 = vsel %vm379, %v6622, -inf
    %6639 = vmax.xlane.f32.xlu0 %v6638
    %v6640 = vpop.xlane.xlu0 %6639
    %v6641 = vsel %vm379, %v6623, -inf
    %6642 = vmax.xlane.f32.xlu0 %v6641
    %v6643 = vpop.xlane.xlu0 %6642
    %v6644 = vsel %vm379, %v6624, -inf
    %6645 = vmax.xlane.f32.xlu0 %v6644
    %v6646 = vpop.xlane.xlu0 %6645
    %v6647 = vsel %vm379, %v6625, -inf
    %6648 = vmax.xlane.f32.xlu0 %v6647
    %v6649 = vpop.xlane.xlu0 %6648
    %v6650 = vsub.f32 %v6618, %v6628
    %v6651 = vsub.f32 %v6619, %v6631
    %v6652 = vsub.f32 %v6620, %v6634
    %v6653 = vsub.f32 %v6621, %v6637
    %v6654 = vsub.f32 %v6622, %v6640
    %v6655 = vsub.f32 %v6623, %v6643
    %v6656 = vsub.f32 %v6624, %v6646
    %v6657 = vsub.f32 %v6625, %v6649
    %v6658 = vmul.f32 %v6650, 1.442695
    %v6659 = vpow.pop %v6658
    %v6660 = vmul.f32 %v6651, 1.442695
    %v6661 = vpow.pop %v6660
    %v6662 = vmul.f32 %v6652, 1.442695
    %v6663 = vpow.pop %v6662
    %v6664 = vmul.f32 %v6653, 1.442695
    %v6665 = vpow.pop %v6664
    %v6666 = vmul.f32 %v6654, 1.442695
    %v6667 = vpow.pop %v6666
    %v6668 = vmul.f32 %v6655, 1.442695
    %v6669 = vpow.pop %v6668
    %v6670 = vmul.f32 %v6656, 1.442695
    %v6671 = vpow.pop %v6670
    %v6672 = vmul.f32 %v6657, 1.442695
    %v6673 = vpow.pop %v6672
    %v6674 = vsel %vm379, %v6659, 0.0
    %6675 = vadd.xlane.f32.xlu0 %v6674
    %v6676 = vpop.xlane.xlu0 %6675
    %v6677 = vsel %vm379, %v6661, 0.0
    %6678 = vadd.xlane.f32.xlu0 %v6677
    %v6679 = vpop.xlane.xlu0 %6678
    %v6680 = vsel %vm379, %v6663, 0.0
    %6681 = vadd.xlane.f32.xlu0 %v6680
    %v6682 = vpop.xlane.xlu0 %6681
    %v6683 = vsel %vm379, %v6665, 0.0
    %6684 = vadd.xlane.f32.xlu0 %v6683
    %v6685 = vpop.xlane.xlu0 %6684
    %v6686 = vsel %vm379, %v6667, 0.0
    %6687 = vadd.xlane.f32.xlu0 %v6686
    %v6688 = vpop.xlane.xlu0 %6687
    %v6689 = vsel %vm379, %v6669, 0.0
    %6690 = vadd.xlane.f32.xlu0 %v6689
    %v6691 = vpop.xlane.xlu0 %6690
    %v6692 = vsel %vm379, %v6671, 0.0
    %6693 = vadd.xlane.f32.xlu0 %v6692
    %v6694 = vpop.xlane.xlu0 %6693
    %v6695 = vsel %vm379, %v6673, 0.0
    %6696 = vadd.xlane.f32.xlu0 %v6695
    %v6697 = vpop.xlane.xlu0 %6696
    %v6698 = vrcp.pop %v6676
    %v6699 = vrcp.pop %v6679
    %v6700 = vrcp.pop %v6682
    %v6701 = vrcp.pop %v6685
    %v6702 = vrcp.pop %v6688
    %v6703 = vrcp.pop %v6691
    %v6704 = vrcp.pop %v6694
    %v6705 = vrcp.pop %v6697
    %v6706 = vmul.f32 %v6676, %v6698
    %v6707 = vmul.f32 %v6679, %v6699
    %v6708 = vmul.f32 %v6682, %v6700
    %v6709 = vmul.f32 %v6685, %v6701
    %v6710 = vmul.f32 %v6688, %v6702
    %v6711 = vmul.f32 %v6691, %v6703
    %v6712 = vmul.f32 %v6694, %v6704
    %v6713 = vmul.f32 %v6697, %v6705
    %v6714 = vsub.f32 2.0, %v6706
    %v6715 = vsub.f32 2.0, %v6707
    %v6716 = vsub.f32 2.0, %v6708
    %v6717 = vsub.f32 2.0, %v6709
    %v6718 = vsub.f32 2.0, %v6710
    %v6719 = vsub.f32 2.0, %v6711
    %v6720 = vsub.f32 2.0, %v6712
    %v6721 = vsub.f32 2.0, %v6713
    %v6722 = vmul.f32 %v6698, %v6714
    %v6723 = vmul.f32 %v6699, %v6715
    %v6724 = vmul.f32 %v6700, %v6716
    %v6725 = vmul.f32 %v6701, %v6717
    %v6726 = vmul.f32 %v6702, %v6718
    %v6727 = vmul.f32 %v6703, %v6719
    %v6728 = vmul.f32 %v6704, %v6720
    %v6729 = vmul.f32 %v6705, %v6721
    %v6730 = vmul.f32 %v6676, %v6722
    %v6731 = vmul.f32 %v6679, %v6723
    %v6732 = vmul.f32 %v6682, %v6724
    %v6733 = vmul.f32 %v6685, %v6725
    %v6734 = vmul.f32 %v6688, %v6726
    %v6735 = vmul.f32 %v6691, %v6727
    %v6736 = vmul.f32 %v6694, %v6728
    %v6737 = vmul.f32 %v6697, %v6729
    %v6738 = vsub.f32 2.0, %v6730
    %v6739 = vsub.f32 2.0, %v6731
    %v6740 = vsub.f32 2.0, %v6732
    %v6741 = vsub.f32 2.0, %v6733
    %v6742 = vsub.f32 2.0, %v6734
    %v6743 = vsub.f32 2.0, %v6735
    %v6744 = vsub.f32 2.0, %v6736
    %v6745 = vsub.f32 2.0, %v6737
    %v6746 = vmul.f32 %v6722, %v6738
    %v6747 = vmul.f32 %v6723, %v6739
    %v6748 = vmul.f32 %v6724, %v6740
    %v6749 = vmul.f32 %v6725, %v6741
    %v6750 = vmul.f32 %v6726, %v6742
    %v6751 = vmul.f32 %v6727, %v6743
    %v6752 = vmul.f32 %v6728, %v6744
    %v6753 = vmul.f32 %v6729, %v6745
    %v6754 = vmul.f32 %v6659, %v6746
    %v6755 = vmul.f32 %v6661, %v6747
    %v6756 = vmul.f32 %v6663, %v6748
    %v6757 = vmul.f32 %v6665, %v6749
    %v6758 = vmul.f32 %v6667, %v6750
    %v6759 = vmul.f32 %v6669, %v6751
    %v6760 = vmul.f32 %v6671, %v6752
    %v6761 = vmul.f32 %v6673, %v6753
    %6762 = vrot.lane.b32.xlu0 %v4534, 40
    %v6763 = vpop.permute.xlu0 %6762
    %6764 = vrot.lane.b32.xlu0 %v4539, 40
    %v6765 = vpop.permute.xlu0 %6764
    %6766 = vrot.lane.b32.xlu0 %v4544, 40
    %v6767 = vpop.permute.xlu0 %6766
    %6768 = vrot.lane.b32.xlu0 %v4549, 40
    %v6769 = vpop.permute.xlu0 %6768
    %v6775 = vsel %vm379, %v6754, 0
    %v6778 = vsel %vm379, %v6755, 0
    %v6781 = vsel %vm379, %v6756, 0
    %v6784 = vsel %vm379, %v6757, 0
    %6786 = vmatprep.subr.mxu0 0.0
    %6787 = vmatpush1.msra.mxu0 0.0
    %6788 = vmatprep.subr.mxu0 0.0
    %6789 = vmatpush1.msra.mxu0 0.0
    %6790 = vmatprep.subr.mxu0 0.0
    %6791 = vmatpush1.msra.mxu0 0.0
    %6792 = vmatprep.subr.mxu0 0.0
    %6793 = vmatpush1.msra.mxu0 0.0
    %6794 = vmatprep.subr.mxu0 0.0
    %6795 = vmatpush1.msra.mxu0 0.0
    %6796 = vmatprep.subr.mxu0 0.0
    %6797 = vmatpush1.msra.mxu0 0.0
    %6798 = vmatprep.subr.mxu0 0.0
    %6799 = vmatpush1.msra.mxu0 0.0
    %6800 = vmatprep.subr.mxu0 0.0
    %6801 = vmatpush1.msra.mxu0 0.0
    %6802 = vmatprep.subr.mxu0 0.0
    %6803 = vmatpush1.msra.mxu0 0.0
    %6804 = vmatprep.subr.mxu0 0.0
    %6805 = vmatpush1.msra.mxu0 0.0
    %6806 = vmatprep.subr.mxu0 0.0
    %6807 = vmatpush1.msra.mxu0 0.0
    %6808 = vmatprep.subr.mxu0 0.0
    %6809 = vmatpush1.msra.mxu0 0.0
    %6810 = vmatprep.subr.mxu0 0.0
    %6811 = vmatpush1.msra.mxu0 %v6769
    %6812 = vmatprep.subr.mxu0 0.0
    %6813 = vmatpush1.msra.mxu0 %v6767
    %6814 = vmatprep.subr.mxu0 0.0
    %6815 = vmatpush1.msra.mxu0 %v6765
    %6816 = vmatprep.subr.mxu0 0.0
    %6817 = vmatpush1.msra.mxu0 %v6763
    %6818 = vmatprep.subr.mxu0 0.0
    %6819 = vmatpush2.msra.mxu0 0.0
    %6820 = vmatprep.subr.mxu0 0.0
    %6821 = vmatpush2.msra.mxu0 0.0
    %6822 = vmatprep.subr.mxu0 0.0
    %6823 = vmatpush2.msra.mxu0 0.0
    %6824 = vmatprep.subr.mxu0 0.0
    %6825 = vmatpush2.msra.mxu0 0.0
    %6826 = vmatprep.subr.mxu0 0.0
    %6827 = vmatpush2.msra.mxu0 0.0
    %6828 = vmatprep.subr.mxu0 0.0
    %6829 = vmatpush2.msra.mxu0 0.0
    %6830 = vmatprep.subr.mxu0 0.0
    %6831 = vmatpush2.msra.mxu0 0.0
    %6832 = vmatprep.subr.mxu0 0.0
    %6833 = vmatpush2.msra.mxu0 0.0
    %6834 = vmatprep.subr.mxu0 0.0
    %6835 = vmatpush2.msra.mxu0 0.0
    %6836 = vmatprep.subr.mxu0 0.0
    %6837 = vmatpush2.msra.mxu0 0.0
    %6838 = vmatprep.subr.mxu0 0.0
    %6839 = vmatpush2.msra.mxu0 0.0
    %6840 = vmatprep.subr.mxu0 0.0
    %6841 = vmatpush2.msra.mxu0 0.0
    %6842 = vmatprep.subr.mxu0 0.0
    %6843 = vmatpush2.msra.mxu0 0.0
    %6844 = vmatprep.subr.mxu0 0.0
    %6845 = vmatpush2.msra.mxu0 0.0
    %6846 = vmatprep.subr.mxu0 0.0
    %6847 = vmatpush2.msra.mxu0 0.0
    %6848 = vmatprep.subr.mxu0 0.0
    %6849 = vmatpush2.msra.mxu0 0.0
    %6850 = vmatprep.mubr.f32.mxu0 0.0
    %6851 = vmatmul.mubr.f32.gmra.mxu0 %v6775
    %v6852 = vpop.f32.mrf.mxu0
    %v6853 = vadd.f32 0.0, %v6852
    %v6854 = vpop.f32.mrf.mxu0
    %6855 = vmatprep.mubr.f32.mxu0 0.0
    %6856 = vmatmul.mubr.f32.gmra.mxu0 %v6778
    %v6857 = vpop.f32.mrf.mxu0
    %v6858 = vadd.f32 0.0, %v6857
    %v6859 = vpop.f32.mrf.mxu0
    %6860 = vmatprep.mubr.f32.mxu0 0.0
    %6861 = vmatmul.mubr.f32.gmra.mxu0 %v6781
    %v6862 = vpop.f32.mrf.mxu0
    %v6863 = vadd.f32 0.0, %v6862
    %v6864 = vpop.f32.mrf.mxu0
    %6865 = vmatprep.mubr.f32.mxu0 0.0
    %6866 = vmatmul.mubr.f32.gmra.mxu0 %v6784
    %v6867 = vpop.f32.mrf.mxu0
    %v6868 = vadd.f32 0.0, %v6867
    %v6869 = vpop.f32.mrf.mxu0
    %6870 = vdwg.mxu0
    %6871 = vrot.lane.b32.xlu0 %v4554, 40
    %v6872 = vpop.permute.xlu0 %6871
    %6873 = vrot.lane.b32.xlu0 %v4559, 40
    %v6874 = vpop.permute.xlu0 %6873
    %6875 = vrot.lane.b32.xlu0 %v4564, 40
    %v6876 = vpop.permute.xlu0 %6875
    %6877 = vrot.lane.b32.xlu0 %v4569, 40
    %v6878 = vpop.permute.xlu0 %6877
    %v6884 = vsel %vm379, %v6758, 0
    %v6887 = vsel %vm379, %v6759, 0
    %v6890 = vsel %vm379, %v6760, 0
    %v6893 = vsel %vm379, %v6761, 0
    %6895 = vmatprep.subr.mxu0 0.0
    %6896 = vmatpush1.msra.mxu0 0.0
    %6897 = vmatprep.subr.mxu0 0.0
    %6898 = vmatpush1.msra.mxu0 0.0
    %6899 = vmatprep.subr.mxu0 0.0
    %6900 = vmatpush1.msra.mxu0 0.0
    %6901 = vmatprep.subr.mxu0 0.0
    %6902 = vmatpush1.msra.mxu0 0.0
    %6903 = vmatprep.subr.mxu0 0.0
    %6904 = vmatpush1.msra.mxu0 0.0
    %6905 = vmatprep.subr.mxu0 0.0
    %6906 = vmatpush1.msra.mxu0 0.0
    %6907 = vmatprep.subr.mxu0 0.0
    %6908 = vmatpush1.msra.mxu0 0.0
    %6909 = vmatprep.subr.mxu0 0.0
    %6910 = vmatpush1.msra.mxu0 0.0
    %6911 = vmatprep.subr.mxu0 0.0
    %6912 = vmatpush1.msra.mxu0 0.0
    %6913 = vmatprep.subr.mxu0 0.0
    %6914 = vmatpush1.msra.mxu0 0.0
    %6915 = vmatprep.subr.mxu0 0.0
    %6916 = vmatpush1.msra.mxu0 0.0
    %6917 = vmatprep.subr.mxu0 0.0
    %6918 = vmatpush1.msra.mxu0 0.0
    %6919 = vmatprep.subr.mxu0 0.0
    %6920 = vmatpush1.msra.mxu0 %v6878
    %6921 = vmatprep.subr.mxu0 0.0
    %6922 = vmatpush1.msra.mxu0 %v6876
    %6923 = vmatprep.subr.mxu0 0.0
    %6924 = vmatpush1.msra.mxu0 %v6874
    %6925 = vmatprep.subr.mxu0 0.0
    %6926 = vmatpush1.msra.mxu0 %v6872
    %6927 = vmatprep.subr.mxu0 0.0
    %6928 = vmatpush2.msra.mxu0 0.0
    %6929 = vmatprep.subr.mxu0 0.0
    %6930 = vmatpush2.msra.mxu0 0.0
    %6931 = vmatprep.subr.mxu0 0.0
    %6932 = vmatpush2.msra.mxu0 0.0
    %6933 = vmatprep.subr.mxu0 0.0
    %6934 = vmatpush2.msra.mxu0 0.0
    %6935 = vmatprep.subr.mxu0 0.0
    %6936 = vmatpush2.msra.mxu0 0.0
    %6937 = vmatprep.subr.mxu0 0.0
    %6938 = vmatpush2.msra.mxu0 0.0
    %6939 = vmatprep.subr.mxu0 0.0
    %6940 = vmatpush2.msra.mxu0 0.0
    %6941 = vmatprep.subr.mxu0 0.0
    %6942 = vmatpush2.msra.mxu0 0.0
    %6943 = vmatprep.subr.mxu0 0.0
    %6944 = vmatpush2.msra.mxu0 0.0
    %6945 = vmatprep.subr.mxu0 0.0
    %6946 = vmatpush2.msra.mxu0 0.0
    %6947 = vmatprep.subr.mxu0 0.0
    %6948 = vmatpush2.msra.mxu0 0.0
    %6949 = vmatprep.subr.mxu0 0.0
    %6950 = vmatpush2.msra.mxu0 0.0
    %6951 = vmatprep.subr.mxu0 0.0
    %6952 = vmatpush2.msra.mxu0 0.0
    %6953 = vmatprep.subr.mxu0 0.0
    %6954 = vmatpush2.msra.mxu0 0.0
    %6955 = vmatprep.subr.mxu0 0.0
    %6956 = vmatpush2.msra.mxu0 0.0
    %6957 = vmatprep.subr.mxu0 0.0
    %6958 = vmatpush2.msra.mxu0 0.0
    %6959 = vmatprep.mubr.f32.mxu0 0.0
    %6960 = vmatmul.mubr.f32.gmra.mxu0 %v6884
    %v6961 = vpop.f32.mrf.mxu0
    %v6962 = vadd.f32 0.0, %v6961
    %v6963 = vpop.f32.mrf.mxu0
    %6964 = vmatprep.mubr.f32.mxu0 0.0
    %6965 = vmatmul.mubr.f32.gmra.mxu0 %v6887
    %v6966 = vpop.f32.mrf.mxu0
    %v6967 = vadd.f32 0.0, %v6966
    %v6968 = vpop.f32.mrf.mxu0
    %6969 = vmatprep.mubr.f32.mxu0 0.0
    %6970 = vmatmul.mubr.f32.gmra.mxu0 %v6890
    %v6971 = vpop.f32.mrf.mxu0
    %v6972 = vadd.f32 0.0, %v6971
    %v6973 = vpop.f32.mrf.mxu0
    %6974 = vmatprep.mubr.f32.mxu0 0.0
    %6975 = vmatmul.mubr.f32.gmra.mxu0 %v6893
    %v6976 = vpop.f32.mrf.mxu0
    %v6977 = vadd.f32 0.0, %v6976
    %v6978 = vpop.f32.mrf.mxu0
    %6979 = vdwg.mxu0
    %6988 = vrot.lane.b32.xlu0 %v5645, 8
    %v6989 = vpop.permute.xlu0 %6988
    %6990 = vrot.lane.b32.xlu0 %v5650, 8
    %v6991 = vpop.permute.xlu0 %6990
    %6992 = vrot.lane.b32.xlu0 %v5655, 8
    %v6993 = vpop.permute.xlu0 %6992
    %6994 = vrot.lane.b32.xlu0 %v5660, 8
    %v6995 = vpop.permute.xlu0 %6994
    %6996 = vrot.lane.b32.xlu0 %v5754, 8
    %v6997 = vpop.permute.xlu0 %6996
    %6998 = vrot.lane.b32.xlu0 %v5759, 8
    %v6999 = vpop.permute.xlu0 %6998
    %7000 = vrot.lane.b32.xlu0 %v5764, 8
    %v7001 = vpop.permute.xlu0 %7000
    %7002 = vrot.lane.b32.xlu0 %v5769, 8
    %v7003 = vpop.permute.xlu0 %7002
    %7020 = vrot.lane.b32.xlu0 %v6249, 16
    %v7021 = vpop.permute.xlu0 %7020
    %7022 = vrot.lane.b32.xlu0 %v6254, 16
    %v7023 = vpop.permute.xlu0 %7022
    %7024 = vrot.lane.b32.xlu0 %v6259, 16
    %v7025 = vpop.permute.xlu0 %7024
    %7026 = vrot.lane.b32.xlu0 %v6264, 16
    %v7027 = vpop.permute.xlu0 %7026
    %7028 = vrot.lane.b32.xlu0 %v6358, 16
    %v7029 = vpop.permute.xlu0 %7028
    %7030 = vrot.lane.b32.xlu0 %v6363, 16
    %v7031 = vpop.permute.xlu0 %7030
    %7032 = vrot.lane.b32.xlu0 %v6368, 16
    %v7033 = vpop.permute.xlu0 %7032
    %7034 = vrot.lane.b32.xlu0 %v6373, 16
    %v7035 = vpop.permute.xlu0 %7034
    %7052 = vrot.lane.b32.xlu0 %v6853, 24
    %v7053 = vpop.permute.xlu0 %7052
    %7054 = vrot.lane.b32.xlu0 %v6858, 24
    %v7055 = vpop.permute.xlu0 %7054
    %7056 = vrot.lane.b32.xlu0 %v6863, 24
    %v7057 = vpop.permute.xlu0 %7056
    %7058 = vrot.lane.b32.xlu0 %v6868, 24
    %v7059 = vpop.permute.xlu0 %7058
    %7060 = vrot.lane.b32.xlu0 %v6962, 24
    %v7061 = vpop.permute.xlu0 %7060
    %7062 = vrot.lane.b32.xlu0 %v6967, 24
    %v7063 = vpop.permute.xlu0 %7062
    %7064 = vrot.lane.b32.xlu0 %v6972, 24
    %v7065 = vpop.permute.xlu0 %7064
    %7066 = vrot.lane.b32.xlu0 %v6977, 24
    %v7067 = vpop.permute.xlu0 %7066
    %v7076 = vsel %vm521, %v5041, %v6989
    %v7077 = vsel %vm521, %v5046, %v6991
    %v7078 = vsel %vm521, %v5051, %v6993
    %v7079 = vsel %vm521, %v5056, %v6995
    %v7080 = vsel %vm521, %v5150, %v6997
    %v7081 = vsel %vm521, %v5155, %v6999
    %v7082 = vsel %vm521, %v5160, %v7001
    %v7083 = vsel %vm521, %v5165, %v7003
    %v7084 = vsel %vm49, %v7076, %v7021
    %v7085 = vsel %vm49, %v7077, %v7023
    %v7086 = vsel %vm49, %v7078, %v7025
    %v7087 = vsel %vm49, %v7079, %v7027
    %v7088 = vsel %vm49, %v7080, %v7029
    %v7089 = vsel %vm49, %v7081, %v7031
    %v7090 = vsel %vm49, %v7082, %v7033
    %v7091 = vsel %vm49, %v7083, %v7035
    %v7092 = vsel %vm3030, %v7084, %v7053
    %v7093 = vsel %vm3030, %v7085, %v7055
    %v7094 = vsel %vm3030, %v7086, %v7057
    %v7095 = vsel %vm3030, %v7087, %v7059
    %v7096 = vsel %vm3030, %v7088, %v7061
    %v7097 = vsel %vm3030, %v7089, %v7063
    %v7098 = vsel %vm3030, %v7090, %v7065
    %v7099 = vsel %vm3030, %v7091, %v7067
    %v7100 = vld [vmem:[%s4 + $0xd] sm:$0x1]
    %v7101 = vlaneseq
    %v7102 = vshrl.u32 %v7101, 7
    %v7103 = vsub.s32 0, %v7102
    %v7104 = vrot.slane %v7100, %v7103
    %v7106 = vsel %vm379, %v7092, 0
    %v7109 = vsel %vm379, %v7093, 0
    %v7112 = vsel %vm379, %v7094, 0
    %v7115 = vsel %vm379, %v7095, 0
    %v7118 = vsel %vm379, %v7096, 0
    %v7121 = vsel %vm379, %v7097, 0
    %v7124 = vsel %vm379, %v7098, 0
    %v7127 = vsel %vm379, %v7099, 0
    %7129 = vmatprep.subr.mxu0 0.0
    %7130 = vmatpush1.msra.mxu0 0.0
    %7131 = vmatprep.subr.mxu0 0.0
    %7132 = vmatpush1.msra.mxu0 0.0
    %7133 = vmatprep.subr.mxu0 0.0
    %7134 = vmatpush1.msra.mxu0 0.0
    %7135 = vmatprep.subr.mxu0 0.0
    %7136 = vmatpush1.msra.mxu0 0.0
    %7137 = vmatprep.subr.mxu0 0.0
    %7138 = vmatpush1.msra.mxu0 0.0
    %7139 = vmatprep.subr.mxu0 0.0
    %7140 = vmatpush1.msra.mxu0 0.0
    %7141 = vmatprep.subr.mxu0 0.0
    %7142 = vmatpush1.msra.mxu0 0.0
    %7143 = vmatprep.subr.mxu0 0.0
    %7144 = vmatpush1.msra.mxu0 0.0
    %7145 = vmatprep.subr.mxu0 0.0
    %7146 = vmatpush1.msra.mxu0 0.0
    %7147 = vmatprep.subr.mxu0 0.0
    %7148 = vmatpush1.msra.mxu0 0.0
    %7149 = vmatprep.subr.mxu0 0.0
    %7150 = vmatpush1.msra.mxu0 0.0
    %7151 = vmatprep.subr.mxu0 0.0
    %7152 = vmatpush1.msra.mxu0 0.0
    %7153 = vmatprep.subr.mxu0 0.0
    %7154 = vmatpush1.msra.mxu0 %v4113
    %7155 = vmatprep.subr.mxu0 0.0
    %7156 = vmatpush1.msra.mxu0 %v4110
    %7157 = vmatprep.subr.mxu0 0.0
    %7158 = vmatpush1.msra.mxu0 %v4107
    %7159 = vmatprep.subr.mxu0 0.0
    %7160 = vmatpush1.msra.mxu0 %v4104
    %7161 = vmatprep.subr.mxu0 0.0
    %7162 = vmatpush2.msra.mxu0 0.0
    %7163 = vmatprep.subr.mxu0 0.0
    %7164 = vmatpush2.msra.mxu0 0.0
    %7165 = vmatprep.subr.mxu0 0.0
    %7166 = vmatpush2.msra.mxu0 0.0
    %7167 = vmatprep.subr.mxu0 0.0
    %7168 = vmatpush2.msra.mxu0 0.0
    %7169 = vmatprep.subr.mxu0 0.0
    %7170 = vmatpush2.msra.mxu0 0.0
    %7171 = vmatprep.subr.mxu0 0.0
    %7172 = vmatpush2.msra.mxu0 0.0
    %7173 = vmatprep.subr.mxu0 0.0
    %7174 = vmatpush2.msra.mxu0 0.0
    %7175 = vmatprep.subr.mxu0 0.0
    %7176 = vmatpush2.msra.mxu0 0.0
    %7177 = vmatprep.subr.mxu0 0.0
    %7178 = vmatpush2.msra.mxu0 0.0
    %7179 = vmatprep.subr.mxu0 0.0
    %7180 = vmatpush2.msra.mxu0 0.0
    %7181 = vmatprep.subr.mxu0 0.0
    %7182 = vmatpush2.msra.mxu0 0.0
    %7183 = vmatprep.subr.mxu0 0.0
    %7184 = vmatpush2.msra.mxu0 0.0
    %7185 = vmatprep.subr.mxu0 0.0
    %7186 = vmatpush2.msra.mxu0 0.0
    %7187 = vmatprep.subr.mxu0 0.0
    %7188 = vmatpush2.msra.mxu0 0.0
    %7189 = vmatprep.subr.mxu0 0.0
    %7190 = vmatpush2.msra.mxu0 0.0
    %7191 = vmatprep.subr.mxu0 0.0
    %7192 = vmatpush2.msra.mxu0 0.0
    %7193 = vmatprep.mubr.f32.mxu0 0.0
    %7194 = vmatmul.mubr.f32.gmra.mxu0 %v7106
    %v7195 = vpop.f32.mrf.mxu0
    %v7196 = vadd.f32 %v7104, %v7195
    %v7197 = vpop.f32.mrf.mxu0
    %7198 = vmatprep.mubr.f32.mxu0 0.0
    %7199 = vmatmul.mubr.f32.gmra.mxu0 %v7109
    %v7200 = vpop.f32.mrf.mxu0
    %v7201 = vadd.f32 %v7104, %v7200
    %v7202 = vpop.f32.mrf.mxu0
    %7203 = vmatprep.mubr.f32.mxu0 0.0
    %7204 = vmatmul.mubr.f32.gmra.mxu0 %v7112
    %v7205 = vpop.f32.mrf.mxu0
    %v7206 = vadd.f32 %v7104, %v7205
    %v7207 = vpop.f32.mrf.mxu0
    %7208 = vmatprep.mubr.f32.mxu0 0.0
    %7209 = vmatmul.mubr.f32.gmra.mxu0 %v7115
    %v7210 = vpop.f32.mrf.mxu0
    %v7211 = vadd.f32 %v7104, %v7210
    %v7212 = vpop.f32.mrf.mxu0
    %7213 = vmatprep.mubr.f32.mxu0 0.0
    %7214 = vmatmul.mubr.f32.gmra.mxu0 %v7118
    %v7215 = vpop.f32.mrf.mxu0
    %v7216 = vadd.f32 %v7104, %v7215
    %v7217 = vpop.f32.mrf.mxu0
    %7218 = vmatprep.mubr.f32.mxu0 0.0
    %7219 = vmatmul.mubr.f32.gmra.mxu0 %v7121
    %v7220 = vpop.f32.mrf.mxu0
    %v7221 = vadd.f32 %v7104, %v7220
    %v7222 = vpop.f32.mrf.mxu0
    %7223 = vmatprep.mubr.f32.mxu0 0.0
    %7224 = vmatmul.mubr.f32.gmra.mxu0 %v7124
    %v7225 = vpop.f32.mrf.mxu0
    %v7226 = vadd.f32 %v7104, %v7225
    %v7227 = vpop.f32.mrf.mxu0
    %7228 = vmatprep.mubr.f32.mxu0 0.0
    %7229 = vmatmul.mubr.f32.gmra.mxu0 %v7127
    %v7230 = vpop.f32.mrf.mxu0
    %v7231 = vadd.f32 %v7104, %v7230
    %v7232 = vpop.f32.mrf.mxu0
    %7233 = vdwg.mxu0
    %v7234 = vadd.f32 %v4093, %v7196
    %v7235 = vadd.f32 %v4094, %v7201
    %v7236 = vadd.f32 %v4095, %v7206
    %v7237 = vadd.f32 %v4096, %v7211
    %v7238 = vadd.f32 %v4097, %v7216
    %v7239 = vadd.f32 %v4098, %v7221
    %v7240 = vadd.f32 %v4099, %v7226
    %v7241 = vadd.f32 %v4100, %v7231
    %7250 = vrot.lane.b32.xlu0 %v7196, 112
    %v7251 = vpop.permute.xlu0 %7250
    %7252 = vrot.lane.b32.xlu0 %v7201, 112
    %v7253 = vpop.permute.xlu0 %7252
    %7254 = vrot.lane.b32.xlu0 %v7206, 112
    %v7255 = vpop.permute.xlu0 %7254
    %7256 = vrot.lane.b32.xlu0 %v7211, 112
    %v7257 = vpop.permute.xlu0 %7256
    %7258 = vrot.lane.b32.xlu0 %v7216, 112
    %v7259 = vpop.permute.xlu0 %7258
    %7260 = vrot.lane.b32.xlu0 %v7221, 112
    %v7261 = vpop.permute.xlu0 %7260
    %7262 = vrot.lane.b32.xlu0 %v7226, 112
    %v7263 = vpop.permute.xlu0 %7262
    %7264 = vrot.lane.b32.xlu0 %v7231, 112
    %v7265 = vpop.permute.xlu0 %7264
    %v7274 = vadd.f32 %v4093, %v7251
    %v7275 = vadd.f32 %v4094, %v7253
    %v7276 = vadd.f32 %v4095, %v7255
    %v7277 = vadd.f32 %v4096, %v7257
    %v7278 = vadd.f32 %v4097, %v7259
    %v7279 = vadd.f32 %v4098, %v7261
    %v7280 = vadd.f32 %v4099, %v7263
    %v7281 = vadd.f32 %v4100, %v7265
    %v7282 = vld [vmem:[%s4 + $0x14] sm:$0x1]
    %v7283 = vld [vmem:[%s4 + $0x15] sm:$0x1]
    %v7284 = vsel %vm49, %v7234, 0.0
    %7285 = vadd.xlane.f32.xlu0 %v7284
    %v7286 = vpop.xlane.xlu0 %7285
    %v7287 = vsel %vm49, %v7235, 0.0
    %7288 = vadd.xlane.f32.xlu0 %v7287
    %v7289 = vpop.xlane.xlu0 %7288
    %v7290 = vsel %vm49, %v7236, 0.0
    %7291 = vadd.xlane.f32.xlu0 %v7290
    %v7292 = vpop.xlane.xlu0 %7291
    %v7293 = vsel %vm49, %v7237, 0.0
    %7294 = vadd.xlane.f32.xlu0 %v7293
    %v7295 = vpop.xlane.xlu0 %7294
    %v7296 = vsel %vm49, %v7238, 0.0
    %7297 = vadd.xlane.f32.xlu0 %v7296
    %v7298 = vpop.xlane.xlu0 %7297
    %v7299 = vsel %vm49, %v7239, 0.0
    %7300 = vadd.xlane.f32.xlu0 %v7299
    %v7301 = vpop.xlane.xlu0 %7300
    %v7302 = vsel %vm49, %v7240, 0.0
    %7303 = vadd.xlane.f32.xlu0 %v7302
    %v7304 = vpop.xlane.xlu0 %7303
    %v7305 = vsel %vm49, %v7241, 0.0
    %7306 = vadd.xlane.f32.xlu0 %v7305
    %v7307 = vpop.xlane.xlu0 %7306
    %v7308 = vmul.f32 %v7234, %v7234
    %v7309 = vmul.f32 %v7235, %v7235
    %v7310 = vmul.f32 %v7236, %v7236
    %v7311 = vmul.f32 %v7237, %v7237
    %v7312 = vmul.f32 %v7238, %v7238
    %v7313 = vmul.f32 %v7239, %v7239
    %v7314 = vmul.f32 %v7240, %v7240
    %v7315 = vmul.f32 %v7241, %v7241
    %v7316 = vsel %vm49, %v7308, 0.0
    %7317 = vadd.xlane.f32.xlu0 %v7316
    %v7318 = vpop.xlane.xlu0 %7317
    %v7319 = vsel %vm49, %v7309, 0.0
    %7320 = vadd.xlane.f32.xlu0 %v7319
    %v7321 = vpop.xlane.xlu0 %7320
    %v7322 = vsel %vm49, %v7310, 0.0
    %7323 = vadd.xlane.f32.xlu0 %v7322
    %v7324 = vpop.xlane.xlu0 %7323
    %v7325 = vsel %vm49, %v7311, 0.0
    %7326 = vadd.xlane.f32.xlu0 %v7325
    %v7327 = vpop.xlane.xlu0 %7326
    %v7328 = vsel %vm49, %v7312, 0.0
    %7329 = vadd.xlane.f32.xlu0 %v7328
    %v7330 = vpop.xlane.xlu0 %7329
    %v7331 = vsel %vm49, %v7313, 0.0
    %7332 = vadd.xlane.f32.xlu0 %v7331
    %v7333 = vpop.xlane.xlu0 %7332
    %v7334 = vsel %vm49, %v7314, 0.0
    %7335 = vadd.xlane.f32.xlu0 %v7334
    %v7336 = vpop.xlane.xlu0 %7335
    %v7337 = vsel %vm49, %v7315, 0.0
    %7338 = vadd.xlane.f32.xlu0 %v7337
    %v7339 = vpop.xlane.xlu0 %7338
    %v7340 = vmul.f32 %v7286, 0.0625
    %v7341 = vmul.f32 %v7289, 0.0625
    %v7342 = vmul.f32 %v7292, 0.0625
    %v7343 = vmul.f32 %v7295, 0.0625
    %v7344 = vmul.f32 %v7298, 0.0625
    %v7345 = vmul.f32 %v7301, 0.0625
    %v7346 = vmul.f32 %v7304, 0.0625
    %v7347 = vmul.f32 %v7307, 0.0625
    %v7348 = vmul.f32 %v7286, %v7340
    %v7349 = vmul.f32 %v7289, %v7341
    %v7350 = vmul.f32 %v7292, %v7342
    %v7351 = vmul.f32 %v7295, %v7343
    %v7352 = vmul.f32 %v7298, %v7344
    %v7353 = vmul.f32 %v7301, %v7345
    %v7354 = vmul.f32 %v7304, %v7346
    %v7355 = vmul.f32 %v7307, %v7347
    %v7356 = vsub.f32 %v7318, %v7348
    %v7357 = vsub.f32 %v7321, %v7349
    %v7358 = vsub.f32 %v7324, %v7350
    %v7359 = vsub.f32 %v7327, %v7351
    %v7360 = vsub.f32 %v7330, %v7352
    %v7361 = vsub.f32 %v7333, %v7353
    %v7362 = vsub.f32 %v7336, %v7354
    %v7363 = vsub.f32 %v7339, %v7355
    %v7364 = vmax.f32 %v7356, 0.0
    %v7365 = vmax.f32 %v7357, 0.0
    %v7366 = vmax.f32 %v7358, 0.0
    %v7367 = vmax.f32 %v7359, 0.0
    %v7368 = vmax.f32 %v7360, 0.0
    %v7369 = vmax.f32 %v7361, 0.0
    %v7370 = vmax.f32 %v7362, 0.0
    %v7371 = vmax.f32 %v7363, 0.0
    %v7372 = vmul.f32 %v7364, 0.06666667
    %v7373 = vmul.f32 %v7365, 0.06666667
    %v7374 = vmul.f32 %v7366, 0.06666667
    %v7375 = vmul.f32 %v7367, 0.06666667
    %v7376 = vmul.f32 %v7368, 0.06666667
    %v7377 = vmul.f32 %v7369, 0.06666667
    %v7378 = vmul.f32 %v7370, 0.06666667
    %v7379 = vmul.f32 %v7371, 0.06666667
    %v7380 = vrsqrt.pop %v7372
    %v7381 = vmul.f32 %v7372, %v7380
    %vm7382 = vcmp.eq.f32.partialorder %v7372, inf
    %v7383 = vsel %vm7382, %v7372, %v7381
    %vm7384 = vcmp.eq.f32.partialorder %v7372, 0.0
    %v7385 = vand.u32 %v7372, 2147483648
    %v7386 = vsel %vm7384, %v7385, %v7383
    %v7387 = vrsqrt.pop %v7373
    %v7388 = vmul.f32 %v7373, %v7387
    %vm7389 = vcmp.eq.f32.partialorder %v7373, inf
    %v7390 = vsel %vm7389, %v7373, %v7388
    %vm7391 = vcmp.eq.f32.partialorder %v7373, 0.0
    %v7392 = vand.u32 %v7373, 2147483648
    %v7393 = vsel %vm7391, %v7392, %v7390
    %v7394 = vrsqrt.pop %v7374
    %v7395 = vmul.f32 %v7374, %v7394
    %vm7396 = vcmp.eq.f32.partialorder %v7374, inf
    %v7397 = vsel %vm7396, %v7374, %v7395
    %vm7398 = vcmp.eq.f32.partialorder %v7374, 0.0
    %v7399 = vand.u32 %v7374, 2147483648
    %v7400 = vsel %vm7398, %v7399, %v7397
    %v7401 = vrsqrt.pop %v7375
    %v7402 = vmul.f32 %v7375, %v7401
    %vm7403 = vcmp.eq.f32.partialorder %v7375, inf
    %v7404 = vsel %vm7403, %v7375, %v7402
    %vm7405 = vcmp.eq.f32.partialorder %v7375, 0.0
    %v7406 = vand.u32 %v7375, 2147483648
    %v7407 = vsel %vm7405, %v7406, %v7404
    %v7408 = vrsqrt.pop %v7376
    %v7409 = vmul.f32 %v7376, %v7408
    %vm7410 = vcmp.eq.f32.partialorder %v7376, inf
    %v7411 = vsel %vm7410, %v7376, %v7409
    %vm7412 = vcmp.eq.f32.partialorder %v7376, 0.0
    %v7413 = vand.u32 %v7376, 2147483648
    %v7414 = vsel %vm7412, %v7413, %v7411
    %v7415 = vrsqrt.pop %v7377
    %v7416 = vmul.f32 %v7377, %v7415
    %vm7417 = vcmp.eq.f32.partialorder %v7377, inf
    %v7418 = vsel %vm7417, %v7377, %v7416
    %vm7419 = vcmp.eq.f32.partialorder %v7377, 0.0
    %v7420 = vand.u32 %v7377, 2147483648
    %v7421 = vsel %vm7419, %v7420, %v7418
    %v7422 = vrsqrt.pop %v7378
    %v7423 = vmul.f32 %v7378, %v7422
    %vm7424 = vcmp.eq.f32.partialorder %v7378, inf
    %v7425 = vsel %vm7424, %v7378, %v7423
    %vm7426 = vcmp.eq.f32.partialorder %v7378, 0.0
    %v7427 = vand.u32 %v7378, 2147483648
    %v7428 = vsel %vm7426, %v7427, %v7425
    %v7429 = vrsqrt.pop %v7379
    %v7430 = vmul.f32 %v7379, %v7429
    %vm7431 = vcmp.eq.f32.partialorder %v7379, inf
    %v7432 = vsel %vm7431, %v7379, %v7430
    %vm7433 = vcmp.eq.f32.partialorder %v7379, 0.0
    %v7434 = vand.u32 %v7379, 2147483648
    %v7435 = vsel %vm7433, %v7434, %v7432
    %v7436 = vadd.f32 %v7386, 1e-06
    %v7437 = vadd.f32 %v7393, 1e-06
    %v7438 = vadd.f32 %v7400, 1e-06
    %v7439 = vadd.f32 %v7407, 1e-06
    %v7440 = vadd.f32 %v7414, 1e-06
    %v7441 = vadd.f32 %v7421, 1e-06
    %v7442 = vadd.f32 %v7428, 1e-06
    %v7443 = vadd.f32 %v7435, 1e-06
    %v7444 = vrcp.pop %v7436
    %v7445 = vrcp.pop %v7437
    %v7446 = vrcp.pop %v7438
    %v7447 = vrcp.pop %v7439
    %v7448 = vrcp.pop %v7440
    %v7449 = vrcp.pop %v7441
    %v7450 = vrcp.pop %v7442
    %v7451 = vrcp.pop %v7443
    %v7452 = vmul.f32 %v7436, %v7444
    %v7453 = vmul.f32 %v7437, %v7445
    %v7454 = vmul.f32 %v7438, %v7446
    %v7455 = vmul.f32 %v7439, %v7447
    %v7456 = vmul.f32 %v7440, %v7448
    %v7457 = vmul.f32 %v7441, %v7449
    %v7458 = vmul.f32 %v7442, %v7450
    %v7459 = vmul.f32 %v7443, %v7451
    %v7460 = vsub.f32 2.0, %v7452
    %v7461 = vsub.f32 2.0, %v7453
    %v7462 = vsub.f32 2.0, %v7454
    %v7463 = vsub.f32 2.0, %v7455
    %v7464 = vsub.f32 2.0, %v7456
    %v7465 = vsub.f32 2.0, %v7457
    %v7466 = vsub.f32 2.0, %v7458
    %v7467 = vsub.f32 2.0, %v7459
    %v7468 = vmul.f32 %v7444, %v7460
    %v7469 = vmul.f32 %v7445, %v7461
    %v7470 = vmul.f32 %v7446, %v7462
    %v7471 = vmul.f32 %v7447, %v7463
    %v7472 = vmul.f32 %v7448, %v7464
    %v7473 = vmul.f32 %v7449, %v7465
    %v7474 = vmul.f32 %v7450, %v7466
    %v7475 = vmul.f32 %v7451, %v7467
    %v7476 = vmul.f32 %v7436, %v7468
    %v7477 = vmul.f32 %v7437, %v7469
    %v7478 = vmul.f32 %v7438, %v7470
    %v7479 = vmul.f32 %v7439, %v7471
    %v7480 = vmul.f32 %v7440, %v7472
    %v7481 = vmul.f32 %v7441, %v7473
    %v7482 = vmul.f32 %v7442, %v7474
    %v7483 = vmul.f32 %v7443, %v7475
    %v7484 = vsub.f32 2.0, %v7476
    %v7485 = vsub.f32 2.0, %v7477
    %v7486 = vsub.f32 2.0, %v7478
    %v7487 = vsub.f32 2.0, %v7479
    %v7488 = vsub.f32 2.0, %v7480
    %v7489 = vsub.f32 2.0, %v7481
    %v7490 = vsub.f32 2.0, %v7482
    %v7491 = vsub.f32 2.0, %v7483
    %v7492 = vmul.f32 %v7468, %v7484
    %v7493 = vmul.f32 %v7469, %v7485
    %v7494 = vmul.f32 %v7470, %v7486
    %v7495 = vmul.f32 %v7471, %v7487
    %v7496 = vmul.f32 %v7472, %v7488
    %v7497 = vmul.f32 %v7473, %v7489
    %v7498 = vmul.f32 %v7474, %v7490
    %v7499 = vmul.f32 %v7475, %v7491
    %v7500 = vsub.f32 %v7234, %v7340
    %v7501 = vsub.f32 %v7235, %v7341
    %v7502 = vsub.f32 %v7236, %v7342
    %v7503 = vsub.f32 %v7237, %v7343
    %v7504 = vsub.f32 %v7238, %v7344
    %v7505 = vsub.f32 %v7239, %v7345
    %v7506 = vsub.f32 %v7240, %v7346
    %v7507 = vsub.f32 %v7241, %v7347
    %v7508 = vmul.f32 %v7500, %v7492
    %v7509 = vmul.f32 %v7501, %v7493
    %v7510 = vmul.f32 %v7502, %v7494
    %v7511 = vmul.f32 %v7503, %v7495
    %v7512 = vmul.f32 %v7504, %v7496
    %v7513 = vmul.f32 %v7505, %v7497
    %v7514 = vmul.f32 %v7506, %v7498
    %v7515 = vmul.f32 %v7507, %v7499
    %v7516 = vlaneseq
    %v7517 = vshrl.u32 %v7516, 7
    %v7518 = vsub.s32 0, %v7517
    %v7519 = vrot.slane %v7282, %v7518
    %v7520 = vmul.f32 %v7519, %v7508
    %v7521 = vmul.f32 %v7519, %v7509
    %v7522 = vmul.f32 %v7519, %v7510
    %v7523 = vmul.f32 %v7519, %v7511
    %v7524 = vmul.f32 %v7519, %v7512
    %v7525 = vmul.f32 %v7519, %v7513
    %v7526 = vmul.f32 %v7519, %v7514
    %v7527 = vmul.f32 %v7519, %v7515
    %v7528 = vlaneseq
    %v7529 = vshrl.u32 %v7528, 7
    %v7530 = vsub.s32 0, %v7529
    %v7531 = vrot.slane %v7283, %v7530
    %v7532 = vadd.f32 %v7520, %v7531
    %v7533 = vadd.f32 %v7521, %v7531
    %v7534 = vadd.f32 %v7522, %v7531
    %v7535 = vadd.f32 %v7523, %v7531
    %v7536 = vadd.f32 %v7524, %v7531
    %v7537 = vadd.f32 %v7525, %v7531
    %v7538 = vadd.f32 %v7526, %v7531
    %v7539 = vadd.f32 %v7527, %v7531
    %v7540 = vld [vmem:[%s4 + $0x16] sm:$0x1]
    %v7541 = vld [vmem:[%s4 + $0x17] sm:$0x1]
    %v7542 = vsel %vm49, %v7274, 0.0
    %7543 = vadd.xlane.f32.xlu0 %v7542
    %v7544 = vpop.xlane.xlu0 %7543
    %v7545 = vsel %vm49, %v7275, 0.0
    %7546 = vadd.xlane.f32.xlu0 %v7545
    %v7547 = vpop.xlane.xlu0 %7546
    %v7548 = vsel %vm49, %v7276, 0.0
    %7549 = vadd.xlane.f32.xlu0 %v7548
    %v7550 = vpop.xlane.xlu0 %7549
    %v7551 = vsel %vm49, %v7277, 0.0
    %7552 = vadd.xlane.f32.xlu0 %v7551
    %v7553 = vpop.xlane.xlu0 %7552
    %v7554 = vsel %vm49, %v7278, 0.0
    %7555 = vadd.xlane.f32.xlu0 %v7554
    %v7556 = vpop.xlane.xlu0 %7555
    %v7557 = vsel %vm49, %v7279, 0.0
    %7558 = vadd.xlane.f32.xlu0 %v7557
    %v7559 = vpop.xlane.xlu0 %7558
    %v7560 = vsel %vm49, %v7280, 0.0
    %7561 = vadd.xlane.f32.xlu0 %v7560
    %v7562 = vpop.xlane.xlu0 %7561
    %v7563 = vsel %vm49, %v7281, 0.0
    %7564 = vadd.xlane.f32.xlu0 %v7563
    %v7565 = vpop.xlane.xlu0 %7564
    %v7566 = vmul.f32 %v7274, %v7274
    %v7567 = vmul.f32 %v7275, %v7275
    %v7568 = vmul.f32 %v7276, %v7276
    %v7569 = vmul.f32 %v7277, %v7277
    %v7570 = vmul.f32 %v7278, %v7278
    %v7571 = vmul.f32 %v7279, %v7279
    %v7572 = vmul.f32 %v7280, %v7280
    %v7573 = vmul.f32 %v7281, %v7281
    %v7574 = vsel %vm49, %v7566, 0.0
    %7575 = vadd.xlane.f32.xlu0 %v7574
    %v7576 = vpop.xlane.xlu0 %7575
    %v7577 = vsel %vm49, %v7567, 0.0
    %7578 = vadd.xlane.f32.xlu0 %v7577
    %v7579 = vpop.xlane.xlu0 %7578
    %v7580 = vsel %vm49, %v7568, 0.0
    %7581 = vadd.xlane.f32.xlu0 %v7580
    %v7582 = vpop.xlane.xlu0 %7581
    %v7583 = vsel %vm49, %v7569, 0.0
    %7584 = vadd.xlane.f32.xlu0 %v7583
    %v7585 = vpop.xlane.xlu0 %7584
    %v7586 = vsel %vm49, %v7570, 0.0
    %7587 = vadd.xlane.f32.xlu0 %v7586
    %v7588 = vpop.xlane.xlu0 %7587
    %v7589 = vsel %vm49, %v7571, 0.0
    %7590 = vadd.xlane.f32.xlu0 %v7589
    %v7591 = vpop.xlane.xlu0 %7590
    %v7592 = vsel %vm49, %v7572, 0.0
    %7593 = vadd.xlane.f32.xlu0 %v7592
    %v7594 = vpop.xlane.xlu0 %7593
    %v7595 = vsel %vm49, %v7573, 0.0
    %7596 = vadd.xlane.f32.xlu0 %v7595
    %v7597 = vpop.xlane.xlu0 %7596
    %v7598 = vmul.f32 %v7544, 0.0625
    %v7599 = vmul.f32 %v7547, 0.0625
    %v7600 = vmul.f32 %v7550, 0.0625
    %v7601 = vmul.f32 %v7553, 0.0625
    %v7602 = vmul.f32 %v7556, 0.0625
    %v7603 = vmul.f32 %v7559, 0.0625
    %v7604 = vmul.f32 %v7562, 0.0625
    %v7605 = vmul.f32 %v7565, 0.0625
    %v7606 = vmul.f32 %v7544, %v7598
    %v7607 = vmul.f32 %v7547, %v7599
    %v7608 = vmul.f32 %v7550, %v7600
    %v7609 = vmul.f32 %v7553, %v7601
    %v7610 = vmul.f32 %v7556, %v7602
    %v7611 = vmul.f32 %v7559, %v7603
    %v7612 = vmul.f32 %v7562, %v7604
    %v7613 = vmul.f32 %v7565, %v7605
    %v7614 = vsub.f32 %v7576, %v7606
    %v7615 = vsub.f32 %v7579, %v7607
    %v7616 = vsub.f32 %v7582, %v7608
    %v7617 = vsub.f32 %v7585, %v7609
    %v7618 = vsub.f32 %v7588, %v7610
    %v7619 = vsub.f32 %v7591, %v7611
    %v7620 = vsub.f32 %v7594, %v7612
    %v7621 = vsub.f32 %v7597, %v7613
    %v7622 = vmax.f32 %v7614, 0.0
    %v7623 = vmax.f32 %v7615, 0.0
    %v7624 = vmax.f32 %v7616, 0.0
    %v7625 = vmax.f32 %v7617, 0.0
    %v7626 = vmax.f32 %v7618, 0.0
    %v7627 = vmax.f32 %v7619, 0.0
    %v7628 = vmax.f32 %v7620, 0.0
    %v7629 = vmax.f32 %v7621, 0.0
    %v7630 = vmul.f32 %v7622, 0.06666667
    %v7631 = vmul.f32 %v7623, 0.06666667
    %v7632 = vmul.f32 %v7624, 0.06666667
    %v7633 = vmul.f32 %v7625, 0.06666667
    %v7634 = vmul.f32 %v7626, 0.06666667
    %v7635 = vmul.f32 %v7627, 0.06666667
    %v7636 = vmul.f32 %v7628, 0.06666667
    %v7637 = vmul.f32 %v7629, 0.06666667
    %v7638 = vrsqrt.pop %v7630
    %v7639 = vmul.f32 %v7630, %v7638
    %vm7640 = vcmp.eq.f32.partialorder %v7630, inf
    %v7641 = vsel %vm7640, %v7630, %v7639
    %vm7642 = vcmp.eq.f32.partialorder %v7630, 0.0
    %v7643 = vand.u32 %v7630, 2147483648
    %v7644 = vsel %vm7642, %v7643, %v7641
    %v7645 = vrsqrt.pop %v7631
    %v7646 = vmul.f32 %v7631, %v7645
    %vm7647 = vcmp.eq.f32.partialorder %v7631, inf
    %v7648 = vsel %vm7647, %v7631, %v7646
    %vm7649 = vcmp.eq.f32.partialorder %v7631, 0.0
    %v7650 = vand.u32 %v7631, 2147483648
    %v7651 = vsel %vm7649, %v7650, %v7648
    %v7652 = vrsqrt.pop %v7632
    %v7653 = vmul.f32 %v7632, %v7652
    %vm7654 = vcmp.eq.f32.partialorder %v7632, inf
    %v7655 = vsel %vm7654, %v7632, %v7653
    %vm7656 = vcmp.eq.f32.partialorder %v7632, 0.0
    %v7657 = vand.u32 %v7632, 2147483648
    %v7658 = vsel %vm7656, %v7657, %v7655
    %v7659 = vrsqrt.pop %v7633
    %v7660 = vmul.f32 %v7633, %v7659
    %vm7661 = vcmp.eq.f32.partialorder %v7633, inf
    %v7662 = vsel %vm7661, %v7633, %v7660
    %vm7663 = vcmp.eq.f32.partialorder %v7633, 0.0
    %v7664 = vand.u32 %v7633, 2147483648
    %v7665 = vsel %vm7663, %v7664, %v7662
    %v7666 = vrsqrt.pop %v7634
    %v7667 = vmul.f32 %v7634, %v7666
    %vm7668 = vcmp.eq.f32.partialorder %v7634, inf
    %v7669 = vsel %vm7668, %v7634, %v7667
    %vm7670 = vcmp.eq.f32.partialorder %v7634, 0.0
    %v7671 = vand.u32 %v7634, 2147483648
    %v7672 = vsel %vm7670, %v7671, %v7669
    %v7673 = vrsqrt.pop %v7635
    %v7674 = vmul.f32 %v7635, %v7673
    %vm7675 = vcmp.eq.f32.partialorder %v7635, inf
    %v7676 = vsel %vm7675, %v7635, %v7674
    %vm7677 = vcmp.eq.f32.partialorder %v7635, 0.0
    %v7678 = vand.u32 %v7635, 2147483648
    %v7679 = vsel %vm7677, %v7678, %v7676
    %v7680 = vrsqrt.pop %v7636
    %v7681 = vmul.f32 %v7636, %v7680
    %vm7682 = vcmp.eq.f32.partialorder %v7636, inf
    %v7683 = vsel %vm7682, %v7636, %v7681
    %vm7684 = vcmp.eq.f32.partialorder %v7636, 0.0
    %v7685 = vand.u32 %v7636, 2147483648
    %v7686 = vsel %vm7684, %v7685, %v7683
    %v7687 = vrsqrt.pop %v7637
    %v7688 = vmul.f32 %v7637, %v7687
    %vm7689 = vcmp.eq.f32.partialorder %v7637, inf
    %v7690 = vsel %vm7689, %v7637, %v7688
    %vm7691 = vcmp.eq.f32.partialorder %v7637, 0.0
    %v7692 = vand.u32 %v7637, 2147483648
    %v7693 = vsel %vm7691, %v7692, %v7690
    %v7694 = vadd.f32 %v7644, 1e-06
    %v7695 = vadd.f32 %v7651, 1e-06
    %v7696 = vadd.f32 %v7658, 1e-06
    %v7697 = vadd.f32 %v7665, 1e-06
    %v7698 = vadd.f32 %v7672, 1e-06
    %v7699 = vadd.f32 %v7679, 1e-06
    %v7700 = vadd.f32 %v7686, 1e-06
    %v7701 = vadd.f32 %v7693, 1e-06
    %v7702 = vrcp.pop %v7694
    %v7703 = vrcp.pop %v7695
    %v7704 = vrcp.pop %v7696
    %v7705 = vrcp.pop %v7697
    %v7706 = vrcp.pop %v7698
    %v7707 = vrcp.pop %v7699
    %v7708 = vrcp.pop %v7700
    %v7709 = vrcp.pop %v7701
    %v7710 = vmul.f32 %v7694, %v7702
    %v7711 = vmul.f32 %v7695, %v7703
    %v7712 = vmul.f32 %v7696, %v7704
    %v7713 = vmul.f32 %v7697, %v7705
    %v7714 = vmul.f32 %v7698, %v7706
    %v7715 = vmul.f32 %v7699, %v7707
    %v7716 = vmul.f32 %v7700, %v7708
    %v7717 = vmul.f32 %v7701, %v7709
    %v7718 = vsub.f32 2.0, %v7710
    %v7719 = vsub.f32 2.0, %v7711
    %v7720 = vsub.f32 2.0, %v7712
    %v7721 = vsub.f32 2.0, %v7713
    %v7722 = vsub.f32 2.0, %v7714
    %v7723 = vsub.f32 2.0, %v7715
    %v7724 = vsub.f32 2.0, %v7716
    %v7725 = vsub.f32 2.0, %v7717
    %v7726 = vmul.f32 %v7702, %v7718
    %v7727 = vmul.f32 %v7703, %v7719
    %v7728 = vmul.f32 %v7704, %v7720
    %v7729 = vmul.f32 %v7705, %v7721
    %v7730 = vmul.f32 %v7706, %v7722
    %v7731 = vmul.f32 %v7707, %v7723
    %v7732 = vmul.f32 %v7708, %v7724
    %v7733 = vmul.f32 %v7709, %v7725
    %v7734 = vmul.f32 %v7694, %v7726
    %v7735 = vmul.f32 %v7695, %v7727
    %v7736 = vmul.f32 %v7696, %v7728
    %v7737 = vmul.f32 %v7697, %v7729
    %v7738 = vmul.f32 %v7698, %v7730
    %v7739 = vmul.f32 %v7699, %v7731
    %v7740 = vmul.f32 %v7700, %v7732
    %v7741 = vmul.f32 %v7701, %v7733
    %v7742 = vsub.f32 2.0, %v7734
    %v7743 = vsub.f32 2.0, %v7735
    %v7744 = vsub.f32 2.0, %v7736
    %v7745 = vsub.f32 2.0, %v7737
    %v7746 = vsub.f32 2.0, %v7738
    %v7747 = vsub.f32 2.0, %v7739
    %v7748 = vsub.f32 2.0, %v7740
    %v7749 = vsub.f32 2.0, %v7741
    %v7750 = vmul.f32 %v7726, %v7742
    %v7751 = vmul.f32 %v7727, %v7743
    %v7752 = vmul.f32 %v7728, %v7744
    %v7753 = vmul.f32 %v7729, %v7745
    %v7754 = vmul.f32 %v7730, %v7746
    %v7755 = vmul.f32 %v7731, %v7747
    %v7756 = vmul.f32 %v7732, %v7748
    %v7757 = vmul.f32 %v7733, %v7749
    %v7758 = vsub.f32 %v7274, %v7598
    %v7759 = vsub.f32 %v7275, %v7599
    %v7760 = vsub.f32 %v7276, %v7600
    %v7761 = vsub.f32 %v7277, %v7601
    %v7762 = vsub.f32 %v7278, %v7602
    %v7763 = vsub.f32 %v7279, %v7603
    %v7764 = vsub.f32 %v7280, %v7604
    %v7765 = vsub.f32 %v7281, %v7605
    %v7766 = vmul.f32 %v7758, %v7750
    %v7767 = vmul.f32 %v7759, %v7751
    %v7768 = vmul.f32 %v7760, %v7752
    %v7769 = vmul.f32 %v7761, %v7753
    %v7770 = vmul.f32 %v7762, %v7754
    %v7771 = vmul.f32 %v7763, %v7755
    %v7772 = vmul.f32 %v7764, %v7756
    %v7773 = vmul.f32 %v7765, %v7757
    %v7774 = vlaneseq
    %v7775 = vshrl.u32 %v7774, 7
    %v7776 = vsub.s32 0, %v7775
    %v7777 = vrot.slane %v7540, %v7776
    %v7778 = vmul.f32 %v7777, %v7766
    %v7779 = vmul.f32 %v7777, %v7767
    %v7780 = vmul.f32 %v7777, %v7768
    %v7781 = vmul.f32 %v7777, %v7769
    %v7782 = vmul.f32 %v7777, %v7770
    %v7783 = vmul.f32 %v7777, %v7771
    %v7784 = vmul.f32 %v7777, %v7772
    %v7785 = vmul.f32 %v7777, %v7773
    %v7786 = vlaneseq
    %v7787 = vshrl.u32 %v7786, 7
    %v7788 = vsub.s32 0, %v7787
    %v7789 = vrot.slane %v7541, %v7788
    %v7790 = vadd.f32 %v7778, %v7789
    %v7791 = vadd.f32 %v7779, %v7789
    %v7792 = vadd.f32 %v7780, %v7789
    %v7793 = vadd.f32 %v7781, %v7789
    %v7794 = vadd.f32 %v7782, %v7789
    %v7795 = vadd.f32 %v7783, %v7789
    %v7796 = vadd.f32 %v7784, %v7789
    %v7797 = vadd.f32 %v7785, %v7789
    %7806 = vrot.lane.b32.xlu0 %v7790, 16
    %v7807 = vpop.permute.xlu0 %7806
    %7808 = vrot.lane.b32.xlu0 %v7791, 16
    %v7809 = vpop.permute.xlu0 %7808
    %7810 = vrot.lane.b32.xlu0 %v7792, 16
    %v7811 = vpop.permute.xlu0 %7810
    %7812 = vrot.lane.b32.xlu0 %v7793, 16
    %v7813 = vpop.permute.xlu0 %7812
    %7814 = vrot.lane.b32.xlu0 %v7794, 16
    %v7815 = vpop.permute.xlu0 %7814
    %7816 = vrot.lane.b32.xlu0 %v7795, 16
    %v7817 = vpop.permute.xlu0 %7816
    %7818 = vrot.lane.b32.xlu0 %v7796, 16
    %v7819 = vpop.permute.xlu0 %7818
    %7820 = vrot.lane.b32.xlu0 %v7797, 16
    %v7821 = vpop.permute.xlu0 %7820
    %v7830 = vsel %vm49, %v7532, %v7807
    %v7831 = vsel %vm49, %v7533, %v7809
    %v7832 = vsel %vm49, %v7534, %v7811
    %v7833 = vsel %vm49, %v7535, %v7813
    %v7834 = vsel %vm49, %v7536, %v7815
    %v7835 = vsel %vm49, %v7537, %v7817
    %v7836 = vsel %vm49, %v7538, %v7819
    %v7837 = vsel %vm49, %v7539, %v7821
    %v7838 = vld [vmem:[%s4 + $0xe] sm:$0x1]
    %v7839 = vlaneseq
    %v7840 = vshrl.u32 %v7839, 7
    %v7841 = vsub.s32 0, %v7840
    %v7842 = vrot.slane %v7838, %v7841
    %v7844 = vsel %vm379, %v7830, 0
    %v7847 = vsel %vm379, %v7831, 0
    %v7850 = vsel %vm379, %v7832, 0
    %v7853 = vsel %vm379, %v7833, 0
    %v7856 = vsel %vm379, %v7834, 0
    %v7859 = vsel %vm379, %v7835, 0
    %v7862 = vsel %vm379, %v7836, 0
    %v7865 = vsel %vm379, %v7837, 0
    %7867 = vmatprep.subr.mxu0 0.0
    %7868 = vmatpush1.msra.mxu0 0.0
    %7869 = vmatprep.subr.mxu0 0.0
    %7870 = vmatpush1.msra.mxu0 0.0
    %7871 = vmatprep.subr.mxu0 0.0
    %7872 = vmatpush1.msra.mxu0 0.0
    %7873 = vmatprep.subr.mxu0 0.0
    %7874 = vmatpush1.msra.mxu0 0.0
    %7875 = vmatprep.subr.mxu0 0.0
    %7876 = vmatpush1.msra.mxu0 0.0
    %7877 = vmatprep.subr.mxu0 0.0
    %7878 = vmatpush1.msra.mxu0 0.0
    %7879 = vmatprep.subr.mxu0 0.0
    %7880 = vmatpush1.msra.mxu0 0.0
    %7881 = vmatprep.subr.mxu0 0.0
    %7882 = vmatpush1.msra.mxu0 0.0
    %7883 = vmatprep.subr.mxu0 0.0
    %7884 = vmatpush1.msra.mxu0 0.0
    %7885 = vmatprep.subr.mxu0 0.0
    %7886 = vmatpush1.msra.mxu0 0.0
    %7887 = vmatprep.subr.mxu0 0.0
    %7888 = vmatpush1.msra.mxu0 0.0
    %7889 = vmatprep.subr.mxu0 0.0
    %7890 = vmatpush1.msra.mxu0 0.0
    %7891 = vmatprep.subr.mxu0 0.0
    %7892 = vmatpush1.msra.mxu0 %v4111
    %7893 = vmatprep.subr.mxu0 0.0
    %7894 = vmatpush1.msra.mxu0 %v4108
    %7895 = vmatprep.subr.mxu0 0.0
    %7896 = vmatpush1.msra.mxu0 %v4105
    %7897 = vmatprep.subr.mxu0 0.0
    %7898 = vmatpush1.msra.mxu0 %v4102
    %7899 = vmatprep.subr.mxu0 0.0
    %7900 = vmatpush2.msra.mxu0 0.0
    %7901 = vmatprep.subr.mxu0 0.0
    %7902 = vmatpush2.msra.mxu0 0.0
    %7903 = vmatprep.subr.mxu0 0.0
    %7904 = vmatpush2.msra.mxu0 0.0
    %7905 = vmatprep.subr.mxu0 0.0
    %7906 = vmatpush2.msra.mxu0 0.0
    %7907 = vmatprep.subr.mxu0 0.0
    %7908 = vmatpush2.msra.mxu0 0.0
    %7909 = vmatprep.subr.mxu0 0.0
    %7910 = vmatpush2.msra.mxu0 0.0
    %7911 = vmatprep.subr.mxu0 0.0
    %7912 = vmatpush2.msra.mxu0 0.0
    %7913 = vmatprep.subr.mxu0 0.0
    %7914 = vmatpush2.msra.mxu0 0.0
    %7915 = vmatprep.subr.mxu0 0.0
    %7916 = vmatpush2.msra.mxu0 0.0
    %7917 = vmatprep.subr.mxu0 0.0
    %7918 = vmatpush2.msra.mxu0 0.0
    %7919 = vmatprep.subr.mxu0 0.0
    %7920 = vmatpush2.msra.mxu0 0.0
    %7921 = vmatprep.subr.mxu0 0.0
    %7922 = vmatpush2.msra.mxu0 0.0
    %7923 = vmatprep.subr.mxu0 0.0
    %7924 = vmatpush2.msra.mxu0 0.0
    %7925 = vmatprep.subr.mxu0 0.0
    %7926 = vmatpush2.msra.mxu0 0.0
    %7927 = vmatprep.subr.mxu0 0.0
    %7928 = vmatpush2.msra.mxu0 0.0
    %7929 = vmatprep.subr.mxu0 0.0
    %7930 = vmatpush2.msra.mxu0 0.0
    %7931 = vmatprep.mubr.f32.mxu0 0.0
    %7932 = vmatmul.mubr.f32.gmra.mxu0 %v7844
    %v7933 = vpop.f32.mrf.mxu0
    %v7934 = vadd.f32 %v7842, %v7933
    %v7935 = vpop.f32.mrf.mxu0
    %7936 = vmatprep.mubr.f32.mxu0 0.0
    %7937 = vmatmul.mubr.f32.gmra.mxu0 %v7847
    %v7938 = vpop.f32.mrf.mxu0
    %v7939 = vadd.f32 %v7842, %v7938
    %v7940 = vpop.f32.mrf.mxu0
    %7941 = vmatprep.mubr.f32.mxu0 0.0
    %7942 = vmatmul.mubr.f32.gmra.mxu0 %v7850
    %v7943 = vpop.f32.mrf.mxu0
    %v7944 = vadd.f32 %v7842, %v7943
    %v7945 = vpop.f32.mrf.mxu0
    %7946 = vmatprep.mubr.f32.mxu0 0.0
    %7947 = vmatmul.mubr.f32.gmra.mxu0 %v7853
    %v7948 = vpop.f32.mrf.mxu0
    %v7949 = vadd.f32 %v7842, %v7948
    %v7950 = vpop.f32.mrf.mxu0
    %7951 = vmatprep.mubr.f32.mxu0 0.0
    %7952 = vmatmul.mubr.f32.gmra.mxu0 %v7856
    %v7953 = vpop.f32.mrf.mxu0
    %v7954 = vadd.f32 %v7842, %v7953
    %v7955 = vpop.f32.mrf.mxu0
    %7956 = vmatprep.mubr.f32.mxu0 0.0
    %7957 = vmatmul.mubr.f32.gmra.mxu0 %v7859
    %v7958 = vpop.f32.mrf.mxu0
    %v7959 = vadd.f32 %v7842, %v7958
    %v7960 = vpop.f32.mrf.mxu0
    %7961 = vmatprep.mubr.f32.mxu0 0.0
    %7962 = vmatmul.mubr.f32.gmra.mxu0 %v7862
    %v7963 = vpop.f32.mrf.mxu0
    %v7964 = vadd.f32 %v7842, %v7963
    %v7965 = vpop.f32.mrf.mxu0
    %7966 = vmatprep.mubr.f32.mxu0 0.0
    %7967 = vmatmul.mubr.f32.gmra.mxu0 %v7865
    %v7968 = vpop.f32.mrf.mxu0
    %v7969 = vadd.f32 %v7842, %v7968
    %v7970 = vpop.f32.mrf.mxu0
    %7971 = vdwg.mxu0
    %v7972 = vmax.f32 %v7934, 0.0
    %v7973 = vmax.f32 %v7939, 0.0
    %v7974 = vmax.f32 %v7944, 0.0
    %v7975 = vmax.f32 %v7949, 0.0
    %v7976 = vmax.f32 %v7954, 0.0
    %v7977 = vmax.f32 %v7959, 0.0
    %v7978 = vmax.f32 %v7964, 0.0
    %v7979 = vmax.f32 %v7969, 0.0
    %s7980 = scalar_lea.vmem %s3, 128
    %v7981 = vld [vmem:[%s7980] sm:$0xff]
    %v7982 = vld [vmem:[%s7980 + $0x8] sm:$0xff]
    %v7983 = vld [vmem:[%s7980 + $0x10] sm:$0xff]
    %v7984 = vld [vmem:[%s7980 + $0x18] sm:$0xff]
    %v7985 = vld [vmem:[%s7980 + $0x20] sm:$0xff]
    %v7986 = vld [vmem:[%s7980 + $0x28] sm:$0xff]
    %v7987 = vld [vmem:[%s7980 + $0x30] sm:$0xff]
    %v7988 = vld [vmem:[%s7980 + $0x38] sm:$0xff]
    %v7989 = vld [vmem:[%s7980 + $0x40] sm:$0xff]
    %v7990 = vld [vmem:[%s7980 + $0x48] sm:$0xff]
    %v7991 = vld [vmem:[%s7980 + $0x50] sm:$0xff]
    %v7992 = vld [vmem:[%s7980 + $0x58] sm:$0xff]
    %v7993 = vld [vmem:[%s7980 + $0x60] sm:$0xff]
    %v7994 = vld [vmem:[%s7980 + $0x68] sm:$0xff]
    %v7995 = vld [vmem:[%s7980 + $0x70] sm:$0xff]
    %v7996 = vld [vmem:[%s7980 + $0x78] sm:$0xff]
    %v7997 = vld [vmem:[%s4 + $0xf] sm:$0x1]
    %v7998 = vlaneseq
    %v7999 = vshrl.u32 %v7998, 7
    %v8000 = vsub.s32 0, %v7999
    %v8001 = vrot.slane %v7997, %v8000
    %8002 = vmatprep.subr.mxu0 0.0
    %8003 = vmatpush1.msra.mxu0 %v7996
    %8004 = vmatprep.subr.mxu0 0.0
    %8005 = vmatpush1.msra.mxu0 %v7995
    %8006 = vmatprep.subr.mxu0 0.0
    %8007 = vmatpush1.msra.mxu0 %v7994
    %8008 = vmatprep.subr.mxu0 0.0
    %8009 = vmatpush1.msra.mxu0 %v7993
    %8010 = vmatprep.subr.mxu0 0.0
    %8011 = vmatpush1.msra.mxu0 %v7992
    %8012 = vmatprep.subr.mxu0 0.0
    %8013 = vmatpush1.msra.mxu0 %v7991
    %8014 = vmatprep.subr.mxu0 0.0
    %8015 = vmatpush1.msra.mxu0 %v7990
    %8016 = vmatprep.subr.mxu0 0.0
    %8017 = vmatpush1.msra.mxu0 %v7989
    %8018 = vmatprep.subr.mxu0 0.0
    %8019 = vmatpush1.msra.mxu0 %v7988
    %8020 = vmatprep.subr.mxu0 0.0
    %8021 = vmatpush1.msra.mxu0 %v7987
    %8022 = vmatprep.subr.mxu0 0.0
    %8023 = vmatpush1.msra.mxu0 %v7986
    %8024 = vmatprep.subr.mxu0 0.0
    %8025 = vmatpush1.msra.mxu0 %v7985
    %8026 = vmatprep.subr.mxu0 0.0
    %8027 = vmatpush1.msra.mxu0 %v7984
    %8028 = vmatprep.subr.mxu0 0.0
    %8029 = vmatpush1.msra.mxu0 %v7983
    %8030 = vmatprep.subr.mxu0 0.0
    %8031 = vmatpush1.msra.mxu0 %v7982
    %8032 = vmatprep.subr.mxu0 0.0
    %8033 = vmatpush1.msra.mxu0 %v7981
    %8034 = vmatprep.subr.mxu0 0.0
    %8035 = vmatpush2.msra.mxu0 0.0
    %8036 = vmatprep.subr.mxu0 0.0
    %8037 = vmatpush2.msra.mxu0 0.0
    %8038 = vmatprep.subr.mxu0 0.0
    %8039 = vmatpush2.msra.mxu0 0.0
    %8040 = vmatprep.subr.mxu0 0.0
    %8041 = vmatpush2.msra.mxu0 0.0
    %8042 = vmatprep.subr.mxu0 0.0
    %8043 = vmatpush2.msra.mxu0 0.0
    %8044 = vmatprep.subr.mxu0 0.0
    %8045 = vmatpush2.msra.mxu0 0.0
    %8046 = vmatprep.subr.mxu0 0.0
    %8047 = vmatpush2.msra.mxu0 0.0
    %8048 = vmatprep.subr.mxu0 0.0
    %8049 = vmatpush2.msra.mxu0 0.0
    %8050 = vmatprep.subr.mxu0 0.0
    %8051 = vmatpush2.msra.mxu0 0.0
    %8052 = vmatprep.subr.mxu0 0.0
    %8053 = vmatpush2.msra.mxu0 0.0
    %8054 = vmatprep.subr.mxu0 0.0
    %8055 = vmatpush2.msra.mxu0 0.0
    %8056 = vmatprep.subr.mxu0 0.0
    %8057 = vmatpush2.msra.mxu0 0.0
    %8058 = vmatprep.subr.mxu0 0.0
    %8059 = vmatpush2.msra.mxu0 0.0
    %8060 = vmatprep.subr.mxu0 0.0
    %8061 = vmatpush2.msra.mxu0 0.0
    %8062 = vmatprep.subr.mxu0 0.0
    %8063 = vmatpush2.msra.mxu0 0.0
    %8064 = vmatprep.subr.mxu0 0.0
    %8065 = vmatpush2.msra.mxu0 0.0
    %8066 = vmatprep.mubr.f32.mxu0 0.0
    %8067 = vmatmul.mubr.f32.gmra.mxu0 %v7972
    %v8068 = vpop.f32.mrf.mxu0
    %v8069 = vadd.f32 %v8001, %v8068
    %v8070 = vpop.f32.mrf.mxu0
    %8071 = vmatprep.mubr.f32.mxu0 0.0
    %8072 = vmatmul.mubr.f32.gmra.mxu0 %v7973
    %v8073 = vpop.f32.mrf.mxu0
    %v8074 = vadd.f32 %v8001, %v8073
    %v8075 = vpop.f32.mrf.mxu0
    %8076 = vmatprep.mubr.f32.mxu0 0.0
    %8077 = vmatmul.mubr.f32.gmra.mxu0 %v7974
    %v8078 = vpop.f32.mrf.mxu0
    %v8079 = vadd.f32 %v8001, %v8078
    %v8080 = vpop.f32.mrf.mxu0
    %8081 = vmatprep.mubr.f32.mxu0 0.0
    %8082 = vmatmul.mubr.f32.gmra.mxu0 %v7975
    %v8083 = vpop.f32.mrf.mxu0
    %v8084 = vadd.f32 %v8001, %v8083
    %v8085 = vpop.f32.mrf.mxu0
    %8086 = vmatprep.mubr.f32.mxu0 0.0
    %8087 = vmatmul.mubr.f32.gmra.mxu0 %v7976
    %v8088 = vpop.f32.mrf.mxu0
    %v8089 = vadd.f32 %v8001, %v8088
    %v8090 = vpop.f32.mrf.mxu0
    %8091 = vmatprep.mubr.f32.mxu0 0.0
    %8092 = vmatmul.mubr.f32.gmra.mxu0 %v7977
    %v8093 = vpop.f32.mrf.mxu0
    %v8094 = vadd.f32 %v8001, %v8093
    %v8095 = vpop.f32.mrf.mxu0
    %8096 = vmatprep.mubr.f32.mxu0 0.0
    %8097 = vmatmul.mubr.f32.gmra.mxu0 %v7978
    %v8098 = vpop.f32.mrf.mxu0
    %v8099 = vadd.f32 %v8001, %v8098
    %v8100 = vpop.f32.mrf.mxu0
    %8101 = vmatprep.mubr.f32.mxu0 0.0
    %8102 = vmatmul.mubr.f32.gmra.mxu0 %v7979
    %v8103 = vpop.f32.mrf.mxu0
    %v8104 = vadd.f32 %v8001, %v8103
    %v8105 = vpop.f32.mrf.mxu0
    %8106 = vdwg.mxu0
    %v8107 = vadd.f32 %v7234, %v8069
    %v8108 = vadd.f32 %v7235, %v8074
    %v8109 = vadd.f32 %v7236, %v8079
    %v8110 = vadd.f32 %v7237, %v8084
    %v8111 = vadd.f32 %v7238, %v8089
    %v8112 = vadd.f32 %v7239, %v8094
    %v8113 = vadd.f32 %v7240, %v8099
    %v8114 = vadd.f32 %v7241, %v8104
    %8123 = vrot.lane.b32.xlu0 %v8069, 112
    %v8124 = vpop.permute.xlu0 %8123
    %8125 = vrot.lane.b32.xlu0 %v8074, 112
    %v8126 = vpop.permute.xlu0 %8125
    %8127 = vrot.lane.b32.xlu0 %v8079, 112
    %v8128 = vpop.permute.xlu0 %8127
    %8129 = vrot.lane.b32.xlu0 %v8084, 112
    %v8130 = vpop.permute.xlu0 %8129
    %8131 = vrot.lane.b32.xlu0 %v8089, 112
    %v8132 = vpop.permute.xlu0 %8131
    %8133 = vrot.lane.b32.xlu0 %v8094, 112
    %v8134 = vpop.permute.xlu0 %8133
    %8135 = vrot.lane.b32.xlu0 %v8099, 112
    %v8136 = vpop.permute.xlu0 %8135
    %8137 = vrot.lane.b32.xlu0 %v8104, 112
    %v8138 = vpop.permute.xlu0 %8137
    %v8147 = vadd.f32 %v7274, %v8124
    %v8148 = vadd.f32 %v7275, %v8126
    %v8149 = vadd.f32 %v7276, %v8128
    %v8150 = vadd.f32 %v7277, %v8130
    %v8151 = vadd.f32 %v7278, %v8132
    %v8152 = vadd.f32 %v7279, %v8134
    %v8153 = vadd.f32 %v7280, %v8136
    %v8154 = vadd.f32 %v7281, %v8138
    %v8155 = vadd.f32 %v8107, %v8147
    %v8156 = vadd.f32 %v8108, %v8148
    %v8157 = vadd.f32 %v8109, %v8149
    %v8158 = vadd.f32 %v8110, %v8150
    %v8159 = vadd.f32 %v8111, %v8151
    %v8160 = vadd.f32 %v8112, %v8152
    %v8161 = vadd.f32 %v8113, %v8153
    %v8162 = vadd.f32 %v8114, %v8154
    %8163 = vxpose.xlu0.b32.start [1/16] %v8155, 128
    %8164 = vxpose.xlu0.b32.cont [2/16] %v8156, 128
    %8165 = vxpose.xlu0.b32.cont [3/16] %v8157, 128
    %8166 = vxpose.xlu0.b32.cont [4/16] %v8158, 128
    %8167 = vxpose.xlu0.b32.cont [5/16] 0.0, 128
    %8168 = vxpose.xlu0.b32.cont [6/16] 0.0, 128
    %8169 = vxpose.xlu0.b32.cont [7/16] 0.0, 128
    %8170 = vxpose.xlu0.b32.cont [8/16] 0.0, 128
    %8171 = vxpose.xlu0.b32.cont [9/16] 0.0, 128
    %8172 = vxpose.xlu0.b32.cont [10/16] 0.0, 128
    %8173 = vxpose.xlu0.b32.cont [11/16] 0.0, 128
    %8174 = vxpose.xlu0.b32.cont [12/16] 0.0, 128
    %8175 = vxpose.xlu0.b32.cont [13/16] 0.0, 128
    %8176 = vxpose.xlu0.b32.cont [14/16] 0.0, 128
    %8177 = vxpose.xlu0.b32.cont [15/16] 0.0, 128
    %8178 = vxpose.xlu0.b32.end [16/16] 0.0, 128
    %v8179 = vpop.trf.xlu0
    %v8180 = vpop.trf.xlu0
    %v8181 = vpop.trf.xlu0
    %v8182 = vpop.trf.xlu0
    %v8183 = vpop.trf.xlu0
    %v8184 = vpop.trf.xlu0
    %v8185 = vpop.trf.xlu0
    %v8186 = vpop.trf.xlu0
    %v8187 = vpop.trf.xlu0
    %v8188 = vpop.trf.xlu0
    %v8189 = vpop.trf.xlu0
    %v8190 = vpop.trf.xlu0
    %v8191 = vpop.trf.xlu0
    %v8192 = vpop.trf.xlu0
    %v8193 = vpop.trf.xlu0
    %v8194 = vpop.trf.xlu0
    %8195 = vxpose.xlu0.b32.start [1/16] %v8159, 128
    %8196 = vxpose.xlu0.b32.cont [2/16] %v8160, 128
    %8197 = vxpose.xlu0.b32.cont [3/16] %v8161, 128
    %8198 = vxpose.xlu0.b32.cont [4/16] %v8162, 128
    %8199 = vxpose.xlu0.b32.cont [5/16] 0.0, 128
    %8200 = vxpose.xlu0.b32.cont [6/16] 0.0, 128
    %8201 = vxpose.xlu0.b32.cont [7/16] 0.0, 128
    %8202 = vxpose.xlu0.b32.cont [8/16] 0.0, 128
    %8203 = vxpose.xlu0.b32.cont [9/16] 0.0, 128
    %8204 = vxpose.xlu0.b32.cont [10/16] 0.0, 128
    %8205 = vxpose.xlu0.b32.cont [11/16] 0.0, 128
    %8206 = vxpose.xlu0.b32.cont [12/16] 0.0, 128
    %8207 = vxpose.xlu0.b32.cont [13/16] 0.0, 128
    %8208 = vxpose.xlu0.b32.cont [14/16] 0.0, 128
    %8209 = vxpose.xlu0.b32.cont [15/16] 0.0, 128
    %8210 = vxpose.xlu0.b32.end [16/16] 0.0, 128
    %v8211 = vpop.trf.xlu0
    %v8212 = vpop.trf.xlu0
    %v8213 = vpop.trf.xlu0
    %v8214 = vpop.trf.xlu0
    %v8215 = vpop.trf.xlu0
    %v8216 = vpop.trf.xlu0
    %v8217 = vpop.trf.xlu0
    %v8218 = vpop.trf.xlu0
    %v8219 = vpop.trf.xlu0
    %v8220 = vpop.trf.xlu0
    %v8221 = vpop.trf.xlu0
    %v8222 = vpop.trf.xlu0
    %v8223 = vpop.trf.xlu0
    %v8224 = vpop.trf.xlu0
    %v8225 = vpop.trf.xlu0
    %v8226 = vpop.trf.xlu0
    %v8227 = vld [vmem:[%s4 + $0x18] sm:$0x1]
    %v8228 = vld [vmem:[%s4 + $0x19] sm:$0x1]
    %v8229 = vsel %vm379, %v8179, 0.0
    %8230 = vadd.xlane.f32.xlu0 %v8229
    %v8231 = vpop.xlane.xlu0 %8230
    %v8232 = vsel %vm379, %v8180, 0.0
    %8233 = vadd.xlane.f32.xlu0 %v8232
    %v8234 = vpop.xlane.xlu0 %8233
    %v8235 = vsel %vm379, %v8211, 0.0
    %8236 = vadd.xlane.f32.xlu0 %v8235
    %v8237 = vpop.xlane.xlu0 %8236
    %v8238 = vsel %vm379, %v8212, 0.0
    %8239 = vadd.xlane.f32.xlu0 %v8238
    %v8240 = vpop.xlane.xlu0 %8239
    %v8241 = vmul.f32 %v8179, %v8179
    %v8242 = vmul.f32 %v8180, %v8180
    %v8243 = vmul.f32 %v8211, %v8211
    %v8244 = vmul.f32 %v8212, %v8212
    %v8245 = vsel %vm379, %v8241, 0.0
    %8246 = vadd.xlane.f32.xlu0 %v8245
    %v8247 = vpop.xlane.xlu0 %8246
    %v8248 = vsel %vm379, %v8242, 0.0
    %8249 = vadd.xlane.f32.xlu0 %v8248
    %v8250 = vpop.xlane.xlu0 %8249
    %v8251 = vsel %vm379, %v8243, 0.0
    %8252 = vadd.xlane.f32.xlu0 %v8251
    %v8253 = vpop.xlane.xlu0 %8252
    %v8254 = vsel %vm379, %v8244, 0.0
    %8255 = vadd.xlane.f32.xlu0 %v8254
    %v8256 = vpop.xlane.xlu0 %8255
    %v8257 = vmul.f32 %v8231, 0.03125
    %v8258 = vmul.f32 %v8234, 0.03125
    %v8259 = vmul.f32 %v8237, 0.03125
    %v8260 = vmul.f32 %v8240, 0.03125
    %v8261 = vmul.f32 %v8231, %v8257
    %v8262 = vmul.f32 %v8234, %v8258
    %v8263 = vmul.f32 %v8237, %v8259
    %v8264 = vmul.f32 %v8240, %v8260
    %v8265 = vsub.f32 %v8247, %v8261
    %v8266 = vsub.f32 %v8250, %v8262
    %v8267 = vsub.f32 %v8253, %v8263
    %v8268 = vsub.f32 %v8256, %v8264
    %v8269 = vmax.f32 %v8265, 0.0
    %v8270 = vmax.f32 %v8266, 0.0
    %v8271 = vmax.f32 %v8267, 0.0
    %v8272 = vmax.f32 %v8268, 0.0
    %v8273 = vmul.f32 %v8269, 0.032258064
    %v8274 = vmul.f32 %v8270, 0.032258064
    %v8275 = vmul.f32 %v8271, 0.032258064
    %v8276 = vmul.f32 %v8272, 0.032258064
    %v8277 = vrsqrt.pop %v8273
    %v8278 = vmul.f32 %v8273, %v8277
    %vm8279 = vcmp.eq.f32.partialorder %v8273, inf
    %v8280 = vsel %vm8279, %v8273, %v8278
    %vm8281 = vcmp.eq.f32.partialorder %v8273, 0.0
    %v8282 = vand.u32 %v8273, 2147483648
    %v8283 = vsel %vm8281, %v8282, %v8280
    %v8284 = vrsqrt.pop %v8274
    %v8285 = vmul.f32 %v8274, %v8284
    %vm8286 = vcmp.eq.f32.partialorder %v8274, inf
    %v8287 = vsel %vm8286, %v8274, %v8285
    %vm8288 = vcmp.eq.f32.partialorder %v8274, 0.0
    %v8289 = vand.u32 %v8274, 2147483648
    %v8290 = vsel %vm8288, %v8289, %v8287
    %v8291 = vrsqrt.pop %v8275
    %v8292 = vmul.f32 %v8275, %v8291
    %vm8293 = vcmp.eq.f32.partialorder %v8275, inf
    %v8294 = vsel %vm8293, %v8275, %v8292
    %vm8295 = vcmp.eq.f32.partialorder %v8275, 0.0
    %v8296 = vand.u32 %v8275, 2147483648
    %v8297 = vsel %vm8295, %v8296, %v8294
    %v8298 = vrsqrt.pop %v8276
    %v8299 = vmul.f32 %v8276, %v8298
    %vm8300 = vcmp.eq.f32.partialorder %v8276, inf
    %v8301 = vsel %vm8300, %v8276, %v8299
    %vm8302 = vcmp.eq.f32.partialorder %v8276, 0.0
    %v8303 = vand.u32 %v8276, 2147483648
    %v8304 = vsel %vm8302, %v8303, %v8301
    %v8305 = vadd.f32 %v8283, 1e-06
    %v8306 = vadd.f32 %v8290, 1e-06
    %v8307 = vadd.f32 %v8297, 1e-06
    %v8308 = vadd.f32 %v8304, 1e-06
    %v8309 = vrcp.pop %v8305
    %v8310 = vrcp.pop %v8306
    %v8311 = vrcp.pop %v8307
    %v8312 = vrcp.pop %v8308
    %v8313 = vmul.f32 %v8305, %v8309
    %v8314 = vmul.f32 %v8306, %v8310
    %v8315 = vmul.f32 %v8307, %v8311
    %v8316 = vmul.f32 %v8308, %v8312
    %v8317 = vsub.f32 2.0, %v8313
    %v8318 = vsub.f32 2.0, %v8314
    %v8319 = vsub.f32 2.0, %v8315
    %v8320 = vsub.f32 2.0, %v8316
    %v8321 = vmul.f32 %v8309, %v8317
    %v8322 = vmul.f32 %v8310, %v8318
    %v8323 = vmul.f32 %v8311, %v8319
    %v8324 = vmul.f32 %v8312, %v8320
    %v8325 = vmul.f32 %v8305, %v8321
    %v8326 = vmul.f32 %v8306, %v8322
    %v8327 = vmul.f32 %v8307, %v8323
    %v8328 = vmul.f32 %v8308, %v8324
    %v8329 = vsub.f32 2.0, %v8325
    %v8330 = vsub.f32 2.0, %v8326
    %v8331 = vsub.f32 2.0, %v8327
    %v8332 = vsub.f32 2.0, %v8328
    %v8333 = vmul.f32 %v8321, %v8329
    %v8334 = vmul.f32 %v8322, %v8330
    %v8335 = vmul.f32 %v8323, %v8331
    %v8336 = vmul.f32 %v8324, %v8332
    %v8337 = vsub.f32 %v8179, %v8257
    %v8338 = vsub.f32 %v8180, %v8258
    %v8339 = vsub.f32 %v8211, %v8259
    %v8340 = vsub.f32 %v8212, %v8260
    %v8341 = vmul.f32 %v8337, %v8333
    %v8342 = vmul.f32 %v8338, %v8334
    %v8343 = vmul.f32 %v8339, %v8335
    %v8344 = vmul.f32 %v8340, %v8336
    %v8345 = vlaneseq
    %v8346 = vshrl.u32 %v8345, 7
    %v8347 = vsub.s32 0, %v8346
    %v8348 = vrot.slane %v8227, %v8347
    %v8349 = vmul.f32 %v8348, %v8341
    %v8350 = vmul.f32 %v8348, %v8342
    %v8351 = vmul.f32 %v8348, %v8343
    %v8352 = vmul.f32 %v8348, %v8344
    %v8353 = vlaneseq
    %v8354 = vshrl.u32 %v8353, 7
    %v8355 = vsub.s32 0, %v8354
    %v8356 = vrot.slane %v8228, %v8355
    %v8357 = vadd.f32 %v8349, %v8356
    %v8358 = vadd.f32 %v8350, %v8356
    %v8359 = vadd.f32 %v8351, %v8356
    %v8360 = vadd.f32 %v8352, %v8356
    %8361 = vst.msk [vmem:[#allocation2] sm:$0xff] %vm379, %v8357
    %8362 = vst.msk [vmem:[#allocation2 + $0x8] sm:$0xff] %vm379, %v8358
    %8363 = vst.msk [vmem:[#allocation2 + $0x10] sm:$0xff] %vm379, %v8359
    %8364 = vst.msk [vmem:[#allocation2 + $0x18] sm:$0xff] %vm379, %v8360
    // Predicated region
    $region22: #{double_sp_encoder.1} parent=1 // pred_check
      _
    $region23: #{double_sp_encoder.1} parent=1 // pred_check_branch
      %8366 = sbr.rel (0) target = $region25
    $region24: #{double_sp_encoder.1} parent=1 // pred_region
      %s8368 = ssub.s32 512, 512
      %8369 = vsyncadd [#allocation3], %s8368
      %s8370 = sshll.u32 [#allocation2], 4
      %s8371 = int_to_ptr.vmem [resolvable:$true] %s8370
      %8376 = dma.vmem_to_hbm [thread:$0]  %s8371, 512, %s5, [#allocation3], 128, 128, 8
    $region25: #{double_sp_encoder.1} parent=1 // pred_fallthru
      _
    // Predicated region
    $region26: #{double_sp_encoder.1} parent=1 // pred_check
      _
    $region27: #{double_sp_encoder.1} parent=1 // pred_check_branch
      %8378 = sbr.rel (0) target = $region29
    $region28: #{double_sp_encoder.1} parent=1 // pred_region
      %8379 = dma.done [#allocation3], 512
    $region29: #{double_sp_encoder.1} parent=1 // pred_fallthru
      _
    %8380 = vsyncpa [#allocation3], 1

</llo_original>
